<compile_context>
chip_gen: v7x
topology: tpu7x:2x2x1
jax: 0.10.0
libtpu: 0.0.40
codegen_flags: <defaults>
</compile_context>

<pallas_src>
import functools

import jax
import jax.numpy as jnp
from jax import lax
from jax.experimental import pallas as pl
from jax.experimental.pallas import tpu as pltpu

BN_EPS = 1e-5
LANES = 128                       # lane-dense padded channel width
NEG_BIAS = -1e9                   # finite sentinel for padded logits
MAX_Q_TILE = 512                  # rows per conv grid step (multiple of 8)
VMEM_LIMIT_BYTES = 32 * 1024 * 1024

_VMEM = pl.BlockSpec(memory_space=pltpu.MemorySpace.VMEM)


def _round_up(x, m):
    return (x + m - 1) // m * m


# ---------------------------------------------------------------------------
# Pallas kernels
# ---------------------------------------------------------------------------
def conv_stats_kernel(p_ref, w_ref, stats_ref):
    """Pass 1: per-channel sum / sum-sq of z = patches @ W over the whole batch.

    p_ref    : [4, QT, Kp] bf16   patch tile, grouped by 2x2 pool corner
    w_ref    : [Kp, 128]   bf16   conv weight (Cout zero-padded to 128)
    stats_ref: [8, 128]    f32    row 0 = sum(z), row 1 = sum(z*z) (resident)
    """
    @pl.when(pl.program_id(0) == 0)
    def _init():
        stats_ref[...] = jnp.zeros_like(stats_ref)

    w = w_ref[...]
    s = jnp.zeros((1, LANES), jnp.float32)
    ss = jnp.zeros((1, LANES), jnp.float32)
    for c in range(p_ref.shape[0]):                      # running accumulators
        z = jnp.dot(p_ref[c], w, preferred_element_type=jnp.float32)
        s = s + jnp.sum(z, axis=0, keepdims=True)
        ss = ss + jnp.sum(z * z, axis=0, keepdims=True)
    stats_ref[0:1, :] += s
    stats_ref[1:2, :] += ss


def conv_norm_pool_kernel(stats_ref, g_ref, bt_ref, p_ref, w_ref, o_ref,
                          *, inv_count):
    """Pass 2: recompute z tile, BN normalize + ReLU + 2x2 max-pool, bf16 out.

    stats_ref: [8, 128] f32   batch sum / sum-sq from pass 1
    g_ref/bt : [1, 128] f32   gamma / beta (zero-padded)
    p_ref    : [4, QT, Kp] bf16
    w_ref    : [Kp, 128]   bf16
    o_ref    : [QT, 128]   bf16   pooled activation (lane-dense)
    """
    mean = stats_ref[0:1, :] * inv_count
    var = jnp.maximum(stats_ref[1:2, :] * inv_count - mean * mean, 0.0)
    scale = lax.rsqrt(var + BN_EPS) * g_ref[...]
    shift = bt_ref[...] - mean * scale

    w = w_ref[...]
    out = None
    for c in range(p_ref.shape[0]):                      # running max (pool)
        z = jnp.dot(p_ref[c], w, preferred_element_type=jnp.float32)
        y = jnp.maximum(z * scale + shift, 0.0)          # BN + ReLU (f32)
        out = y if out is None else jnp.maximum(out, y)
    o_ref[...] = out.astype(o_ref.dtype)


def fc_stack_kernel(x_ref, w1_ref, g1_ref, bt1_ref,
                    w2_ref, g2_ref, bt2_ref, w3_ref, b3_ref, o_ref):
    """fc1+BN+ReLU -> fc2+BN+ReLU -> fc3+LogSoftmax, all lane-dense (128).

    fc1/fc2 biases are dropped (cancelled by BN); fc3 bias kept, padded lanes
    carry a finite -1e9 so they vanish under log-softmax (f32 math).
    """
    def bn_relu(z, g, bt):                               # centered, training-mode
        mean = jnp.mean(z, axis=0, keepdims=True)
        zc = z - mean
        var = jnp.mean(zc * zc, axis=0, keepdims=True)
        return jnp.maximum(zc * lax.rsqrt(var + BN_EPS) * g + bt, 0.0)

    x = x_ref[...]                                                   # [N, 3200] bf16
    h1 = bn_relu(jnp.dot(x, w1_ref[...], preferred_element_type=jnp.float32),
                 g1_ref[...], bt1_ref[...])                          # [N, 128] f32
    h2 = bn_relu(jnp.dot(h1.astype(jnp.bfloat16), w2_ref[...],
                         preferred_element_type=jnp.float32),
                 g2_ref[...], bt2_ref[...])                          # [N, 128] f32
    z3 = jnp.dot(h2.astype(jnp.bfloat16), w3_ref[...],
                 preferred_element_type=jnp.float32) + b3_ref[...]   # [N, 128] f32
    z3 = z3 - jnp.max(z3, axis=1, keepdims=True)
    lse = jnp.log(jnp.sum(jnp.exp(z3), axis=1, keepdims=True))
    o_ref[...] = z3 - lse


# ---------------------------------------------------------------------------
# JAX glue (layout plumbing only)
# ---------------------------------------------------------------------------
def _corner_patches(x_nhwc, k, ph, pw, q_pad, k_pad):
    """NHWC -> im2col patches grouped by pool corner: [4, q_pad, k_pad] bf16."""
    n, h, w, c = x_nhwc.shape
    oh, ow = h - k + 1, w - k + 1
    cols = [x_nhwc[:, dh:dh + oh, dw:dw + ow, :]
            for dh in range(k) for dw in range(k)]
    p = jnp.stack(cols, axis=3).reshape(n, oh, ow, k * k * c)
    p = p[:, :2 * ph, :2 * pw, :]                        # trim to even (pool floor)
    corners = jnp.stack([p[:, 0::2, 0::2], p[:, 0::2, 1::2],
                         p[:, 1::2, 0::2], p[:, 1::2, 1::2]], axis=0)
    q = n * ph * pw
    corners = corners.reshape(4, q, k * k * c).astype(jnp.bfloat16)
    return jnp.pad(corners, ((0, 0), (0, q_pad - q), (0, k_pad - k * k * c)))


def conv_bn_relu_pool(x_nhwc, w_mat, g, bt, *, k):
    """Fused conv + BN(train) + ReLU + 2x2 maxpool (two tiled pallas_calls)."""
    n, h, w, _ = x_nhwc.shape
    k_pad = w_mat.shape[0]
    oh, ow = h - k + 1, w - k + 1
    ph, pw = oh // 2, ow // 2
    q = n * ph * pw
    qt = min(MAX_Q_TILE, _round_up(q, 8))
    q_pad = _round_up(q, qt)
    n_tiles = q_pad // qt

    corners = _corner_patches(x_nhwc, k, ph, pw, q_pad, k_pad)

    # Pass 1: batch-wide BN statistics (grid-resident accumulator).
    stats = pl.pallas_call(
        conv_stats_kernel,
        out_shape=jax.ShapeDtypeStruct((8, LANES), jnp.float32),
        grid=(n_tiles,),
        in_specs=[pl.BlockSpec((4, qt, k_pad), lambda i: (0, i, 0)),
                  pl.BlockSpec((k_pad, LANES), lambda i: (0, 0))],
        out_specs=pl.BlockSpec((8, LANES), lambda i: (0, 0)),
        compiler_params=pltpu.CompilerParams(
            dimension_semantics=("arbitrary",),
            vmem_limit_bytes=VMEM_LIMIT_BYTES),
    )(corners, w_mat)

    # Pass 2: normalize + ReLU + pool, Q-parallel (uses 2nd core on v7x).
    pooled = pl.pallas_call(
        functools.partial(conv_norm_pool_kernel, inv_count=1.0 / (4.0 * q)),
        out_shape=jax.ShapeDtypeStruct((q_pad, LANES), jnp.bfloat16),
        grid=(n_tiles,),
        in_specs=[pl.BlockSpec((8, LANES), lambda i: (0, 0)),
                  pl.BlockSpec((1, LANES), lambda i: (0, 0)),
                  pl.BlockSpec((1, LANES), lambda i: (0, 0)),
                  pl.BlockSpec((4, qt, k_pad), lambda i: (0, i, 0)),
                  pl.BlockSpec((k_pad, LANES), lambda i: (0, 0))],
        out_specs=pl.BlockSpec((qt, LANES), lambda i: (i, 0)),
        compiler_params=pltpu.CompilerParams(
            dimension_semantics=("parallel",),
            vmem_limit_bytes=VMEM_LIMIT_BYTES),
    )(stats, g, bt, corners, w_mat)

    return pooled, (n, ph, pw, q)


def fc_stack(x2d, q):
    n = x2d.shape[0]
    out = pl.pallas_call(
        fc_stack_kernel,
        out_shape=jax.ShapeDtypeStruct((n, LANES), jnp.float32),
        in_specs=[_VMEM] * 9,
        out_specs=_VMEM,
        compiler_params=pltpu.CompilerParams(vmem_limit_bytes=VMEM_LIMIT_BYTES),
    )(x2d.astype(jnp.bfloat16),
      q["fw1"], q["g3"], q["bt3"],
      q["fw2"], q["g4"], q["bt4"],
      q["fw3"], q["fb3"])
    return out[:, :10]


# ---------------------------------------------------------------------------
# Parameter prep (done ONCE, hoisted out of the forward path)
# ---------------------------------------------------------------------------
def prepare_params(p):
    def conv_w(w):        # [Cout, Cin, KH, KW] -> [round_up(KH*KW*Cin,128), 128] bf16
        co, ci, kh, kw = w.shape
        kkc = kh * kw * ci
        k_pad = _round_up(kkc, LANES)
        m = jnp.transpose(w, (2, 3, 1, 0)).reshape(kkc, co)
        m = jnp.pad(m, ((0, k_pad - kkc), (0, LANES - co)))
        return m.astype(jnp.bfloat16)

    def vec(v, fill=0.0):  # [C] -> [1, 128] f32
        out = jnp.full((1, LANES), fill, jnp.float32)
        return out.at[0, :v.shape[0]].set(v.astype(jnp.float32))

    def fc_w(w):           # [in, out] -> [128, 128] bf16 (zero padding)
        i, o = w.shape
        return jnp.pad(w, ((0, LANES - i), (0, LANES - o))).astype(jnp.bfloat16)

    def fc1_w(w):          # [400, 120] (torch NCHW-flatten rows) -> [25*128, 128]
        o = w.shape[1]
        w4 = w.reshape(16, 5, 5, o)              # rows were (c, h, w) ordered
        w4 = jnp.transpose(w4, (1, 2, 0, 3))     # -> (h, w, c, out): conv2 pooled layout
        w4 = jnp.pad(w4, ((0, 0), (0, 0), (0, LANES - 16), (0, LANES - o)))
        return w4.reshape(25 * LANES, LANES).astype(jnp.bfloat16)

    return {
        "cw1": conv_w(p["w1"]), "g1": vec(p["g1"]), "bt1": vec(p["bt1"]),
        "cw2": conv_w(p["w2"]), "g2": vec(p["g2"]), "bt2": vec(p["bt2"]),
        "fw1": fc1_w(p["wf1"]), "g3": vec(p["g3"]), "bt3": vec(p["bt3"]),
        "fw2": fc_w(p["wf2"]), "g4": vec(p["g4"]), "bt4": vec(p["bt4"]),
        "fw3": fc_w(p["wf3"]), "fb3": vec(p["bf3"], fill=NEG_BIAS),
    }


# ---------------------------------------------------------------------------
# Full model forward (5 Pallas kernel launches total)
# ---------------------------------------------------------------------------
def lenet5_bn_forward(x_nchw, q):
    x = jnp.transpose(x_nchw, (0, 2, 3, 1)).astype(jnp.float32)       # NCHW -> NHWC

    # conv1 + BN1 + ReLU + pool1 -> rows ordered (n, ph, pw), 6 real channels
    y1, (n, ph1, pw1, q1) = conv_bn_relu_pool(x, q["cw1"], q["g1"], q["bt1"], k=5)
    y1 = y1[:q1, :6].reshape(n, ph1, pw1, 6)                          # [N,14,14,6] bf16

    # conv2 + BN2 + ReLU + pool2 -> [q2, 128] bf16 (padded channels are exact zeros)
    y2, (_, ph2, pw2, q2) = conv_bn_relu_pool(y1, q["cw2"], q["g2"], q["bt2"], k=5)

    # fc1 consumes the pooled activation in its native (row, 128-lane) layout;
    # the weight-row permutation/padding in prepare_params replaces the
    # torch.flatten(NCHW) transpose.
    x_fc = y2[:q2].reshape(n, ph2 * pw2 * LANES)                      # [N, 3200] bf16

    return fc_stack(x_fc, q)                                          # [N, 10] f32


def init_params(key):
    ks = jax.random.split(key, 10)
    f32 = jnp.float32
    return {
        # conv weights in PyTorch layout [Cout, Cin, KH, KW]
        "w1": jax.random.normal(ks[0], (6, 3, 5, 5), f32) * 0.1,
        "b1": jax.random.normal(ks[1], (6,), f32) * 0.1,
        "w2": jax.random.normal(ks[2], (16, 6, 5, 5), f32) * 0.1,
        "b2": jax.random.normal(ks[3], (16,), f32) * 0.1,
        # linear weights stored as [in, out] (== PyTorch weight.T)
        "wf1": jax.random.normal(ks[4], (400, 120), f32) * 0.05,
        "bf1": jax.random.normal(ks[5], (120,), f32) * 0.05,
        "wf2": jax.random.normal(ks[6], (120, 84), f32) * 0.05,
        "bf2": jax.random.normal(ks[7], (84,), f32) * 0.05,
        "wf3": jax.random.normal(ks[8], (84, 10), f32) * 0.05,
        "bf3": jax.random.normal(ks[9], (10,), f32) * 0.05,
        # BatchNorm affine params (PyTorch defaults: weight=1, bias=0)
        "g1": jnp.ones((6,), f32), "bt1": jnp.zeros((6,), f32),
        "g2": jnp.ones((16,), f32), "bt2": jnp.zeros((16,), f32),
        "g3": jnp.ones((120,), f32), "bt3": jnp.zeros((120,), f32),
        "g4": jnp.ones((84,), f32), "bt4": jnp.zeros((84,), f32),
    }


def reference_forward(x_nchw, p):
    """Pure-JAX f32 reference (training-mode BN), for correctness checking."""
    def bn(z, g, b, axes):
        mean = jnp.mean(z, axis=axes, keepdims=True)
        var = jnp.var(z, axis=axes, keepdims=True)      # biased, matches BN train norm
        return (z - mean) * lax.rsqrt(var + BN_EPS) * g + b

    dn = ("NCHW", "OIHW", "NCHW")
    z = lax.conv_general_dilated(x_nchw, p["w1"], (1, 1), "VALID", dimension_numbers=dn)
    z = z + p["b1"].reshape(1, -1, 1, 1)
    z = jnp.maximum(bn(z, p["g1"].reshape(1, -1, 1, 1), p["bt1"].reshape(1, -1, 1, 1),
                       (0, 2, 3)), 0.0)
    z = lax.reduce_window(z, -jnp.inf, lax.max, (1, 1, 2, 2), (1, 1, 2, 2), "VALID")

    z = lax.conv_general_dilated(z, p["w2"], (1, 1), "VALID", dimension_numbers=dn)
    z = z + p["b2"].reshape(1, -1, 1, 1)
    z = jnp.maximum(bn(z, p["g2"].reshape(1, -1, 1, 1), p["bt2"].reshape(1, -1, 1, 1),
                       (0, 2, 3)), 0.0)
    z = lax.reduce_window(z, -jnp.inf, lax.max, (1, 1, 2, 2), (1, 1, 2, 2), "VALID")

    h = z.reshape(z.shape[0], -1)                        # NCHW flatten
    h = jnp.maximum(bn(h @ p["wf1"] + p["bf1"], p["g3"][None], p["bt3"][None], (0,)), 0.0)
    h = jnp.maximum(bn(h @ p["wf2"] + p["bf2"], p["g4"][None], p["bt4"][None], (0,)), 0.0)
    h = h @ p["wf3"] + p["bf3"]
    return jax.nn.log_softmax(h, axis=1)


if __name__ == "__main__":
    key = jax.random.PRNGKey(0)
    k_x, k_p = jax.random.split(key)
    # LeNet-5 needs 32x32 spatial input to reach 16*5*5 = 400 features.
    x = jax.random.normal(k_x, (2, 3, 32, 32), jnp.float32)   # NCHW like PyTorch
    params = init_params(k_p)
    q = prepare_params(params)        # weight padding / permutation done once

    fwd = jax.jit(lenet5_bn_forward)
    out = jax.block_until_ready(fwd(x, q))

    assert out.shape == (2, 10), out.shape
    assert bool(jnp.all(jnp.isfinite(out)))
    # log-softmax rows should sum (in prob space) to ~1
    assert jnp.allclose(jnp.sum(jnp.exp(out), axis=1), 1.0, atol=1e-3)
    # compare against the pure-JAX f32 reference (bf16 MXU operands -> loose tol)
    ref = reference_forward(x, params)
    max_err = float(jnp.max(jnp.abs(out - ref)))
    assert max_err < 0.15, f"max abs error vs reference: {max_err}"
    print("KERNEL_OK")
</pallas_src>

<mosaic_0001>
module attributes {stable_mosaic.version = 11 : i64} {
  func.func @conv_stats_kernel(%arg0: i32, %arg1: memref<4x392x128xbf16, #tpu.memory_space<vmem>>, %arg2: memref<128x128xbf16, #tpu.memory_space<vmem>>, %arg3: memref<8x128xf32, #tpu.memory_space<vmem>>) attributes {dimension_semantics = [#tpu.dimension_semantics<arbitrary>], iteration_bounds = array<i64: 1>, scalar_prefetch = 0 : i64, scratch_operands = 0 : i64, tpu.core_type = #tpu.core_type<tc>, window_params = [{transform_indices = @transform_0, window_bounds = array<i64: 4, 392, 128>}, {pipeline_mode = #tpu.pipeline_mode<synchronous>, transform_indices = @transform_1, window_bounds = array<i64: 128, 128>}, {pipeline_mode = #tpu.pipeline_mode<synchronous>, transform_indices = @transform_2, window_bounds = array<i64: 8, 128>}]} {
    %c0_i32 = arith.constant 0 : i32
    %0 = arith.cmpi eq, %arg0, %c0_i32 : i32
    %1 = arith.extui %0 : i1 to i32
    %c0_i32_0 = arith.constant 0 : i32
    %2 = arith.cmpi ne, %1, %c0_i32_0 : i32
    scf.if %2 {
      %cst_32 = arith.constant 0.000000e+00 : f32
      %52 = vector.broadcast %cst_32 : f32 to vector<8x128xf32>
      %c0_33 = arith.constant 0 : index
      %c0_34 = arith.constant 0 : index
      %53 = vector.load %arg3[%c0_33, %c0_34] : memref<8x128xf32, #tpu.memory_space<vmem>>, vector<8x128xf32>
      tpu.vector_store %arg3[%c0_33, %c0_34], %52 {strides = array<i32>} : memref<8x128xf32, #tpu.memory_space<vmem>>, vector<8x128xf32>,
    } else {
    }
    %c0 = arith.constant 0 : index
    %c0_1 = arith.constant 0 : index
    %3 = vector.load %arg2[%c0, %c0_1] : memref<128x128xbf16, #tpu.memory_space<vmem>>, vector<128x128xbf16>
    %cst = arith.constant 0.000000e+00 : f32
    %4 = vector.broadcast %cst : f32 to vector<1x128xf32>
    %cst_2 = arith.constant 0.000000e+00 : f32
    %5 = vector.broadcast %cst_2 : f32 to vector<1x128xf32>
    %c0_3 = arith.constant 0 : index
    %c0_4 = arith.constant 0 : index
    %c0_5 = arith.constant 0 : index
    %6 = vector.load %arg1[%c0_3, %c0_4, %c0_5] : memref<4x392x128xbf16, #tpu.memory_space<vmem>>, vector<1x392x128xbf16>
    %7 = vector.shape_cast %6 : vector<1x392x128xbf16> to vector<392x128xbf16>
    %cst_6 = arith.constant dense<0.000000e+00> : vector<392x128xf32>
    %8 = tpu.matmul %7, %3, %cst_6 {dimension_numbers = #tpu.dot_dimension_numbers<[1], [0], [0], [1], [0, 0, 1, 1], [], []>} : vector<392x128xbf16>, vector<128x128xbf16>, vector<392x128xf32> -> vector<392x128xf32>
    %cst_7 = arith.constant dense<0.000000e+00> : vector<128xf32>
    %9 = vector.multi_reduction <add>, %8, %cst_7 [0] : vector<392x128xf32> to vector<128xf32>
    %10 = vector.shape_cast %9 : vector<128xf32> to vector<1x128xf32>
    %11 = arith.addf %4, %10 : vector<1x128xf32>
    %12 = arith.mulf %8, %8 : vector<392x128xf32>
    %cst_8 = arith.constant dense<0.000000e+00> : vector<128xf32>
    %13 = vector.multi_reduction <add>, %12, %cst_8 [0] : vector<392x128xf32> to vector<128xf32>
    %14 = vector.shape_cast %13 : vector<128xf32> to vector<1x128xf32>
    %15 = arith.addf %5, %14 : vector<1x128xf32>
    %c1 = arith.constant 1 : index
    %c0_9 = arith.constant 0 : index
    %c0_10 = arith.constant 0 : index
    %16 = vector.load %arg1[%c1, %c0_9, %c0_10] : memref<4x392x128xbf16, #tpu.memory_space<vmem>>, vector<1x392x128xbf16>
    %17 = vector.shape_cast %16 : vector<1x392x128xbf16> to vector<392x128xbf16>
    %cst_11 = arith.constant dense<0.000000e+00> : vector<392x128xf32>
    %18 = tpu.matmul %17, %3, %cst_11 {dimension_numbers = #tpu.dot_dimension_numbers<[1], [0], [0], [1], [0, 0, 1, 1], [], []>} : vector<392x128xbf16>, vector<128x128xbf16>, vector<392x128xf32> -> vector<392x128xf32>
    %cst_12 = arith.constant dense<0.000000e+00> : vector<128xf32>
    %19 = vector.multi_reduction <add>, %18, %cst_12 [0] : vector<392x128xf32> to vector<128xf32>
    %20 = vector.shape_cast %19 : vector<128xf32> to vector<1x128xf32>
    %21 = arith.addf %11, %20 : vector<1x128xf32>
    %22 = arith.mulf %18, %18 : vector<392x128xf32>
    %cst_13 = arith.constant dense<0.000000e+00> : vector<128xf32>
    %23 = vector.multi_reduction <add>, %22, %cst_13 [0] : vector<392x128xf32> to vector<128xf32>
    %24 = vector.shape_cast %23 : vector<128xf32> to vector<1x128xf32>
    %25 = arith.addf %15, %24 : vector<1x128xf32>
    %c2 = arith.constant 2 : index
    %c0_14 = arith.constant 0 : index
    %c0_15 = arith.constant 0 : index
    %26 = vector.load %arg1[%c2, %c0_14, %c0_15] : memref<4x392x128xbf16, #tpu.memory_space<vmem>>, vector<1x392x128xbf16>
    %27 = vector.shape_cast %26 : vector<1x392x128xbf16> to vector<392x128xbf16>
    %cst_16 = arith.constant dense<0.000000e+00> : vector<392x128xf32>
    %28 = tpu.matmul %27, %3, %cst_16 {dimension_numbers = #tpu.dot_dimension_numbers<[1], [0], [0], [1], [0, 0, 1, 1], [], []>} : vector<392x128xbf16>, vector<128x128xbf16>, vector<392x128xf32> -> vector<392x128xf32>
    %cst_17 = arith.constant dense<0.000000e+00> : vector<128xf32>
    %29 = vector.multi_reduction <add>, %28, %cst_17 [0] : vector<392x128xf32> to vector<128xf32>
    %30 = vector.shape_cast %29 : vector<128xf32> to vector<1x128xf32>
    %31 = arith.addf %21, %30 : vector<1x128xf32>
    %32 = arith.mulf %28, %28 : vector<392x128xf32>
    %cst_18 = arith.constant dense<0.000000e+00> : vector<128xf32>
    %33 = vector.multi_reduction <add>, %32, %cst_18 [0] : vector<392x128xf32> to vector<128xf32>
    %34 = vector.shape_cast %33 : vector<128xf32> to vector<1x128xf32>
    %35 = arith.addf %25, %34 : vector<1x128xf32>
    %c3 = arith.constant 3 : index
    %c0_19 = arith.constant 0 : index
    %c0_20 = arith.constant 0 : index
    %36 = vector.load %arg1[%c3, %c0_19, %c0_20] : memref<4x392x128xbf16, #tpu.memory_space<vmem>>, vector<1x392x128xbf16>
    %37 = vector.shape_cast %36 : vector<1x392x128xbf16> to vector<392x128xbf16>
    %cst_21 = arith.constant dense<0.000000e+00> : vector<392x128xf32>
    %38 = tpu.matmul %37, %3, %cst_21 {dimension_numbers = #tpu.dot_dimension_numbers<[1], [0], [0], [1], [0, 0, 1, 1], [], []>} : vector<392x128xbf16>, vector<128x128xbf16>, vector<392x128xf32> -> vector<392x128xf32>
    %cst_22 = arith.constant dense<0.000000e+00> : vector<128xf32>
    %39 = vector.multi_reduction <add>, %38, %cst_22 [0] : vector<392x128xf32> to vector<128xf32>
    %40 = vector.shape_cast %39 : vector<128xf32> to vector<1x128xf32>
    %41 = arith.addf %31, %40 : vector<1x128xf32>
    %42 = arith.mulf %38, %38 : vector<392x128xf32>
    %cst_23 = arith.constant dense<0.000000e+00> : vector<128xf32>
    %43 = vector.multi_reduction <add>, %42, %cst_23 [0] : vector<392x128xf32> to vector<128xf32>
    %44 = vector.shape_cast %43 : vector<128xf32> to vector<1x128xf32>
    %45 = arith.addf %35, %44 : vector<1x128xf32>
    %c0_24 = arith.constant 0 : index
    %c0_25 = arith.constant 0 : index
    %46 = vector.load %arg3[%c0_24, %c0_25] : memref<8x128xf32, #tpu.memory_space<vmem>>, vector<1x128xf32>
    %47 = arith.addf %46, %41 : vector<1x128xf32>
    %c0_26 = arith.constant 0 : index
    %c0_27 = arith.constant 0 : index
    %48 = vector.load %arg3[%c0_26, %c0_27] : memref<8x128xf32, #tpu.memory_space<vmem>>, vector<1x128xf32>
    tpu.vector_store %arg3[%c0_26, %c0_27], %47 {strides = array<i32>} : memref<8x128xf32, #tpu.memory_space<vmem>>, vector<1x128xf32>,
    %c1_28 = arith.constant 1 : index
    %c0_29 = arith.constant 0 : index
    %49 = vector.load %arg3[%c1_28, %c0_29] : memref<8x128xf32, #tpu.memory_space<vmem>>, vector<1x128xf32>
    %50 = arith.addf %49, %45 : vector<1x128xf32>
    %c1_30 = arith.constant 1 : index
    %c0_31 = arith.constant 0 : index
    %51 = vector.load %arg3[%c1_30, %c0_31] : memref<8x128xf32, #tpu.memory_space<vmem>>, vector<1x128xf32>
    tpu.vector_store %arg3[%c1_30, %c0_31], %50 {strides = array<i32>} : memref<8x128xf32, #tpu.memory_space<vmem>>, vector<1x128xf32>,
    return
  }
  func.func @transform_0(%arg0: i32) -> (i32, i32, i32) {
    %c0_i32 = arith.constant 0 : i32
    %c0_i32_0 = arith.constant 0 : i32
    %c0_i32_1 = arith.constant 0 : i32
    return %c0_i32, %arg0, %c0_i32_0 : i32, i32, i32
  }
  func.func @transform_1(%arg0: i32) -> (i32, i32) {
    %c0_i32 = arith.constant 0 : i32
    %c0_i32_0 = arith.constant 0 : i32
    %c0_i32_1 = arith.constant 0 : i32
    return %c0_i32, %c0_i32_0 : i32, i32
  }
  func.func @transform_2(%arg0: i32) -> (i32, i32) {
    %c0_i32 = arith.constant 0 : i32
    %c0_i32_0 = arith.constant 0 : i32
    %c0_i32_1 = arith.constant 0 : i32
    return %c0_i32, %c0_i32_0 : i32, i32
  }
}

module attributes {stable_mosaic.version = 11 : i64} {
  func.func @conv_norm_pool_kernel(%arg0: i32, %arg1: memref<8x128xf32, #tpu.memory_space<vmem>>, %arg2: memref<1x128xf32, #tpu.memory_space<vmem>>, %arg3: memref<1x128xf32, #tpu.memory_space<vmem>>, %arg4: memref<4x392x128xbf16, #tpu.memory_space<vmem>>, %arg5: memref<128x128xbf16, #tpu.memory_space<vmem>>, %arg6: memref<392x128xbf16, #tpu.memory_space<vmem>>) attributes {dimension_semantics = [#tpu.dimension_semantics<parallel>], iteration_bounds = array<i64: 1>, scalar_prefetch = 0 : i64, scratch_operands = 0 : i64, tpu.core_type = #tpu.core_type<tc>, window_params = [{pipeline_mode = #tpu.pipeline_mode<synchronous>, transform_indices = @transform_0, window_bounds = array<i64: 8, 128>}, {pipeline_mode = #tpu.pipeline_mode<synchronous>, transform_indices = @transform_1, window_bounds = array<i64: 1, 128>}, {pipeline_mode = #tpu.pipeline_mode<synchronous>, transform_indices = @transform_2, window_bounds = array<i64: 1, 128>}, {transform_indices = @transform_3, window_bounds = array<i64: 4, 392, 128>}, {pipeline_mode = #tpu.pipeline_mode<synchronous>, transform_indices = @transform_4, window_bounds = array<i64: 128, 128>}, {transform_indices = @transform_5, window_bounds = array<i64: 392, 128>}]} {
    %c0 = arith.constant 0 : index
    %c0_0 = arith.constant 0 : index
    %0 = vector.load %arg1[%c0, %c0_0] : memref<8x128xf32, #tpu.memory_space<vmem>>, vector<1x128xf32>
    %cst = arith.constant 6.37755089E-4 : f32
    %1 = vector.broadcast %cst : f32 to vector<1x128xf32>
    %2 = arith.mulf %0, %1 : vector<1x128xf32>
    %c1 = arith.constant 1 : index
    %c0_1 = arith.constant 0 : index
    %3 = vector.load %arg1[%c1, %c0_1] : memref<8x128xf32, #tpu.memory_space<vmem>>, vector<1x128xf32>
    %cst_2 = arith.constant 6.37755089E-4 : f32
    %4 = vector.broadcast %cst_2 : f32 to vector<1x128xf32>
    %5 = arith.mulf %3, %4 : vector<1x128xf32>
    %6 = arith.mulf %2, %2 : vector<1x128xf32>
    %7 = arith.subf %5, %6 : vector<1x128xf32>
    %cst_3 = arith.constant 0.000000e+00 : f32
    %8 = vector.broadcast %cst_3 : f32 to vector<1x128xf32>
    %9 = arith.maximumf %7, %8 : vector<1x128xf32>
    %cst_4 = arith.constant 9.99999974E-6 : f32
    %10 = vector.broadcast %cst_4 : f32 to vector<1x128xf32>
    %11 = arith.addf %9, %10 : vector<1x128xf32>
    %12 = math.rsqrt %11 : vector<1x128xf32>
    %c0_5 = arith.constant 0 : index
    %c0_6 = arith.constant 0 : index
    %13 = vector.load %arg2[%c0_5, %c0_6] : memref<1x128xf32, #tpu.memory_space<vmem>>, vector<1x128xf32>
    %14 = arith.mulf %12, %13 : vector<1x128xf32>
    %c0_7 = arith.constant 0 : index
    %c0_8 = arith.constant 0 : index
    %15 = vector.load %arg3[%c0_7, %c0_8] : memref<1x128xf32, #tpu.memory_space<vmem>>, vector<1x128xf32>
    %16 = arith.mulf %2, %14 : vector<1x128xf32>
    %17 = arith.subf %15, %16 : vector<1x128xf32>
    %c0_9 = arith.constant 0 : index
    %c0_10 = arith.constant 0 : index
    %18 = vector.load %arg5[%c0_9, %c0_10] : memref<128x128xbf16, #tpu.memory_space<vmem>>, vector<128x128xbf16>
    %c0_11 = arith.constant 0 : index
    %c0_12 = arith.constant 0 : index
    %c0_13 = arith.constant 0 : index
    %19 = vector.load %arg4[%c0_11, %c0_12, %c0_13] : memref<4x392x128xbf16, #tpu.memory_space<vmem>>, vector<1x392x128xbf16>
    %20 = vector.shape_cast %19 : vector<1x392x128xbf16> to vector<392x128xbf16>
    %cst_14 = arith.constant dense<0.000000e+00> : vector<392x128xf32>
    %21 = tpu.matmul %20, %18, %cst_14 {dimension_numbers = #tpu.dot_dimension_numbers<[1], [0], [0], [1], [0, 0, 1, 1], [], []>} : vector<392x128xbf16>, vector<128x128xbf16>, vector<392x128xf32> -> vector<392x128xf32>
    %22 = vector.broadcast %14 : vector<1x128xf32> to vector<392x128xf32>
    %23 = arith.mulf %21, %22 : vector<392x128xf32>
    %24 = vector.broadcast %17 : vector<1x128xf32> to vector<392x128xf32>
    %25 = arith.addf %23, %24 : vector<392x128xf32>
    %cst_15 = arith.constant 0.000000e+00 : f32
    %26 = vector.broadcast %cst_15 : f32 to vector<392x128xf32>
    %27 = arith.maximumf %25, %26 : vector<392x128xf32>
    %c1_16 = arith.constant 1 : index
    %c0_17 = arith.constant 0 : index
    %c0_18 = arith.constant 0 : index
    %28 = vector.load %arg4[%c1_16, %c0_17, %c0_18] : memref<4x392x128xbf16, #tpu.memory_space<vmem>>, vector<1x392x128xbf16>
    %29 = vector.shape_cast %28 : vector<1x392x128xbf16> to vector<392x128xbf16>
    %cst_19 = arith.constant dense<0.000000e+00> : vector<392x128xf32>
    %30 = tpu.matmul %29, %18, %cst_19 {dimension_numbers = #tpu.dot_dimension_numbers<[1], [0], [0], [1], [0, 0, 1, 1], [], []>} : vector<392x128xbf16>, vector<128x128xbf16>, vector<392x128xf32> -> vector<392x128xf32>
    %31 = vector.broadcast %14 : vector<1x128xf32> to vector<392x128xf32>
    %32 = arith.mulf %30, %31 : vector<392x128xf32>
    %33 = vector.broadcast %17 : vector<1x128xf32> to vector<392x128xf32>
    %34 = arith.addf %32, %33 : vector<392x128xf32>
    %cst_20 = arith.constant 0.000000e+00 : f32
    %35 = vector.broadcast %cst_20 : f32 to vector<392x128xf32>
    %36 = arith.maximumf %34, %35 : vector<392x128xf32>
    %37 = arith.maximumf %27, %36 : vector<392x128xf32>
    %c2 = arith.constant 2 : index
    %c0_21 = arith.constant 0 : index
    %c0_22 = arith.constant 0 : index
    %38 = vector.load %arg4[%c2, %c0_21, %c0_22] : memref<4x392x128xbf16, #tpu.memory_space<vmem>>, vector<1x392x128xbf16>
    %39 = vector.shape_cast %38 : vector<1x392x128xbf16> to vector<392x128xbf16>
    %cst_23 = arith.constant dense<0.000000e+00> : vector<392x128xf32>
    %40 = tpu.matmul %39, %18, %cst_23 {dimension_numbers = #tpu.dot_dimension_numbers<[1], [0], [0], [1], [0, 0, 1, 1], [], []>} : vector<392x128xbf16>, vector<128x128xbf16>, vector<392x128xf32> -> vector<392x128xf32>
    %41 = vector.broadcast %14 : vector<1x128xf32> to vector<392x128xf32>
    %42 = arith.mulf %40, %41 : vector<392x128xf32>
    %43 = vector.broadcast %17 : vector<1x128xf32> to vector<392x128xf32>
    %44 = arith.addf %42, %43 : vector<392x128xf32>
    %cst_24 = arith.constant 0.000000e+00 : f32
    %45 = vector.broadcast %cst_24 : f32 to vector<392x128xf32>
    %46 = arith.maximumf %44, %45 : vector<392x128xf32>
    %47 = arith.maximumf %37, %46 : vector<392x128xf32>
    %c3 = arith.constant 3 : index
    %c0_25 = arith.constant 0 : index
    %c0_26 = arith.constant 0 : index
    %48 = vector.load %arg4[%c3, %c0_25, %c0_26] : memref<4x392x128xbf16, #tpu.memory_space<vmem>>, vector<1x392x128xbf16>
    %49 = vector.shape_cast %48 : vector<1x392x128xbf16> to vector<392x128xbf16>
    %cst_27 = arith.constant dense<0.000000e+00> : vector<392x128xf32>
    %50 = tpu.matmul %49, %18, %cst_27 {dimension_numbers = #tpu.dot_dimension_numbers<[1], [0], [0], [1], [0, 0, 1, 1], [], []>} : vector<392x128xbf16>, vector<128x128xbf16>, vector<392x128xf32> -> vector<392x128xf32>
    %51 = vector.broadcast %14 : vector<1x128xf32> to vector<392x128xf32>
    %52 = arith.mulf %50, %51 : vector<392x128xf32>
    %53 = vector.broadcast %17 : vector<1x128xf32> to vector<392x128xf32>
    %54 = arith.addf %52, %53 : vector<392x128xf32>
    %cst_28 = arith.constant 0.000000e+00 : f32
    %55 = vector.broadcast %cst_28 : f32 to vector<392x128xf32>
    %56 = arith.maximumf %54, %55 : vector<392x128xf32>
    %57 = arith.maximumf %47, %56 : vector<392x128xf32>
    %58 = arith.truncf %57 : vector<392x128xf32> to vector<392x128xbf16>
    %c0_29 = arith.constant 0 : index
    %c0_30 = arith.constant 0 : index
    %59 = vector.load %arg6[%c0_29, %c0_30] : memref<392x128xbf16, #tpu.memory_space<vmem>>, vector<392x128xbf16>
    tpu.vector_store %arg6[%c0_29, %c0_30], %58 {strides = array<i32>} : memref<392x128xbf16, #tpu.memory_space<vmem>>, vector<392x128xbf16>,
    return
  }
  func.func @transform_0(%arg0: i32) -> (i32, i32) {
    %c0_i32 = arith.constant 0 : i32
    %c0_i32_0 = arith.constant 0 : i32
    %c0_i32_1 = arith.constant 0 : i32
    return %c0_i32, %c0_i32_0 : i32, i32
  }
  func.func @transform_1(%arg0: i32) -> (i32, i32) {
    %c0_i32 = arith.constant 0 : i32
    %c0_i32_0 = arith.constant 0 : i32
    %c0_i32_1 = arith.constant 0 : i32
    return %c0_i32, %c0_i32_0 : i32, i32
  }
  func.func @transform_2(%arg0: i32) -> (i32, i32) {
    %c0_i32 = arith.constant 0 : i32
    %c0_i32_0 = arith.constant 0 : i32
    %c0_i32_1 = arith.constant 0 : i32
    return %c0_i32, %c0_i32_0 : i32, i32
  }
  func.func @transform_3(%arg0: i32) -> (i32, i32, i32) {
    %c0_i32 = arith.constant 0 : i32
    %c0_i32_0 = arith.constant 0 : i32
    %c0_i32_1 = arith.constant 0 : i32
    return %c0_i32, %arg0, %c0_i32_0 : i32, i32, i32
  }
  func.func @transform_4(%arg0: i32) -> (i32, i32) {
    %c0_i32 = arith.constant 0 : i32
    %c0_i32_0 = arith.constant 0 : i32
    %c0_i32_1 = arith.constant 0 : i32
    return %c0_i32, %c0_i32_0 : i32, i32
  }
  func.func @transform_5(%arg0: i32) -> (i32, i32) {
    %c0_i32 = arith.constant 0 : i32
    %c0_i32_0 = arith.constant 0 : i32
    return %arg0, %c0_i32 : i32, i32
  }
}

module attributes {stable_mosaic.version = 11 : i64} {
  func.func @conv_stats_kernel(%arg0: i32, %arg1: memref<4x56x256xbf16, #tpu.memory_space<vmem>>, %arg2: memref<256x128xbf16, #tpu.memory_space<vmem>>, %arg3: memref<8x128xf32, #tpu.memory_space<vmem>>) attributes {dimension_semantics = [#tpu.dimension_semantics<arbitrary>], iteration_bounds = array<i64: 1>, scalar_prefetch = 0 : i64, scratch_operands = 0 : i64, tpu.core_type = #tpu.core_type<tc>, window_params = [{transform_indices = @transform_0, window_bounds = array<i64: 4, 56, 256>}, {pipeline_mode = #tpu.pipeline_mode<synchronous>, transform_indices = @transform_1, window_bounds = array<i64: 256, 128>}, {pipeline_mode = #tpu.pipeline_mode<synchronous>, transform_indices = @transform_2, window_bounds = array<i64: 8, 128>}]} {
    %c0_i32 = arith.constant 0 : i32
    %0 = arith.cmpi eq, %arg0, %c0_i32 : i32
    %1 = arith.extui %0 : i1 to i32
    %c0_i32_0 = arith.constant 0 : i32
    %2 = arith.cmpi ne, %1, %c0_i32_0 : i32
    scf.if %2 {
      %cst_32 = arith.constant 0.000000e+00 : f32
      %52 = vector.broadcast %cst_32 : f32 to vector<8x128xf32>
      %c0_33 = arith.constant 0 : index
      %c0_34 = arith.constant 0 : index
      %53 = vector.load %arg3[%c0_33, %c0_34] : memref<8x128xf32, #tpu.memory_space<vmem>>, vector<8x128xf32>
      tpu.vector_store %arg3[%c0_33, %c0_34], %52 {strides = array<i32>} : memref<8x128xf32, #tpu.memory_space<vmem>>, vector<8x128xf32>,
    } else {
    }
    %c0 = arith.constant 0 : index
    %c0_1 = arith.constant 0 : index
    %3 = vector.load %arg2[%c0, %c0_1] : memref<256x128xbf16, #tpu.memory_space<vmem>>, vector<256x128xbf16>
    %cst = arith.constant 0.000000e+00 : f32
    %4 = vector.broadcast %cst : f32 to vector<1x128xf32>
    %cst_2 = arith.constant 0.000000e+00 : f32
    %5 = vector.broadcast %cst_2 : f32 to vector<1x128xf32>
    %c0_3 = arith.constant 0 : index
    %c0_4 = arith.constant 0 : index
    %c0_5 = arith.constant 0 : index
    %6 = vector.load %arg1[%c0_3, %c0_4, %c0_5] : memref<4x56x256xbf16, #tpu.memory_space<vmem>>, vector<1x56x256xbf16>
    %7 = vector.shape_cast %6 : vector<1x56x256xbf16> to vector<56x256xbf16>
    %cst_6 = arith.constant dense<0.000000e+00> : vector<56x128xf32>
    %8 = tpu.matmul %7, %3, %cst_6 {dimension_numbers = #tpu.dot_dimension_numbers<[1], [0], [0], [1], [0, 0, 1, 1], [], []>} : vector<56x256xbf16>, vector<256x128xbf16>, vector<56x128xf32> -> vector<56x128xf32>
    %cst_7 = arith.constant dense<0.000000e+00> : vector<128xf32>
    %9 = vector.multi_reduction <add>, %8, %cst_7 [0] : vector<56x128xf32> to vector<128xf32>
    %10 = vector.shape_cast %9 : vector<128xf32> to vector<1x128xf32>
    %11 = arith.addf %4, %10 : vector<1x128xf32>
    %12 = arith.mulf %8, %8 : vector<56x128xf32>
    %cst_8 = arith.constant dense<0.000000e+00> : vector<128xf32>
    %13 = vector.multi_reduction <add>, %12, %cst_8 [0] : vector<56x128xf32> to vector<128xf32>
    %14 = vector.shape_cast %13 : vector<128xf32> to vector<1x128xf32>
    %15 = arith.addf %5, %14 : vector<1x128xf32>
    %c1 = arith.constant 1 : index
    %c0_9 = arith.constant 0 : index
    %c0_10 = arith.constant 0 : index
    %16 = vector.load %arg1[%c1, %c0_9, %c0_10] : memref<4x56x256xbf16, #tpu.memory_space<vmem>>, vector<1x56x256xbf16>
    %17 = vector.shape_cast %16 : vector<1x56x256xbf16> to vector<56x256xbf16>
    %cst_11 = arith.constant dense<0.000000e+00> : vector<56x128xf32>
    %18 = tpu.matmul %17, %3, %cst_11 {dimension_numbers = #tpu.dot_dimension_numbers<[1], [0], [0], [1], [0, 0, 1, 1], [], []>} : vector<56x256xbf16>, vector<256x128xbf16>, vector<56x128xf32> -> vector<56x128xf32>
    %cst_12 = arith.constant dense<0.000000e+00> : vector<128xf32>
    %19 = vector.multi_reduction <add>, %18, %cst_12 [0] : vector<56x128xf32> to vector<128xf32>
    %20 = vector.shape_cast %19 : vector<128xf32> to vector<1x128xf32>
    %21 = arith.addf %11, %20 : vector<1x128xf32>
    %22 = arith.mulf %18, %18 : vector<56x128xf32>
    %cst_13 = arith.constant dense<0.000000e+00> : vector<128xf32>
    %23 = vector.multi_reduction <add>, %22, %cst_13 [0] : vector<56x128xf32> to vector<128xf32>
    %24 = vector.shape_cast %23 : vector<128xf32> to vector<1x128xf32>
    %25 = arith.addf %15, %24 : vector<1x128xf32>
    %c2 = arith.constant 2 : index
    %c0_14 = arith.constant 0 : index
    %c0_15 = arith.constant 0 : index
    %26 = vector.load %arg1[%c2, %c0_14, %c0_15] : memref<4x56x256xbf16, #tpu.memory_space<vmem>>, vector<1x56x256xbf16>
    %27 = vector.shape_cast %26 : vector<1x56x256xbf16> to vector<56x256xbf16>
    %cst_16 = arith.constant dense<0.000000e+00> : vector<56x128xf32>
    %28 = tpu.matmul %27, %3, %cst_16 {dimension_numbers = #tpu.dot_dimension_numbers<[1], [0], [0], [1], [0, 0, 1, 1], [], []>} : vector<56x256xbf16>, vector<256x128xbf16>, vector<56x128xf32> -> vector<56x128xf32>
    %cst_17 = arith.constant dense<0.000000e+00> : vector<128xf32>
    %29 = vector.multi_reduction <add>, %28, %cst_17 [0] : vector<56x128xf32> to vector<128xf32>
    %30 = vector.shape_cast %29 : vector<128xf32> to vector<1x128xf32>
    %31 = arith.addf %21, %30 : vector<1x128xf32>
    %32 = arith.mulf %28, %28 : vector<56x128xf32>
    %cst_18 = arith.constant dense<0.000000e+00> : vector<128xf32>
    %33 = vector.multi_reduction <add>, %32, %cst_18 [0] : vector<56x128xf32> to vector<128xf32>
    %34 = vector.shape_cast %33 : vector<128xf32> to vector<1x128xf32>
    %35 = arith.addf %25, %34 : vector<1x128xf32>
    %c3 = arith.constant 3 : index
    %c0_19 = arith.constant 0 : index
    %c0_20 = arith.constant 0 : index
    %36 = vector.load %arg1[%c3, %c0_19, %c0_20] : memref<4x56x256xbf16, #tpu.memory_space<vmem>>, vector<1x56x256xbf16>
    %37 = vector.shape_cast %36 : vector<1x56x256xbf16> to vector<56x256xbf16>
    %cst_21 = arith.constant dense<0.000000e+00> : vector<56x128xf32>
    %38 = tpu.matmul %37, %3, %cst_21 {dimension_numbers = #tpu.dot_dimension_numbers<[1], [0], [0], [1], [0, 0, 1, 1], [], []>} : vector<56x256xbf16>, vector<256x128xbf16>, vector<56x128xf32> -> vector<56x128xf32>
    %cst_22 = arith.constant dense<0.000000e+00> : vector<128xf32>
    %39 = vector.multi_reduction <add>, %38, %cst_22 [0] : vector<56x128xf32> to vector<128xf32>
    %40 = vector.shape_cast %39 : vector<128xf32> to vector<1x128xf32>
    %41 = arith.addf %31, %40 : vector<1x128xf32>
    %42 = arith.mulf %38, %38 : vector<56x128xf32>
    %cst_23 = arith.constant dense<0.000000e+00> : vector<128xf32>
    %43 = vector.multi_reduction <add>, %42, %cst_23 [0] : vector<56x128xf32> to vector<128xf32>
    %44 = vector.shape_cast %43 : vector<128xf32> to vector<1x128xf32>
    %45 = arith.addf %35, %44 : vector<1x128xf32>
    %c0_24 = arith.constant 0 : index
    %c0_25 = arith.constant 0 : index
    %46 = vector.load %arg3[%c0_24, %c0_25] : memref<8x128xf32, #tpu.memory_space<vmem>>, vector<1x128xf32>
    %47 = arith.addf %46, %41 : vector<1x128xf32>
    %c0_26 = arith.constant 0 : index
    %c0_27 = arith.constant 0 : index
    %48 = vector.load %arg3[%c0_26, %c0_27] : memref<8x128xf32, #tpu.memory_space<vmem>>, vector<1x128xf32>
    tpu.vector_store %arg3[%c0_26, %c0_27], %47 {strides = array<i32>} : memref<8x128xf32, #tpu.memory_space<vmem>>, vector<1x128xf32>,
    %c1_28 = arith.constant 1 : index
    %c0_29 = arith.constant 0 : index
    %49 = vector.load %arg3[%c1_28, %c0_29] : memref<8x128xf32, #tpu.memory_space<vmem>>, vector<1x128xf32>
    %50 = arith.addf %49, %45 : vector<1x128xf32>
    %c1_30 = arith.constant 1 : index
    %c0_31 = arith.constant 0 : index
    %51 = vector.load %arg3[%c1_30, %c0_31] : memref<8x128xf32, #tpu.memory_space<vmem>>, vector<1x128xf32>
    tpu.vector_store %arg3[%c1_30, %c0_31], %50 {strides = array<i32>} : memref<8x128xf32, #tpu.memory_space<vmem>>, vector<1x128xf32>,
    return
  }
  func.func @transform_0(%arg0: i32) -> (i32, i32, i32) {
    %c0_i32 = arith.constant 0 : i32
    %c0_i32_0 = arith.constant 0 : i32
    %c0_i32_1 = arith.constant 0 : i32
    return %c0_i32, %arg0, %c0_i32_0 : i32, i32, i32
  }
  func.func @transform_1(%arg0: i32) -> (i32, i32) {
    %c0_i32 = arith.constant 0 : i32
    %c0_i32_0 = arith.constant 0 : i32
    %c0_i32_1 = arith.constant 0 : i32
    return %c0_i32, %c0_i32_0 : i32, i32
  }
  func.func @transform_2(%arg0: i32) -> (i32, i32) {
    %c0_i32 = arith.constant 0 : i32
    %c0_i32_0 = arith.constant 0 : i32
    %c0_i32_1 = arith.constant 0 : i32
    return %c0_i32, %c0_i32_0 : i32, i32
  }
}

module attributes {stable_mosaic.version = 11 : i64} {
  func.func @conv_norm_pool_kernel(%arg0: i32, %arg1: memref<8x128xf32, #tpu.memory_space<vmem>>, %arg2: memref<1x128xf32, #tpu.memory_space<vmem>>, %arg3: memref<1x128xf32, #tpu.memory_space<vmem>>, %arg4: memref<4x56x256xbf16, #tpu.memory_space<vmem>>, %arg5: memref<256x128xbf16, #tpu.memory_space<vmem>>, %arg6: memref<56x128xbf16, #tpu.memory_space<vmem>>) attributes {dimension_semantics = [#tpu.dimension_semantics<parallel>], iteration_bounds = array<i64: 1>, scalar_prefetch = 0 : i64, scratch_operands = 0 : i64, tpu.core_type = #tpu.core_type<tc>, window_params = [{pipeline_mode = #tpu.pipeline_mode<synchronous>, transform_indices = @transform_0, window_bounds = array<i64: 8, 128>}, {pipeline_mode = #tpu.pipeline_mode<synchronous>, transform_indices = @transform_1, window_bounds = array<i64: 1, 128>}, {pipeline_mode = #tpu.pipeline_mode<synchronous>, transform_indices = @transform_2, window_bounds = array<i64: 1, 128>}, {transform_indices = @transform_3, window_bounds = array<i64: 4, 56, 256>}, {pipeline_mode = #tpu.pipeline_mode<synchronous>, transform_indices = @transform_4, window_bounds = array<i64: 256, 128>}, {transform_indices = @transform_5, window_bounds = array<i64: 56, 128>}]} {
    %c0 = arith.constant 0 : index
    %c0_0 = arith.constant 0 : index
    %0 = vector.load %arg1[%c0, %c0_0] : memref<8x128xf32, #tpu.memory_space<vmem>>, vector<1x128xf32>
    %cst = arith.constant 5.000000e-03 : f32
    %1 = vector.broadcast %cst : f32 to vector<1x128xf32>
    %2 = arith.mulf %0, %1 : vector<1x128xf32>
    %c1 = arith.constant 1 : index
    %c0_1 = arith.constant 0 : index
    %3 = vector.load %arg1[%c1, %c0_1] : memref<8x128xf32, #tpu.memory_space<vmem>>, vector<1x128xf32>
    %cst_2 = arith.constant 5.000000e-03 : f32
    %4 = vector.broadcast %cst_2 : f32 to vector<1x128xf32>
    %5 = arith.mulf %3, %4 : vector<1x128xf32>
    %6 = arith.mulf %2, %2 : vector<1x128xf32>
    %7 = arith.subf %5, %6 : vector<1x128xf32>
    %cst_3 = arith.constant 0.000000e+00 : f32
    %8 = vector.broadcast %cst_3 : f32 to vector<1x128xf32>
    %9 = arith.maximumf %7, %8 : vector<1x128xf32>
    %cst_4 = arith.constant 9.99999974E-6 : f32
    %10 = vector.broadcast %cst_4 : f32 to vector<1x128xf32>
    %11 = arith.addf %9, %10 : vector<1x128xf32>
    %12 = math.rsqrt %11 : vector<1x128xf32>
    %c0_5 = arith.constant 0 : index
    %c0_6 = arith.constant 0 : index
    %13 = vector.load %arg2[%c0_5, %c0_6] : memref<1x128xf32, #tpu.memory_space<vmem>>, vector<1x128xf32>
    %14 = arith.mulf %12, %13 : vector<1x128xf32>
    %c0_7 = arith.constant 0 : index
    %c0_8 = arith.constant 0 : index
    %15 = vector.load %arg3[%c0_7, %c0_8] : memref<1x128xf32, #tpu.memory_space<vmem>>, vector<1x128xf32>
    %16 = arith.mulf %2, %14 : vector<1x128xf32>
    %17 = arith.subf %15, %16 : vector<1x128xf32>
    %c0_9 = arith.constant 0 : index
    %c0_10 = arith.constant 0 : index
    %18 = vector.load %arg5[%c0_9, %c0_10] : memref<256x128xbf16, #tpu.memory_space<vmem>>, vector<256x128xbf16>
    %c0_11 = arith.constant 0 : index
    %c0_12 = arith.constant 0 : index
    %c0_13 = arith.constant 0 : index
    %19 = vector.load %arg4[%c0_11, %c0_12, %c0_13] : memref<4x56x256xbf16, #tpu.memory_space<vmem>>, vector<1x56x256xbf16>
    %20 = vector.shape_cast %19 : vector<1x56x256xbf16> to vector<56x256xbf16>
    %cst_14 = arith.constant dense<0.000000e+00> : vector<56x128xf32>
    %21 = tpu.matmul %20, %18, %cst_14 {dimension_numbers = #tpu.dot_dimension_numbers<[1], [0], [0], [1], [0, 0, 1, 1], [], []>} : vector<56x256xbf16>, vector<256x128xbf16>, vector<56x128xf32> -> vector<56x128xf32>
    %22 = vector.broadcast %14 : vector<1x128xf32> to vector<56x128xf32>
    %23 = arith.mulf %21, %22 : vector<56x128xf32>
    %24 = vector.broadcast %17 : vector<1x128xf32> to vector<56x128xf32>
    %25 = arith.addf %23, %24 : vector<56x128xf32>
    %cst_15 = arith.constant 0.000000e+00 : f32
    %26 = vector.broadcast %cst_15 : f32 to vector<56x128xf32>
    %27 = arith.maximumf %25, %26 : vector<56x128xf32>
    %c1_16 = arith.constant 1 : index
    %c0_17 = arith.constant 0 : index
    %c0_18 = arith.constant 0 : index
    %28 = vector.load %arg4[%c1_16, %c0_17, %c0_18] : memref<4x56x256xbf16, #tpu.memory_space<vmem>>, vector<1x56x256xbf16>
    %29 = vector.shape_cast %28 : vector<1x56x256xbf16> to vector<56x256xbf16>
    %cst_19 = arith.constant dense<0.000000e+00> : vector<56x128xf32>
    %30 = tpu.matmul %29, %18, %cst_19 {dimension_numbers = #tpu.dot_dimension_numbers<[1], [0], [0], [1], [0, 0, 1, 1], [], []>} : vector<56x256xbf16>, vector<256x128xbf16>, vector<56x128xf32> -> vector<56x128xf32>
    %31 = vector.broadcast %14 : vector<1x128xf32> to vector<56x128xf32>
    %32 = arith.mulf %30, %31 : vector<56x128xf32>
    %33 = vector.broadcast %17 : vector<1x128xf32> to vector<56x128xf32>
    %34 = arith.addf %32, %33 : vector<56x128xf32>
    %cst_20 = arith.constant 0.000000e+00 : f32
    %35 = vector.broadcast %cst_20 : f32 to vector<56x128xf32>
    %36 = arith.maximumf %34, %35 : vector<56x128xf32>
    %37 = arith.maximumf %27, %36 : vector<56x128xf32>
    %c2 = arith.constant 2 : index
    %c0_21 = arith.constant 0 : index
    %c0_22 = arith.constant 0 : index
    %38 = vector.load %arg4[%c2, %c0_21, %c0_22] : memref<4x56x256xbf16, #tpu.memory_space<vmem>>, vector<1x56x256xbf16>
    %39 = vector.shape_cast %38 : vector<1x56x256xbf16> to vector<56x256xbf16>
    %cst_23 = arith.constant dense<0.000000e+00> : vector<56x128xf32>
    %40 = tpu.matmul %39, %18, %cst_23 {dimension_numbers = #tpu.dot_dimension_numbers<[1], [0], [0], [1], [0, 0, 1, 1], [], []>} : vector<56x256xbf16>, vector<256x128xbf16>, vector<56x128xf32> -> vector<56x128xf32>
    %41 = vector.broadcast %14 : vector<1x128xf32> to vector<56x128xf32>
    %42 = arith.mulf %40, %41 : vector<56x128xf32>
    %43 = vector.broadcast %17 : vector<1x128xf32> to vector<56x128xf32>
    %44 = arith.addf %42, %43 : vector<56x128xf32>
    %cst_24 = arith.constant 0.000000e+00 : f32
    %45 = vector.broadcast %cst_24 : f32 to vector<56x128xf32>
    %46 = arith.maximumf %44, %45 : vector<56x128xf32>
    %47 = arith.maximumf %37, %46 : vector<56x128xf32>
    %c3 = arith.constant 3 : index
    %c0_25 = arith.constant 0 : index
    %c0_26 = arith.constant 0 : index
    %48 = vector.load %arg4[%c3, %c0_25, %c0_26] : memref<4x56x256xbf16, #tpu.memory_space<vmem>>, vector<1x56x256xbf16>
    %49 = vector.shape_cast %48 : vector<1x56x256xbf16> to vector<56x256xbf16>
    %cst_27 = arith.constant dense<0.000000e+00> : vector<56x128xf32>
    %50 = tpu.matmul %49, %18, %cst_27 {dimension_numbers = #tpu.dot_dimension_numbers<[1], [0], [0], [1], [0, 0, 1, 1], [], []>} : vector<56x256xbf16>, vector<256x128xbf16>, vector<56x128xf32> -> vector<56x128xf32>
    %51 = vector.broadcast %14 : vector<1x128xf32> to vector<56x128xf32>
    %52 = arith.mulf %50, %51 : vector<56x128xf32>
    %53 = vector.broadcast %17 : vector<1x128xf32> to vector<56x128xf32>
    %54 = arith.addf %52, %53 : vector<56x128xf32>
    %cst_28 = arith.constant 0.000000e+00 : f32
    %55 = vector.broadcast %cst_28 : f32 to vector<56x128xf32>
    %56 = arith.maximumf %54, %55 : vector<56x128xf32>
    %57 = arith.maximumf %47, %56 : vector<56x128xf32>
    %58 = arith.truncf %57 : vector<56x128xf32> to vector<56x128xbf16>
    %c0_29 = arith.constant 0 : index
    %c0_30 = arith.constant 0 : index
    %59 = vector.load %arg6[%c0_29, %c0_30] : memref<56x128xbf16, #tpu.memory_space<vmem>>, vector<56x128xbf16>
    tpu.vector_store %arg6[%c0_29, %c0_30], %58 {strides = array<i32>} : memref<56x128xbf16, #tpu.memory_space<vmem>>, vector<56x128xbf16>,
    return
  }
  func.func @transform_0(%arg0: i32) -> (i32, i32) {
    %c0_i32 = arith.constant 0 : i32
    %c0_i32_0 = arith.constant 0 : i32
    %c0_i32_1 = arith.constant 0 : i32
    return %c0_i32, %c0_i32_0 : i32, i32
  }
  func.func @transform_1(%arg0: i32) -> (i32, i32) {
    %c0_i32 = arith.constant 0 : i32
    %c0_i32_0 = arith.constant 0 : i32
    %c0_i32_1 = arith.constant 0 : i32
    return %c0_i32, %c0_i32_0 : i32, i32
  }
  func.func @transform_2(%arg0: i32) -> (i32, i32) {
    %c0_i32 = arith.constant 0 : i32
    %c0_i32_0 = arith.constant 0 : i32
    %c0_i32_1 = arith.constant 0 : i32
    return %c0_i32, %c0_i32_0 : i32, i32
  }
  func.func @transform_3(%arg0: i32) -> (i32, i32, i32) {
    %c0_i32 = arith.constant 0 : i32
    %c0_i32_0 = arith.constant 0 : i32
    %c0_i32_1 = arith.constant 0 : i32
    return %c0_i32, %arg0, %c0_i32_0 : i32, i32, i32
  }
  func.func @transform_4(%arg0: i32) -> (i32, i32) {
    %c0_i32 = arith.constant 0 : i32
    %c0_i32_0 = arith.constant 0 : i32
    %c0_i32_1 = arith.constant 0 : i32
    return %c0_i32, %c0_i32_0 : i32, i32
  }
  func.func @transform_5(%arg0: i32) -> (i32, i32) {
    %c0_i32 = arith.constant 0 : i32
    %c0_i32_0 = arith.constant 0 : i32
    return %arg0, %c0_i32 : i32, i32
  }
}

module attributes {stable_mosaic.version = 11 : i64} {
  func.func @fc_stack_kernel(%arg0: memref<2x3200xbf16, #tpu.memory_space<vmem>>, %arg1: memref<3200x128xbf16, #tpu.memory_space<vmem>>, %arg2: memref<1x128xf32, #tpu.memory_space<vmem>>, %arg3: memref<1x128xf32, #tpu.memory_space<vmem>>, %arg4: memref<128x128xbf16, #tpu.memory_space<vmem>>, %arg5: memref<1x128xf32, #tpu.memory_space<vmem>>, %arg6: memref<1x128xf32, #tpu.memory_space<vmem>>, %arg7: memref<128x128xbf16, #tpu.memory_space<vmem>>, %arg8: memref<1x128xf32, #tpu.memory_space<vmem>>, %arg9: memref<2x128xf32, #tpu.memory_space<vmem>>) attributes {dimension_semantics = [], scalar_prefetch = 0 : i64, scratch_operands = 0 : i64, tpu.core_type = #tpu.core_type<tc>} {
    %c0 = arith.constant 0 : index
    %c0_0 = arith.constant 0 : index
    %0 = vector.load %arg0[%c0, %c0_0] : memref<2x3200xbf16, #tpu.memory_space<vmem>>, vector<2x3200xbf16>
    %c0_1 = arith.constant 0 : index
    %c0_2 = arith.constant 0 : index
    %1 = vector.load %arg1[%c0_1, %c0_2] : memref<3200x128xbf16, #tpu.memory_space<vmem>>, vector<3200x128xbf16>
    %cst = arith.constant dense<0.000000e+00> : vector<2x128xf32>
    %2 = tpu.matmul %0, %1, %cst {dimension_numbers = #tpu.dot_dimension_numbers<[1], [0], [0], [1], [0, 0, 1, 1], [], []>} : vector<2x3200xbf16>, vector<3200x128xbf16>, vector<2x128xf32> -> vector<2x128xf32>
    %c0_3 = arith.constant 0 : index
    %c0_4 = arith.constant 0 : index
    %3 = vector.load %arg2[%c0_3, %c0_4] : memref<1x128xf32, #tpu.memory_space<vmem>>, vector<1x128xf32>
    %c0_5 = arith.constant 0 : index
    %c0_6 = arith.constant 0 : index
    %4 = vector.load %arg3[%c0_5, %c0_6] : memref<1x128xf32, #tpu.memory_space<vmem>>, vector<1x128xf32>
    %cst_7 = arith.constant dense<0.000000e+00> : vector<128xf32>
    %5 = vector.multi_reduction <add>, %2, %cst_7 [0] : vector<2x128xf32> to vector<128xf32>
    %6 = vector.shape_cast %5 : vector<128xf32> to vector<1x128xf32>
    %cst_8 = arith.constant 2.000000e+00 : f32
    %7 = vector.broadcast %cst_8 : f32 to vector<1x128xf32>
    %8 = arith.divf %6, %7 : vector<1x128xf32>
    %9 = vector.broadcast %8 : vector<1x128xf32> to vector<2x128xf32>
    %10 = arith.subf %2, %9 : vector<2x128xf32>
    %11 = arith.mulf %10, %10 : vector<2x128xf32>
    %cst_9 = arith.constant dense<0.000000e+00> : vector<128xf32>
    %12 = vector.multi_reduction <add>, %11, %cst_9 [0] : vector<2x128xf32> to vector<128xf32>
    %13 = vector.shape_cast %12 : vector<128xf32> to vector<1x128xf32>
    %cst_10 = arith.constant 2.000000e+00 : f32
    %14 = vector.broadcast %cst_10 : f32 to vector<1x128xf32>
    %15 = arith.divf %13, %14 : vector<1x128xf32>
    %cst_11 = arith.constant 9.99999974E-6 : f32
    %16 = vector.broadcast %cst_11 : f32 to vector<1x128xf32>
    %17 = arith.addf %15, %16 : vector<1x128xf32>
    %18 = math.rsqrt %17 : vector<1x128xf32>
    %19 = vector.broadcast %18 : vector<1x128xf32> to vector<2x128xf32>
    %20 = arith.mulf %10, %19 : vector<2x128xf32>
    %21 = vector.broadcast %3 : vector<1x128xf32> to vector<2x128xf32>
    %22 = arith.mulf %20, %21 : vector<2x128xf32>
    %23 = vector.broadcast %4 : vector<1x128xf32> to vector<2x128xf32>
    %24 = arith.addf %22, %23 : vector<2x128xf32>
    %cst_12 = arith.constant 0.000000e+00 : f32
    %25 = vector.broadcast %cst_12 : f32 to vector<2x128xf32>
    %26 = arith.maximumf %24, %25 : vector<2x128xf32>
    %27 = arith.truncf %26 : vector<2x128xf32> to vector<2x128xbf16>
    %c0_13 = arith.constant 0 : index
    %c0_14 = arith.constant 0 : index
    %28 = vector.load %arg4[%c0_13, %c0_14] : memref<128x128xbf16, #tpu.memory_space<vmem>>, vector<128x128xbf16>
    %cst_15 = arith.constant dense<0.000000e+00> : vector<2x128xf32>
    %29 = tpu.matmul %27, %28, %cst_15 {dimension_numbers = #tpu.dot_dimension_numbers<[1], [0], [0], [1], [0, 0, 1, 1], [], []>} : vector<2x128xbf16>, vector<128x128xbf16>, vector<2x128xf32> -> vector<2x128xf32>
    %c0_16 = arith.constant 0 : index
    %c0_17 = arith.constant 0 : index
    %30 = vector.load %arg5[%c0_16, %c0_17] : memref<1x128xf32, #tpu.memory_space<vmem>>, vector<1x128xf32>
    %c0_18 = arith.constant 0 : index
    %c0_19 = arith.constant 0 : index
    %31 = vector.load %arg6[%c0_18, %c0_19] : memref<1x128xf32, #tpu.memory_space<vmem>>, vector<1x128xf32>
    %cst_20 = arith.constant dense<0.000000e+00> : vector<128xf32>
    %32 = vector.multi_reduction <add>, %29, %cst_20 [0] : vector<2x128xf32> to vector<128xf32>
    %33 = vector.shape_cast %32 : vector<128xf32> to vector<1x128xf32>
    %cst_21 = arith.constant 2.000000e+00 : f32
    %34 = vector.broadcast %cst_21 : f32 to vector<1x128xf32>
    %35 = arith.divf %33, %34 : vector<1x128xf32>
    %36 = vector.broadcast %35 : vector<1x128xf32> to vector<2x128xf32>
    %37 = arith.subf %29, %36 : vector<2x128xf32>
    %38 = arith.mulf %37, %37 : vector<2x128xf32>
    %cst_22 = arith.constant dense<0.000000e+00> : vector<128xf32>
    %39 = vector.multi_reduction <add>, %38, %cst_22 [0] : vector<2x128xf32> to vector<128xf32>
    %40 = vector.shape_cast %39 : vector<128xf32> to vector<1x128xf32>
    %cst_23 = arith.constant 2.000000e+00 : f32
    %41 = vector.broadcast %cst_23 : f32 to vector<1x128xf32>
    %42 = arith.divf %40, %41 : vector<1x128xf32>
    %cst_24 = arith.constant 9.99999974E-6 : f32
    %43 = vector.broadcast %cst_24 : f32 to vector<1x128xf32>
    %44 = arith.addf %42, %43 : vector<1x128xf32>
    %45 = math.rsqrt %44 : vector<1x128xf32>
    %46 = vector.broadcast %45 : vector<1x128xf32> to vector<2x128xf32>
    %47 = arith.mulf %37, %46 : vector<2x128xf32>
    %48 = vector.broadcast %30 : vector<1x128xf32> to vector<2x128xf32>
    %49 = arith.mulf %47, %48 : vector<2x128xf32>
    %50 = vector.broadcast %31 : vector<1x128xf32> to vector<2x128xf32>
    %51 = arith.addf %49, %50 : vector<2x128xf32>
    %cst_25 = arith.constant 0.000000e+00 : f32
    %52 = vector.broadcast %cst_25 : f32 to vector<2x128xf32>
    %53 = arith.maximumf %51, %52 : vector<2x128xf32>
    %54 = arith.truncf %53 : vector<2x128xf32> to vector<2x128xbf16>
    %c0_26 = arith.constant 0 : index
    %c0_27 = arith.constant 0 : index
    %55 = vector.load %arg7[%c0_26, %c0_27] : memref<128x128xbf16, #tpu.memory_space<vmem>>, vector<128x128xbf16>
    %cst_28 = arith.constant dense<0.000000e+00> : vector<2x128xf32>
    %56 = tpu.matmul %54, %55, %cst_28 {dimension_numbers = #tpu.dot_dimension_numbers<[1], [0], [0], [1], [0, 0, 1, 1], [], []>} : vector<2x128xbf16>, vector<128x128xbf16>, vector<2x128xf32> -> vector<2x128xf32>
    %c0_29 = arith.constant 0 : index
    %c0_30 = arith.constant 0 : index
    %57 = vector.load %arg8[%c0_29, %c0_30] : memref<1x128xf32, #tpu.memory_space<vmem>>, vector<1x128xf32>
    %58 = vector.broadcast %57 : vector<1x128xf32> to vector<2x128xf32>
    %59 = arith.addf %56, %58 : vector<2x128xf32>
    %cst_31 = arith.constant dense<0xFF800000> : vector<2xf32>
    %60 = vector.multi_reduction <maximumf>, %59, %cst_31 [1] : vector<2x128xf32> to vector<2xf32>
    %61 = vector.shape_cast %60 : vector<2xf32> to vector<2x1xf32>
    %62 = vector.broadcast %61 : vector<2x1xf32> to vector<2x128xf32>
    %63 = arith.subf %59, %62 : vector<2x128xf32>
    %64 = math.exp %63 : vector<2x128xf32>
    %cst_32 = arith.constant dense<0.000000e+00> : vector<2xf32>
    %65 = vector.multi_reduction <add>, %64, %cst_32 [1] : vector<2x128xf32> to vector<2xf32>
    %66 = vector.shape_cast %65 : vector<2xf32> to vector<2x1xf32>
    %67 = math.log %66 : vector<2x1xf32>
    %68 = vector.broadcast %67 : vector<2x1xf32> to vector<2x128xf32>
    %69 = arith.subf %63, %68 : vector<2x128xf32>
    %c0_33 = arith.constant 0 : index
    %c0_34 = arith.constant 0 : index
    %70 = vector.load %arg9[%c0_33, %c0_34] : memref<2x128xf32, #tpu.memory_space<vmem>>, vector<2x128xf32>
    tpu.vector_store %arg9[%c0_33, %c0_34], %69 {strides = array<i32>} : memref<2x128xf32, #tpu.memory_space<vmem>>, vector<2x128xf32>,
    return
  }
}

</mosaic_0001>

<llo_original>
// kernel: lenet5_bn_forward.5
$region0: #{lenet5_bn_forward.5}
  #allocation0 [shape = 'u32[]', space=smem, size = 0x4, offset = 0x4, fixed_abs, tag = 'smem constant byte address 0x4 - core index']
  #allocation1 [shape = 'u32[144,128]{1,0:T(1,128)}', space=vmem, size = 0x12000, scoped, tag = 'internal scratch']
  %s0 = inlined_call_operand.vmem [shape: bf16[4,392,128], index: 0, kind: input, shape index: {}]
  %s1 = inlined_call_operand.vmem [shape: bf16[128,128], index: 1, kind: input, shape index: {}]
  %s2 = inlined_call_operand.vmem [shape: f32[8,128], index: 2, kind: output, shape index: {}]
  %s3 = sld [smem:[#allocation0]]
  $region22: #{lenet5_bn_forward.5} parent=0
    _
  %s5 = ssub.s32 1, %s3
  %s6 = scalar_select 0, %s5, %s3
  // Predicated region
  $region2: #{lenet5_bn_forward.5} parent=0 // pred_check
    _
  $region3: #{lenet5_bn_forward.5} parent=0 // pred_check_branch
    %8 = sbr.rel (0) target = $region5
  $region4: #{lenet5_bn_forward.5} parent=0 // pred_region
    _
  $region5: #{lenet5_bn_forward.5} parent=0 // pred_fallthru
    _
  // Predicated region
  $region6: #{lenet5_bn_forward.5} parent=0 // pred_check
    _
  $region7: #{lenet5_bn_forward.5} parent=0 // pred_check_branch
    %10 = sbr.rel (0) target = $region9
  $region8: #{lenet5_bn_forward.5} parent=0 // pred_region
    _
  $region9: #{lenet5_bn_forward.5} parent=0 // pred_fallthru
    _
  %p12 = scmp.eq.s32.totalorder 0, 0
  // Predicated region
  $region10: #{lenet5_bn_forward.5} parent=0 // pred_check
    %p13 = pneg %p12
  $region11: #{lenet5_bn_forward.5} parent=0 // pred_check_branch
    %15 = sbr.rel (%p13) target = $region13
  $region12: #{lenet5_bn_forward.5} parent=0 // pred_region
    %16 = vst [vmem:[%s2] sm:$0xff] 0.0
  $region13: #{lenet5_bn_forward.5} parent=0 // pred_fallthru
    _
  %v17 = vld [vmem:[%s1] sm:$0xf]
  %v18 = vld [vmem:[%s1 + $0x4] sm:$0xf]
  %v19 = vld [vmem:[%s1 + $0x8] sm:$0xf]
  %v20 = vld [vmem:[%s1 + $0xc] sm:$0xf]
  %v21 = vld [vmem:[%s1 + $0x10] sm:$0xf]
  %v22 = vld [vmem:[%s1 + $0x14] sm:$0xf]
  %v23 = vld [vmem:[%s1 + $0x18] sm:$0xf]
  %v24 = vld [vmem:[%s1 + $0x1c] sm:$0xf]
  %v25 = vld [vmem:[%s1 + $0x20] sm:$0xf]
  %v26 = vld [vmem:[%s1 + $0x24] sm:$0xf]
  %v27 = vld [vmem:[%s1 + $0x28] sm:$0xf]
  %v28 = vld [vmem:[%s1 + $0x2c] sm:$0xf]
  %v29 = vld [vmem:[%s1 + $0x30] sm:$0xf]
  %v30 = vld [vmem:[%s1 + $0x34] sm:$0xf]
  %v31 = vld [vmem:[%s1 + $0x38] sm:$0xf]
  %v32 = vld [vmem:[%s1 + $0x3c] sm:$0xf]
  %v33 = vld [vmem:[%s0] sm:$0xf]
  %v34 = vld [vmem:[%s0 + $0x4] sm:$0xf]
  %v35 = vld [vmem:[%s0 + $0x8] sm:$0xf]
  %v36 = vld [vmem:[%s0 + $0xc] sm:$0xf]
  %v37 = vld [vmem:[%s0 + $0x10] sm:$0xf]
  %v38 = vld [vmem:[%s0 + $0x14] sm:$0xf]
  %v39 = vld [vmem:[%s0 + $0x18] sm:$0xf]
  %v40 = vld [vmem:[%s0 + $0x1c] sm:$0xf]
  %v41 = vld [vmem:[%s0 + $0x20] sm:$0xf]
  %v42 = vld [vmem:[%s0 + $0x24] sm:$0xf]
  %v43 = vld [vmem:[%s0 + $0x28] sm:$0xf]
  %v44 = vld [vmem:[%s0 + $0x2c] sm:$0xf]
  %v45 = vld [vmem:[%s0 + $0x30] sm:$0xf]
  %v46 = vld [vmem:[%s0 + $0x34] sm:$0xf]
  %v47 = vld [vmem:[%s0 + $0x38] sm:$0xf]
  %v48 = vld [vmem:[%s0 + $0x3c] sm:$0xf]
  %v49 = vld [vmem:[%s0 + $0x40] sm:$0xf]
  %v50 = vld [vmem:[%s0 + $0x44] sm:$0xf]
  %v51 = vld [vmem:[%s0 + $0x48] sm:$0xf]
  %v52 = vld [vmem:[%s0 + $0x4c] sm:$0xf]
  %v53 = vld [vmem:[%s0 + $0x50] sm:$0xf]
  %v54 = vld [vmem:[%s0 + $0x54] sm:$0xf]
  %v55 = vld [vmem:[%s0 + $0x58] sm:$0xf]
  %v56 = vld [vmem:[%s0 + $0x5c] sm:$0xf]
  %v57 = vld [vmem:[%s0 + $0x60] sm:$0xf]
  %v58 = vld [vmem:[%s0 + $0x64] sm:$0xf]
  %v59 = vld [vmem:[%s0 + $0x68] sm:$0xf]
  %v60 = vld [vmem:[%s0 + $0x6c] sm:$0xf]
  %v61 = vld [vmem:[%s0 + $0x70] sm:$0xf]
  %v62 = vld [vmem:[%s0 + $0x74] sm:$0xf]
  %v63 = vld [vmem:[%s0 + $0x78] sm:$0xf]
  %v64 = vld [vmem:[%s0 + $0x7c] sm:$0xf]
  %v65 = vld [vmem:[%s0 + $0x80] sm:$0xf]
  %v66 = vld [vmem:[%s0 + $0x84] sm:$0xf]
  %v67 = vld [vmem:[%s0 + $0x88] sm:$0xf]
  %v68 = vld [vmem:[%s0 + $0x8c] sm:$0xf]
  %v69 = vld [vmem:[%s0 + $0x90] sm:$0xf]
  %v70 = vld [vmem:[%s0 + $0x94] sm:$0xf]
  %v71 = vld [vmem:[%s0 + $0x98] sm:$0xf]
  %v72 = vld [vmem:[%s0 + $0x9c] sm:$0xf]
  %v73 = vld [vmem:[%s0 + $0xa0] sm:$0xf]
  %v74 = vld [vmem:[%s0 + $0xa4] sm:$0xf]
  %v75 = vld [vmem:[%s0 + $0xa8] sm:$0xf]
  %v76 = vld [vmem:[%s0 + $0xac] sm:$0xf]
  %v77 = vld [vmem:[%s0 + $0xb0] sm:$0xf]
  %v78 = vld [vmem:[%s0 + $0xb4] sm:$0xf]
  %v79 = vld [vmem:[%s0 + $0xb8] sm:$0xf]
  %v80 = vld [vmem:[%s0 + $0xbc] sm:$0xf]
  %v81 = vld [vmem:[%s0 + $0xc0] sm:$0xf]
  %v131 = vunpack.c.l.b16 %v33
  %v132 = vunpack.c.l.b16 %v34
  %v133 = vunpack.c.l.b16 %v35
  %v134 = vunpack.c.l.b16 %v36
  %v135 = vunpack.c.l.b16 %v37
  %v136 = vunpack.c.l.b16 %v38
  %v137 = vunpack.c.l.b16 %v39
  %v138 = vunpack.c.l.b16 %v40
  %v139 = vunpack.c.l.b16 %v41
  %v140 = vunpack.c.l.b16 %v42
  %v141 = vunpack.c.l.b16 %v43
  %v142 = vunpack.c.l.b16 %v44
  %v143 = vunpack.c.l.b16 %v45
  %v144 = vunpack.c.l.b16 %v46
  %v145 = vunpack.c.l.b16 %v47
  %v146 = vunpack.c.l.b16 %v48
  %v147 = vunpack.c.l.b16 %v49
  %v148 = vunpack.c.l.b16 %v50
  %v149 = vunpack.c.l.b16 %v51
  %v150 = vunpack.c.l.b16 %v52
  %v151 = vunpack.c.l.b16 %v53
  %v152 = vunpack.c.l.b16 %v54
  %v153 = vunpack.c.l.b16 %v55
  %v154 = vunpack.c.l.b16 %v56
  %v155 = vunpack.c.l.b16 %v57
  %v156 = vunpack.c.l.b16 %v58
  %v157 = vunpack.c.l.b16 %v59
  %v158 = vunpack.c.l.b16 %v60
  %v159 = vunpack.c.l.b16 %v61
  %v160 = vunpack.c.l.b16 %v62
  %v161 = vunpack.c.l.b16 %v63
  %v162 = vunpack.c.l.b16 %v64
  %v163 = vunpack.c.l.b16 %v65
  %v164 = vunpack.c.l.b16 %v66
  %v165 = vunpack.c.l.b16 %v67
  %v166 = vunpack.c.l.b16 %v68
  %v167 = vunpack.c.l.b16 %v69
  %v168 = vunpack.c.l.b16 %v70
  %v169 = vunpack.c.l.b16 %v71
  %v170 = vunpack.c.l.b16 %v72
  %v171 = vunpack.c.l.b16 %v73
  %v172 = vunpack.c.l.b16 %v74
  %v173 = vunpack.c.l.b16 %v75
  %v174 = vunpack.c.l.b16 %v76
  %v175 = vunpack.c.l.b16 %v77
  %v176 = vunpack.c.l.b16 %v78
  %v177 = vunpack.c.l.b16 %v79
  %v178 = vunpack.c.l.b16 %v80
  %v179 = vunpack.c.l.b16 %v81
  %v180 = vpack.c.b16 %v132, %v131
  %v181 = vpack.c.b16 %v134, %v133
  %v182 = vpack.c.b16 %v136, %v135
  %v183 = vpack.c.b16 %v138, %v137
  %v184 = vpack.c.b16 %v140, %v139
  %v185 = vpack.c.b16 %v142, %v141
  %v186 = vpack.c.b16 %v144, %v143
  %v187 = vpack.c.b16 %v146, %v145
  %v188 = vpack.c.b16 %v148, %v147
  %v189 = vpack.c.b16 %v150, %v149
  %v190 = vpack.c.b16 %v152, %v151
  %v191 = vpack.c.b16 %v154, %v153
  %v192 = vpack.c.b16 %v156, %v155
  %v193 = vpack.c.b16 %v158, %v157
  %v194 = vpack.c.b16 %v160, %v159
  %v195 = vpack.c.b16 %v162, %v161
  %v196 = vpack.c.b16 %v164, %v163
  %v197 = vpack.c.b16 %v166, %v165
  %v198 = vpack.c.b16 %v168, %v167
  %v199 = vpack.c.b16 %v170, %v169
  %v200 = vpack.c.b16 %v172, %v171
  %v201 = vpack.c.b16 %v174, %v173
  %v202 = vpack.c.b16 %v176, %v175
  %v203 = vpack.c.b16 %v178, %v177
  %v204 = vpack.c.b16 %v179, %v179
  %v246 = vunpack.c.l.b16 %v17
  %v247 = vunpack.c.l.b16 %v18
  %v248 = vunpack.c.l.b16 %v19
  %v249 = vunpack.c.l.b16 %v20
  %v250 = vunpack.c.l.b16 %v21
  %v251 = vunpack.c.l.b16 %v22
  %v252 = vunpack.c.l.b16 %v23
  %v253 = vunpack.c.l.b16 %v24
  %v254 = vunpack.c.l.b16 %v25
  %v255 = vunpack.c.l.b16 %v26
  %v256 = vunpack.c.l.b16 %v27
  %v257 = vunpack.c.l.b16 %v28
  %v258 = vunpack.c.l.b16 %v29
  %v259 = vunpack.c.l.b16 %v30
  %v260 = vunpack.c.l.b16 %v31
  %v261 = vunpack.c.l.b16 %v32
  %v262 = vpack.c.b16 %v247, %v246
  %v263 = vpack.c.b16 %v249, %v248
  %v264 = vpack.c.b16 %v251, %v250
  %v265 = vpack.c.b16 %v253, %v252
  %v266 = vpack.c.b16 %v255, %v254
  %v267 = vpack.c.b16 %v257, %v256
  %v268 = vpack.c.b16 %v259, %v258
  %v269 = vpack.c.b16 %v261, %v260
  %278 = vmatprep.subr.bf16.mxu0 0
  %279 = vmatpush1.bf16.msra.mxu0 %v262
  %280 = vmatprep.subr.bf16.mxu0 0
  %281 = vmatpush1.bf16.msra.mxu0 %v263
  %282 = vmatprep.subr.bf16.mxu0 0
  %283 = vmatpush1.bf16.msra.mxu0 %v264
  %284 = vmatprep.subr.bf16.mxu0 0
  %285 = vmatpush1.bf16.msra.mxu0 %v265
  %286 = vmatprep.subr.bf16.mxu0 0
  %287 = vmatpush1.bf16.msra.mxu0 %v266
  %288 = vmatprep.subr.bf16.mxu0 0
  %289 = vmatpush1.bf16.msra.mxu0 %v267
  %290 = vmatprep.subr.bf16.mxu0 0
  %291 = vmatpush1.bf16.msra.mxu0 %v268
  %292 = vmatprep.subr.bf16.mxu0 0
  %293 = vmatpush1.bf16.msra.mxu0 %v269
  %294 = vmatprep.subr.bf16.mxu0 0
  %295 = vmatpush1.bf16.msra.mxu0 0
  %296 = vmatprep.subr.bf16.mxu0 0
  %297 = vmatpush1.bf16.msra.mxu0 0
  %298 = vmatprep.subr.bf16.mxu0 0
  %299 = vmatpush1.bf16.msra.mxu0 0
  %300 = vmatprep.subr.bf16.mxu0 0
  %301 = vmatpush1.bf16.msra.mxu0 0
  %302 = vmatprep.subr.bf16.mxu0 0
  %303 = vmatpush1.bf16.msra.mxu0 0
  %304 = vmatprep.subr.bf16.mxu0 0
  %305 = vmatpush1.bf16.msra.mxu0 0
  %306 = vmatprep.subr.bf16.mxu0 0
  %307 = vmatpush1.bf16.msra.mxu0 0
  %308 = vmatprep.subr.bf16.mxu0 0
  %309 = vmatpush1.bf16.msra.mxu0 0
  %310 = vmatprep.mubr.bf16.mxu0 0
  %311 = vmatmul.mubr.bf16.gmra.mrb[0].mxu0 %v180
  %v312 = vpop.f32.mrb[0].mxu0
  %v313 = vadd.f32 0.0, %v312
  %v314 = vpop.f32.mrb[0].mxu0
  %v315 = vpop.f32.mrb[0].mxu0
  %v316 = vadd.f32 0.0, %v315
  %v317 = vpop.f32.mrb[0].mxu0
  %318 = vmatprep.mubr.bf16.mxu0 0
  %319 = vmatmul.mubr.bf16.gmra.mrb[0].mxu0 %v181
  %v320 = vpop.f32.mrb[0].mxu0
  %v321 = vadd.f32 0.0, %v320
  %v322 = vpop.f32.mrb[0].mxu0
  %v323 = vpop.f32.mrb[0].mxu0
  %v324 = vadd.f32 0.0, %v323
  %v325 = vpop.f32.mrb[0].mxu0
  %326 = vmatprep.mubr.bf16.mxu0 0
  %327 = vmatmul.mubr.bf16.gmra.mrb[0].mxu0 %v182
  %v328 = vpop.f32.mrb[0].mxu0
  %v329 = vadd.f32 0.0, %v328
  %v330 = vpop.f32.mrb[0].mxu0
  %v331 = vpop.f32.mrb[0].mxu0
  %v332 = vadd.f32 0.0, %v331
  %v333 = vpop.f32.mrb[0].mxu0
  %334 = vmatprep.mubr.bf16.mxu0 0
  %335 = vmatmul.mubr.bf16.gmra.mrb[0].mxu0 %v183
  %v336 = vpop.f32.mrb[0].mxu0
  %v337 = vadd.f32 0.0, %v336
  %v338 = vpop.f32.mrb[0].mxu0
  %v339 = vpop.f32.mrb[0].mxu0
  %v340 = vadd.f32 0.0, %v339
  %v341 = vpop.f32.mrb[0].mxu0
  %342 = vmatprep.mubr.bf16.mxu0 0
  %343 = vmatmul.mubr.bf16.gmra.mrb[0].mxu0 %v184
  %v344 = vpop.f32.mrb[0].mxu0
  %v345 = vadd.f32 0.0, %v344
  %v346 = vpop.f32.mrb[0].mxu0
  %v347 = vpop.f32.mrb[0].mxu0
  %v348 = vadd.f32 0.0, %v347
  %v349 = vpop.f32.mrb[0].mxu0
  %350 = vmatprep.mubr.bf16.mxu0 0
  %351 = vmatmul.mubr.bf16.gmra.mrb[0].mxu0 %v185
  %v352 = vpop.f32.mrb[0].mxu0
  %v353 = vadd.f32 0.0, %v352
  %v354 = vpop.f32.mrb[0].mxu0
  %v355 = vpop.f32.mrb[0].mxu0
  %v356 = vadd.f32 0.0, %v355
  %v357 = vpop.f32.mrb[0].mxu0
  %358 = vmatprep.mubr.bf16.mxu0 0
  %359 = vmatmul.mubr.bf16.gmra.mrb[0].mxu0 %v186
  %v360 = vpop.f32.mrb[0].mxu0
  %v361 = vadd.f32 0.0, %v360
  %v362 = vpop.f32.mrb[0].mxu0
  %v363 = vpop.f32.mrb[0].mxu0
  %v364 = vadd.f32 0.0, %v363
  %v365 = vpop.f32.mrb[0].mxu0
  %366 = vmatprep.mubr.bf16.mxu0 0
  %367 = vmatmul.mubr.bf16.gmra.mrb[0].mxu0 %v187
  %v368 = vpop.f32.mrb[0].mxu0
  %v369 = vadd.f32 0.0, %v368
  %v370 = vpop.f32.mrb[0].mxu0
  %v371 = vpop.f32.mrb[0].mxu0
  %v372 = vadd.f32 0.0, %v371
  %v373 = vpop.f32.mrb[0].mxu0
  %374 = vmatprep.mubr.bf16.mxu0 0
  %375 = vmatmul.mubr.bf16.gmra.mrb[0].mxu0 %v188
  %v376 = vpop.f32.mrb[0].mxu0
  %v377 = vadd.f32 0.0, %v376
  %v378 = vpop.f32.mrb[0].mxu0
  %v379 = vpop.f32.mrb[0].mxu0
  %v380 = vadd.f32 0.0, %v379
  %v381 = vpop.f32.mrb[0].mxu0
  %382 = vmatprep.mubr.bf16.mxu0 0
  %383 = vmatmul.mubr.bf16.gmra.mrb[0].mxu0 %v189
  %v384 = vpop.f32.mrb[0].mxu0
  %v385 = vadd.f32 0.0, %v384
  %v386 = vpop.f32.mrb[0].mxu0
  %v387 = vpop.f32.mrb[0].mxu0
  %v388 = vadd.f32 0.0, %v387
  %v389 = vpop.f32.mrb[0].mxu0
  %390 = vmatprep.mubr.bf16.mxu0 0
  %391 = vmatmul.mubr.bf16.gmra.mrb[0].mxu0 %v190
  %v392 = vpop.f32.mrb[0].mxu0
  %v393 = vadd.f32 0.0, %v392
  %v394 = vpop.f32.mrb[0].mxu0
  %v395 = vpop.f32.mrb[0].mxu0
  %v396 = vadd.f32 0.0, %v395
  %v397 = vpop.f32.mrb[0].mxu0
  %398 = vmatprep.mubr.bf16.mxu0 0
  %399 = vmatmul.mubr.bf16.gmra.mrb[0].mxu0 %v191
  %v400 = vpop.f32.mrb[0].mxu0
  %v401 = vadd.f32 0.0, %v400
  %v402 = vpop.f32.mrb[0].mxu0
  %v403 = vpop.f32.mrb[0].mxu0
  %v404 = vadd.f32 0.0, %v403
  %v405 = vpop.f32.mrb[0].mxu0
  %406 = vmatprep.mubr.bf16.mxu0 0
  %407 = vmatmul.mubr.bf16.gmra.mrb[0].mxu0 %v192
  %v408 = vpop.f32.mrb[0].mxu0
  %v409 = vadd.f32 0.0, %v408
  %v410 = vpop.f32.mrb[0].mxu0
  %v411 = vpop.f32.mrb[0].mxu0
  %v412 = vadd.f32 0.0, %v411
  %v413 = vpop.f32.mrb[0].mxu0
  %414 = vmatprep.mubr.bf16.mxu0 0
  %415 = vmatmul.mubr.bf16.gmra.mrb[0].mxu0 %v193
  %v416 = vpop.f32.mrb[0].mxu0
  %v417 = vadd.f32 0.0, %v416
  %v418 = vpop.f32.mrb[0].mxu0
  %v419 = vpop.f32.mrb[0].mxu0
  %v420 = vadd.f32 0.0, %v419
  %v421 = vpop.f32.mrb[0].mxu0
  %422 = vmatprep.mubr.bf16.mxu0 0
  %423 = vmatmul.mubr.bf16.gmra.mrb[0].mxu0 %v194
  %v424 = vpop.f32.mrb[0].mxu0
  %v425 = vadd.f32 0.0, %v424
  %v426 = vpop.f32.mrb[0].mxu0
  %v427 = vpop.f32.mrb[0].mxu0
  %v428 = vadd.f32 0.0, %v427
  %v429 = vpop.f32.mrb[0].mxu0
  %430 = vmatprep.mubr.bf16.mxu0 0
  %431 = vmatmul.mubr.bf16.gmra.mrb[0].mxu0 %v195
  %v432 = vpop.f32.mrb[0].mxu0
  %v433 = vadd.f32 0.0, %v432
  %v434 = vpop.f32.mrb[0].mxu0
  %v435 = vpop.f32.mrb[0].mxu0
  %v436 = vadd.f32 0.0, %v435
  %v437 = vpop.f32.mrb[0].mxu0
  %438 = vmatprep.mubr.bf16.mxu0 0
  %439 = vmatmul.mubr.bf16.gmra.mrb[0].mxu0 %v196
  %v440 = vpop.f32.mrb[0].mxu0
  %v441 = vadd.f32 0.0, %v440
  %v442 = vpop.f32.mrb[0].mxu0
  %v443 = vpop.f32.mrb[0].mxu0
  %v444 = vadd.f32 0.0, %v443
  %v445 = vpop.f32.mrb[0].mxu0
  %446 = vmatprep.mubr.bf16.mxu0 0
  %447 = vmatmul.mubr.bf16.gmra.mrb[0].mxu0 %v197
  %v448 = vpop.f32.mrb[0].mxu0
  %v449 = vadd.f32 0.0, %v448
  %v450 = vpop.f32.mrb[0].mxu0
  %v451 = vpop.f32.mrb[0].mxu0
  %v452 = vadd.f32 0.0, %v451
  %v453 = vpop.f32.mrb[0].mxu0
  %454 = vmatprep.mubr.bf16.mxu0 0
  %455 = vmatmul.mubr.bf16.gmra.mrb[0].mxu0 %v198
  %v456 = vpop.f32.mrb[0].mxu0
  %v457 = vadd.f32 0.0, %v456
  %v458 = vpop.f32.mrb[0].mxu0
  %v459 = vpop.f32.mrb[0].mxu0
  %v460 = vadd.f32 0.0, %v459
  %v461 = vpop.f32.mrb[0].mxu0
  %462 = vmatprep.mubr.bf16.mxu0 0
  %463 = vmatmul.mubr.bf16.gmra.mrb[0].mxu0 %v199
  %v464 = vpop.f32.mrb[0].mxu0
  %v465 = vadd.f32 0.0, %v464
  %v466 = vpop.f32.mrb[0].mxu0
  %v467 = vpop.f32.mrb[0].mxu0
  %v468 = vadd.f32 0.0, %v467
  %v469 = vpop.f32.mrb[0].mxu0
  %470 = vmatprep.mubr.bf16.mxu0 0
  %471 = vmatmul.mubr.bf16.gmra.mrb[0].mxu0 %v200
  %v472 = vpop.f32.mrb[0].mxu0
  %v473 = vadd.f32 0.0, %v472
  %v474 = vpop.f32.mrb[0].mxu0
  %v475 = vpop.f32.mrb[0].mxu0
  %v476 = vadd.f32 0.0, %v475
  %v477 = vpop.f32.mrb[0].mxu0
  %478 = vmatprep.mubr.bf16.mxu0 0
  %479 = vmatmul.mubr.bf16.gmra.mrb[0].mxu0 %v201
  %v480 = vpop.f32.mrb[0].mxu0
  %v481 = vadd.f32 0.0, %v480
  %v482 = vpop.f32.mrb[0].mxu0
  %v483 = vpop.f32.mrb[0].mxu0
  %v484 = vadd.f32 0.0, %v483
  %v485 = vpop.f32.mrb[0].mxu0
  %486 = vmatprep.mubr.bf16.mxu0 0
  %487 = vmatmul.mubr.bf16.gmra.mrb[0].mxu0 %v202
  %v488 = vpop.f32.mrb[0].mxu0
  %v489 = vadd.f32 0.0, %v488
  %v490 = vpop.f32.mrb[0].mxu0
  %v491 = vpop.f32.mrb[0].mxu0
  %v492 = vadd.f32 0.0, %v491
  %v493 = vpop.f32.mrb[0].mxu0
  %494 = vmatprep.mubr.bf16.mxu0 0
  %495 = vmatmul.mubr.bf16.gmra.mrb[0].mxu0 %v203
  %v496 = vpop.f32.mrb[0].mxu0
  %v497 = vadd.f32 0.0, %v496
  %v498 = vpop.f32.mrb[0].mxu0
  %v499 = vpop.f32.mrb[0].mxu0
  %v500 = vadd.f32 0.0, %v499
  %v501 = vpop.f32.mrb[0].mxu0
  %502 = vmatprep.mubr.bf16.mxu0 0
  %503 = vmatmul.mubr.bf16.gmra.mrb[0].mxu0 %v204
  %v504 = vpop.f32.mrb[0].mxu0
  %v505 = vadd.f32 0.0, %v504
  %v506 = vpop.f32.mrb[0].mxu0
  %v507 = vpop.f32.mrb[0].mxu0
  %v508 = vpop.f32.mrb[0].mxu0
  %509 = vdwg.mxu0
  %v510 = vadd.f32 %v313, %v316
  %v511 = vadd.f32 %v510, %v321
  %v512 = vadd.f32 %v511, %v324
  %v513 = vadd.f32 %v512, %v329
  %v514 = vadd.f32 %v513, %v332
  %v515 = vadd.f32 %v514, %v337
  %v516 = vadd.f32 %v515, %v340
  %v517 = vadd.f32 %v516, %v345
  %v518 = vadd.f32 %v517, %v348
  %v519 = vadd.f32 %v518, %v353
  %v520 = vadd.f32 %v519, %v356
  %v521 = vadd.f32 %v520, %v361
  %v522 = vadd.f32 %v521, %v364
  %v523 = vadd.f32 %v522, %v369
  %v524 = vadd.f32 %v523, %v372
  %v525 = vadd.f32 %v524, %v377
  %v526 = vadd.f32 %v525, %v380
  %v527 = vadd.f32 %v526, %v385
  %v528 = vadd.f32 %v527, %v388
  %v529 = vadd.f32 %v528, %v393
  %v530 = vadd.f32 %v529, %v396
  %v531 = vadd.f32 %v530, %v401
  %v532 = vadd.f32 %v531, %v404
  %v533 = vadd.f32 %v532, %v409
  %v534 = vadd.f32 %v533, %v412
  %v535 = vadd.f32 %v534, %v417
  %v536 = vadd.f32 %v535, %v420
  %v537 = vadd.f32 %v536, %v425
  %v538 = vadd.f32 %v537, %v428
  %v539 = vadd.f32 %v538, %v433
  %v540 = vadd.f32 %v539, %v436
  %v541 = vadd.f32 %v540, %v441
  %v542 = vadd.f32 %v541, %v444
  %v543 = vadd.f32 %v542, %v449
  %v544 = vadd.f32 %v543, %v452
  %v545 = vadd.f32 %v544, %v457
  %v546 = vadd.f32 %v545, %v460
  %v547 = vadd.f32 %v546, %v465
  %v548 = vadd.f32 %v547, %v468
  %v549 = vadd.f32 %v548, %v473
  %v550 = vadd.f32 %v549, %v476
  %v551 = vadd.f32 %v550, %v481
  %v552 = vadd.f32 %v551, %v484
  %v553 = vadd.f32 %v552, %v489
  %v554 = vadd.f32 %v553, %v492
  %v555 = vadd.f32 %v554, %v497
  %v556 = vadd.f32 %v555, %v500
  %v557 = vadd.f32 %v556, %v505
  %v558 = vrot.slane %v557, 4
  %v559 = vadd.f32 %v557, %v558
  %v560 = vrot.slane %v559, 2
  %v561 = vadd.f32 %v559, %v560
  %v562 = vrot.slane %v561, 1
  %v563 = vadd.f32 %v561, %v562
  %v564 = vadd.f32 %v563, 0.0
  %v565 = vmul.f32 %v313, %v313
  %v566 = vmul.f32 %v316, %v316
  %v567 = vmul.f32 %v321, %v321
  %v568 = vmul.f32 %v324, %v324
  %v569 = vmul.f32 %v329, %v329
  %v570 = vmul.f32 %v332, %v332
  %v571 = vmul.f32 %v337, %v337
  %v572 = vmul.f32 %v340, %v340
  %v573 = vmul.f32 %v345, %v345
  %v574 = vmul.f32 %v348, %v348
  %v575 = vmul.f32 %v353, %v353
  %v576 = vmul.f32 %v356, %v356
  %v577 = vmul.f32 %v361, %v361
  %v578 = vmul.f32 %v364, %v364
  %v579 = vmul.f32 %v369, %v369
  %v580 = vmul.f32 %v372, %v372
  %v581 = vmul.f32 %v377, %v377
  %v582 = vmul.f32 %v380, %v380
  %v583 = vmul.f32 %v385, %v385
  %v584 = vmul.f32 %v388, %v388
  %v585 = vmul.f32 %v393, %v393
  %v586 = vmul.f32 %v396, %v396
  %v587 = vmul.f32 %v401, %v401
  %v588 = vmul.f32 %v404, %v404
  %v589 = vmul.f32 %v409, %v409
  %v590 = vmul.f32 %v412, %v412
  %v591 = vmul.f32 %v417, %v417
  %v592 = vmul.f32 %v420, %v420
  %v593 = vmul.f32 %v425, %v425
  %v594 = vmul.f32 %v428, %v428
  %v595 = vmul.f32 %v433, %v433
  %v596 = vmul.f32 %v436, %v436
  %v597 = vmul.f32 %v441, %v441
  %v598 = vmul.f32 %v444, %v444
  %v599 = vmul.f32 %v449, %v449
  %v600 = vmul.f32 %v452, %v452
  %v601 = vmul.f32 %v457, %v457
  %v602 = vmul.f32 %v460, %v460
  %v603 = vmul.f32 %v465, %v465
  %v604 = vmul.f32 %v468, %v468
  %v605 = vmul.f32 %v473, %v473
  %v606 = vmul.f32 %v476, %v476
  %v607 = vmul.f32 %v481, %v481
  %v608 = vmul.f32 %v484, %v484
  %v609 = vmul.f32 %v489, %v489
  %v610 = vmul.f32 %v492, %v492
  %v611 = vmul.f32 %v497, %v497
  %v612 = vmul.f32 %v500, %v500
  %v613 = vmul.f32 %v505, %v505
  %v614 = vadd.f32 %v565, %v566
  %v615 = vadd.f32 %v614, %v567
  %v616 = vadd.f32 %v615, %v568
  %v617 = vadd.f32 %v616, %v569
  %v618 = vadd.f32 %v617, %v570
  %v619 = vadd.f32 %v618, %v571
  %v620 = vadd.f32 %v619, %v572
  %v621 = vadd.f32 %v620, %v573
  %v622 = vadd.f32 %v621, %v574
  %v623 = vadd.f32 %v622, %v575
  %v624 = vadd.f32 %v623, %v576
  %v625 = vadd.f32 %v624, %v577
  %v626 = vadd.f32 %v625, %v578
  %v627 = vadd.f32 %v626, %v579
  %v628 = vadd.f32 %v627, %v580
  %v629 = vadd.f32 %v628, %v581
  %v630 = vadd.f32 %v629, %v582
  %v631 = vadd.f32 %v630, %v583
  %v632 = vadd.f32 %v631, %v584
  %v633 = vadd.f32 %v632, %v585
  %v634 = vadd.f32 %v633, %v586
  %v635 = vadd.f32 %v634, %v587
  %v636 = vadd.f32 %v635, %v588
  %v637 = vadd.f32 %v636, %v589
  %v638 = vadd.f32 %v637, %v590
  %v639 = vadd.f32 %v638, %v591
  %v640 = vadd.f32 %v639, %v592
  %v641 = vadd.f32 %v640, %v593
  %v642 = vadd.f32 %v641, %v594
  %v643 = vadd.f32 %v642, %v595
  %v644 = vadd.f32 %v643, %v596
  %v645 = vadd.f32 %v644, %v597
  %v646 = vadd.f32 %v645, %v598
  %v647 = vadd.f32 %v646, %v599
  %v648 = vadd.f32 %v647, %v600
  %v649 = vadd.f32 %v648, %v601
  %v650 = vadd.f32 %v649, %v602
  %v651 = vadd.f32 %v650, %v603
  %v652 = vadd.f32 %v651, %v604
  %v653 = vadd.f32 %v652, %v605
  %v654 = vadd.f32 %v653, %v606
  %v655 = vadd.f32 %v654, %v607
  %v656 = vadd.f32 %v655, %v608
  %v657 = vadd.f32 %v656, %v609
  %v658 = vadd.f32 %v657, %v610
  %v659 = vadd.f32 %v658, %v611
  %v660 = vadd.f32 %v659, %v612
  %v661 = vadd.f32 %v660, %v613
  %v662 = vrot.slane %v661, 4
  %v663 = vadd.f32 %v661, %v662
  %v664 = vrot.slane %v663, 2
  %v665 = vadd.f32 %v663, %v664
  %v666 = vrot.slane %v665, 1
  %v667 = vadd.f32 %v665, %v666
  %v668 = vadd.f32 %v667, 0.0
  %s669 = scalar_lea.vmem %s0, 196
  %v670 = vld [vmem:[%s669] sm:$0xf]
  %v671 = vld [vmem:[%s669 + $0x4] sm:$0xf]
  %v672 = vld [vmem:[%s669 + $0x8] sm:$0xf]
  %v673 = vld [vmem:[%s669 + $0xc] sm:$0xf]
  %v674 = vld [vmem:[%s669 + $0x10] sm:$0xf]
  %v675 = vld [vmem:[%s669 + $0x14] sm:$0xf]
  %v676 = vld [vmem:[%s669 + $0x18] sm:$0xf]
  %v677 = vld [vmem:[%s669 + $0x1c] sm:$0xf]
  %v678 = vld [vmem:[%s669 + $0x20] sm:$0xf]
  %v679 = vld [vmem:[%s669 + $0x24] sm:$0xf]
  %v680 = vld [vmem:[%s669 + $0x28] sm:$0xf]
  %v681 = vld [vmem:[%s669 + $0x2c] sm:$0xf]
  %v682 = vld [vmem:[%s669 + $0x30] sm:$0xf]
  %v683 = vld [vmem:[%s669 + $0x34] sm:$0xf]
  %v684 = vld [vmem:[%s669 + $0x38] sm:$0xf]
  %v685 = vld [vmem:[%s669 + $0x3c] sm:$0xf]
  %v686 = vld [vmem:[%s669 + $0x40] sm:$0xf]
  %v687 = vld [vmem:[%s669 + $0x44] sm:$0xf]
  %v688 = vld [vmem:[%s669 + $0x48] sm:$0xf]
  %v689 = vld [vmem:[%s669 + $0x4c] sm:$0xf]
  %v690 = vld [vmem:[%s669 + $0x50] sm:$0xf]
  %v691 = vld [vmem:[%s669 + $0x54] sm:$0xf]
  %v692 = vld [vmem:[%s669 + $0x58] sm:$0xf]
  %v693 = vld [vmem:[%s669 + $0x5c] sm:$0xf]
  %v694 = vld [vmem:[%s669 + $0x60] sm:$0xf]
  %v695 = vld [vmem:[%s669 + $0x64] sm:$0xf]
  %v696 = vld [vmem:[%s669 + $0x68] sm:$0xf]
  %v697 = vld [vmem:[%s669 + $0x6c] sm:$0xf]
  %v698 = vld [vmem:[%s669 + $0x70] sm:$0xf]
  %v699 = vld [vmem:[%s669 + $0x74] sm:$0xf]
  %v700 = vld [vmem:[%s669 + $0x78] sm:$0xf]
  %v701 = vld [vmem:[%s669 + $0x7c] sm:$0xf]
  %v702 = vld [vmem:[%s669 + $0x80] sm:$0xf]
  %v703 = vld [vmem:[%s669 + $0x84] sm:$0xf]
  %v704 = vld [vmem:[%s669 + $0x88] sm:$0xf]
  %v705 = vld [vmem:[%s669 + $0x8c] sm:$0xf]
  %v706 = vld [vmem:[%s669 + $0x90] sm:$0xf]
  %v707 = vld [vmem:[%s669 + $0x94] sm:$0xf]
  %v708 = vld [vmem:[%s669 + $0x98] sm:$0xf]
  %v709 = vld [vmem:[%s669 + $0x9c] sm:$0xf]
  %v710 = vld [vmem:[%s669 + $0xa0] sm:$0xf]
  %v711 = vld [vmem:[%s669 + $0xa4] sm:$0xf]
  %v712 = vld [vmem:[%s669 + $0xa8] sm:$0xf]
  %v713 = vld [vmem:[%s669 + $0xac] sm:$0xf]
  %v714 = vld [vmem:[%s669 + $0xb0] sm:$0xf]
  %v715 = vld [vmem:[%s669 + $0xb4] sm:$0xf]
  %v716 = vld [vmem:[%s669 + $0xb8] sm:$0xf]
  %v717 = vld [vmem:[%s669 + $0xbc] sm:$0xf]
  %v718 = vld [vmem:[%s669 + $0xc0] sm:$0xf]
  %v768 = vunpack.c.l.b16 %v670
  %v769 = vunpack.c.l.b16 %v671
  %v770 = vunpack.c.l.b16 %v672
  %v771 = vunpack.c.l.b16 %v673
  %v772 = vunpack.c.l.b16 %v674
  %v773 = vunpack.c.l.b16 %v675
  %v774 = vunpack.c.l.b16 %v676
  %v775 = vunpack.c.l.b16 %v677
  %v776 = vunpack.c.l.b16 %v678
  %v777 = vunpack.c.l.b16 %v679
  %v778 = vunpack.c.l.b16 %v680
  %v779 = vunpack.c.l.b16 %v681
  %v780 = vunpack.c.l.b16 %v682
  %v781 = vunpack.c.l.b16 %v683
  %v782 = vunpack.c.l.b16 %v684
  %v783 = vunpack.c.l.b16 %v685
  %v784 = vunpack.c.l.b16 %v686
  %v785 = vunpack.c.l.b16 %v687
  %v786 = vunpack.c.l.b16 %v688
  %v787 = vunpack.c.l.b16 %v689
  %v788 = vunpack.c.l.b16 %v690
  %v789 = vunpack.c.l.b16 %v691
  %v790 = vunpack.c.l.b16 %v692
  %v791 = vunpack.c.l.b16 %v693
  %v792 = vunpack.c.l.b16 %v694
  %v793 = vunpack.c.l.b16 %v695
  %v794 = vunpack.c.l.b16 %v696
  %v795 = vunpack.c.l.b16 %v697
  %v796 = vunpack.c.l.b16 %v698
  %v797 = vunpack.c.l.b16 %v699
  %v798 = vunpack.c.l.b16 %v700
  %v799 = vunpack.c.l.b16 %v701
  %v800 = vunpack.c.l.b16 %v702
  %v801 = vunpack.c.l.b16 %v703
  %v802 = vunpack.c.l.b16 %v704
  %v803 = vunpack.c.l.b16 %v705
  %v804 = vunpack.c.l.b16 %v706
  %v805 = vunpack.c.l.b16 %v707
  %v806 = vunpack.c.l.b16 %v708
  %v807 = vunpack.c.l.b16 %v709
  %v808 = vunpack.c.l.b16 %v710
  %v809 = vunpack.c.l.b16 %v711
  %v810 = vunpack.c.l.b16 %v712
  %v811 = vunpack.c.l.b16 %v713
  %v812 = vunpack.c.l.b16 %v714
  %v813 = vunpack.c.l.b16 %v715
  %v814 = vunpack.c.l.b16 %v716
  %v815 = vunpack.c.l.b16 %v717
  %v816 = vunpack.c.l.b16 %v718
  %v817 = vpack.c.b16 %v769, %v768
  %v818 = vpack.c.b16 %v771, %v770
  %v819 = vpack.c.b16 %v773, %v772
  %v820 = vpack.c.b16 %v775, %v774
  %v821 = vpack.c.b16 %v777, %v776
  %v822 = vpack.c.b16 %v779, %v778
  %v823 = vpack.c.b16 %v781, %v780
  %v824 = vpack.c.b16 %v783, %v782
  %v825 = vpack.c.b16 %v785, %v784
  %v826 = vpack.c.b16 %v787, %v786
  %v827 = vpack.c.b16 %v789, %v788
  %v828 = vpack.c.b16 %v791, %v790
  %v829 = vpack.c.b16 %v793, %v792
  %v830 = vpack.c.b16 %v795, %v794
  %v831 = vpack.c.b16 %v797, %v796
  %v832 = vpack.c.b16 %v799, %v798
  %v833 = vpack.c.b16 %v801, %v800
  %v834 = vpack.c.b16 %v803, %v802
  %v835 = vpack.c.b16 %v805, %v804
  %v836 = vpack.c.b16 %v807, %v806
  %v837 = vpack.c.b16 %v809, %v808
  %v838 = vpack.c.b16 %v811, %v810
  %v839 = vpack.c.b16 %v813, %v812
  %v840 = vpack.c.b16 %v815, %v814
  %v841 = vpack.c.b16 %v816, %v816
  %867 = vmatprep.subr.bf16.mxu0 0
  %868 = vmatpush1.bf16.msra.mxu0 %v262
  %869 = vmatprep.subr.bf16.mxu0 0
  %870 = vmatpush1.bf16.msra.mxu0 %v263
  %871 = vmatprep.subr.bf16.mxu0 0
  %872 = vmatpush1.bf16.msra.mxu0 %v264
  %873 = vmatprep.subr.bf16.mxu0 0
  %874 = vmatpush1.bf16.msra.mxu0 %v265
  %875 = vmatprep.subr.bf16.mxu0 0
  %876 = vmatpush1.bf16.msra.mxu0 %v266
  %877 = vmatprep.subr.bf16.mxu0 0
  %878 = vmatpush1.bf16.msra.mxu0 %v267
  %879 = vmatprep.subr.bf16.mxu0 0
  %880 = vmatpush1.bf16.msra.mxu0 %v268
  %881 = vmatprep.subr.bf16.mxu0 0
  %882 = vmatpush1.bf16.msra.mxu0 %v269
  %883 = vmatprep.subr.bf16.mxu0 0
  %884 = vmatpush1.bf16.msra.mxu0 0
  %885 = vmatprep.subr.bf16.mxu0 0
  %886 = vmatpush1.bf16.msra.mxu0 0
  %887 = vmatprep.subr.bf16.mxu0 0
  %888 = vmatpush1.bf16.msra.mxu0 0
  %889 = vmatprep.subr.bf16.mxu0 0
  %890 = vmatpush1.bf16.msra.mxu0 0
  %891 = vmatprep.subr.bf16.mxu0 0
  %892 = vmatpush1.bf16.msra.mxu0 0
  %893 = vmatprep.subr.bf16.mxu0 0
  %894 = vmatpush1.bf16.msra.mxu0 0
  %895 = vmatprep.subr.bf16.mxu0 0
  %896 = vmatpush1.bf16.msra.mxu0 0
  %897 = vmatprep.subr.bf16.mxu0 0
  %898 = vmatpush1.bf16.msra.mxu0 0
  %899 = vmatprep.mubr.bf16.mxu0 0
  %900 = vmatmul.mubr.bf16.gmra.mrb[0].mxu0 %v817
  %v901 = vpop.f32.mrb[0].mxu0
  %v902 = vadd.f32 0.0, %v901
  %v903 = vpop.f32.mrb[0].mxu0
  %v904 = vpop.f32.mrb[0].mxu0
  %v905 = vadd.f32 0.0, %v904
  %v906 = vpop.f32.mrb[0].mxu0
  %907 = vmatprep.mubr.bf16.mxu0 0
  %908 = vmatmul.mubr.bf16.gmra.mrb[0].mxu0 %v818
  %v909 = vpop.f32.mrb[0].mxu0
  %v910 = vadd.f32 0.0, %v909
  %v911 = vpop.f32.mrb[0].mxu0
  %v912 = vpop.f32.mrb[0].mxu0
  %v913 = vadd.f32 0.0, %v912
  %v914 = vpop.f32.mrb[0].mxu0
  %915 = vmatprep.mubr.bf16.mxu0 0
  %916 = vmatmul.mubr.bf16.gmra.mrb[0].mxu0 %v819
  %v917 = vpop.f32.mrb[0].mxu0
  %v918 = vadd.f32 0.0, %v917
  %v919 = vpop.f32.mrb[0].mxu0
  %v920 = vpop.f32.mrb[0].mxu0
  %v921 = vadd.f32 0.0, %v920
  %v922 = vpop.f32.mrb[0].mxu0
  %923 = vmatprep.mubr.bf16.mxu0 0
  %924 = vmatmul.mubr.bf16.gmra.mrb[0].mxu0 %v820
  %v925 = vpop.f32.mrb[0].mxu0
  %v926 = vadd.f32 0.0, %v925
  %v927 = vpop.f32.mrb[0].mxu0
  %v928 = vpop.f32.mrb[0].mxu0
  %v929 = vadd.f32 0.0, %v928
  %v930 = vpop.f32.mrb[0].mxu0
  %931 = vmatprep.mubr.bf16.mxu0 0
  %932 = vmatmul.mubr.bf16.gmra.mrb[0].mxu0 %v821
  %v933 = vpop.f32.mrb[0].mxu0
  %v934 = vadd.f32 0.0, %v933
  %v935 = vpop.f32.mrb[0].mxu0
  %v936 = vpop.f32.mrb[0].mxu0
  %v937 = vadd.f32 0.0, %v936
  %v938 = vpop.f32.mrb[0].mxu0
  %939 = vmatprep.mubr.bf16.mxu0 0
  %940 = vmatmul.mubr.bf16.gmra.mrb[0].mxu0 %v822
  %v941 = vpop.f32.mrb[0].mxu0
  %v942 = vadd.f32 0.0, %v941
  %v943 = vpop.f32.mrb[0].mxu0
  %v944 = vpop.f32.mrb[0].mxu0
  %v945 = vadd.f32 0.0, %v944
  %v946 = vpop.f32.mrb[0].mxu0
  %947 = vmatprep.mubr.bf16.mxu0 0
  %948 = vmatmul.mubr.bf16.gmra.mrb[0].mxu0 %v823
  %v949 = vpop.f32.mrb[0].mxu0
  %v950 = vadd.f32 0.0, %v949
  %v951 = vpop.f32.mrb[0].mxu0
  %v952 = vpop.f32.mrb[0].mxu0
  %v953 = vadd.f32 0.0, %v952
  %v954 = vpop.f32.mrb[0].mxu0
  %955 = vmatprep.mubr.bf16.mxu0 0
  %956 = vmatmul.mubr.bf16.gmra.mrb[0].mxu0 %v824
  %v957 = vpop.f32.mrb[0].mxu0
  %v958 = vadd.f32 0.0, %v957
  %v959 = vpop.f32.mrb[0].mxu0
  %v960 = vpop.f32.mrb[0].mxu0
  %v961 = vadd.f32 0.0, %v960
  %v962 = vpop.f32.mrb[0].mxu0
  %963 = vmatprep.mubr.bf16.mxu0 0
  %964 = vmatmul.mubr.bf16.gmra.mrb[0].mxu0 %v825
  %v965 = vpop.f32.mrb[0].mxu0
  %v966 = vadd.f32 0.0, %v965
  %v967 = vpop.f32.mrb[0].mxu0
  %v968 = vpop.f32.mrb[0].mxu0
  %v969 = vadd.f32 0.0, %v968
  %v970 = vpop.f32.mrb[0].mxu0
  %971 = vmatprep.mubr.bf16.mxu0 0
  %972 = vmatmul.mubr.bf16.gmra.mrb[0].mxu0 %v826
  %v973 = vpop.f32.mrb[0].mxu0
  %v974 = vadd.f32 0.0, %v973
  %v975 = vpop.f32.mrb[0].mxu0
  %v976 = vpop.f32.mrb[0].mxu0
  %v977 = vadd.f32 0.0, %v976
  %v978 = vpop.f32.mrb[0].mxu0
  %979 = vmatprep.mubr.bf16.mxu0 0
  %980 = vmatmul.mubr.bf16.gmra.mrb[0].mxu0 %v827
  %v981 = vpop.f32.mrb[0].mxu0
  %v982 = vadd.f32 0.0, %v981
  %v983 = vpop.f32.mrb[0].mxu0
  %v984 = vpop.f32.mrb[0].mxu0
  %v985 = vadd.f32 0.0, %v984
  %v986 = vpop.f32.mrb[0].mxu0
  %987 = vmatprep.mubr.bf16.mxu0 0
  %988 = vmatmul.mubr.bf16.gmra.mrb[0].mxu0 %v828
  %v989 = vpop.f32.mrb[0].mxu0
  %v990 = vadd.f32 0.0, %v989
  %v991 = vpop.f32.mrb[0].mxu0
  %v992 = vpop.f32.mrb[0].mxu0
  %v993 = vadd.f32 0.0, %v992
  %v994 = vpop.f32.mrb[0].mxu0
  %995 = vmatprep.mubr.bf16.mxu0 0
  %996 = vmatmul.mubr.bf16.gmra.mrb[0].mxu0 %v829
  %v997 = vpop.f32.mrb[0].mxu0
  %v998 = vadd.f32 0.0, %v997
  %v999 = vpop.f32.mrb[0].mxu0
  %v1000 = vpop.f32.mrb[0].mxu0
  %v1001 = vadd.f32 0.0, %v1000
  %v1002 = vpop.f32.mrb[0].mxu0
  %1003 = vmatprep.mubr.bf16.mxu0 0
  %1004 = vmatmul.mubr.bf16.gmra.mrb[0].mxu0 %v830
  %v1005 = vpop.f32.mrb[0].mxu0
  %v1006 = vadd.f32 0.0, %v1005
  %v1007 = vpop.f32.mrb[0].mxu0
  %v1008 = vpop.f32.mrb[0].mxu0
  %v1009 = vadd.f32 0.0, %v1008
  %v1010 = vpop.f32.mrb[0].mxu0
  %1011 = vmatprep.mubr.bf16.mxu0 0
  %1012 = vmatmul.mubr.bf16.gmra.mrb[0].mxu0 %v831
  %v1013 = vpop.f32.mrb[0].mxu0
  %v1014 = vadd.f32 0.0, %v1013
  %v1015 = vpop.f32.mrb[0].mxu0
  %v1016 = vpop.f32.mrb[0].mxu0
  %v1017 = vadd.f32 0.0, %v1016
  %v1018 = vpop.f32.mrb[0].mxu0
  %1019 = vmatprep.mubr.bf16.mxu0 0
  %1020 = vmatmul.mubr.bf16.gmra.mrb[0].mxu0 %v832
  %v1021 = vpop.f32.mrb[0].mxu0
  %v1022 = vadd.f32 0.0, %v1021
  %v1023 = vpop.f32.mrb[0].mxu0
  %v1024 = vpop.f32.mrb[0].mxu0
  %v1025 = vadd.f32 0.0, %v1024
  %v1026 = vpop.f32.mrb[0].mxu0
  %1027 = vmatprep.mubr.bf16.mxu0 0
  %1028 = vmatmul.mubr.bf16.gmra.mrb[0].mxu0 %v833
  %v1029 = vpop.f32.mrb[0].mxu0
  %v1030 = vadd.f32 0.0, %v1029
  %v1031 = vpop.f32.mrb[0].mxu0
  %v1032 = vpop.f32.mrb[0].mxu0
  %v1033 = vadd.f32 0.0, %v1032
  %v1034 = vpop.f32.mrb[0].mxu0
  %1035 = vmatprep.mubr.bf16.mxu0 0
  %1036 = vmatmul.mubr.bf16.gmra.mrb[0].mxu0 %v834
  %v1037 = vpop.f32.mrb[0].mxu0
  %v1038 = vadd.f32 0.0, %v1037
  %v1039 = vpop.f32.mrb[0].mxu0
  %v1040 = vpop.f32.mrb[0].mxu0
  %v1041 = vadd.f32 0.0, %v1040
  %v1042 = vpop.f32.mrb[0].mxu0
  %1043 = vmatprep.mubr.bf16.mxu0 0
  %1044 = vmatmul.mubr.bf16.gmra.mrb[0].mxu0 %v835
  %v1045 = vpop.f32.mrb[0].mxu0
  %v1046 = vadd.f32 0.0, %v1045
  %v1047 = vpop.f32.mrb[0].mxu0
  %v1048 = vpop.f32.mrb[0].mxu0
  %v1049 = vadd.f32 0.0, %v1048
  %v1050 = vpop.f32.mrb[0].mxu0
  %1051 = vmatprep.mubr.bf16.mxu0 0
  %1052 = vmatmul.mubr.bf16.gmra.mrb[0].mxu0 %v836
  %v1053 = vpop.f32.mrb[0].mxu0
  %v1054 = vadd.f32 0.0, %v1053
  %v1055 = vpop.f32.mrb[0].mxu0
  %v1056 = vpop.f32.mrb[0].mxu0
  %v1057 = vadd.f32 0.0, %v1056
  %v1058 = vpop.f32.mrb[0].mxu0
  %1059 = vmatprep.mubr.bf16.mxu0 0
  %1060 = vmatmul.mubr.bf16.gmra.mrb[0].mxu0 %v837
  %v1061 = vpop.f32.mrb[0].mxu0
  %v1062 = vadd.f32 0.0, %v1061
  %v1063 = vpop.f32.mrb[0].mxu0
  %v1064 = vpop.f32.mrb[0].mxu0
  %v1065 = vadd.f32 0.0, %v1064
  %v1066 = vpop.f32.mrb[0].mxu0
  %1067 = vmatprep.mubr.bf16.mxu0 0
  %1068 = vmatmul.mubr.bf16.gmra.mrb[0].mxu0 %v838
  %v1069 = vpop.f32.mrb[0].mxu0
  %v1070 = vadd.f32 0.0, %v1069
  %v1071 = vpop.f32.mrb[0].mxu0
  %v1072 = vpop.f32.mrb[0].mxu0
  %v1073 = vadd.f32 0.0, %v1072
  %v1074 = vpop.f32.mrb[0].mxu0
  %1075 = vmatprep.mubr.bf16.mxu0 0
  %1076 = vmatmul.mubr.bf16.gmra.mrb[0].mxu0 %v839
  %v1077 = vpop.f32.mrb[0].mxu0
  %v1078 = vadd.f32 0.0, %v1077
  %v1079 = vpop.f32.mrb[0].mxu0
  %v1080 = vpop.f32.mrb[0].mxu0
  %v1081 = vadd.f32 0.0, %v1080
  %v1082 = vpop.f32.mrb[0].mxu0
  %1083 = vmatprep.mubr.bf16.mxu0 0
  %1084 = vmatmul.mubr.bf16.gmra.mrb[0].mxu0 %v840
  %v1085 = vpop.f32.mrb[0].mxu0
  %v1086 = vadd.f32 0.0, %v1085
  %v1087 = vpop.f32.mrb[0].mxu0
  %v1088 = vpop.f32.mrb[0].mxu0
  %v1089 = vadd.f32 0.0, %v1088
  %v1090 = vpop.f32.mrb[0].mxu0
  %1091 = vmatprep.mubr.bf16.mxu0 0
  %1092 = vmatmul.mubr.bf16.gmra.mrb[0].mxu0 %v841
  %v1093 = vpop.f32.mrb[0].mxu0
  %v1094 = vadd.f32 0.0, %v1093
  %v1095 = vpop.f32.mrb[0].mxu0
  %v1096 = vpop.f32.mrb[0].mxu0
  %v1097 = vpop.f32.mrb[0].mxu0
  %1098 = vdwg.mxu0
  %v1099 = vadd.f32 %v902, %v905
  %v1100 = vadd.f32 %v1099, %v910
  %v1101 = vadd.f32 %v1100, %v913
  %v1102 = vadd.f32 %v1101, %v918
  %v1103 = vadd.f32 %v1102, %v921
  %v1104 = vadd.f32 %v1103, %v926
  %v1105 = vadd.f32 %v1104, %v929
  %v1106 = vadd.f32 %v1105, %v934
  %v1107 = vadd.f32 %v1106, %v937
  %v1108 = vadd.f32 %v1107, %v942
  %v1109 = vadd.f32 %v1108, %v945
  %v1110 = vadd.f32 %v1109, %v950
  %v1111 = vadd.f32 %v1110, %v953
  %v1112 = vadd.f32 %v1111, %v958
  %v1113 = vadd.f32 %v1112, %v961
  %v1114 = vadd.f32 %v1113, %v966
  %v1115 = vadd.f32 %v1114, %v969
  %v1116 = vadd.f32 %v1115, %v974
  %v1117 = vadd.f32 %v1116, %v977
  %v1118 = vadd.f32 %v1117, %v982
  %v1119 = vadd.f32 %v1118, %v985
  %v1120 = vadd.f32 %v1119, %v990
  %v1121 = vadd.f32 %v1120, %v993
  %v1122 = vadd.f32 %v1121, %v998
  %v1123 = vadd.f32 %v1122, %v1001
  %v1124 = vadd.f32 %v1123, %v1006
  %v1125 = vadd.f32 %v1124, %v1009
  %v1126 = vadd.f32 %v1125, %v1014
  %v1127 = vadd.f32 %v1126, %v1017
  %v1128 = vadd.f32 %v1127, %v1022
  %v1129 = vadd.f32 %v1128, %v1025
  %v1130 = vadd.f32 %v1129, %v1030
  %v1131 = vadd.f32 %v1130, %v1033
  %v1132 = vadd.f32 %v1131, %v1038
  %v1133 = vadd.f32 %v1132, %v1041
  %v1134 = vadd.f32 %v1133, %v1046
  %v1135 = vadd.f32 %v1134, %v1049
  %v1136 = vadd.f32 %v1135, %v1054
  %v1137 = vadd.f32 %v1136, %v1057
  %v1138 = vadd.f32 %v1137, %v1062
  %v1139 = vadd.f32 %v1138, %v1065
  %v1140 = vadd.f32 %v1139, %v1070
  %v1141 = vadd.f32 %v1140, %v1073
  %v1142 = vadd.f32 %v1141, %v1078
  %v1143 = vadd.f32 %v1142, %v1081
  %v1144 = vadd.f32 %v1143, %v1086
  %v1145 = vadd.f32 %v1144, %v1089
  %v1146 = vadd.f32 %v1145, %v1094
  %v1147 = vrot.slane %v1146, 4
  %v1148 = vadd.f32 %v1146, %v1147
  %v1149 = vrot.slane %v1148, 2
  %v1150 = vadd.f32 %v1148, %v1149
  %v1151 = vrot.slane %v1150, 1
  %v1152 = vadd.f32 %v1150, %v1151
  %v1153 = vadd.f32 %v564, %v1152
  %v1154 = vmul.f32 %v902, %v902
  %v1155 = vmul.f32 %v905, %v905
  %v1156 = vmul.f32 %v910, %v910
  %v1157 = vmul.f32 %v913, %v913
  %v1158 = vmul.f32 %v918, %v918
  %v1159 = vmul.f32 %v921, %v921
  %v1160 = vmul.f32 %v926, %v926
  %v1161 = vmul.f32 %v929, %v929
  %v1162 = vmul.f32 %v934, %v934
  %v1163 = vmul.f32 %v937, %v937
  %v1164 = vmul.f32 %v942, %v942
  %v1165 = vmul.f32 %v945, %v945
  %v1166 = vmul.f32 %v950, %v950
  %v1167 = vmul.f32 %v953, %v953
  %v1168 = vmul.f32 %v958, %v958
  %v1169 = vmul.f32 %v961, %v961
  %v1170 = vmul.f32 %v966, %v966
  %v1171 = vmul.f32 %v969, %v969
  %v1172 = vmul.f32 %v974, %v974
  %v1173 = vmul.f32 %v977, %v977
  %v1174 = vmul.f32 %v982, %v982
  %v1175 = vmul.f32 %v985, %v985
  %v1176 = vmul.f32 %v990, %v990
  %v1177 = vmul.f32 %v993, %v993
  %v1178 = vmul.f32 %v998, %v998
  %v1179 = vmul.f32 %v1001, %v1001
  %v1180 = vmul.f32 %v1006, %v1006
  %v1181 = vmul.f32 %v1009, %v1009
  %v1182 = vmul.f32 %v1014, %v1014
  %v1183 = vmul.f32 %v1017, %v1017
  %v1184 = vmul.f32 %v1022, %v1022
  %v1185 = vmul.f32 %v1025, %v1025
  %v1186 = vmul.f32 %v1030, %v1030
  %v1187 = vmul.f32 %v1033, %v1033
  %v1188 = vmul.f32 %v1038, %v1038
  %v1189 = vmul.f32 %v1041, %v1041
  %v1190 = vmul.f32 %v1046, %v1046
  %v1191 = vmul.f32 %v1049, %v1049
  %v1192 = vmul.f32 %v1054, %v1054
  %v1193 = vmul.f32 %v1057, %v1057
  %v1194 = vmul.f32 %v1062, %v1062
  %v1195 = vmul.f32 %v1065, %v1065
  %v1196 = vmul.f32 %v1070, %v1070
  %v1197 = vmul.f32 %v1073, %v1073
  %v1198 = vmul.f32 %v1078, %v1078
  %v1199 = vmul.f32 %v1081, %v1081
  %v1200 = vmul.f32 %v1086, %v1086
  %v1201 = vmul.f32 %v1089, %v1089
  %v1202 = vmul.f32 %v1094, %v1094
  %v1203 = vadd.f32 %v1154, %v1155
  %v1204 = vadd.f32 %v1203, %v1156
  %v1205 = vadd.f32 %v1204, %v1157
  %v1206 = vadd.f32 %v1205, %v1158
  %v1207 = vadd.f32 %v1206, %v1159
  %v1208 = vadd.f32 %v1207, %v1160
  %v1209 = vadd.f32 %v1208, %v1161
  %v1210 = vadd.f32 %v1209, %v1162
  %v1211 = vadd.f32 %v1210, %v1163
  %v1212 = vadd.f32 %v1211, %v1164
  %v1213 = vadd.f32 %v1212, %v1165
  %v1214 = vadd.f32 %v1213, %v1166
  %v1215 = vadd.f32 %v1214, %v1167
  %v1216 = vadd.f32 %v1215, %v1168
  %v1217 = vadd.f32 %v1216, %v1169
  %v1218 = vadd.f32 %v1217, %v1170
  %v1219 = vadd.f32 %v1218, %v1171
  %v1220 = vadd.f32 %v1219, %v1172
  %v1221 = vadd.f32 %v1220, %v1173
  %v1222 = vadd.f32 %v1221, %v1174
  %v1223 = vadd.f32 %v1222, %v1175
  %v1224 = vadd.f32 %v1223, %v1176
  %v1225 = vadd.f32 %v1224, %v1177
  %v1226 = vadd.f32 %v1225, %v1178
  %v1227 = vadd.f32 %v1226, %v1179
  %v1228 = vadd.f32 %v1227, %v1180
  %v1229 = vadd.f32 %v1228, %v1181
  %v1230 = vadd.f32 %v1229, %v1182
  %v1231 = vadd.f32 %v1230, %v1183
  %v1232 = vadd.f32 %v1231, %v1184
  %v1233 = vadd.f32 %v1232, %v1185
  %v1234 = vadd.f32 %v1233, %v1186
  %v1235 = vadd.f32 %v1234, %v1187
  %v1236 = vadd.f32 %v1235, %v1188
  %v1237 = vadd.f32 %v1236, %v1189
  %v1238 = vadd.f32 %v1237, %v1190
  %v1239 = vadd.f32 %v1238, %v1191
  %v1240 = vadd.f32 %v1239, %v1192
  %v1241 = vadd.f32 %v1240, %v1193
  %v1242 = vadd.f32 %v1241, %v1194
  %v1243 = vadd.f32 %v1242, %v1195
  %v1244 = vadd.f32 %v1243, %v1196
  %v1245 = vadd.f32 %v1244, %v1197
  %v1246 = vadd.f32 %v1245, %v1198
  %v1247 = vadd.f32 %v1246, %v1199
  %v1248 = vadd.f32 %v1247, %v1200
  %v1249 = vadd.f32 %v1248, %v1201
  %v1250 = vadd.f32 %v1249, %v1202
  %v1251 = vrot.slane %v1250, 4
  %v1252 = vadd.f32 %v1250, %v1251
  %v1253 = vrot.slane %v1252, 2
  %v1254 = vadd.f32 %v1252, %v1253
  %v1255 = vrot.slane %v1254, 1
  %v1256 = vadd.f32 %v1254, %v1255
  %v1257 = vadd.f32 %v668, %v1256
  %s1258 = scalar_lea.vmem %s0, 392
  %v1259 = vld [vmem:[%s1258] sm:$0xf]
  %v1260 = vld [vmem:[%s1258 + $0x4] sm:$0xf]
  %v1261 = vld [vmem:[%s1258 + $0x8] sm:$0xf]
  %v1262 = vld [vmem:[%s1258 + $0xc] sm:$0xf]
  %v1263 = vld [vmem:[%s1258 + $0x10] sm:$0xf]
  %v1264 = vld [vmem:[%s1258 + $0x14] sm:$0xf]
  %v1265 = vld [vmem:[%s1258 + $0x18] sm:$0xf]
  %v1266 = vld [vmem:[%s1258 + $0x1c] sm:$0xf]
  %v1267 = vld [vmem:[%s1258 + $0x20] sm:$0xf]
  %v1268 = vld [vmem:[%s1258 + $0x24] sm:$0xf]
  %v1269 = vld [vmem:[%s1258 + $0x28] sm:$0xf]
  %v1270 = vld [vmem:[%s1258 + $0x2c] sm:$0xf]
  %v1271 = vld [vmem:[%s1258 + $0x30] sm:$0xf]
  %v1272 = vld [vmem:[%s1258 + $0x34] sm:$0xf]
  %v1273 = vld [vmem:[%s1258 + $0x38] sm:$0xf]
  %v1274 = vld [vmem:[%s1258 + $0x3c] sm:$0xf]
  %v1275 = vld [vmem:[%s1258 + $0x40] sm:$0xf]
  %v1276 = vld [vmem:[%s1258 + $0x44] sm:$0xf]
  %v1277 = vld [vmem:[%s1258 + $0x48] sm:$0xf]
  %v1278 = vld [vmem:[%s1258 + $0x4c] sm:$0xf]
  %v1279 = vld [vmem:[%s1258 + $0x50] sm:$0xf]
  %v1280 = vld [vmem:[%s1258 + $0x54] sm:$0xf]
  %v1281 = vld [vmem:[%s1258 + $0x58] sm:$0xf]
  %v1282 = vld [vmem:[%s1258 + $0x5c] sm:$0xf]
  %v1283 = vld [vmem:[%s1258 + $0x60] sm:$0xf]
  %v1284 = vld [vmem:[%s1258 + $0x64] sm:$0xf]
  %v1285 = vld [vmem:[%s1258 + $0x68] sm:$0xf]
  %v1286 = vld [vmem:[%s1258 + $0x6c] sm:$0xf]
  %v1287 = vld [vmem:[%s1258 + $0x70] sm:$0xf]
  %v1288 = vld [vmem:[%s1258 + $0x74] sm:$0xf]
  %v1289 = vld [vmem:[%s1258 + $0x78] sm:$0xf]
  %v1290 = vld [vmem:[%s1258 + $0x7c] sm:$0xf]
  %v1291 = vld [vmem:[%s1258 + $0x80] sm:$0xf]
  %v1292 = vld [vmem:[%s1258 + $0x84] sm:$0xf]
  %v1293 = vld [vmem:[%s1258 + $0x88] sm:$0xf]
  %v1294 = vld [vmem:[%s1258 + $0x8c] sm:$0xf]
  %v1295 = vld [vmem:[%s1258 + $0x90] sm:$0xf]
  %v1296 = vld [vmem:[%s1258 + $0x94] sm:$0xf]
  %v1297 = vld [vmem:[%s1258 + $0x98] sm:$0xf]
  %v1298 = vld [vmem:[%s1258 + $0x9c] sm:$0xf]
  %v1299 = vld [vmem:[%s1258 + $0xa0] sm:$0xf]
  %v1300 = vld [vmem:[%s1258 + $0xa4] sm:$0xf]
  %v1301 = vld [vmem:[%s1258 + $0xa8] sm:$0xf]
  %v1302 = vld [vmem:[%s1258 + $0xac] sm:$0xf]
  %v1303 = vld [vmem:[%s1258 + $0xb0] sm:$0xf]
  %v1304 = vld [vmem:[%s1258 + $0xb4] sm:$0xf]
  %v1305 = vld [vmem:[%s1258 + $0xb8] sm:$0xf]
  %v1306 = vld [vmem:[%s1258 + $0xbc] sm:$0xf]
  %v1307 = vld [vmem:[%s1258 + $0xc0] sm:$0xf]
  %v1357 = vunpack.c.l.b16 %v1259
  %v1358 = vunpack.c.l.b16 %v1260
  %v1359 = vunpack.c.l.b16 %v1261
  %v1360 = vunpack.c.l.b16 %v1262
  %v1361 = vunpack.c.l.b16 %v1263
  %v1362 = vunpack.c.l.b16 %v1264
  %v1363 = vunpack.c.l.b16 %v1265
  %v1364 = vunpack.c.l.b16 %v1266
  %v1365 = vunpack.c.l.b16 %v1267
  %v1366 = vunpack.c.l.b16 %v1268
  %v1367 = vunpack.c.l.b16 %v1269
  %v1368 = vunpack.c.l.b16 %v1270
  %v1369 = vunpack.c.l.b16 %v1271
  %v1370 = vunpack.c.l.b16 %v1272
  %v1371 = vunpack.c.l.b16 %v1273
  %v1372 = vunpack.c.l.b16 %v1274
  %v1373 = vunpack.c.l.b16 %v1275
  %v1374 = vunpack.c.l.b16 %v1276
  %v1375 = vunpack.c.l.b16 %v1277
  %v1376 = vunpack.c.l.b16 %v1278
  %v1377 = vunpack.c.l.b16 %v1279
  %v1378 = vunpack.c.l.b16 %v1280
  %v1379 = vunpack.c.l.b16 %v1281
  %v1380 = vunpack.c.l.b16 %v1282
  %v1381 = vunpack.c.l.b16 %v1283
  %v1382 = vunpack.c.l.b16 %v1284
  %v1383 = vunpack.c.l.b16 %v1285
  %v1384 = vunpack.c.l.b16 %v1286
  %v1385 = vunpack.c.l.b16 %v1287
  %v1386 = vunpack.c.l.b16 %v1288
  %v1387 = vunpack.c.l.b16 %v1289
  %v1388 = vunpack.c.l.b16 %v1290
  %v1389 = vunpack.c.l.b16 %v1291
  %v1390 = vunpack.c.l.b16 %v1292
  %v1391 = vunpack.c.l.b16 %v1293
  %v1392 = vunpack.c.l.b16 %v1294
  %v1393 = vunpack.c.l.b16 %v1295
  %v1394 = vunpack.c.l.b16 %v1296
  %v1395 = vunpack.c.l.b16 %v1297
  %v1396 = vunpack.c.l.b16 %v1298
  %v1397 = vunpack.c.l.b16 %v1299
  %v1398 = vunpack.c.l.b16 %v1300
  %v1399 = vunpack.c.l.b16 %v1301
  %v1400 = vunpack.c.l.b16 %v1302
  %v1401 = vunpack.c.l.b16 %v1303
  %v1402 = vunpack.c.l.b16 %v1304
  %v1403 = vunpack.c.l.b16 %v1305
  %v1404 = vunpack.c.l.b16 %v1306
  %v1405 = vunpack.c.l.b16 %v1307
  %v1406 = vpack.c.b16 %v1358, %v1357
  %v1407 = vpack.c.b16 %v1360, %v1359
  %v1408 = vpack.c.b16 %v1362, %v1361
  %v1409 = vpack.c.b16 %v1364, %v1363
  %v1410 = vpack.c.b16 %v1366, %v1365
  %v1411 = vpack.c.b16 %v1368, %v1367
  %v1412 = vpack.c.b16 %v1370, %v1369
  %v1413 = vpack.c.b16 %v1372, %v1371
  %v1414 = vpack.c.b16 %v1374, %v1373
  %v1415 = vpack.c.b16 %v1376, %v1375
  %v1416 = vpack.c.b16 %v1378, %v1377
  %v1417 = vpack.c.b16 %v1380, %v1379
  %v1418 = vpack.c.b16 %v1382, %v1381
  %v1419 = vpack.c.b16 %v1384, %v1383
  %v1420 = vpack.c.b16 %v1386, %v1385
  %v1421 = vpack.c.b16 %v1388, %v1387
  %v1422 = vpack.c.b16 %v1390, %v1389
  %v1423 = vpack.c.b16 %v1392, %v1391
  %v1424 = vpack.c.b16 %v1394, %v1393
  %v1425 = vpack.c.b16 %v1396, %v1395
  %v1426 = vpack.c.b16 %v1398, %v1397
  %v1427 = vpack.c.b16 %v1400, %v1399
  %v1428 = vpack.c.b16 %v1402, %v1401
  %v1429 = vpack.c.b16 %v1404, %v1403
  %v1430 = vpack.c.b16 %v1405, %v1405
  %1456 = vmatprep.subr.bf16.mxu0 0
  %1457 = vmatpush1.bf16.msra.mxu0 %v262
  %1458 = vmatprep.subr.bf16.mxu0 0
  %1459 = vmatpush1.bf16.msra.mxu0 %v263
  %1460 = vmatprep.subr.bf16.mxu0 0
  %1461 = vmatpush1.bf16.msra.mxu0 %v264
  %1462 = vmatprep.subr.bf16.mxu0 0
  %1463 = vmatpush1.bf16.msra.mxu0 %v265
  %1464 = vmatprep.subr.bf16.mxu0 0
  %1465 = vmatpush1.bf16.msra.mxu0 %v266
  %1466 = vmatprep.subr.bf16.mxu0 0
  %1467 = vmatpush1.bf16.msra.mxu0 %v267
  %1468 = vmatprep.subr.bf16.mxu0 0
  %1469 = vmatpush1.bf16.msra.mxu0 %v268
  %1470 = vmatprep.subr.bf16.mxu0 0
  %1471 = vmatpush1.bf16.msra.mxu0 %v269
  %1472 = vmatprep.subr.bf16.mxu0 0
  %1473 = vmatpush1.bf16.msra.mxu0 0
  %1474 = vmatprep.subr.bf16.mxu0 0
  %1475 = vmatpush1.bf16.msra.mxu0 0
  %1476 = vmatprep.subr.bf16.mxu0 0
  %1477 = vmatpush1.bf16.msra.mxu0 0
  %1478 = vmatprep.subr.bf16.mxu0 0
  %1479 = vmatpush1.bf16.msra.mxu0 0
  %1480 = vmatprep.subr.bf16.mxu0 0
  %1481 = vmatpush1.bf16.msra.mxu0 0
  %1482 = vmatprep.subr.bf16.mxu0 0
  %1483 = vmatpush1.bf16.msra.mxu0 0
  %1484 = vmatprep.subr.bf16.mxu0 0
  %1485 = vmatpush1.bf16.msra.mxu0 0
  %1486 = vmatprep.subr.bf16.mxu0 0
  %1487 = vmatpush1.bf16.msra.mxu0 0
  %1488 = vmatprep.mubr.bf16.mxu0 0
  %1489 = vmatmul.mubr.bf16.gmra.mrb[0].mxu0 %v1406
  %v1490 = vpop.f32.mrb[0].mxu0
  %v1491 = vadd.f32 0.0, %v1490
  %v1492 = vpop.f32.mrb[0].mxu0
  %v1493 = vpop.f32.mrb[0].mxu0
  %v1494 = vadd.f32 0.0, %v1493
  %v1495 = vpop.f32.mrb[0].mxu0
  %1496 = vmatprep.mubr.bf16.mxu0 0
  %1497 = vmatmul.mubr.bf16.gmra.mrb[0].mxu0 %v1407
  %v1498 = vpop.f32.mrb[0].mxu0
  %v1499 = vadd.f32 0.0, %v1498
  %v1500 = vpop.f32.mrb[0].mxu0
  %v1501 = vpop.f32.mrb[0].mxu0
  %v1502 = vadd.f32 0.0, %v1501
  %v1503 = vpop.f32.mrb[0].mxu0
  %1504 = vmatprep.mubr.bf16.mxu0 0
  %1505 = vmatmul.mubr.bf16.gmra.mrb[0].mxu0 %v1408
  %v1506 = vpop.f32.mrb[0].mxu0
  %v1507 = vadd.f32 0.0, %v1506
  %v1508 = vpop.f32.mrb[0].mxu0
  %v1509 = vpop.f32.mrb[0].mxu0
  %v1510 = vadd.f32 0.0, %v1509
  %v1511 = vpop.f32.mrb[0].mxu0
  %1512 = vmatprep.mubr.bf16.mxu0 0
  %1513 = vmatmul.mubr.bf16.gmra.mrb[0].mxu0 %v1409
  %v1514 = vpop.f32.mrb[0].mxu0
  %v1515 = vadd.f32 0.0, %v1514
  %v1516 = vpop.f32.mrb[0].mxu0
  %v1517 = vpop.f32.mrb[0].mxu0
  %v1518 = vadd.f32 0.0, %v1517
  %v1519 = vpop.f32.mrb[0].mxu0
  %1520 = vmatprep.mubr.bf16.mxu0 0
  %1521 = vmatmul.mubr.bf16.gmra.mrb[0].mxu0 %v1410
  %v1522 = vpop.f32.mrb[0].mxu0
  %v1523 = vadd.f32 0.0, %v1522
  %v1524 = vpop.f32.mrb[0].mxu0
  %v1525 = vpop.f32.mrb[0].mxu0
  %v1526 = vadd.f32 0.0, %v1525
  %v1527 = vpop.f32.mrb[0].mxu0
  %1528 = vmatprep.mubr.bf16.mxu0 0
  %1529 = vmatmul.mubr.bf16.gmra.mrb[0].mxu0 %v1411
  %v1530 = vpop.f32.mrb[0].mxu0
  %v1531 = vadd.f32 0.0, %v1530
  %v1532 = vpop.f32.mrb[0].mxu0
  %v1533 = vpop.f32.mrb[0].mxu0
  %v1534 = vadd.f32 0.0, %v1533
  %v1535 = vpop.f32.mrb[0].mxu0
  %1536 = vmatprep.mubr.bf16.mxu0 0
  %1537 = vmatmul.mubr.bf16.gmra.mrb[0].mxu0 %v1412
  %v1538 = vpop.f32.mrb[0].mxu0
  %v1539 = vadd.f32 0.0, %v1538
  %v1540 = vpop.f32.mrb[0].mxu0
  %v1541 = vpop.f32.mrb[0].mxu0
  %v1542 = vadd.f32 0.0, %v1541
  %v1543 = vpop.f32.mrb[0].mxu0
  %1544 = vmatprep.mubr.bf16.mxu0 0
  %1545 = vmatmul.mubr.bf16.gmra.mrb[0].mxu0 %v1413
  %v1546 = vpop.f32.mrb[0].mxu0
  %v1547 = vadd.f32 0.0, %v1546
  %v1548 = vpop.f32.mrb[0].mxu0
  %v1549 = vpop.f32.mrb[0].mxu0
  %v1550 = vadd.f32 0.0, %v1549
  %v1551 = vpop.f32.mrb[0].mxu0
  %1552 = vmatprep.mubr.bf16.mxu0 0
  %1553 = vmatmul.mubr.bf16.gmra.mrb[0].mxu0 %v1414
  %v1554 = vpop.f32.mrb[0].mxu0
  %v1555 = vadd.f32 0.0, %v1554
  %v1556 = vpop.f32.mrb[0].mxu0
  %v1557 = vpop.f32.mrb[0].mxu0
  %v1558 = vadd.f32 0.0, %v1557
  %v1559 = vpop.f32.mrb[0].mxu0
  %1560 = vmatprep.mubr.bf16.mxu0 0
  %1561 = vmatmul.mubr.bf16.gmra.mrb[0].mxu0 %v1415
  %v1562 = vpop.f32.mrb[0].mxu0
  %v1563 = vadd.f32 0.0, %v1562
  %v1564 = vpop.f32.mrb[0].mxu0
  %v1565 = vpop.f32.mrb[0].mxu0
  %v1566 = vadd.f32 0.0, %v1565
  %v1567 = vpop.f32.mrb[0].mxu0
  %1568 = vmatprep.mubr.bf16.mxu0 0
  %1569 = vmatmul.mubr.bf16.gmra.mrb[0].mxu0 %v1416
  %v1570 = vpop.f32.mrb[0].mxu0
  %v1571 = vadd.f32 0.0, %v1570
  %v1572 = vpop.f32.mrb[0].mxu0
  %v1573 = vpop.f32.mrb[0].mxu0
  %v1574 = vadd.f32 0.0, %v1573
  %v1575 = vpop.f32.mrb[0].mxu0
  %1576 = vmatprep.mubr.bf16.mxu0 0
  %1577 = vmatmul.mubr.bf16.gmra.mrb[0].mxu0 %v1417
  %v1578 = vpop.f32.mrb[0].mxu0
  %v1579 = vadd.f32 0.0, %v1578
  %v1580 = vpop.f32.mrb[0].mxu0
  %v1581 = vpop.f32.mrb[0].mxu0
  %v1582 = vadd.f32 0.0, %v1581
  %v1583 = vpop.f32.mrb[0].mxu0
  %1584 = vmatprep.mubr.bf16.mxu0 0
  %1585 = vmatmul.mubr.bf16.gmra.mrb[0].mxu0 %v1418
  %v1586 = vpop.f32.mrb[0].mxu0
  %v1587 = vadd.f32 0.0, %v1586
  %v1588 = vpop.f32.mrb[0].mxu0
  %v1589 = vpop.f32.mrb[0].mxu0
  %v1590 = vadd.f32 0.0, %v1589
  %v1591 = vpop.f32.mrb[0].mxu0
  %1592 = vmatprep.mubr.bf16.mxu0 0
  %1593 = vmatmul.mubr.bf16.gmra.mrb[0].mxu0 %v1419
  %v1594 = vpop.f32.mrb[0].mxu0
  %v1595 = vadd.f32 0.0, %v1594
  %v1596 = vpop.f32.mrb[0].mxu0
  %v1597 = vpop.f32.mrb[0].mxu0
  %v1598 = vadd.f32 0.0, %v1597
  %v1599 = vpop.f32.mrb[0].mxu0
  %1600 = vmatprep.mubr.bf16.mxu0 0
  %1601 = vmatmul.mubr.bf16.gmra.mrb[0].mxu0 %v1420
  %v1602 = vpop.f32.mrb[0].mxu0
  %v1603 = vadd.f32 0.0, %v1602
  %v1604 = vpop.f32.mrb[0].mxu0
  %v1605 = vpop.f32.mrb[0].mxu0
  %v1606 = vadd.f32 0.0, %v1605
  %v1607 = vpop.f32.mrb[0].mxu0
  %1608 = vmatprep.mubr.bf16.mxu0 0
  %1609 = vmatmul.mubr.bf16.gmra.mrb[0].mxu0 %v1421
  %v1610 = vpop.f32.mrb[0].mxu0
  %v1611 = vadd.f32 0.0, %v1610
  %v1612 = vpop.f32.mrb[0].mxu0
  %v1613 = vpop.f32.mrb[0].mxu0
  %v1614 = vadd.f32 0.0, %v1613
  %v1615 = vpop.f32.mrb[0].mxu0
  %1616 = vmatprep.mubr.bf16.mxu0 0
  %1617 = vmatmul.mubr.bf16.gmra.mrb[0].mxu0 %v1422
  %v1618 = vpop.f32.mrb[0].mxu0
  %v1619 = vadd.f32 0.0, %v1618
  %v1620 = vpop.f32.mrb[0].mxu0
  %v1621 = vpop.f32.mrb[0].mxu0
  %v1622 = vadd.f32 0.0, %v1621
  %v1623 = vpop.f32.mrb[0].mxu0
  %1624 = vmatprep.mubr.bf16.mxu0 0
  %1625 = vmatmul.mubr.bf16.gmra.mrb[0].mxu0 %v1423
  %v1626 = vpop.f32.mrb[0].mxu0
  %v1627 = vadd.f32 0.0, %v1626
  %v1628 = vpop.f32.mrb[0].mxu0
  %v1629 = vpop.f32.mrb[0].mxu0
  %v1630 = vadd.f32 0.0, %v1629
  %v1631 = vpop.f32.mrb[0].mxu0
  %1632 = vmatprep.mubr.bf16.mxu0 0
  %1633 = vmatmul.mubr.bf16.gmra.mrb[0].mxu0 %v1424
  %v1634 = vpop.f32.mrb[0].mxu0
  %v1635 = vadd.f32 0.0, %v1634
  %v1636 = vpop.f32.mrb[0].mxu0
  %v1637 = vpop.f32.mrb[0].mxu0
  %v1638 = vadd.f32 0.0, %v1637
  %v1639 = vpop.f32.mrb[0].mxu0
  %1640 = vmatprep.mubr.bf16.mxu0 0
  %1641 = vmatmul.mubr.bf16.gmra.mrb[0].mxu0 %v1425
  %v1642 = vpop.f32.mrb[0].mxu0
  %v1643 = vadd.f32 0.0, %v1642
  %v1644 = vpop.f32.mrb[0].mxu0
  %v1645 = vpop.f32.mrb[0].mxu0
  %v1646 = vadd.f32 0.0, %v1645
  %v1647 = vpop.f32.mrb[0].mxu0
  %1648 = vmatprep.mubr.bf16.mxu0 0
  %1649 = vmatmul.mubr.bf16.gmra.mrb[0].mxu0 %v1426
  %v1650 = vpop.f32.mrb[0].mxu0
  %v1651 = vadd.f32 0.0, %v1650
  %v1652 = vpop.f32.mrb[0].mxu0
  %v1653 = vpop.f32.mrb[0].mxu0
  %v1654 = vadd.f32 0.0, %v1653
  %v1655 = vpop.f32.mrb[0].mxu0
  %1656 = vmatprep.mubr.bf16.mxu0 0
  %1657 = vmatmul.mubr.bf16.gmra.mrb[0].mxu0 %v1427
  %v1658 = vpop.f32.mrb[0].mxu0
  %v1659 = vadd.f32 0.0, %v1658
  %v1660 = vpop.f32.mrb[0].mxu0
  %v1661 = vpop.f32.mrb[0].mxu0
  %v1662 = vadd.f32 0.0, %v1661
  %v1663 = vpop.f32.mrb[0].mxu0
  %1664 = vmatprep.mubr.bf16.mxu0 0
  %1665 = vmatmul.mubr.bf16.gmra.mrb[0].mxu0 %v1428
  %v1666 = vpop.f32.mrb[0].mxu0
  %v1667 = vadd.f32 0.0, %v1666
  %v1668 = vpop.f32.mrb[0].mxu0
  %v1669 = vpop.f32.mrb[0].mxu0
  %v1670 = vadd.f32 0.0, %v1669
  %v1671 = vpop.f32.mrb[0].mxu0
  %1672 = vmatprep.mubr.bf16.mxu0 0
  %1673 = vmatmul.mubr.bf16.gmra.mrb[0].mxu0 %v1429
  %v1674 = vpop.f32.mrb[0].mxu0
  %v1675 = vadd.f32 0.0, %v1674
  %v1676 = vpop.f32.mrb[0].mxu0
  %v1677 = vpop.f32.mrb[0].mxu0
  %v1678 = vadd.f32 0.0, %v1677
  %v1679 = vpop.f32.mrb[0].mxu0
  %1680 = vmatprep.mubr.bf16.mxu0 0
  %1681 = vmatmul.mubr.bf16.gmra.mrb[0].mxu0 %v1430
  %v1682 = vpop.f32.mrb[0].mxu0
  %v1683 = vadd.f32 0.0, %v1682
  %v1684 = vpop.f32.mrb[0].mxu0
  %v1685 = vpop.f32.mrb[0].mxu0
  %v1686 = vpop.f32.mrb[0].mxu0
  %1687 = vdwg.mxu0
  %v1688 = vadd.f32 %v1491, %v1494
  %v1689 = vadd.f32 %v1688, %v1499
  %v1690 = vadd.f32 %v1689, %v1502
  %v1691 = vadd.f32 %v1690, %v1507
  %v1692 = vadd.f32 %v1691, %v1510
  %v1693 = vadd.f32 %v1692, %v1515
  %v1694 = vadd.f32 %v1693, %v1518
  %v1695 = vadd.f32 %v1694, %v1523
  %v1696 = vadd.f32 %v1695, %v1526
  %v1697 = vadd.f32 %v1696, %v1531
  %v1698 = vadd.f32 %v1697, %v1534
  %v1699 = vadd.f32 %v1698, %v1539
  %v1700 = vadd.f32 %v1699, %v1542
  %v1701 = vadd.f32 %v1700, %v1547
  %v1702 = vadd.f32 %v1701, %v1550
  %v1703 = vadd.f32 %v1702, %v1555
  %v1704 = vadd.f32 %v1703, %v1558
  %v1705 = vadd.f32 %v1704, %v1563
  %v1706 = vadd.f32 %v1705, %v1566
  %v1707 = vadd.f32 %v1706, %v1571
  %v1708 = vadd.f32 %v1707, %v1574
  %v1709 = vadd.f32 %v1708, %v1579
  %v1710 = vadd.f32 %v1709, %v1582
  %v1711 = vadd.f32 %v1710, %v1587
  %v1712 = vadd.f32 %v1711, %v1590
  %v1713 = vadd.f32 %v1712, %v1595
  %v1714 = vadd.f32 %v1713, %v1598
  %v1715 = vadd.f32 %v1714, %v1603
  %v1716 = vadd.f32 %v1715, %v1606
  %v1717 = vadd.f32 %v1716, %v1611
  %v1718 = vadd.f32 %v1717, %v1614
  %v1719 = vadd.f32 %v1718, %v1619
  %v1720 = vadd.f32 %v1719, %v1622
  %v1721 = vadd.f32 %v1720, %v1627
  %v1722 = vadd.f32 %v1721, %v1630
  %v1723 = vadd.f32 %v1722, %v1635
  %v1724 = vadd.f32 %v1723, %v1638
  %v1725 = vadd.f32 %v1724, %v1643
  %v1726 = vadd.f32 %v1725, %v1646
  %v1727 = vadd.f32 %v1726, %v1651
  %v1728 = vadd.f32 %v1727, %v1654
  %v1729 = vadd.f32 %v1728, %v1659
  %v1730 = vadd.f32 %v1729, %v1662
  %v1731 = vadd.f32 %v1730, %v1667
  %v1732 = vadd.f32 %v1731, %v1670
  %v1733 = vadd.f32 %v1732, %v1675
  %v1734 = vadd.f32 %v1733, %v1678
  %v1735 = vadd.f32 %v1734, %v1683
  %v1736 = vrot.slane %v1735, 4
  %v1737 = vadd.f32 %v1735, %v1736
  %v1738 = vrot.slane %v1737, 2
  %v1739 = vadd.f32 %v1737, %v1738
  %v1740 = vrot.slane %v1739, 1
  %v1741 = vadd.f32 %v1739, %v1740
  %v1742 = vadd.f32 %v1153, %v1741
  %v1743 = vmul.f32 %v1491, %v1491
  %v1744 = vmul.f32 %v1494, %v1494
  %v1745 = vmul.f32 %v1499, %v1499
  %v1746 = vmul.f32 %v1502, %v1502
  %v1747 = vmul.f32 %v1507, %v1507
  %v1748 = vmul.f32 %v1510, %v1510
  %v1749 = vmul.f32 %v1515, %v1515
  %v1750 = vmul.f32 %v1518, %v1518
  %v1751 = vmul.f32 %v1523, %v1523
  %v1752 = vmul.f32 %v1526, %v1526
  %v1753 = vmul.f32 %v1531, %v1531
  %v1754 = vmul.f32 %v1534, %v1534
  %v1755 = vmul.f32 %v1539, %v1539
  %v1756 = vmul.f32 %v1542, %v1542
  %v1757 = vmul.f32 %v1547, %v1547
  %v1758 = vmul.f32 %v1550, %v1550
  %v1759 = vmul.f32 %v1555, %v1555
  %v1760 = vmul.f32 %v1558, %v1558
  %v1761 = vmul.f32 %v1563, %v1563
  %v1762 = vmul.f32 %v1566, %v1566
  %v1763 = vmul.f32 %v1571, %v1571
  %v1764 = vmul.f32 %v1574, %v1574
  %v1765 = vmul.f32 %v1579, %v1579
  %v1766 = vmul.f32 %v1582, %v1582
  %v1767 = vmul.f32 %v1587, %v1587
  %v1768 = vmul.f32 %v1590, %v1590
  %v1769 = vmul.f32 %v1595, %v1595
  %v1770 = vmul.f32 %v1598, %v1598
  %v1771 = vmul.f32 %v1603, %v1603
  %v1772 = vmul.f32 %v1606, %v1606
  %v1773 = vmul.f32 %v1611, %v1611
  %v1774 = vmul.f32 %v1614, %v1614
  %v1775 = vmul.f32 %v1619, %v1619
  %v1776 = vmul.f32 %v1622, %v1622
  %v1777 = vmul.f32 %v1627, %v1627
  %v1778 = vmul.f32 %v1630, %v1630
  %v1779 = vmul.f32 %v1635, %v1635
  %v1780 = vmul.f32 %v1638, %v1638
  %v1781 = vmul.f32 %v1643, %v1643
  %v1782 = vmul.f32 %v1646, %v1646
  %v1783 = vmul.f32 %v1651, %v1651
  %v1784 = vmul.f32 %v1654, %v1654
  %v1785 = vmul.f32 %v1659, %v1659
  %v1786 = vmul.f32 %v1662, %v1662
  %v1787 = vmul.f32 %v1667, %v1667
  %v1788 = vmul.f32 %v1670, %v1670
  %v1789 = vmul.f32 %v1675, %v1675
  %v1790 = vmul.f32 %v1678, %v1678
  %v1791 = vmul.f32 %v1683, %v1683
  %v1792 = vadd.f32 %v1743, %v1744
  %v1793 = vadd.f32 %v1792, %v1745
  %v1794 = vadd.f32 %v1793, %v1746
  %v1795 = vadd.f32 %v1794, %v1747
  %v1796 = vadd.f32 %v1795, %v1748
  %v1797 = vadd.f32 %v1796, %v1749
  %v1798 = vadd.f32 %v1797, %v1750
  %v1799 = vadd.f32 %v1798, %v1751
  %v1800 = vadd.f32 %v1799, %v1752
  %v1801 = vadd.f32 %v1800, %v1753
  %v1802 = vadd.f32 %v1801, %v1754
  %v1803 = vadd.f32 %v1802, %v1755
  %v1804 = vadd.f32 %v1803, %v1756
  %v1805 = vadd.f32 %v1804, %v1757
  %v1806 = vadd.f32 %v1805, %v1758
  %v1807 = vadd.f32 %v1806, %v1759
  %v1808 = vadd.f32 %v1807, %v1760
  %v1809 = vadd.f32 %v1808, %v1761
  %v1810 = vadd.f32 %v1809, %v1762
  %v1811 = vadd.f32 %v1810, %v1763
  %v1812 = vadd.f32 %v1811, %v1764
  %v1813 = vadd.f32 %v1812, %v1765
  %v1814 = vadd.f32 %v1813, %v1766
  %v1815 = vadd.f32 %v1814, %v1767
  %v1816 = vadd.f32 %v1815, %v1768
  %v1817 = vadd.f32 %v1816, %v1769
  %v1818 = vadd.f32 %v1817, %v1770
  %v1819 = vadd.f32 %v1818, %v1771
  %v1820 = vadd.f32 %v1819, %v1772
  %v1821 = vadd.f32 %v1820, %v1773
  %v1822 = vadd.f32 %v1821, %v1774
  %v1823 = vadd.f32 %v1822, %v1775
  %v1824 = vadd.f32 %v1823, %v1776
  %v1825 = vadd.f32 %v1824, %v1777
  %v1826 = vadd.f32 %v1825, %v1778
  %v1827 = vadd.f32 %v1826, %v1779
  %v1828 = vadd.f32 %v1827, %v1780
  %v1829 = vadd.f32 %v1828, %v1781
  %v1830 = vadd.f32 %v1829, %v1782
  %v1831 = vadd.f32 %v1830, %v1783
  %v1832 = vadd.f32 %v1831, %v1784
  %v1833 = vadd.f32 %v1832, %v1785
  %v1834 = vadd.f32 %v1833, %v1786
  %v1835 = vadd.f32 %v1834, %v1787
  %v1836 = vadd.f32 %v1835, %v1788
  %v1837 = vadd.f32 %v1836, %v1789
  %v1838 = vadd.f32 %v1837, %v1790
  %v1839 = vadd.f32 %v1838, %v1791
  %v1840 = vrot.slane %v1839, 4
  %v1841 = vadd.f32 %v1839, %v1840
  %v1842 = vrot.slane %v1841, 2
  %v1843 = vadd.f32 %v1841, %v1842
  %v1844 = vrot.slane %v1843, 1
  %v1845 = vadd.f32 %v1843, %v1844
  %v1846 = vadd.f32 %v1257, %v1845
  %s1847 = scalar_lea.vmem %s0, 588
  %v1848 = vld [vmem:[%s1847] sm:$0xf]
  %v1849 = vld [vmem:[%s1847 + $0x4] sm:$0xf]
  %v1850 = vld [vmem:[%s1847 + $0x8] sm:$0xf]
  %v1851 = vld [vmem:[%s1847 + $0xc] sm:$0xf]
  %v1852 = vld [vmem:[%s1847 + $0x10] sm:$0xf]
  %v1853 = vld [vmem:[%s1847 + $0x14] sm:$0xf]
  %v1854 = vld [vmem:[%s1847 + $0x18] sm:$0xf]
  %v1855 = vld [vmem:[%s1847 + $0x1c] sm:$0xf]
  %v1856 = vld [vmem:[%s1847 + $0x20] sm:$0xf]
  %v1857 = vld [vmem:[%s1847 + $0x24] sm:$0xf]
  %v1858 = vld [vmem:[%s1847 + $0x28] sm:$0xf]
  %v1859 = vld [vmem:[%s1847 + $0x2c] sm:$0xf]
  %v1860 = vld [vmem:[%s1847 + $0x30] sm:$0xf]
  %v1861 = vld [vmem:[%s1847 + $0x34] sm:$0xf]
  %v1862 = vld [vmem:[%s1847 + $0x38] sm:$0xf]
  %v1863 = vld [vmem:[%s1847 + $0x3c] sm:$0xf]
  %v1864 = vld [vmem:[%s1847 + $0x40] sm:$0xf]
  %v1865 = vld [vmem:[%s1847 + $0x44] sm:$0xf]
  %v1866 = vld [vmem:[%s1847 + $0x48] sm:$0xf]
  %v1867 = vld [vmem:[%s1847 + $0x4c] sm:$0xf]
  %v1868 = vld [vmem:[%s1847 + $0x50] sm:$0xf]
  %v1869 = vld [vmem:[%s1847 + $0x54] sm:$0xf]
  %v1870 = vld [vmem:[%s1847 + $0x58] sm:$0xf]
  %v1871 = vld [vmem:[%s1847 + $0x5c] sm:$0xf]
  %v1872 = vld [vmem:[%s1847 + $0x60] sm:$0xf]
  %v1873 = vld [vmem:[%s1847 + $0x64] sm:$0xf]
  %v1874 = vld [vmem:[%s1847 + $0x68] sm:$0xf]
  %v1875 = vld [vmem:[%s1847 + $0x6c] sm:$0xf]
  %v1876 = vld [vmem:[%s1847 + $0x70] sm:$0xf]
  %v1877 = vld [vmem:[%s1847 + $0x74] sm:$0xf]
  %v1878 = vld [vmem:[%s1847 + $0x78] sm:$0xf]
  %v1879 = vld [vmem:[%s1847 + $0x7c] sm:$0xf]
  %v1880 = vld [vmem:[%s1847 + $0x80] sm:$0xf]
  %v1881 = vld [vmem:[%s1847 + $0x84] sm:$0xf]
  %v1882 = vld [vmem:[%s1847 + $0x88] sm:$0xf]
  %v1883 = vld [vmem:[%s1847 + $0x8c] sm:$0xf]
  %v1884 = vld [vmem:[%s1847 + $0x90] sm:$0xf]
  %v1885 = vld [vmem:[%s1847 + $0x94] sm:$0xf]
  %v1886 = vld [vmem:[%s1847 + $0x98] sm:$0xf]
  %v1887 = vld [vmem:[%s1847 + $0x9c] sm:$0xf]
  %v1888 = vld [vmem:[%s1847 + $0xa0] sm:$0xf]
  %v1889 = vld [vmem:[%s1847 + $0xa4] sm:$0xf]
  %v1890 = vld [vmem:[%s1847 + $0xa8] sm:$0xf]
  %v1891 = vld [vmem:[%s1847 + $0xac] sm:$0xf]
  %v1892 = vld [vmem:[%s1847 + $0xb0] sm:$0xf]
  %v1893 = vld [vmem:[%s1847 + $0xb4] sm:$0xf]
  %v1894 = vld [vmem:[%s1847 + $0xb8] sm:$0xf]
  %v1895 = vld [vmem:[%s1847 + $0xbc] sm:$0xf]
  %v1896 = vld [vmem:[%s1847 + $0xc0] sm:$0xf]
  %v1946 = vunpack.c.l.b16 %v1848
  %v1947 = vunpack.c.l.b16 %v1849
  %v1948 = vunpack.c.l.b16 %v1850
  %v1949 = vunpack.c.l.b16 %v1851
  %v1950 = vunpack.c.l.b16 %v1852
  %v1951 = vunpack.c.l.b16 %v1853
  %v1952 = vunpack.c.l.b16 %v1854
  %v1953 = vunpack.c.l.b16 %v1855
  %v1954 = vunpack.c.l.b16 %v1856
  %v1955 = vunpack.c.l.b16 %v1857
  %v1956 = vunpack.c.l.b16 %v1858
  %v1957 = vunpack.c.l.b16 %v1859
  %v1958 = vunpack.c.l.b16 %v1860
  %v1959 = vunpack.c.l.b16 %v1861
  %v1960 = vunpack.c.l.b16 %v1862
  %v1961 = vunpack.c.l.b16 %v1863
  %v1962 = vunpack.c.l.b16 %v1864
  %v1963 = vunpack.c.l.b16 %v1865
  %v1964 = vunpack.c.l.b16 %v1866
  %v1965 = vunpack.c.l.b16 %v1867
  %v1966 = vunpack.c.l.b16 %v1868
  %v1967 = vunpack.c.l.b16 %v1869
  %v1968 = vunpack.c.l.b16 %v1870
  %v1969 = vunpack.c.l.b16 %v1871
  %v1970 = vunpack.c.l.b16 %v1872
  %v1971 = vunpack.c.l.b16 %v1873
  %v1972 = vunpack.c.l.b16 %v1874
  %v1973 = vunpack.c.l.b16 %v1875
  %v1974 = vunpack.c.l.b16 %v1876
  %v1975 = vunpack.c.l.b16 %v1877
  %v1976 = vunpack.c.l.b16 %v1878
  %v1977 = vunpack.c.l.b16 %v1879
  %v1978 = vunpack.c.l.b16 %v1880
  %v1979 = vunpack.c.l.b16 %v1881
  %v1980 = vunpack.c.l.b16 %v1882
  %v1981 = vunpack.c.l.b16 %v1883
  %v1982 = vunpack.c.l.b16 %v1884
  %v1983 = vunpack.c.l.b16 %v1885
  %v1984 = vunpack.c.l.b16 %v1886
  %v1985 = vunpack.c.l.b16 %v1887
  %v1986 = vunpack.c.l.b16 %v1888
  %v1987 = vunpack.c.l.b16 %v1889
  %v1988 = vunpack.c.l.b16 %v1890
  %v1989 = vunpack.c.l.b16 %v1891
  %v1990 = vunpack.c.l.b16 %v1892
  %v1991 = vunpack.c.l.b16 %v1893
  %v1992 = vunpack.c.l.b16 %v1894
  %v1993 = vunpack.c.l.b16 %v1895
  %v1994 = vunpack.c.l.b16 %v1896
  %v1995 = vpack.c.b16 %v1947, %v1946
  %v1996 = vpack.c.b16 %v1949, %v1948
  %v1997 = vpack.c.b16 %v1951, %v1950
  %v1998 = vpack.c.b16 %v1953, %v1952
  %v1999 = vpack.c.b16 %v1955, %v1954
  %v2000 = vpack.c.b16 %v1957, %v1956
  %v2001 = vpack.c.b16 %v1959, %v1958
  %v2002 = vpack.c.b16 %v1961, %v1960
  %v2003 = vpack.c.b16 %v1963, %v1962
  %v2004 = vpack.c.b16 %v1965, %v1964
  %v2005 = vpack.c.b16 %v1967, %v1966
  %v2006 = vpack.c.b16 %v1969, %v1968
  %v2007 = vpack.c.b16 %v1971, %v1970
  %v2008 = vpack.c.b16 %v1973, %v1972
  %v2009 = vpack.c.b16 %v1975, %v1974
  %v2010 = vpack.c.b16 %v1977, %v1976
  %v2011 = vpack.c.b16 %v1979, %v1978
  %v2012 = vpack.c.b16 %v1981, %v1980
  %v2013 = vpack.c.b16 %v1983, %v1982
  %v2014 = vpack.c.b16 %v1985, %v1984
  %v2015 = vpack.c.b16 %v1987, %v1986
  %v2016 = vpack.c.b16 %v1989, %v1988
  %v2017 = vpack.c.b16 %v1991, %v1990
  %v2018 = vpack.c.b16 %v1993, %v1992
  %v2019 = vpack.c.b16 %v1994, %v1994
  %2045 = vmatprep.subr.bf16.mxu0 0
  %2046 = vmatpush1.bf16.msra.mxu0 %v262
  %2047 = vmatprep.subr.bf16.mxu0 0
  %2048 = vmatpush1.bf16.msra.mxu0 %v263
  %2049 = vmatprep.subr.bf16.mxu0 0
  %2050 = vmatpush1.bf16.msra.mxu0 %v264
  %2051 = vmatprep.subr.bf16.mxu0 0
  %2052 = vmatpush1.bf16.msra.mxu0 %v265
  %2053 = vmatprep.subr.bf16.mxu0 0
  %2054 = vmatpush1.bf16.msra.mxu0 %v266
  %2055 = vmatprep.subr.bf16.mxu0 0
  %2056 = vmatpush1.bf16.msra.mxu0 %v267
  %2057 = vmatprep.subr.bf16.mxu0 0
  %2058 = vmatpush1.bf16.msra.mxu0 %v268
  %2059 = vmatprep.subr.bf16.mxu0 0
  %2060 = vmatpush1.bf16.msra.mxu0 %v269
  %2061 = vmatprep.subr.bf16.mxu0 0
  %2062 = vmatpush1.bf16.msra.mxu0 0
  %2063 = vmatprep.subr.bf16.mxu0 0
  %2064 = vmatpush1.bf16.msra.mxu0 0
  %2065 = vmatprep.subr.bf16.mxu0 0
  %2066 = vmatpush1.bf16.msra.mxu0 0
  %2067 = vmatprep.subr.bf16.mxu0 0
  %2068 = vmatpush1.bf16.msra.mxu0 0
  %2069 = vmatprep.subr.bf16.mxu0 0
  %2070 = vmatpush1.bf16.msra.mxu0 0
  %2071 = vmatprep.subr.bf16.mxu0 0
  %2072 = vmatpush1.bf16.msra.mxu0 0
  %2073 = vmatprep.subr.bf16.mxu0 0
  %2074 = vmatpush1.bf16.msra.mxu0 0
  %2075 = vmatprep.subr.bf16.mxu0 0
  %2076 = vmatpush1.bf16.msra.mxu0 0
  %2077 = vmatprep.mubr.bf16.mxu0 0
  %2078 = vmatmul.mubr.bf16.gmra.mrb[0].mxu0 %v1995
  %v2079 = vpop.f32.mrb[0].mxu0
  %v2080 = vadd.f32 0.0, %v2079
  %v2081 = vpop.f32.mrb[0].mxu0
  %v2082 = vpop.f32.mrb[0].mxu0
  %v2083 = vadd.f32 0.0, %v2082
  %v2084 = vpop.f32.mrb[0].mxu0
  %2085 = vmatprep.mubr.bf16.mxu0 0
  %2086 = vmatmul.mubr.bf16.gmra.mrb[0].mxu0 %v1996
  %v2087 = vpop.f32.mrb[0].mxu0
  %v2088 = vadd.f32 0.0, %v2087
  %v2089 = vpop.f32.mrb[0].mxu0
  %v2090 = vpop.f32.mrb[0].mxu0
  %v2091 = vadd.f32 0.0, %v2090
  %v2092 = vpop.f32.mrb[0].mxu0
  %2093 = vmatprep.mubr.bf16.mxu0 0
  %2094 = vmatmul.mubr.bf16.gmra.mrb[0].mxu0 %v1997
  %v2095 = vpop.f32.mrb[0].mxu0
  %v2096 = vadd.f32 0.0, %v2095
  %v2097 = vpop.f32.mrb[0].mxu0
  %v2098 = vpop.f32.mrb[0].mxu0
  %v2099 = vadd.f32 0.0, %v2098
  %v2100 = vpop.f32.mrb[0].mxu0
  %2101 = vmatprep.mubr.bf16.mxu0 0
  %2102 = vmatmul.mubr.bf16.gmra.mrb[0].mxu0 %v1998
  %v2103 = vpop.f32.mrb[0].mxu0
  %v2104 = vadd.f32 0.0, %v2103
  %v2105 = vpop.f32.mrb[0].mxu0
  %v2106 = vpop.f32.mrb[0].mxu0
  %v2107 = vadd.f32 0.0, %v2106
  %v2108 = vpop.f32.mrb[0].mxu0
  %2109 = vmatprep.mubr.bf16.mxu0 0
  %2110 = vmatmul.mubr.bf16.gmra.mrb[0].mxu0 %v1999
  %v2111 = vpop.f32.mrb[0].mxu0
  %v2112 = vadd.f32 0.0, %v2111
  %v2113 = vpop.f32.mrb[0].mxu0
  %v2114 = vpop.f32.mrb[0].mxu0
  %v2115 = vadd.f32 0.0, %v2114
  %v2116 = vpop.f32.mrb[0].mxu0
  %2117 = vmatprep.mubr.bf16.mxu0 0
  %2118 = vmatmul.mubr.bf16.gmra.mrb[0].mxu0 %v2000
  %v2119 = vpop.f32.mrb[0].mxu0
  %v2120 = vadd.f32 0.0, %v2119
  %v2121 = vpop.f32.mrb[0].mxu0
  %v2122 = vpop.f32.mrb[0].mxu0
  %v2123 = vadd.f32 0.0, %v2122
  %v2124 = vpop.f32.mrb[0].mxu0
  %2125 = vmatprep.mubr.bf16.mxu0 0
  %2126 = vmatmul.mubr.bf16.gmra.mrb[0].mxu0 %v2001
  %v2127 = vpop.f32.mrb[0].mxu0
  %v2128 = vadd.f32 0.0, %v2127
  %v2129 = vpop.f32.mrb[0].mxu0
  %v2130 = vpop.f32.mrb[0].mxu0
  %v2131 = vadd.f32 0.0, %v2130
  %v2132 = vpop.f32.mrb[0].mxu0
  %2133 = vmatprep.mubr.bf16.mxu0 0
  %2134 = vmatmul.mubr.bf16.gmra.mrb[0].mxu0 %v2002
  %v2135 = vpop.f32.mrb[0].mxu0
  %v2136 = vadd.f32 0.0, %v2135
  %v2137 = vpop.f32.mrb[0].mxu0
  %v2138 = vpop.f32.mrb[0].mxu0
  %v2139 = vadd.f32 0.0, %v2138
  %v2140 = vpop.f32.mrb[0].mxu0
  %2141 = vmatprep.mubr.bf16.mxu0 0
  %2142 = vmatmul.mubr.bf16.gmra.mrb[0].mxu0 %v2003
  %v2143 = vpop.f32.mrb[0].mxu0
  %v2144 = vadd.f32 0.0, %v2143
  %v2145 = vpop.f32.mrb[0].mxu0
  %v2146 = vpop.f32.mrb[0].mxu0
  %v2147 = vadd.f32 0.0, %v2146
  %v2148 = vpop.f32.mrb[0].mxu0
  %2149 = vmatprep.mubr.bf16.mxu0 0
  %2150 = vmatmul.mubr.bf16.gmra.mrb[0].mxu0 %v2004
  %v2151 = vpop.f32.mrb[0].mxu0
  %v2152 = vadd.f32 0.0, %v2151
  %v2153 = vpop.f32.mrb[0].mxu0
  %v2154 = vpop.f32.mrb[0].mxu0
  %v2155 = vadd.f32 0.0, %v2154
  %v2156 = vpop.f32.mrb[0].mxu0
  %2157 = vmatprep.mubr.bf16.mxu0 0
  %2158 = vmatmul.mubr.bf16.gmra.mrb[0].mxu0 %v2005
  %v2159 = vpop.f32.mrb[0].mxu0
  %v2160 = vadd.f32 0.0, %v2159
  %v2161 = vpop.f32.mrb[0].mxu0
  %v2162 = vpop.f32.mrb[0].mxu0
  %v2163 = vadd.f32 0.0, %v2162
  %v2164 = vpop.f32.mrb[0].mxu0
  %2165 = vmatprep.mubr.bf16.mxu0 0
  %2166 = vmatmul.mubr.bf16.gmra.mrb[0].mxu0 %v2006
  %v2167 = vpop.f32.mrb[0].mxu0
  %v2168 = vadd.f32 0.0, %v2167
  %v2169 = vpop.f32.mrb[0].mxu0
  %v2170 = vpop.f32.mrb[0].mxu0
  %v2171 = vadd.f32 0.0, %v2170
  %v2172 = vpop.f32.mrb[0].mxu0
  %2173 = vmatprep.mubr.bf16.mxu0 0
  %2174 = vmatmul.mubr.bf16.gmra.mrb[0].mxu0 %v2007
  %v2175 = vpop.f32.mrb[0].mxu0
  %v2176 = vadd.f32 0.0, %v2175
  %v2177 = vpop.f32.mrb[0].mxu0
  %v2178 = vpop.f32.mrb[0].mxu0
  %v2179 = vadd.f32 0.0, %v2178
  %v2180 = vpop.f32.mrb[0].mxu0
  %2181 = vmatprep.mubr.bf16.mxu0 0
  %2182 = vmatmul.mubr.bf16.gmra.mrb[0].mxu0 %v2008
  %v2183 = vpop.f32.mrb[0].mxu0
  %v2184 = vadd.f32 0.0, %v2183
  %v2185 = vpop.f32.mrb[0].mxu0
  %v2186 = vpop.f32.mrb[0].mxu0
  %v2187 = vadd.f32 0.0, %v2186
  %v2188 = vpop.f32.mrb[0].mxu0
  %2189 = vmatprep.mubr.bf16.mxu0 0
  %2190 = vmatmul.mubr.bf16.gmra.mrb[0].mxu0 %v2009
  %v2191 = vpop.f32.mrb[0].mxu0
  %v2192 = vadd.f32 0.0, %v2191
  %v2193 = vpop.f32.mrb[0].mxu0
  %v2194 = vpop.f32.mrb[0].mxu0
  %v2195 = vadd.f32 0.0, %v2194
  %v2196 = vpop.f32.mrb[0].mxu0
  %2197 = vmatprep.mubr.bf16.mxu0 0
  %2198 = vmatmul.mubr.bf16.gmra.mrb[0].mxu0 %v2010
  %v2199 = vpop.f32.mrb[0].mxu0
  %v2200 = vadd.f32 0.0, %v2199
  %v2201 = vpop.f32.mrb[0].mxu0
  %v2202 = vpop.f32.mrb[0].mxu0
  %v2203 = vadd.f32 0.0, %v2202
  %v2204 = vpop.f32.mrb[0].mxu0
  %2205 = vmatprep.mubr.bf16.mxu0 0
  %2206 = vmatmul.mubr.bf16.gmra.mrb[0].mxu0 %v2011
  %v2207 = vpop.f32.mrb[0].mxu0
  %v2208 = vadd.f32 0.0, %v2207
  %v2209 = vpop.f32.mrb[0].mxu0
  %v2210 = vpop.f32.mrb[0].mxu0
  %v2211 = vadd.f32 0.0, %v2210
  %v2212 = vpop.f32.mrb[0].mxu0
  %2213 = vmatprep.mubr.bf16.mxu0 0
  %2214 = vmatmul.mubr.bf16.gmra.mrb[0].mxu0 %v2012
  %v2215 = vpop.f32.mrb[0].mxu0
  %v2216 = vadd.f32 0.0, %v2215
  %v2217 = vpop.f32.mrb[0].mxu0
  %v2218 = vpop.f32.mrb[0].mxu0
  %v2219 = vadd.f32 0.0, %v2218
  %v2220 = vpop.f32.mrb[0].mxu0
  %2221 = vmatprep.mubr.bf16.mxu0 0
  %2222 = vmatmul.mubr.bf16.gmra.mrb[0].mxu0 %v2013
  %v2223 = vpop.f32.mrb[0].mxu0
  %v2224 = vadd.f32 0.0, %v2223
  %v2225 = vpop.f32.mrb[0].mxu0
  %v2226 = vpop.f32.mrb[0].mxu0
  %v2227 = vadd.f32 0.0, %v2226
  %v2228 = vpop.f32.mrb[0].mxu0
  %2229 = vmatprep.mubr.bf16.mxu0 0
  %2230 = vmatmul.mubr.bf16.gmra.mrb[0].mxu0 %v2014
  %v2231 = vpop.f32.mrb[0].mxu0
  %v2232 = vadd.f32 0.0, %v2231
  %v2233 = vpop.f32.mrb[0].mxu0
  %v2234 = vpop.f32.mrb[0].mxu0
  %v2235 = vadd.f32 0.0, %v2234
  %v2236 = vpop.f32.mrb[0].mxu0
  %2237 = vmatprep.mubr.bf16.mxu0 0
  %2238 = vmatmul.mubr.bf16.gmra.mrb[0].mxu0 %v2015
  %v2239 = vpop.f32.mrb[0].mxu0
  %v2240 = vadd.f32 0.0, %v2239
  %v2241 = vpop.f32.mrb[0].mxu0
  %v2242 = vpop.f32.mrb[0].mxu0
  %v2243 = vadd.f32 0.0, %v2242
  %v2244 = vpop.f32.mrb[0].mxu0
  %2245 = vmatprep.mubr.bf16.mxu0 0
  %2246 = vmatmul.mubr.bf16.gmra.mrb[0].mxu0 %v2016
  %v2247 = vpop.f32.mrb[0].mxu0
  %v2248 = vadd.f32 0.0, %v2247
  %v2249 = vpop.f32.mrb[0].mxu0
  %v2250 = vpop.f32.mrb[0].mxu0
  %v2251 = vadd.f32 0.0, %v2250
  %v2252 = vpop.f32.mrb[0].mxu0
  %2253 = vmatprep.mubr.bf16.mxu0 0
  %2254 = vmatmul.mubr.bf16.gmra.mrb[0].mxu0 %v2017
  %v2255 = vpop.f32.mrb[0].mxu0
  %v2256 = vadd.f32 0.0, %v2255
  %v2257 = vpop.f32.mrb[0].mxu0
  %v2258 = vpop.f32.mrb[0].mxu0
  %v2259 = vadd.f32 0.0, %v2258
  %v2260 = vpop.f32.mrb[0].mxu0
  %2261 = vmatprep.mubr.bf16.mxu0 0
  %2262 = vmatmul.mubr.bf16.gmra.mrb[0].mxu0 %v2018
  %v2263 = vpop.f32.mrb[0].mxu0
  %v2264 = vadd.f32 0.0, %v2263
  %v2265 = vpop.f32.mrb[0].mxu0
  %v2266 = vpop.f32.mrb[0].mxu0
  %v2267 = vadd.f32 0.0, %v2266
  %v2268 = vpop.f32.mrb[0].mxu0
  %2269 = vmatprep.mubr.bf16.mxu0 0
  %2270 = vmatmul.mubr.bf16.gmra.mrb[0].mxu0 %v2019
  %v2271 = vpop.f32.mrb[0].mxu0
  %v2272 = vadd.f32 0.0, %v2271
  %v2273 = vpop.f32.mrb[0].mxu0
  %v2274 = vpop.f32.mrb[0].mxu0
  %v2275 = vpop.f32.mrb[0].mxu0
  %2276 = vdwg.mxu0
  %v2277 = vadd.f32 %v2080, %v2083
  %v2278 = vadd.f32 %v2277, %v2088
  %v2279 = vadd.f32 %v2278, %v2091
  %v2280 = vadd.f32 %v2279, %v2096
  %v2281 = vadd.f32 %v2280, %v2099
  %v2282 = vadd.f32 %v2281, %v2104
  %v2283 = vadd.f32 %v2282, %v2107
  %v2284 = vadd.f32 %v2283, %v2112
  %v2285 = vadd.f32 %v2284, %v2115
  %v2286 = vadd.f32 %v2285, %v2120
  %v2287 = vadd.f32 %v2286, %v2123
  %v2288 = vadd.f32 %v2287, %v2128
  %v2289 = vadd.f32 %v2288, %v2131
  %v2290 = vadd.f32 %v2289, %v2136
  %v2291 = vadd.f32 %v2290, %v2139
  %v2292 = vadd.f32 %v2291, %v2144
  %v2293 = vadd.f32 %v2292, %v2147
  %v2294 = vadd.f32 %v2293, %v2152
  %v2295 = vadd.f32 %v2294, %v2155
  %v2296 = vadd.f32 %v2295, %v2160
  %v2297 = vadd.f32 %v2296, %v2163
  %v2298 = vadd.f32 %v2297, %v2168
  %v2299 = vadd.f32 %v2298, %v2171
  %v2300 = vadd.f32 %v2299, %v2176
  %v2301 = vadd.f32 %v2300, %v2179
  %v2302 = vadd.f32 %v2301, %v2184
  %v2303 = vadd.f32 %v2302, %v2187
  %v2304 = vadd.f32 %v2303, %v2192
  %v2305 = vadd.f32 %v2304, %v2195
  %v2306 = vadd.f32 %v2305, %v2200
  %v2307 = vadd.f32 %v2306, %v2203
  %v2308 = vadd.f32 %v2307, %v2208
  %v2309 = vadd.f32 %v2308, %v2211
  %v2310 = vadd.f32 %v2309, %v2216
  %v2311 = vadd.f32 %v2310, %v2219
  %v2312 = vadd.f32 %v2311, %v2224
  %v2313 = vadd.f32 %v2312, %v2227
  %v2314 = vadd.f32 %v2313, %v2232
  %v2315 = vadd.f32 %v2314, %v2235
  %v2316 = vadd.f32 %v2315, %v2240
  %v2317 = vadd.f32 %v2316, %v2243
  %v2318 = vadd.f32 %v2317, %v2248
  %v2319 = vadd.f32 %v2318, %v2251
  %v2320 = vadd.f32 %v2319, %v2256
  %v2321 = vadd.f32 %v2320, %v2259
  %v2322 = vadd.f32 %v2321, %v2264
  %v2323 = vadd.f32 %v2322, %v2267
  %v2324 = vadd.f32 %v2323, %v2272
  %v2325 = vrot.slane %v2324, 4
  %v2326 = vadd.f32 %v2324, %v2325
  %v2327 = vrot.slane %v2326, 2
  %v2328 = vadd.f32 %v2326, %v2327
  %v2329 = vrot.slane %v2328, 1
  %v2330 = vadd.f32 %v2328, %v2329
  %v2331 = vadd.f32 %v1742, %v2330
  %v2332 = vmul.f32 %v2080, %v2080
  %v2333 = vmul.f32 %v2083, %v2083
  %v2334 = vmul.f32 %v2088, %v2088
  %v2335 = vmul.f32 %v2091, %v2091
  %v2336 = vmul.f32 %v2096, %v2096
  %v2337 = vmul.f32 %v2099, %v2099
  %v2338 = vmul.f32 %v2104, %v2104
  %v2339 = vmul.f32 %v2107, %v2107
  %v2340 = vmul.f32 %v2112, %v2112
  %v2341 = vmul.f32 %v2115, %v2115
  %v2342 = vmul.f32 %v2120, %v2120
  %v2343 = vmul.f32 %v2123, %v2123
  %v2344 = vmul.f32 %v2128, %v2128
  %v2345 = vmul.f32 %v2131, %v2131
  %v2346 = vmul.f32 %v2136, %v2136
  %v2347 = vmul.f32 %v2139, %v2139
  %v2348 = vmul.f32 %v2144, %v2144
  %v2349 = vmul.f32 %v2147, %v2147
  %v2350 = vmul.f32 %v2152, %v2152
  %v2351 = vmul.f32 %v2155, %v2155
  %v2352 = vmul.f32 %v2160, %v2160
  %v2353 = vmul.f32 %v2163, %v2163
  %v2354 = vmul.f32 %v2168, %v2168
  %v2355 = vmul.f32 %v2171, %v2171
  %v2356 = vmul.f32 %v2176, %v2176
  %v2357 = vmul.f32 %v2179, %v2179
  %v2358 = vmul.f32 %v2184, %v2184
  %v2359 = vmul.f32 %v2187, %v2187
  %v2360 = vmul.f32 %v2192, %v2192
  %v2361 = vmul.f32 %v2195, %v2195
  %v2362 = vmul.f32 %v2200, %v2200
  %v2363 = vmul.f32 %v2203, %v2203
  %v2364 = vmul.f32 %v2208, %v2208
  %v2365 = vmul.f32 %v2211, %v2211
  %v2366 = vmul.f32 %v2216, %v2216
  %v2367 = vmul.f32 %v2219, %v2219
  %v2368 = vmul.f32 %v2224, %v2224
  %v2369 = vmul.f32 %v2227, %v2227
  %v2370 = vmul.f32 %v2232, %v2232
  %v2371 = vmul.f32 %v2235, %v2235
  %v2372 = vmul.f32 %v2240, %v2240
  %v2373 = vmul.f32 %v2243, %v2243
  %v2374 = vmul.f32 %v2248, %v2248
  %v2375 = vmul.f32 %v2251, %v2251
  %v2376 = vmul.f32 %v2256, %v2256
  %v2377 = vmul.f32 %v2259, %v2259
  %v2378 = vmul.f32 %v2264, %v2264
  %v2379 = vmul.f32 %v2267, %v2267
  %v2380 = vmul.f32 %v2272, %v2272
  %v2381 = vadd.f32 %v2332, %v2333
  %v2382 = vadd.f32 %v2381, %v2334
  %v2383 = vadd.f32 %v2382, %v2335
  %v2384 = vadd.f32 %v2383, %v2336
  %v2385 = vadd.f32 %v2384, %v2337
  %v2386 = vadd.f32 %v2385, %v2338
  %v2387 = vadd.f32 %v2386, %v2339
  %v2388 = vadd.f32 %v2387, %v2340
  %v2389 = vadd.f32 %v2388, %v2341
  %v2390 = vadd.f32 %v2389, %v2342
  %v2391 = vadd.f32 %v2390, %v2343
  %v2392 = vadd.f32 %v2391, %v2344
  %v2393 = vadd.f32 %v2392, %v2345
  %v2394 = vadd.f32 %v2393, %v2346
  %v2395 = vadd.f32 %v2394, %v2347
  %v2396 = vadd.f32 %v2395, %v2348
  %v2397 = vadd.f32 %v2396, %v2349
  %v2398 = vadd.f32 %v2397, %v2350
  %v2399 = vadd.f32 %v2398, %v2351
  %v2400 = vadd.f32 %v2399, %v2352
  %v2401 = vadd.f32 %v2400, %v2353
  %v2402 = vadd.f32 %v2401, %v2354
  %v2403 = vadd.f32 %v2402, %v2355
  %v2404 = vadd.f32 %v2403, %v2356
  %v2405 = vadd.f32 %v2404, %v2357
  %v2406 = vadd.f32 %v2405, %v2358
  %v2407 = vadd.f32 %v2406, %v2359
  %v2408 = vadd.f32 %v2407, %v2360
  %v2409 = vadd.f32 %v2408, %v2361
  %v2410 = vadd.f32 %v2409, %v2362
  %v2411 = vadd.f32 %v2410, %v2363
  %v2412 = vadd.f32 %v2411, %v2364
  %v2413 = vadd.f32 %v2412, %v2365
  %v2414 = vadd.f32 %v2413, %v2366
  %v2415 = vadd.f32 %v2414, %v2367
  %v2416 = vadd.f32 %v2415, %v2368
  %v2417 = vadd.f32 %v2416, %v2369
  %v2418 = vadd.f32 %v2417, %v2370
  %v2419 = vadd.f32 %v2418, %v2371
  %v2420 = vadd.f32 %v2419, %v2372
  %v2421 = vadd.f32 %v2420, %v2373
  %v2422 = vadd.f32 %v2421, %v2374
  %v2423 = vadd.f32 %v2422, %v2375
  %v2424 = vadd.f32 %v2423, %v2376
  %v2425 = vadd.f32 %v2424, %v2377
  %v2426 = vadd.f32 %v2425, %v2378
  %v2427 = vadd.f32 %v2426, %v2379
  %v2428 = vadd.f32 %v2427, %v2380
  %v2429 = vrot.slane %v2428, 4
  %v2430 = vadd.f32 %v2428, %v2429
  %v2431 = vrot.slane %v2430, 2
  %v2432 = vadd.f32 %v2430, %v2431
  %v2433 = vrot.slane %v2432, 1
  %v2434 = vadd.f32 %v2432, %v2433
  %v2435 = vadd.f32 %v1846, %v2434
  %v2436 = vld [vmem:[%s2] sm:$0x1]
  %v2437 = vadd.f32 %v2436, %v2331
  %2438 = vst [vmem:[%s2] sm:$0x1] %v2437
  %v2439 = vld [vmem:[%s2 + $0x1] sm:$0x1]
  %v2440 = vadd.f32 %v2439, %v2435
  %2441 = vst [vmem:[%s2 + $0x1] sm:$0x1] %v2440
  // Predicated region
  $region14: #{lenet5_bn_forward.5} parent=0 // pred_check
    _
  $region15: #{lenet5_bn_forward.5} parent=0 // pred_check_branch
    %2443 = sbr.rel (0) target = $region17
  $region16: #{lenet5_bn_forward.5} parent=0 // pred_region
    _
  $region17: #{lenet5_bn_forward.5} parent=0 // pred_fallthru
    _
  // Predicated region
  $region18: #{lenet5_bn_forward.5} parent=0 // pred_check
    _
  $region19: #{lenet5_bn_forward.5} parent=0 // pred_check_branch
    %2445 = sbr.rel (0) target = $region21
  $region20: #{lenet5_bn_forward.5} parent=0 // pred_region
    _
  $region21: #{lenet5_bn_forward.5} parent=0 // pred_fallthru
    _

// kernel: lenet5_bn_forward.6
$region0: #{lenet5_bn_forward.6}
  #allocation0 [shape = 'u32[]', space=smem, size = 0x4, offset = 0x4, fixed_abs, tag = 'smem constant byte address 0x4 - core index']
  #allocation1 [shape = 'u32[144,128]{1,0:T(1,128)}', space=vmem, size = 0x12000, scoped, tag = 'internal scratch']
  %s0 = inlined_call_operand.vmem [shape: f32[8,128], index: 0, kind: input, shape index: {}]
  %s1 = inlined_call_operand.vmem [shape: f32[1,128], index: 1, kind: input, shape index: {}]
  %s2 = inlined_call_operand.vmem [shape: f32[1,128], index: 2, kind: input, shape index: {}]
  %s3 = inlined_call_operand.vmem [shape: bf16[4,392,128], index: 3, kind: input, shape index: {}]
  %s4 = inlined_call_operand.vmem [shape: bf16[128,128], index: 4, kind: input, shape index: {}]
  %s5 = inlined_call_operand.vmem [shape: bf16[392,128], index: 5, kind: output, shape index: {}]
  %s6 = sld [smem:[#allocation0]]
  $region30: #{lenet5_bn_forward.6} parent=0
    _
  %s8 = ssub.s32 1, %s6
  %s9 = scalar_select 0, %s8, %s6
  // Predicated region
  $region2: #{lenet5_bn_forward.6} parent=0 // pred_check
    _
  $region3: #{lenet5_bn_forward.6} parent=0 // pred_check_branch
    %11 = sbr.rel (0) target = $region5
  $region4: #{lenet5_bn_forward.6} parent=0 // pred_region
    _
  $region5: #{lenet5_bn_forward.6} parent=0 // pred_fallthru
    _
  // Predicated region
  $region6: #{lenet5_bn_forward.6} parent=0 // pred_check
    _
  $region7: #{lenet5_bn_forward.6} parent=0 // pred_check_branch
    %13 = sbr.rel (0) target = $region9
  $region8: #{lenet5_bn_forward.6} parent=0 // pred_region
    _
  $region9: #{lenet5_bn_forward.6} parent=0 // pred_fallthru
    _
  // Predicated region
  $region10: #{lenet5_bn_forward.6} parent=0 // pred_check
    _
  $region11: #{lenet5_bn_forward.6} parent=0 // pred_check_branch
    %15 = sbr.rel (0) target = $region13
  $region12: #{lenet5_bn_forward.6} parent=0 // pred_region
    _
  $region13: #{lenet5_bn_forward.6} parent=0 // pred_fallthru
    _
  // Predicated region
  $region14: #{lenet5_bn_forward.6} parent=0 // pred_check
    _
  $region15: #{lenet5_bn_forward.6} parent=0 // pred_check_branch
    %17 = sbr.rel (0) target = $region17
  $region16: #{lenet5_bn_forward.6} parent=0 // pred_region
    _
  $region17: #{lenet5_bn_forward.6} parent=0 // pred_fallthru
    _
  // Predicated region
  $region18: #{lenet5_bn_forward.6} parent=0 // pred_check
    _
  $region19: #{lenet5_bn_forward.6} parent=0 // pred_check_branch
    %19 = sbr.rel (0) target = $region21
  $region20: #{lenet5_bn_forward.6} parent=0 // pred_region
    _
  $region21: #{lenet5_bn_forward.6} parent=0 // pred_fallthru
    _
  %v21 = vld [vmem:[%s0] sm:$0x1]
  %v22 = vmul.f32 %v21, 0.0006377551
  %v23 = vld [vmem:[%s0 + $0x1] sm:$0x1]
  %v24 = vmul.f32 %v23, 0.0006377551
  %v25 = vmul.f32 %v22, %v22
  %v26 = vsub.f32 %v24, %v25
  %v27 = vmax.f32 %v26, 0.0
  %v28 = vadd.f32 %v27, 1e-05
  %v29 = vrsqrt.pop %v28
  %v30 = vld [vmem:[%s1] sm:$0x1]
  %v31 = vmul.f32 %v29, %v30
  %v32 = vld [vmem:[%s2] sm:$0x1]
  %v33 = vmul.f32 %v22, %v31
  %v34 = vsub.f32 %v32, %v33
  %v35 = vld [vmem:[%s4] sm:$0xf]
  %v36 = vld [vmem:[%s4 + $0x4] sm:$0xf]
  %v37 = vld [vmem:[%s4 + $0x8] sm:$0xf]
  %v38 = vld [vmem:[%s4 + $0xc] sm:$0xf]
  %v39 = vld [vmem:[%s4 + $0x10] sm:$0xf]
  %v40 = vld [vmem:[%s4 + $0x14] sm:$0xf]
  %v41 = vld [vmem:[%s4 + $0x18] sm:$0xf]
  %v42 = vld [vmem:[%s4 + $0x1c] sm:$0xf]
  %v43 = vld [vmem:[%s4 + $0x20] sm:$0xf]
  %v44 = vld [vmem:[%s4 + $0x24] sm:$0xf]
  %v45 = vld [vmem:[%s4 + $0x28] sm:$0xf]
  %v46 = vld [vmem:[%s4 + $0x2c] sm:$0xf]
  %v47 = vld [vmem:[%s4 + $0x30] sm:$0xf]
  %v48 = vld [vmem:[%s4 + $0x34] sm:$0xf]
  %v49 = vld [vmem:[%s4 + $0x38] sm:$0xf]
  %v50 = vld [vmem:[%s4 + $0x3c] sm:$0xf]
  %v51 = vld [vmem:[%s3] sm:$0xf]
  %v52 = vld [vmem:[%s3 + $0x4] sm:$0xf]
  %v53 = vld [vmem:[%s3 + $0x8] sm:$0xf]
  %v54 = vld [vmem:[%s3 + $0xc] sm:$0xf]
  %v55 = vld [vmem:[%s3 + $0x10] sm:$0xf]
  %v56 = vld [vmem:[%s3 + $0x14] sm:$0xf]
  %v57 = vld [vmem:[%s3 + $0x18] sm:$0xf]
  %v58 = vld [vmem:[%s3 + $0x1c] sm:$0xf]
  %v59 = vld [vmem:[%s3 + $0x20] sm:$0xf]
  %v60 = vld [vmem:[%s3 + $0x24] sm:$0xf]
  %v61 = vld [vmem:[%s3 + $0x28] sm:$0xf]
  %v62 = vld [vmem:[%s3 + $0x2c] sm:$0xf]
  %v63 = vld [vmem:[%s3 + $0x30] sm:$0xf]
  %v64 = vld [vmem:[%s3 + $0x34] sm:$0xf]
  %v65 = vld [vmem:[%s3 + $0x38] sm:$0xf]
  %v66 = vld [vmem:[%s3 + $0x3c] sm:$0xf]
  %v67 = vld [vmem:[%s3 + $0x40] sm:$0xf]
  %v68 = vld [vmem:[%s3 + $0x44] sm:$0xf]
  %v69 = vld [vmem:[%s3 + $0x48] sm:$0xf]
  %v70 = vld [vmem:[%s3 + $0x4c] sm:$0xf]
  %v71 = vld [vmem:[%s3 + $0x50] sm:$0xf]
  %v72 = vld [vmem:[%s3 + $0x54] sm:$0xf]
  %v73 = vld [vmem:[%s3 + $0x58] sm:$0xf]
  %v74 = vld [vmem:[%s3 + $0x5c] sm:$0xf]
  %v75 = vld [vmem:[%s3 + $0x60] sm:$0xf]
  %v76 = vld [vmem:[%s3 + $0x64] sm:$0xf]
  %v77 = vld [vmem:[%s3 + $0x68] sm:$0xf]
  %v78 = vld [vmem:[%s3 + $0x6c] sm:$0xf]
  %v79 = vld [vmem:[%s3 + $0x70] sm:$0xf]
  %v80 = vld [vmem:[%s3 + $0x74] sm:$0xf]
  %v81 = vld [vmem:[%s3 + $0x78] sm:$0xf]
  %v82 = vld [vmem:[%s3 + $0x7c] sm:$0xf]
  %v83 = vld [vmem:[%s3 + $0x80] sm:$0xf]
  %v84 = vld [vmem:[%s3 + $0x84] sm:$0xf]
  %v85 = vld [vmem:[%s3 + $0x88] sm:$0xf]
  %v86 = vld [vmem:[%s3 + $0x8c] sm:$0xf]
  %v87 = vld [vmem:[%s3 + $0x90] sm:$0xf]
  %v88 = vld [vmem:[%s3 + $0x94] sm:$0xf]
  %v89 = vld [vmem:[%s3 + $0x98] sm:$0xf]
  %v90 = vld [vmem:[%s3 + $0x9c] sm:$0xf]
  %v91 = vld [vmem:[%s3 + $0xa0] sm:$0xf]
  %v92 = vld [vmem:[%s3 + $0xa4] sm:$0xf]
  %v93 = vld [vmem:[%s3 + $0xa8] sm:$0xf]
  %v94 = vld [vmem:[%s3 + $0xac] sm:$0xf]
  %v95 = vld [vmem:[%s3 + $0xb0] sm:$0xf]
  %v96 = vld [vmem:[%s3 + $0xb4] sm:$0xf]
  %v97 = vld [vmem:[%s3 + $0xb8] sm:$0xf]
  %v98 = vld [vmem:[%s3 + $0xbc] sm:$0xf]
  %v99 = vld [vmem:[%s3 + $0xc0] sm:$0xf]
  %v149 = vunpack.c.l.b16 %v51
  %v150 = vunpack.c.l.b16 %v52
  %v151 = vunpack.c.l.b16 %v53
  %v152 = vunpack.c.l.b16 %v54
  %v153 = vunpack.c.l.b16 %v55
  %v154 = vunpack.c.l.b16 %v56
  %v155 = vunpack.c.l.b16 %v57
  %v156 = vunpack.c.l.b16 %v58
  %v157 = vunpack.c.l.b16 %v59
  %v158 = vunpack.c.l.b16 %v60
  %v159 = vunpack.c.l.b16 %v61
  %v160 = vunpack.c.l.b16 %v62
  %v161 = vunpack.c.l.b16 %v63
  %v162 = vunpack.c.l.b16 %v64
  %v163 = vunpack.c.l.b16 %v65
  %v164 = vunpack.c.l.b16 %v66
  %v165 = vunpack.c.l.b16 %v67
  %v166 = vunpack.c.l.b16 %v68
  %v167 = vunpack.c.l.b16 %v69
  %v168 = vunpack.c.l.b16 %v70
  %v169 = vunpack.c.l.b16 %v71
  %v170 = vunpack.c.l.b16 %v72
  %v171 = vunpack.c.l.b16 %v73
  %v172 = vunpack.c.l.b16 %v74
  %v173 = vunpack.c.l.b16 %v75
  %v174 = vunpack.c.l.b16 %v76
  %v175 = vunpack.c.l.b16 %v77
  %v176 = vunpack.c.l.b16 %v78
  %v177 = vunpack.c.l.b16 %v79
  %v178 = vunpack.c.l.b16 %v80
  %v179 = vunpack.c.l.b16 %v81
  %v180 = vunpack.c.l.b16 %v82
  %v181 = vunpack.c.l.b16 %v83
  %v182 = vunpack.c.l.b16 %v84
  %v183 = vunpack.c.l.b16 %v85
  %v184 = vunpack.c.l.b16 %v86
  %v185 = vunpack.c.l.b16 %v87
  %v186 = vunpack.c.l.b16 %v88
  %v187 = vunpack.c.l.b16 %v89
  %v188 = vunpack.c.l.b16 %v90
  %v189 = vunpack.c.l.b16 %v91
  %v190 = vunpack.c.l.b16 %v92
  %v191 = vunpack.c.l.b16 %v93
  %v192 = vunpack.c.l.b16 %v94
  %v193 = vunpack.c.l.b16 %v95
  %v194 = vunpack.c.l.b16 %v96
  %v195 = vunpack.c.l.b16 %v97
  %v196 = vunpack.c.l.b16 %v98
  %v197 = vunpack.c.l.b16 %v99
  %v198 = vpack.c.b16 %v150, %v149
  %v199 = vpack.c.b16 %v152, %v151
  %v200 = vpack.c.b16 %v154, %v153
  %v201 = vpack.c.b16 %v156, %v155
  %v202 = vpack.c.b16 %v158, %v157
  %v203 = vpack.c.b16 %v160, %v159
  %v204 = vpack.c.b16 %v162, %v161
  %v205 = vpack.c.b16 %v164, %v163
  %v206 = vpack.c.b16 %v166, %v165
  %v207 = vpack.c.b16 %v168, %v167
  %v208 = vpack.c.b16 %v170, %v169
  %v209 = vpack.c.b16 %v172, %v171
  %v210 = vpack.c.b16 %v174, %v173
  %v211 = vpack.c.b16 %v176, %v175
  %v212 = vpack.c.b16 %v178, %v177
  %v213 = vpack.c.b16 %v180, %v179
  %v214 = vpack.c.b16 %v182, %v181
  %v215 = vpack.c.b16 %v184, %v183
  %v216 = vpack.c.b16 %v186, %v185
  %v217 = vpack.c.b16 %v188, %v187
  %v218 = vpack.c.b16 %v190, %v189
  %v219 = vpack.c.b16 %v192, %v191
  %v220 = vpack.c.b16 %v194, %v193
  %v221 = vpack.c.b16 %v196, %v195
  %v222 = vpack.c.b16 %v197, %v197
  %v264 = vunpack.c.l.b16 %v35
  %v265 = vunpack.c.l.b16 %v36
  %v266 = vunpack.c.l.b16 %v37
  %v267 = vunpack.c.l.b16 %v38
  %v268 = vunpack.c.l.b16 %v39
  %v269 = vunpack.c.l.b16 %v40
  %v270 = vunpack.c.l.b16 %v41
  %v271 = vunpack.c.l.b16 %v42
  %v272 = vunpack.c.l.b16 %v43
  %v273 = vunpack.c.l.b16 %v44
  %v274 = vunpack.c.l.b16 %v45
  %v275 = vunpack.c.l.b16 %v46
  %v276 = vunpack.c.l.b16 %v47
  %v277 = vunpack.c.l.b16 %v48
  %v278 = vunpack.c.l.b16 %v49
  %v279 = vunpack.c.l.b16 %v50
  %v280 = vpack.c.b16 %v265, %v264
  %v281 = vpack.c.b16 %v267, %v266
  %v282 = vpack.c.b16 %v269, %v268
  %v283 = vpack.c.b16 %v271, %v270
  %v284 = vpack.c.b16 %v273, %v272
  %v285 = vpack.c.b16 %v275, %v274
  %v286 = vpack.c.b16 %v277, %v276
  %v287 = vpack.c.b16 %v279, %v278
  %296 = vmatprep.subr.bf16.mxu0 0
  %297 = vmatpush1.bf16.msra.mxu0 %v280
  %298 = vmatprep.subr.bf16.mxu0 0
  %299 = vmatpush1.bf16.msra.mxu0 %v281
  %300 = vmatprep.subr.bf16.mxu0 0
  %301 = vmatpush1.bf16.msra.mxu0 %v282
  %302 = vmatprep.subr.bf16.mxu0 0
  %303 = vmatpush1.bf16.msra.mxu0 %v283
  %304 = vmatprep.subr.bf16.mxu0 0
  %305 = vmatpush1.bf16.msra.mxu0 %v284
  %306 = vmatprep.subr.bf16.mxu0 0
  %307 = vmatpush1.bf16.msra.mxu0 %v285
  %308 = vmatprep.subr.bf16.mxu0 0
  %309 = vmatpush1.bf16.msra.mxu0 %v286
  %310 = vmatprep.subr.bf16.mxu0 0
  %311 = vmatpush1.bf16.msra.mxu0 %v287
  %312 = vmatprep.subr.bf16.mxu0 0
  %313 = vmatpush1.bf16.msra.mxu0 0
  %314 = vmatprep.subr.bf16.mxu0 0
  %315 = vmatpush1.bf16.msra.mxu0 0
  %316 = vmatprep.subr.bf16.mxu0 0
  %317 = vmatpush1.bf16.msra.mxu0 0
  %318 = vmatprep.subr.bf16.mxu0 0
  %319 = vmatpush1.bf16.msra.mxu0 0
  %320 = vmatprep.subr.bf16.mxu0 0
  %321 = vmatpush1.bf16.msra.mxu0 0
  %322 = vmatprep.subr.bf16.mxu0 0
  %323 = vmatpush1.bf16.msra.mxu0 0
  %324 = vmatprep.subr.bf16.mxu0 0
  %325 = vmatpush1.bf16.msra.mxu0 0
  %326 = vmatprep.subr.bf16.mxu0 0
  %327 = vmatpush1.bf16.msra.mxu0 0
  %328 = vmatprep.mubr.bf16.mxu0 0
  %329 = vmatmul.mubr.bf16.gmra.mrb[0].mxu0 %v198
  %v330 = vpop.f32.mrb[0].mxu0
  %v331 = vadd.f32 0.0, %v330
  %v332 = vpop.f32.mrb[0].mxu0
  %v333 = vpop.f32.mrb[0].mxu0
  %v334 = vadd.f32 0.0, %v333
  %v335 = vpop.f32.mrb[0].mxu0
  %336 = vmatprep.mubr.bf16.mxu0 0
  %337 = vmatmul.mubr.bf16.gmra.mrb[0].mxu0 %v199
  %v338 = vpop.f32.mrb[0].mxu0
  %v339 = vadd.f32 0.0, %v338
  %v340 = vpop.f32.mrb[0].mxu0
  %v341 = vpop.f32.mrb[0].mxu0
  %v342 = vadd.f32 0.0, %v341
  %v343 = vpop.f32.mrb[0].mxu0
  %344 = vmatprep.mubr.bf16.mxu0 0
  %345 = vmatmul.mubr.bf16.gmra.mrb[0].mxu0 %v200
  %v346 = vpop.f32.mrb[0].mxu0
  %v347 = vadd.f32 0.0, %v346
  %v348 = vpop.f32.mrb[0].mxu0
  %v349 = vpop.f32.mrb[0].mxu0
  %v350 = vadd.f32 0.0, %v349
  %v351 = vpop.f32.mrb[0].mxu0
  %352 = vmatprep.mubr.bf16.mxu0 0
  %353 = vmatmul.mubr.bf16.gmra.mrb[0].mxu0 %v201
  %v354 = vpop.f32.mrb[0].mxu0
  %v355 = vadd.f32 0.0, %v354
  %v356 = vpop.f32.mrb[0].mxu0
  %v357 = vpop.f32.mrb[0].mxu0
  %v358 = vadd.f32 0.0, %v357
  %v359 = vpop.f32.mrb[0].mxu0
  %360 = vmatprep.mubr.bf16.mxu0 0
  %361 = vmatmul.mubr.bf16.gmra.mrb[0].mxu0 %v202
  %v362 = vpop.f32.mrb[0].mxu0
  %v363 = vadd.f32 0.0, %v362
  %v364 = vpop.f32.mrb[0].mxu0
  %v365 = vpop.f32.mrb[0].mxu0
  %v366 = vadd.f32 0.0, %v365
  %v367 = vpop.f32.mrb[0].mxu0
  %368 = vmatprep.mubr.bf16.mxu0 0
  %369 = vmatmul.mubr.bf16.gmra.mrb[0].mxu0 %v203
  %v370 = vpop.f32.mrb[0].mxu0
  %v371 = vadd.f32 0.0, %v370
  %v372 = vpop.f32.mrb[0].mxu0
  %v373 = vpop.f32.mrb[0].mxu0
  %v374 = vadd.f32 0.0, %v373
  %v375 = vpop.f32.mrb[0].mxu0
  %376 = vmatprep.mubr.bf16.mxu0 0
  %377 = vmatmul.mubr.bf16.gmra.mrb[0].mxu0 %v204
  %v378 = vpop.f32.mrb[0].mxu0
  %v379 = vadd.f32 0.0, %v378
  %v380 = vpop.f32.mrb[0].mxu0
  %v381 = vpop.f32.mrb[0].mxu0
  %v382 = vadd.f32 0.0, %v381
  %v383 = vpop.f32.mrb[0].mxu0
  %384 = vmatprep.mubr.bf16.mxu0 0
  %385 = vmatmul.mubr.bf16.gmra.mrb[0].mxu0 %v205
  %v386 = vpop.f32.mrb[0].mxu0
  %v387 = vadd.f32 0.0, %v386
  %v388 = vpop.f32.mrb[0].mxu0
  %v389 = vpop.f32.mrb[0].mxu0
  %v390 = vadd.f32 0.0, %v389
  %v391 = vpop.f32.mrb[0].mxu0
  %392 = vmatprep.mubr.bf16.mxu0 0
  %393 = vmatmul.mubr.bf16.gmra.mrb[0].mxu0 %v206
  %v394 = vpop.f32.mrb[0].mxu0
  %v395 = vadd.f32 0.0, %v394
  %v396 = vpop.f32.mrb[0].mxu0
  %v397 = vpop.f32.mrb[0].mxu0
  %v398 = vadd.f32 0.0, %v397
  %v399 = vpop.f32.mrb[0].mxu0
  %400 = vmatprep.mubr.bf16.mxu0 0
  %401 = vmatmul.mubr.bf16.gmra.mrb[0].mxu0 %v207
  %v402 = vpop.f32.mrb[0].mxu0
  %v403 = vadd.f32 0.0, %v402
  %v404 = vpop.f32.mrb[0].mxu0
  %v405 = vpop.f32.mrb[0].mxu0
  %v406 = vadd.f32 0.0, %v405
  %v407 = vpop.f32.mrb[0].mxu0
  %408 = vmatprep.mubr.bf16.mxu0 0
  %409 = vmatmul.mubr.bf16.gmra.mrb[0].mxu0 %v208
  %v410 = vpop.f32.mrb[0].mxu0
  %v411 = vadd.f32 0.0, %v410
  %v412 = vpop.f32.mrb[0].mxu0
  %v413 = vpop.f32.mrb[0].mxu0
  %v414 = vadd.f32 0.0, %v413
  %v415 = vpop.f32.mrb[0].mxu0
  %416 = vmatprep.mubr.bf16.mxu0 0
  %417 = vmatmul.mubr.bf16.gmra.mrb[0].mxu0 %v209
  %v418 = vpop.f32.mrb[0].mxu0
  %v419 = vadd.f32 0.0, %v418
  %v420 = vpop.f32.mrb[0].mxu0
  %v421 = vpop.f32.mrb[0].mxu0
  %v422 = vadd.f32 0.0, %v421
  %v423 = vpop.f32.mrb[0].mxu0
  %424 = vmatprep.mubr.bf16.mxu0 0
  %425 = vmatmul.mubr.bf16.gmra.mrb[0].mxu0 %v210
  %v426 = vpop.f32.mrb[0].mxu0
  %v427 = vadd.f32 0.0, %v426
  %v428 = vpop.f32.mrb[0].mxu0
  %v429 = vpop.f32.mrb[0].mxu0
  %v430 = vadd.f32 0.0, %v429
  %v431 = vpop.f32.mrb[0].mxu0
  %432 = vmatprep.mubr.bf16.mxu0 0
  %433 = vmatmul.mubr.bf16.gmra.mrb[0].mxu0 %v211
  %v434 = vpop.f32.mrb[0].mxu0
  %v435 = vadd.f32 0.0, %v434
  %v436 = vpop.f32.mrb[0].mxu0
  %v437 = vpop.f32.mrb[0].mxu0
  %v438 = vadd.f32 0.0, %v437
  %v439 = vpop.f32.mrb[0].mxu0
  %440 = vmatprep.mubr.bf16.mxu0 0
  %441 = vmatmul.mubr.bf16.gmra.mrb[0].mxu0 %v212
  %v442 = vpop.f32.mrb[0].mxu0
  %v443 = vadd.f32 0.0, %v442
  %v444 = vpop.f32.mrb[0].mxu0
  %v445 = vpop.f32.mrb[0].mxu0
  %v446 = vadd.f32 0.0, %v445
  %v447 = vpop.f32.mrb[0].mxu0
  %448 = vmatprep.mubr.bf16.mxu0 0
  %449 = vmatmul.mubr.bf16.gmra.mrb[0].mxu0 %v213
  %v450 = vpop.f32.mrb[0].mxu0
  %v451 = vadd.f32 0.0, %v450
  %v452 = vpop.f32.mrb[0].mxu0
  %v453 = vpop.f32.mrb[0].mxu0
  %v454 = vadd.f32 0.0, %v453
  %v455 = vpop.f32.mrb[0].mxu0
  %456 = vmatprep.mubr.bf16.mxu0 0
  %457 = vmatmul.mubr.bf16.gmra.mrb[0].mxu0 %v214
  %v458 = vpop.f32.mrb[0].mxu0
  %v459 = vadd.f32 0.0, %v458
  %v460 = vpop.f32.mrb[0].mxu0
  %v461 = vpop.f32.mrb[0].mxu0
  %v462 = vadd.f32 0.0, %v461
  %v463 = vpop.f32.mrb[0].mxu0
  %464 = vmatprep.mubr.bf16.mxu0 0
  %465 = vmatmul.mubr.bf16.gmra.mrb[0].mxu0 %v215
  %v466 = vpop.f32.mrb[0].mxu0
  %v467 = vadd.f32 0.0, %v466
  %v468 = vpop.f32.mrb[0].mxu0
  %v469 = vpop.f32.mrb[0].mxu0
  %v470 = vadd.f32 0.0, %v469
  %v471 = vpop.f32.mrb[0].mxu0
  %472 = vmatprep.mubr.bf16.mxu0 0
  %473 = vmatmul.mubr.bf16.gmra.mrb[0].mxu0 %v216
  %v474 = vpop.f32.mrb[0].mxu0
  %v475 = vadd.f32 0.0, %v474
  %v476 = vpop.f32.mrb[0].mxu0
  %v477 = vpop.f32.mrb[0].mxu0
  %v478 = vadd.f32 0.0, %v477
  %v479 = vpop.f32.mrb[0].mxu0
  %480 = vmatprep.mubr.bf16.mxu0 0
  %481 = vmatmul.mubr.bf16.gmra.mrb[0].mxu0 %v217
  %v482 = vpop.f32.mrb[0].mxu0
  %v483 = vadd.f32 0.0, %v482
  %v484 = vpop.f32.mrb[0].mxu0
  %v485 = vpop.f32.mrb[0].mxu0
  %v486 = vadd.f32 0.0, %v485
  %v487 = vpop.f32.mrb[0].mxu0
  %488 = vmatprep.mubr.bf16.mxu0 0
  %489 = vmatmul.mubr.bf16.gmra.mrb[0].mxu0 %v218
  %v490 = vpop.f32.mrb[0].mxu0
  %v491 = vadd.f32 0.0, %v490
  %v492 = vpop.f32.mrb[0].mxu0
  %v493 = vpop.f32.mrb[0].mxu0
  %v494 = vadd.f32 0.0, %v493
  %v495 = vpop.f32.mrb[0].mxu0
  %496 = vmatprep.mubr.bf16.mxu0 0
  %497 = vmatmul.mubr.bf16.gmra.mrb[0].mxu0 %v219
  %v498 = vpop.f32.mrb[0].mxu0
  %v499 = vadd.f32 0.0, %v498
  %v500 = vpop.f32.mrb[0].mxu0
  %v501 = vpop.f32.mrb[0].mxu0
  %v502 = vadd.f32 0.0, %v501
  %v503 = vpop.f32.mrb[0].mxu0
  %504 = vmatprep.mubr.bf16.mxu0 0
  %505 = vmatmul.mubr.bf16.gmra.mrb[0].mxu0 %v220
  %v506 = vpop.f32.mrb[0].mxu0
  %v507 = vadd.f32 0.0, %v506
  %v508 = vpop.f32.mrb[0].mxu0
  %v509 = vpop.f32.mrb[0].mxu0
  %v510 = vadd.f32 0.0, %v509
  %v511 = vpop.f32.mrb[0].mxu0
  %512 = vmatprep.mubr.bf16.mxu0 0
  %513 = vmatmul.mubr.bf16.gmra.mrb[0].mxu0 %v221
  %v514 = vpop.f32.mrb[0].mxu0
  %v515 = vadd.f32 0.0, %v514
  %v516 = vpop.f32.mrb[0].mxu0
  %v517 = vpop.f32.mrb[0].mxu0
  %v518 = vadd.f32 0.0, %v517
  %v519 = vpop.f32.mrb[0].mxu0
  %520 = vmatprep.mubr.bf16.mxu0 0
  %521 = vmatmul.mubr.bf16.gmra.mrb[0].mxu0 %v222
  %v522 = vpop.f32.mrb[0].mxu0
  %v523 = vadd.f32 0.0, %v522
  %v524 = vpop.f32.mrb[0].mxu0
  %v525 = vpop.f32.mrb[0].mxu0
  %v526 = vpop.f32.mrb[0].mxu0
  %527 = vdwg.mxu0
  %v528 = vlaneseq
  %v529 = vshrl.u32 %v528, 7
  %v530 = vsub.s32 0, %v529
  %v531 = vrot.slane %v31, %v530
  %v532 = vmul.f32 %v331, %v531
  %v533 = vmul.f32 %v334, %v531
  %v534 = vmul.f32 %v339, %v531
  %v535 = vmul.f32 %v342, %v531
  %v536 = vmul.f32 %v347, %v531
  %v537 = vmul.f32 %v350, %v531
  %v538 = vmul.f32 %v355, %v531
  %v539 = vmul.f32 %v358, %v531
  %v540 = vmul.f32 %v363, %v531
  %v541 = vmul.f32 %v366, %v531
  %v542 = vmul.f32 %v371, %v531
  %v543 = vmul.f32 %v374, %v531
  %v544 = vmul.f32 %v379, %v531
  %v545 = vmul.f32 %v382, %v531
  %v546 = vmul.f32 %v387, %v531
  %v547 = vmul.f32 %v390, %v531
  %v548 = vmul.f32 %v395, %v531
  %v549 = vmul.f32 %v398, %v531
  %v550 = vmul.f32 %v403, %v531
  %v551 = vmul.f32 %v406, %v531
  %v552 = vmul.f32 %v411, %v531
  %v553 = vmul.f32 %v414, %v531
  %v554 = vmul.f32 %v419, %v531
  %v555 = vmul.f32 %v422, %v531
  %v556 = vmul.f32 %v427, %v531
  %v557 = vmul.f32 %v430, %v531
  %v558 = vmul.f32 %v435, %v531
  %v559 = vmul.f32 %v438, %v531
  %v560 = vmul.f32 %v443, %v531
  %v561 = vmul.f32 %v446, %v531
  %v562 = vmul.f32 %v451, %v531
  %v563 = vmul.f32 %v454, %v531
  %v564 = vmul.f32 %v459, %v531
  %v565 = vmul.f32 %v462, %v531
  %v566 = vmul.f32 %v467, %v531
  %v567 = vmul.f32 %v470, %v531
  %v568 = vmul.f32 %v475, %v531
  %v569 = vmul.f32 %v478, %v531
  %v570 = vmul.f32 %v483, %v531
  %v571 = vmul.f32 %v486, %v531
  %v572 = vmul.f32 %v491, %v531
  %v573 = vmul.f32 %v494, %v531
  %v574 = vmul.f32 %v499, %v531
  %v575 = vmul.f32 %v502, %v531
  %v576 = vmul.f32 %v507, %v531
  %v577 = vmul.f32 %v510, %v531
  %v578 = vmul.f32 %v515, %v531
  %v579 = vmul.f32 %v518, %v531
  %v580 = vmul.f32 %v523, %v531
  %v582 = vlaneseq
  %v583 = vshrl.u32 %v582, 7
  %v584 = vsub.s32 0, %v583
  %v585 = vrot.slane %v34, %v584
  %v587 = vadd.f32 %v532, %v585
  %v588 = vadd.f32 %v533, %v585
  %v589 = vadd.f32 %v534, %v585
  %v590 = vadd.f32 %v535, %v585
  %v591 = vadd.f32 %v536, %v585
  %v592 = vadd.f32 %v537, %v585
  %v593 = vadd.f32 %v538, %v585
  %v594 = vadd.f32 %v539, %v585
  %v595 = vadd.f32 %v540, %v585
  %v596 = vadd.f32 %v541, %v585
  %v597 = vadd.f32 %v542, %v585
  %v598 = vadd.f32 %v543, %v585
  %v599 = vadd.f32 %v544, %v585
  %v600 = vadd.f32 %v545, %v585
  %v601 = vadd.f32 %v546, %v585
  %v602 = vadd.f32 %v547, %v585
  %v603 = vadd.f32 %v548, %v585
  %v604 = vadd.f32 %v549, %v585
  %v605 = vadd.f32 %v550, %v585
  %v606 = vadd.f32 %v551, %v585
  %v607 = vadd.f32 %v552, %v585
  %v608 = vadd.f32 %v553, %v585
  %v609 = vadd.f32 %v554, %v585
  %v610 = vadd.f32 %v555, %v585
  %v611 = vadd.f32 %v556, %v585
  %v612 = vadd.f32 %v557, %v585
  %v613 = vadd.f32 %v558, %v585
  %v614 = vadd.f32 %v559, %v585
  %v615 = vadd.f32 %v560, %v585
  %v616 = vadd.f32 %v561, %v585
  %v617 = vadd.f32 %v562, %v585
  %v618 = vadd.f32 %v563, %v585
  %v619 = vadd.f32 %v564, %v585
  %v620 = vadd.f32 %v565, %v585
  %v621 = vadd.f32 %v566, %v585
  %v622 = vadd.f32 %v567, %v585
  %v623 = vadd.f32 %v568, %v585
  %v624 = vadd.f32 %v569, %v585
  %v625 = vadd.f32 %v570, %v585
  %v626 = vadd.f32 %v571, %v585
  %v627 = vadd.f32 %v572, %v585
  %v628 = vadd.f32 %v573, %v585
  %v629 = vadd.f32 %v574, %v585
  %v630 = vadd.f32 %v575, %v585
  %v631 = vadd.f32 %v576, %v585
  %v632 = vadd.f32 %v577, %v585
  %v633 = vadd.f32 %v578, %v585
  %v634 = vadd.f32 %v579, %v585
  %v635 = vadd.f32 %v580, %v585
  %v636 = vmax.f32 %v587, 0.0
  %v637 = vmax.f32 %v588, 0.0
  %v638 = vmax.f32 %v589, 0.0
  %v639 = vmax.f32 %v590, 0.0
  %v640 = vmax.f32 %v591, 0.0
  %v641 = vmax.f32 %v592, 0.0
  %v642 = vmax.f32 %v593, 0.0
  %v643 = vmax.f32 %v594, 0.0
  %v644 = vmax.f32 %v595, 0.0
  %v645 = vmax.f32 %v596, 0.0
  %v646 = vmax.f32 %v597, 0.0
  %v647 = vmax.f32 %v598, 0.0
  %v648 = vmax.f32 %v599, 0.0
  %v649 = vmax.f32 %v600, 0.0
  %v650 = vmax.f32 %v601, 0.0
  %v651 = vmax.f32 %v602, 0.0
  %v652 = vmax.f32 %v603, 0.0
  %v653 = vmax.f32 %v604, 0.0
  %v654 = vmax.f32 %v605, 0.0
  %v655 = vmax.f32 %v606, 0.0
  %v656 = vmax.f32 %v607, 0.0
  %v657 = vmax.f32 %v608, 0.0
  %v658 = vmax.f32 %v609, 0.0
  %v659 = vmax.f32 %v610, 0.0
  %v660 = vmax.f32 %v611, 0.0
  %v661 = vmax.f32 %v612, 0.0
  %v662 = vmax.f32 %v613, 0.0
  %v663 = vmax.f32 %v614, 0.0
  %v664 = vmax.f32 %v615, 0.0
  %v665 = vmax.f32 %v616, 0.0
  %v666 = vmax.f32 %v617, 0.0
  %v667 = vmax.f32 %v618, 0.0
  %v668 = vmax.f32 %v619, 0.0
  %v669 = vmax.f32 %v620, 0.0
  %v670 = vmax.f32 %v621, 0.0
  %v671 = vmax.f32 %v622, 0.0
  %v672 = vmax.f32 %v623, 0.0
  %v673 = vmax.f32 %v624, 0.0
  %v674 = vmax.f32 %v625, 0.0
  %v675 = vmax.f32 %v626, 0.0
  %v676 = vmax.f32 %v627, 0.0
  %v677 = vmax.f32 %v628, 0.0
  %v678 = vmax.f32 %v629, 0.0
  %v679 = vmax.f32 %v630, 0.0
  %v680 = vmax.f32 %v631, 0.0
  %v681 = vmax.f32 %v632, 0.0
  %v682 = vmax.f32 %v633, 0.0
  %v683 = vmax.f32 %v634, 0.0
  %v684 = vmax.f32 %v635, 0.0
  %s685 = scalar_lea.vmem %s3, 196
  %v686 = vld [vmem:[%s685] sm:$0xf]
  %v687 = vld [vmem:[%s685 + $0x4] sm:$0xf]
  %v688 = vld [vmem:[%s685 + $0x8] sm:$0xf]
  %v689 = vld [vmem:[%s685 + $0xc] sm:$0xf]
  %v690 = vld [vmem:[%s685 + $0x10] sm:$0xf]
  %v691 = vld [vmem:[%s685 + $0x14] sm:$0xf]
  %v692 = vld [vmem:[%s685 + $0x18] sm:$0xf]
  %v693 = vld [vmem:[%s685 + $0x1c] sm:$0xf]
  %v694 = vld [vmem:[%s685 + $0x20] sm:$0xf]
  %v695 = vld [vmem:[%s685 + $0x24] sm:$0xf]
  %v696 = vld [vmem:[%s685 + $0x28] sm:$0xf]
  %v697 = vld [vmem:[%s685 + $0x2c] sm:$0xf]
  %v698 = vld [vmem:[%s685 + $0x30] sm:$0xf]
  %v699 = vld [vmem:[%s685 + $0x34] sm:$0xf]
  %v700 = vld [vmem:[%s685 + $0x38] sm:$0xf]
  %v701 = vld [vmem:[%s685 + $0x3c] sm:$0xf]
  %v702 = vld [vmem:[%s685 + $0x40] sm:$0xf]
  %v703 = vld [vmem:[%s685 + $0x44] sm:$0xf]
  %v704 = vld [vmem:[%s685 + $0x48] sm:$0xf]
  %v705 = vld [vmem:[%s685 + $0x4c] sm:$0xf]
  %v706 = vld [vmem:[%s685 + $0x50] sm:$0xf]
  %v707 = vld [vmem:[%s685 + $0x54] sm:$0xf]
  %v708 = vld [vmem:[%s685 + $0x58] sm:$0xf]
  %v709 = vld [vmem:[%s685 + $0x5c] sm:$0xf]
  %v710 = vld [vmem:[%s685 + $0x60] sm:$0xf]
  %v711 = vld [vmem:[%s685 + $0x64] sm:$0xf]
  %v712 = vld [vmem:[%s685 + $0x68] sm:$0xf]
  %v713 = vld [vmem:[%s685 + $0x6c] sm:$0xf]
  %v714 = vld [vmem:[%s685 + $0x70] sm:$0xf]
  %v715 = vld [vmem:[%s685 + $0x74] sm:$0xf]
  %v716 = vld [vmem:[%s685 + $0x78] sm:$0xf]
  %v717 = vld [vmem:[%s685 + $0x7c] sm:$0xf]
  %v718 = vld [vmem:[%s685 + $0x80] sm:$0xf]
  %v719 = vld [vmem:[%s685 + $0x84] sm:$0xf]
  %v720 = vld [vmem:[%s685 + $0x88] sm:$0xf]
  %v721 = vld [vmem:[%s685 + $0x8c] sm:$0xf]
  %v722 = vld [vmem:[%s685 + $0x90] sm:$0xf]
  %v723 = vld [vmem:[%s685 + $0x94] sm:$0xf]
  %v724 = vld [vmem:[%s685 + $0x98] sm:$0xf]
  %v725 = vld [vmem:[%s685 + $0x9c] sm:$0xf]
  %v726 = vld [vmem:[%s685 + $0xa0] sm:$0xf]
  %v727 = vld [vmem:[%s685 + $0xa4] sm:$0xf]
  %v728 = vld [vmem:[%s685 + $0xa8] sm:$0xf]
  %v729 = vld [vmem:[%s685 + $0xac] sm:$0xf]
  %v730 = vld [vmem:[%s685 + $0xb0] sm:$0xf]
  %v731 = vld [vmem:[%s685 + $0xb4] sm:$0xf]
  %v732 = vld [vmem:[%s685 + $0xb8] sm:$0xf]
  %v733 = vld [vmem:[%s685 + $0xbc] sm:$0xf]
  %v734 = vld [vmem:[%s685 + $0xc0] sm:$0xf]
  %v784 = vunpack.c.l.b16 %v686
  %v785 = vunpack.c.l.b16 %v687
  %v786 = vunpack.c.l.b16 %v688
  %v787 = vunpack.c.l.b16 %v689
  %v788 = vunpack.c.l.b16 %v690
  %v789 = vunpack.c.l.b16 %v691
  %v790 = vunpack.c.l.b16 %v692
  %v791 = vunpack.c.l.b16 %v693
  %v792 = vunpack.c.l.b16 %v694
  %v793 = vunpack.c.l.b16 %v695
  %v794 = vunpack.c.l.b16 %v696
  %v795 = vunpack.c.l.b16 %v697
  %v796 = vunpack.c.l.b16 %v698
  %v797 = vunpack.c.l.b16 %v699
  %v798 = vunpack.c.l.b16 %v700
  %v799 = vunpack.c.l.b16 %v701
  %v800 = vunpack.c.l.b16 %v702
  %v801 = vunpack.c.l.b16 %v703
  %v802 = vunpack.c.l.b16 %v704
  %v803 = vunpack.c.l.b16 %v705
  %v804 = vunpack.c.l.b16 %v706
  %v805 = vunpack.c.l.b16 %v707
  %v806 = vunpack.c.l.b16 %v708
  %v807 = vunpack.c.l.b16 %v709
  %v808 = vunpack.c.l.b16 %v710
  %v809 = vunpack.c.l.b16 %v711
  %v810 = vunpack.c.l.b16 %v712
  %v811 = vunpack.c.l.b16 %v713
  %v812 = vunpack.c.l.b16 %v714
  %v813 = vunpack.c.l.b16 %v715
  %v814 = vunpack.c.l.b16 %v716
  %v815 = vunpack.c.l.b16 %v717
  %v816 = vunpack.c.l.b16 %v718
  %v817 = vunpack.c.l.b16 %v719
  %v818 = vunpack.c.l.b16 %v720
  %v819 = vunpack.c.l.b16 %v721
  %v820 = vunpack.c.l.b16 %v722
  %v821 = vunpack.c.l.b16 %v723
  %v822 = vunpack.c.l.b16 %v724
  %v823 = vunpack.c.l.b16 %v725
  %v824 = vunpack.c.l.b16 %v726
  %v825 = vunpack.c.l.b16 %v727
  %v826 = vunpack.c.l.b16 %v728
  %v827 = vunpack.c.l.b16 %v729
  %v828 = vunpack.c.l.b16 %v730
  %v829 = vunpack.c.l.b16 %v731
  %v830 = vunpack.c.l.b16 %v732
  %v831 = vunpack.c.l.b16 %v733
  %v832 = vunpack.c.l.b16 %v734
  %v833 = vpack.c.b16 %v785, %v784
  %v834 = vpack.c.b16 %v787, %v786
  %v835 = vpack.c.b16 %v789, %v788
  %v836 = vpack.c.b16 %v791, %v790
  %v837 = vpack.c.b16 %v793, %v792
  %v838 = vpack.c.b16 %v795, %v794
  %v839 = vpack.c.b16 %v797, %v796
  %v840 = vpack.c.b16 %v799, %v798
  %v841 = vpack.c.b16 %v801, %v800
  %v842 = vpack.c.b16 %v803, %v802
  %v843 = vpack.c.b16 %v805, %v804
  %v844 = vpack.c.b16 %v807, %v806
  %v845 = vpack.c.b16 %v809, %v808
  %v846 = vpack.c.b16 %v811, %v810
  %v847 = vpack.c.b16 %v813, %v812
  %v848 = vpack.c.b16 %v815, %v814
  %v849 = vpack.c.b16 %v817, %v816
  %v850 = vpack.c.b16 %v819, %v818
  %v851 = vpack.c.b16 %v821, %v820
  %v852 = vpack.c.b16 %v823, %v822
  %v853 = vpack.c.b16 %v825, %v824
  %v854 = vpack.c.b16 %v827, %v826
  %v855 = vpack.c.b16 %v829, %v828
  %v856 = vpack.c.b16 %v831, %v830
  %v857 = vpack.c.b16 %v832, %v832
  %883 = vmatprep.subr.bf16.mxu0 0
  %884 = vmatpush1.bf16.msra.mxu0 %v280
  %885 = vmatprep.subr.bf16.mxu0 0
  %886 = vmatpush1.bf16.msra.mxu0 %v281
  %887 = vmatprep.subr.bf16.mxu0 0
  %888 = vmatpush1.bf16.msra.mxu0 %v282
  %889 = vmatprep.subr.bf16.mxu0 0
  %890 = vmatpush1.bf16.msra.mxu0 %v283
  %891 = vmatprep.subr.bf16.mxu0 0
  %892 = vmatpush1.bf16.msra.mxu0 %v284
  %893 = vmatprep.subr.bf16.mxu0 0
  %894 = vmatpush1.bf16.msra.mxu0 %v285
  %895 = vmatprep.subr.bf16.mxu0 0
  %896 = vmatpush1.bf16.msra.mxu0 %v286
  %897 = vmatprep.subr.bf16.mxu0 0
  %898 = vmatpush1.bf16.msra.mxu0 %v287
  %899 = vmatprep.subr.bf16.mxu0 0
  %900 = vmatpush1.bf16.msra.mxu0 0
  %901 = vmatprep.subr.bf16.mxu0 0
  %902 = vmatpush1.bf16.msra.mxu0 0
  %903 = vmatprep.subr.bf16.mxu0 0
  %904 = vmatpush1.bf16.msra.mxu0 0
  %905 = vmatprep.subr.bf16.mxu0 0
  %906 = vmatpush1.bf16.msra.mxu0 0
  %907 = vmatprep.subr.bf16.mxu0 0
  %908 = vmatpush1.bf16.msra.mxu0 0
  %909 = vmatprep.subr.bf16.mxu0 0
  %910 = vmatpush1.bf16.msra.mxu0 0
  %911 = vmatprep.subr.bf16.mxu0 0
  %912 = vmatpush1.bf16.msra.mxu0 0
  %913 = vmatprep.subr.bf16.mxu0 0
  %914 = vmatpush1.bf16.msra.mxu0 0
  %915 = vmatprep.mubr.bf16.mxu0 0
  %916 = vmatmul.mubr.bf16.gmra.mrb[0].mxu0 %v833
  %v917 = vpop.f32.mrb[0].mxu0
  %v918 = vadd.f32 0.0, %v917
  %v919 = vpop.f32.mrb[0].mxu0
  %v920 = vpop.f32.mrb[0].mxu0
  %v921 = vadd.f32 0.0, %v920
  %v922 = vpop.f32.mrb[0].mxu0
  %923 = vmatprep.mubr.bf16.mxu0 0
  %924 = vmatmul.mubr.bf16.gmra.mrb[0].mxu0 %v834
  %v925 = vpop.f32.mrb[0].mxu0
  %v926 = vadd.f32 0.0, %v925
  %v927 = vpop.f32.mrb[0].mxu0
  %v928 = vpop.f32.mrb[0].mxu0
  %v929 = vadd.f32 0.0, %v928
  %v930 = vpop.f32.mrb[0].mxu0
  %931 = vmatprep.mubr.bf16.mxu0 0
  %932 = vmatmul.mubr.bf16.gmra.mrb[0].mxu0 %v835
  %v933 = vpop.f32.mrb[0].mxu0
  %v934 = vadd.f32 0.0, %v933
  %v935 = vpop.f32.mrb[0].mxu0
  %v936 = vpop.f32.mrb[0].mxu0
  %v937 = vadd.f32 0.0, %v936
  %v938 = vpop.f32.mrb[0].mxu0
  %939 = vmatprep.mubr.bf16.mxu0 0
  %940 = vmatmul.mubr.bf16.gmra.mrb[0].mxu0 %v836
  %v941 = vpop.f32.mrb[0].mxu0
  %v942 = vadd.f32 0.0, %v941
  %v943 = vpop.f32.mrb[0].mxu0
  %v944 = vpop.f32.mrb[0].mxu0
  %v945 = vadd.f32 0.0, %v944
  %v946 = vpop.f32.mrb[0].mxu0
  %947 = vmatprep.mubr.bf16.mxu0 0
  %948 = vmatmul.mubr.bf16.gmra.mrb[0].mxu0 %v837
  %v949 = vpop.f32.mrb[0].mxu0
  %v950 = vadd.f32 0.0, %v949
  %v951 = vpop.f32.mrb[0].mxu0
  %v952 = vpop.f32.mrb[0].mxu0
  %v953 = vadd.f32 0.0, %v952
  %v954 = vpop.f32.mrb[0].mxu0
  %955 = vmatprep.mubr.bf16.mxu0 0
  %956 = vmatmul.mubr.bf16.gmra.mrb[0].mxu0 %v838
  %v957 = vpop.f32.mrb[0].mxu0
  %v958 = vadd.f32 0.0, %v957
  %v959 = vpop.f32.mrb[0].mxu0
  %v960 = vpop.f32.mrb[0].mxu0
  %v961 = vadd.f32 0.0, %v960
  %v962 = vpop.f32.mrb[0].mxu0
  %963 = vmatprep.mubr.bf16.mxu0 0
  %964 = vmatmul.mubr.bf16.gmra.mrb[0].mxu0 %v839
  %v965 = vpop.f32.mrb[0].mxu0
  %v966 = vadd.f32 0.0, %v965
  %v967 = vpop.f32.mrb[0].mxu0
  %v968 = vpop.f32.mrb[0].mxu0
  %v969 = vadd.f32 0.0, %v968
  %v970 = vpop.f32.mrb[0].mxu0
  %971 = vmatprep.mubr.bf16.mxu0 0
  %972 = vmatmul.mubr.bf16.gmra.mrb[0].mxu0 %v840
  %v973 = vpop.f32.mrb[0].mxu0
  %v974 = vadd.f32 0.0, %v973
  %v975 = vpop.f32.mrb[0].mxu0
  %v976 = vpop.f32.mrb[0].mxu0
  %v977 = vadd.f32 0.0, %v976
  %v978 = vpop.f32.mrb[0].mxu0
  %979 = vmatprep.mubr.bf16.mxu0 0
  %980 = vmatmul.mubr.bf16.gmra.mrb[0].mxu0 %v841
  %v981 = vpop.f32.mrb[0].mxu0
  %v982 = vadd.f32 0.0, %v981
  %v983 = vpop.f32.mrb[0].mxu0
  %v984 = vpop.f32.mrb[0].mxu0
  %v985 = vadd.f32 0.0, %v984
  %v986 = vpop.f32.mrb[0].mxu0
  %987 = vmatprep.mubr.bf16.mxu0 0
  %988 = vmatmul.mubr.bf16.gmra.mrb[0].mxu0 %v842
  %v989 = vpop.f32.mrb[0].mxu0
  %v990 = vadd.f32 0.0, %v989
  %v991 = vpop.f32.mrb[0].mxu0
  %v992 = vpop.f32.mrb[0].mxu0
  %v993 = vadd.f32 0.0, %v992
  %v994 = vpop.f32.mrb[0].mxu0
  %995 = vmatprep.mubr.bf16.mxu0 0
  %996 = vmatmul.mubr.bf16.gmra.mrb[0].mxu0 %v843
  %v997 = vpop.f32.mrb[0].mxu0
  %v998 = vadd.f32 0.0, %v997
  %v999 = vpop.f32.mrb[0].mxu0
  %v1000 = vpop.f32.mrb[0].mxu0
  %v1001 = vadd.f32 0.0, %v1000
  %v1002 = vpop.f32.mrb[0].mxu0
  %1003 = vmatprep.mubr.bf16.mxu0 0
  %1004 = vmatmul.mubr.bf16.gmra.mrb[0].mxu0 %v844
  %v1005 = vpop.f32.mrb[0].mxu0
  %v1006 = vadd.f32 0.0, %v1005
  %v1007 = vpop.f32.mrb[0].mxu0
  %v1008 = vpop.f32.mrb[0].mxu0
  %v1009 = vadd.f32 0.0, %v1008
  %v1010 = vpop.f32.mrb[0].mxu0
  %1011 = vmatprep.mubr.bf16.mxu0 0
  %1012 = vmatmul.mubr.bf16.gmra.mrb[0].mxu0 %v845
  %v1013 = vpop.f32.mrb[0].mxu0
  %v1014 = vadd.f32 0.0, %v1013
  %v1015 = vpop.f32.mrb[0].mxu0
  %v1016 = vpop.f32.mrb[0].mxu0
  %v1017 = vadd.f32 0.0, %v1016
  %v1018 = vpop.f32.mrb[0].mxu0
  %1019 = vmatprep.mubr.bf16.mxu0 0
  %1020 = vmatmul.mubr.bf16.gmra.mrb[0].mxu0 %v846
  %v1021 = vpop.f32.mrb[0].mxu0
  %v1022 = vadd.f32 0.0, %v1021
  %v1023 = vpop.f32.mrb[0].mxu0
  %v1024 = vpop.f32.mrb[0].mxu0
  %v1025 = vadd.f32 0.0, %v1024
  %v1026 = vpop.f32.mrb[0].mxu0
  %1027 = vmatprep.mubr.bf16.mxu0 0
  %1028 = vmatmul.mubr.bf16.gmra.mrb[0].mxu0 %v847
  %v1029 = vpop.f32.mrb[0].mxu0
  %v1030 = vadd.f32 0.0, %v1029
  %v1031 = vpop.f32.mrb[0].mxu0
  %v1032 = vpop.f32.mrb[0].mxu0
  %v1033 = vadd.f32 0.0, %v1032
  %v1034 = vpop.f32.mrb[0].mxu0
  %1035 = vmatprep.mubr.bf16.mxu0 0
  %1036 = vmatmul.mubr.bf16.gmra.mrb[0].mxu0 %v848
  %v1037 = vpop.f32.mrb[0].mxu0
  %v1038 = vadd.f32 0.0, %v1037
  %v1039 = vpop.f32.mrb[0].mxu0
  %v1040 = vpop.f32.mrb[0].mxu0
  %v1041 = vadd.f32 0.0, %v1040
  %v1042 = vpop.f32.mrb[0].mxu0
  %1043 = vmatprep.mubr.bf16.mxu0 0
  %1044 = vmatmul.mubr.bf16.gmra.mrb[0].mxu0 %v849
  %v1045 = vpop.f32.mrb[0].mxu0
  %v1046 = vadd.f32 0.0, %v1045
  %v1047 = vpop.f32.mrb[0].mxu0
  %v1048 = vpop.f32.mrb[0].mxu0
  %v1049 = vadd.f32 0.0, %v1048
  %v1050 = vpop.f32.mrb[0].mxu0
  %1051 = vmatprep.mubr.bf16.mxu0 0
  %1052 = vmatmul.mubr.bf16.gmra.mrb[0].mxu0 %v850
  %v1053 = vpop.f32.mrb[0].mxu0
  %v1054 = vadd.f32 0.0, %v1053
  %v1055 = vpop.f32.mrb[0].mxu0
  %v1056 = vpop.f32.mrb[0].mxu0
  %v1057 = vadd.f32 0.0, %v1056
  %v1058 = vpop.f32.mrb[0].mxu0
  %1059 = vmatprep.mubr.bf16.mxu0 0
  %1060 = vmatmul.mubr.bf16.gmra.mrb[0].mxu0 %v851
  %v1061 = vpop.f32.mrb[0].mxu0
  %v1062 = vadd.f32 0.0, %v1061
  %v1063 = vpop.f32.mrb[0].mxu0
  %v1064 = vpop.f32.mrb[0].mxu0
  %v1065 = vadd.f32 0.0, %v1064
  %v1066 = vpop.f32.mrb[0].mxu0
  %1067 = vmatprep.mubr.bf16.mxu0 0
  %1068 = vmatmul.mubr.bf16.gmra.mrb[0].mxu0 %v852
  %v1069 = vpop.f32.mrb[0].mxu0
  %v1070 = vadd.f32 0.0, %v1069
  %v1071 = vpop.f32.mrb[0].mxu0
  %v1072 = vpop.f32.mrb[0].mxu0
  %v1073 = vadd.f32 0.0, %v1072
  %v1074 = vpop.f32.mrb[0].mxu0
  %1075 = vmatprep.mubr.bf16.mxu0 0
  %1076 = vmatmul.mubr.bf16.gmra.mrb[0].mxu0 %v853
  %v1077 = vpop.f32.mrb[0].mxu0
  %v1078 = vadd.f32 0.0, %v1077
  %v1079 = vpop.f32.mrb[0].mxu0
  %v1080 = vpop.f32.mrb[0].mxu0
  %v1081 = vadd.f32 0.0, %v1080
  %v1082 = vpop.f32.mrb[0].mxu0
  %1083 = vmatprep.mubr.bf16.mxu0 0
  %1084 = vmatmul.mubr.bf16.gmra.mrb[0].mxu0 %v854
  %v1085 = vpop.f32.mrb[0].mxu0
  %v1086 = vadd.f32 0.0, %v1085
  %v1087 = vpop.f32.mrb[0].mxu0
  %v1088 = vpop.f32.mrb[0].mxu0
  %v1089 = vadd.f32 0.0, %v1088
  %v1090 = vpop.f32.mrb[0].mxu0
  %1091 = vmatprep.mubr.bf16.mxu0 0
  %1092 = vmatmul.mubr.bf16.gmra.mrb[0].mxu0 %v855
  %v1093 = vpop.f32.mrb[0].mxu0
  %v1094 = vadd.f32 0.0, %v1093
  %v1095 = vpop.f32.mrb[0].mxu0
  %v1096 = vpop.f32.mrb[0].mxu0
  %v1097 = vadd.f32 0.0, %v1096
  %v1098 = vpop.f32.mrb[0].mxu0
  %1099 = vmatprep.mubr.bf16.mxu0 0
  %1100 = vmatmul.mubr.bf16.gmra.mrb[0].mxu0 %v856
  %v1101 = vpop.f32.mrb[0].mxu0
  %v1102 = vadd.f32 0.0, %v1101
  %v1103 = vpop.f32.mrb[0].mxu0
  %v1104 = vpop.f32.mrb[0].mxu0
  %v1105 = vadd.f32 0.0, %v1104
  %v1106 = vpop.f32.mrb[0].mxu0
  %1107 = vmatprep.mubr.bf16.mxu0 0
  %1108 = vmatmul.mubr.bf16.gmra.mrb[0].mxu0 %v857
  %v1109 = vpop.f32.mrb[0].mxu0
  %v1110 = vadd.f32 0.0, %v1109
  %v1111 = vpop.f32.mrb[0].mxu0
  %v1112 = vpop.f32.mrb[0].mxu0
  %v1113 = vpop.f32.mrb[0].mxu0
  %1114 = vdwg.mxu0
  %v1115 = vmul.f32 %v918, %v531
  %v1116 = vmul.f32 %v921, %v531
  %v1117 = vmul.f32 %v926, %v531
  %v1118 = vmul.f32 %v929, %v531
  %v1119 = vmul.f32 %v934, %v531
  %v1120 = vmul.f32 %v937, %v531
  %v1121 = vmul.f32 %v942, %v531
  %v1122 = vmul.f32 %v945, %v531
  %v1123 = vmul.f32 %v950, %v531
  %v1124 = vmul.f32 %v953, %v531
  %v1125 = vmul.f32 %v958, %v531
  %v1126 = vmul.f32 %v961, %v531
  %v1127 = vmul.f32 %v966, %v531
  %v1128 = vmul.f32 %v969, %v531
  %v1129 = vmul.f32 %v974, %v531
  %v1130 = vmul.f32 %v977, %v531
  %v1131 = vmul.f32 %v982, %v531
  %v1132 = vmul.f32 %v985, %v531
  %v1133 = vmul.f32 %v990, %v531
  %v1134 = vmul.f32 %v993, %v531
  %v1135 = vmul.f32 %v998, %v531
  %v1136 = vmul.f32 %v1001, %v531
  %v1137 = vmul.f32 %v1006, %v531
  %v1138 = vmul.f32 %v1009, %v531
  %v1139 = vmul.f32 %v1014, %v531
  %v1140 = vmul.f32 %v1017, %v531
  %v1141 = vmul.f32 %v1022, %v531
  %v1142 = vmul.f32 %v1025, %v531
  %v1143 = vmul.f32 %v1030, %v531
  %v1144 = vmul.f32 %v1033, %v531
  %v1145 = vmul.f32 %v1038, %v531
  %v1146 = vmul.f32 %v1041, %v531
  %v1147 = vmul.f32 %v1046, %v531
  %v1148 = vmul.f32 %v1049, %v531
  %v1149 = vmul.f32 %v1054, %v531
  %v1150 = vmul.f32 %v1057, %v531
  %v1151 = vmul.f32 %v1062, %v531
  %v1152 = vmul.f32 %v1065, %v531
  %v1153 = vmul.f32 %v1070, %v531
  %v1154 = vmul.f32 %v1073, %v531
  %v1155 = vmul.f32 %v1078, %v531
  %v1156 = vmul.f32 %v1081, %v531
  %v1157 = vmul.f32 %v1086, %v531
  %v1158 = vmul.f32 %v1089, %v531
  %v1159 = vmul.f32 %v1094, %v531
  %v1160 = vmul.f32 %v1097, %v531
  %v1161 = vmul.f32 %v1102, %v531
  %v1162 = vmul.f32 %v1105, %v531
  %v1163 = vmul.f32 %v1110, %v531
  %v1164 = vadd.f32 %v1115, %v585
  %v1165 = vadd.f32 %v1116, %v585
  %v1166 = vadd.f32 %v1117, %v585
  %v1167 = vadd.f32 %v1118, %v585
  %v1168 = vadd.f32 %v1119, %v585
  %v1169 = vadd.f32 %v1120, %v585
  %v1170 = vadd.f32 %v1121, %v585
  %v1171 = vadd.f32 %v1122, %v585
  %v1172 = vadd.f32 %v1123, %v585
  %v1173 = vadd.f32 %v1124, %v585
  %v1174 = vadd.f32 %v1125, %v585
  %v1175 = vadd.f32 %v1126, %v585
  %v1176 = vadd.f32 %v1127, %v585
  %v1177 = vadd.f32 %v1128, %v585
  %v1178 = vadd.f32 %v1129, %v585
  %v1179 = vadd.f32 %v1130, %v585
  %v1180 = vadd.f32 %v1131, %v585
  %v1181 = vadd.f32 %v1132, %v585
  %v1182 = vadd.f32 %v1133, %v585
  %v1183 = vadd.f32 %v1134, %v585
  %v1184 = vadd.f32 %v1135, %v585
  %v1185 = vadd.f32 %v1136, %v585
  %v1186 = vadd.f32 %v1137, %v585
  %v1187 = vadd.f32 %v1138, %v585
  %v1188 = vadd.f32 %v1139, %v585
  %v1189 = vadd.f32 %v1140, %v585
  %v1190 = vadd.f32 %v1141, %v585
  %v1191 = vadd.f32 %v1142, %v585
  %v1192 = vadd.f32 %v1143, %v585
  %v1193 = vadd.f32 %v1144, %v585
  %v1194 = vadd.f32 %v1145, %v585
  %v1195 = vadd.f32 %v1146, %v585
  %v1196 = vadd.f32 %v1147, %v585
  %v1197 = vadd.f32 %v1148, %v585
  %v1198 = vadd.f32 %v1149, %v585
  %v1199 = vadd.f32 %v1150, %v585
  %v1200 = vadd.f32 %v1151, %v585
  %v1201 = vadd.f32 %v1152, %v585
  %v1202 = vadd.f32 %v1153, %v585
  %v1203 = vadd.f32 %v1154, %v585
  %v1204 = vadd.f32 %v1155, %v585
  %v1205 = vadd.f32 %v1156, %v585
  %v1206 = vadd.f32 %v1157, %v585
  %v1207 = vadd.f32 %v1158, %v585
  %v1208 = vadd.f32 %v1159, %v585
  %v1209 = vadd.f32 %v1160, %v585
  %v1210 = vadd.f32 %v1161, %v585
  %v1211 = vadd.f32 %v1162, %v585
  %v1212 = vadd.f32 %v1163, %v585
  %v1213 = vmax.f32 %v1164, 0.0
  %v1214 = vmax.f32 %v1165, 0.0
  %v1215 = vmax.f32 %v1166, 0.0
  %v1216 = vmax.f32 %v1167, 0.0
  %v1217 = vmax.f32 %v1168, 0.0
  %v1218 = vmax.f32 %v1169, 0.0
  %v1219 = vmax.f32 %v1170, 0.0
  %v1220 = vmax.f32 %v1171, 0.0
  %v1221 = vmax.f32 %v1172, 0.0
  %v1222 = vmax.f32 %v1173, 0.0
  %v1223 = vmax.f32 %v1174, 0.0
  %v1224 = vmax.f32 %v1175, 0.0
  %v1225 = vmax.f32 %v1176, 0.0
  %v1226 = vmax.f32 %v1177, 0.0
  %v1227 = vmax.f32 %v1178, 0.0
  %v1228 = vmax.f32 %v1179, 0.0
  %v1229 = vmax.f32 %v1180, 0.0
  %v1230 = vmax.f32 %v1181, 0.0
  %v1231 = vmax.f32 %v1182, 0.0
  %v1232 = vmax.f32 %v1183, 0.0
  %v1233 = vmax.f32 %v1184, 0.0
  %v1234 = vmax.f32 %v1185, 0.0
  %v1235 = vmax.f32 %v1186, 0.0
  %v1236 = vmax.f32 %v1187, 0.0
  %v1237 = vmax.f32 %v1188, 0.0
  %v1238 = vmax.f32 %v1189, 0.0
  %v1239 = vmax.f32 %v1190, 0.0
  %v1240 = vmax.f32 %v1191, 0.0
  %v1241 = vmax.f32 %v1192, 0.0
  %v1242 = vmax.f32 %v1193, 0.0
  %v1243 = vmax.f32 %v1194, 0.0
  %v1244 = vmax.f32 %v1195, 0.0
  %v1245 = vmax.f32 %v1196, 0.0
  %v1246 = vmax.f32 %v1197, 0.0
  %v1247 = vmax.f32 %v1198, 0.0
  %v1248 = vmax.f32 %v1199, 0.0
  %v1249 = vmax.f32 %v1200, 0.0
  %v1250 = vmax.f32 %v1201, 0.0
  %v1251 = vmax.f32 %v1202, 0.0
  %v1252 = vmax.f32 %v1203, 0.0
  %v1253 = vmax.f32 %v1204, 0.0
  %v1254 = vmax.f32 %v1205, 0.0
  %v1255 = vmax.f32 %v1206, 0.0
  %v1256 = vmax.f32 %v1207, 0.0
  %v1257 = vmax.f32 %v1208, 0.0
  %v1258 = vmax.f32 %v1209, 0.0
  %v1259 = vmax.f32 %v1210, 0.0
  %v1260 = vmax.f32 %v1211, 0.0
  %v1261 = vmax.f32 %v1212, 0.0
  %v1262 = vmax.f32 %v636, %v1213
  %v1263 = vmax.f32 %v637, %v1214
  %v1264 = vmax.f32 %v638, %v1215
  %v1265 = vmax.f32 %v639, %v1216
  %v1266 = vmax.f32 %v640, %v1217
  %v1267 = vmax.f32 %v641, %v1218
  %v1268 = vmax.f32 %v642, %v1219
  %v1269 = vmax.f32 %v643, %v1220
  %v1270 = vmax.f32 %v644, %v1221
  %v1271 = vmax.f32 %v645, %v1222
  %v1272 = vmax.f32 %v646, %v1223
  %v1273 = vmax.f32 %v647, %v1224
  %v1274 = vmax.f32 %v648, %v1225
  %v1275 = vmax.f32 %v649, %v1226
  %v1276 = vmax.f32 %v650, %v1227
  %v1277 = vmax.f32 %v651, %v1228
  %v1278 = vmax.f32 %v652, %v1229
  %v1279 = vmax.f32 %v653, %v1230
  %v1280 = vmax.f32 %v654, %v1231
  %v1281 = vmax.f32 %v655, %v1232
  %v1282 = vmax.f32 %v656, %v1233
  %v1283 = vmax.f32 %v657, %v1234
  %v1284 = vmax.f32 %v658, %v1235
  %v1285 = vmax.f32 %v659, %v1236
  %v1286 = vmax.f32 %v660, %v1237
  %v1287 = vmax.f32 %v661, %v1238
  %v1288 = vmax.f32 %v662, %v1239
  %v1289 = vmax.f32 %v663, %v1240
  %v1290 = vmax.f32 %v664, %v1241
  %v1291 = vmax.f32 %v665, %v1242
  %v1292 = vmax.f32 %v666, %v1243
  %v1293 = vmax.f32 %v667, %v1244
  %v1294 = vmax.f32 %v668, %v1245
  %v1295 = vmax.f32 %v669, %v1246
  %v1296 = vmax.f32 %v670, %v1247
  %v1297 = vmax.f32 %v671, %v1248
  %v1298 = vmax.f32 %v672, %v1249
  %v1299 = vmax.f32 %v673, %v1250
  %v1300 = vmax.f32 %v674, %v1251
  %v1301 = vmax.f32 %v675, %v1252
  %v1302 = vmax.f32 %v676, %v1253
  %v1303 = vmax.f32 %v677, %v1254
  %v1304 = vmax.f32 %v678, %v1255
  %v1305 = vmax.f32 %v679, %v1256
  %v1306 = vmax.f32 %v680, %v1257
  %v1307 = vmax.f32 %v681, %v1258
  %v1308 = vmax.f32 %v682, %v1259
  %v1309 = vmax.f32 %v683, %v1260
  %v1310 = vmax.f32 %v684, %v1261
  %s1311 = scalar_lea.vmem %s3, 392
  %v1312 = vld [vmem:[%s1311] sm:$0xf]
  %v1313 = vld [vmem:[%s1311 + $0x4] sm:$0xf]
  %v1314 = vld [vmem:[%s1311 + $0x8] sm:$0xf]
  %v1315 = vld [vmem:[%s1311 + $0xc] sm:$0xf]
  %v1316 = vld [vmem:[%s1311 + $0x10] sm:$0xf]
  %v1317 = vld [vmem:[%s1311 + $0x14] sm:$0xf]
  %v1318 = vld [vmem:[%s1311 + $0x18] sm:$0xf]
  %v1319 = vld [vmem:[%s1311 + $0x1c] sm:$0xf]
  %v1320 = vld [vmem:[%s1311 + $0x20] sm:$0xf]
  %v1321 = vld [vmem:[%s1311 + $0x24] sm:$0xf]
  %v1322 = vld [vmem:[%s1311 + $0x28] sm:$0xf]
  %v1323 = vld [vmem:[%s1311 + $0x2c] sm:$0xf]
  %v1324 = vld [vmem:[%s1311 + $0x30] sm:$0xf]
  %v1325 = vld [vmem:[%s1311 + $0x34] sm:$0xf]
  %v1326 = vld [vmem:[%s1311 + $0x38] sm:$0xf]
  %v1327 = vld [vmem:[%s1311 + $0x3c] sm:$0xf]
  %v1328 = vld [vmem:[%s1311 + $0x40] sm:$0xf]
  %v1329 = vld [vmem:[%s1311 + $0x44] sm:$0xf]
  %v1330 = vld [vmem:[%s1311 + $0x48] sm:$0xf]
  %v1331 = vld [vmem:[%s1311 + $0x4c] sm:$0xf]
  %v1332 = vld [vmem:[%s1311 + $0x50] sm:$0xf]
  %v1333 = vld [vmem:[%s1311 + $0x54] sm:$0xf]
  %v1334 = vld [vmem:[%s1311 + $0x58] sm:$0xf]
  %v1335 = vld [vmem:[%s1311 + $0x5c] sm:$0xf]
  %v1336 = vld [vmem:[%s1311 + $0x60] sm:$0xf]
  %v1337 = vld [vmem:[%s1311 + $0x64] sm:$0xf]
  %v1338 = vld [vmem:[%s1311 + $0x68] sm:$0xf]
  %v1339 = vld [vmem:[%s1311 + $0x6c] sm:$0xf]
  %v1340 = vld [vmem:[%s1311 + $0x70] sm:$0xf]
  %v1341 = vld [vmem:[%s1311 + $0x74] sm:$0xf]
  %v1342 = vld [vmem:[%s1311 + $0x78] sm:$0xf]
  %v1343 = vld [vmem:[%s1311 + $0x7c] sm:$0xf]
  %v1344 = vld [vmem:[%s1311 + $0x80] sm:$0xf]
  %v1345 = vld [vmem:[%s1311 + $0x84] sm:$0xf]
  %v1346 = vld [vmem:[%s1311 + $0x88] sm:$0xf]
  %v1347 = vld [vmem:[%s1311 + $0x8c] sm:$0xf]
  %v1348 = vld [vmem:[%s1311 + $0x90] sm:$0xf]
  %v1349 = vld [vmem:[%s1311 + $0x94] sm:$0xf]
  %v1350 = vld [vmem:[%s1311 + $0x98] sm:$0xf]
  %v1351 = vld [vmem:[%s1311 + $0x9c] sm:$0xf]
  %v1352 = vld [vmem:[%s1311 + $0xa0] sm:$0xf]
  %v1353 = vld [vmem:[%s1311 + $0xa4] sm:$0xf]
  %v1354 = vld [vmem:[%s1311 + $0xa8] sm:$0xf]
  %v1355 = vld [vmem:[%s1311 + $0xac] sm:$0xf]
  %v1356 = vld [vmem:[%s1311 + $0xb0] sm:$0xf]
  %v1357 = vld [vmem:[%s1311 + $0xb4] sm:$0xf]
  %v1358 = vld [vmem:[%s1311 + $0xb8] sm:$0xf]
  %v1359 = vld [vmem:[%s1311 + $0xbc] sm:$0xf]
  %v1360 = vld [vmem:[%s1311 + $0xc0] sm:$0xf]
  %v1410 = vunpack.c.l.b16 %v1312
  %v1411 = vunpack.c.l.b16 %v1313
  %v1412 = vunpack.c.l.b16 %v1314
  %v1413 = vunpack.c.l.b16 %v1315
  %v1414 = vunpack.c.l.b16 %v1316
  %v1415 = vunpack.c.l.b16 %v1317
  %v1416 = vunpack.c.l.b16 %v1318
  %v1417 = vunpack.c.l.b16 %v1319
  %v1418 = vunpack.c.l.b16 %v1320
  %v1419 = vunpack.c.l.b16 %v1321
  %v1420 = vunpack.c.l.b16 %v1322
  %v1421 = vunpack.c.l.b16 %v1323
  %v1422 = vunpack.c.l.b16 %v1324
  %v1423 = vunpack.c.l.b16 %v1325
  %v1424 = vunpack.c.l.b16 %v1326
  %v1425 = vunpack.c.l.b16 %v1327
  %v1426 = vunpack.c.l.b16 %v1328
  %v1427 = vunpack.c.l.b16 %v1329
  %v1428 = vunpack.c.l.b16 %v1330
  %v1429 = vunpack.c.l.b16 %v1331
  %v1430 = vunpack.c.l.b16 %v1332
  %v1431 = vunpack.c.l.b16 %v1333
  %v1432 = vunpack.c.l.b16 %v1334
  %v1433 = vunpack.c.l.b16 %v1335
  %v1434 = vunpack.c.l.b16 %v1336
  %v1435 = vunpack.c.l.b16 %v1337
  %v1436 = vunpack.c.l.b16 %v1338
  %v1437 = vunpack.c.l.b16 %v1339
  %v1438 = vunpack.c.l.b16 %v1340
  %v1439 = vunpack.c.l.b16 %v1341
  %v1440 = vunpack.c.l.b16 %v1342
  %v1441 = vunpack.c.l.b16 %v1343
  %v1442 = vunpack.c.l.b16 %v1344
  %v1443 = vunpack.c.l.b16 %v1345
  %v1444 = vunpack.c.l.b16 %v1346
  %v1445 = vunpack.c.l.b16 %v1347
  %v1446 = vunpack.c.l.b16 %v1348
  %v1447 = vunpack.c.l.b16 %v1349
  %v1448 = vunpack.c.l.b16 %v1350
  %v1449 = vunpack.c.l.b16 %v1351
  %v1450 = vunpack.c.l.b16 %v1352
  %v1451 = vunpack.c.l.b16 %v1353
  %v1452 = vunpack.c.l.b16 %v1354
  %v1453 = vunpack.c.l.b16 %v1355
  %v1454 = vunpack.c.l.b16 %v1356
  %v1455 = vunpack.c.l.b16 %v1357
  %v1456 = vunpack.c.l.b16 %v1358
  %v1457 = vunpack.c.l.b16 %v1359
  %v1458 = vunpack.c.l.b16 %v1360
  %v1459 = vpack.c.b16 %v1411, %v1410
  %v1460 = vpack.c.b16 %v1413, %v1412
  %v1461 = vpack.c.b16 %v1415, %v1414
  %v1462 = vpack.c.b16 %v1417, %v1416
  %v1463 = vpack.c.b16 %v1419, %v1418
  %v1464 = vpack.c.b16 %v1421, %v1420
  %v1465 = vpack.c.b16 %v1423, %v1422
  %v1466 = vpack.c.b16 %v1425, %v1424
  %v1467 = vpack.c.b16 %v1427, %v1426
  %v1468 = vpack.c.b16 %v1429, %v1428
  %v1469 = vpack.c.b16 %v1431, %v1430
  %v1470 = vpack.c.b16 %v1433, %v1432
  %v1471 = vpack.c.b16 %v1435, %v1434
  %v1472 = vpack.c.b16 %v1437, %v1436
  %v1473 = vpack.c.b16 %v1439, %v1438
  %v1474 = vpack.c.b16 %v1441, %v1440
  %v1475 = vpack.c.b16 %v1443, %v1442
  %v1476 = vpack.c.b16 %v1445, %v1444
  %v1477 = vpack.c.b16 %v1447, %v1446
  %v1478 = vpack.c.b16 %v1449, %v1448
  %v1479 = vpack.c.b16 %v1451, %v1450
  %v1480 = vpack.c.b16 %v1453, %v1452
  %v1481 = vpack.c.b16 %v1455, %v1454
  %v1482 = vpack.c.b16 %v1457, %v1456
  %v1483 = vpack.c.b16 %v1458, %v1458
  %1509 = vmatprep.subr.bf16.mxu0 0
  %1510 = vmatpush1.bf16.msra.mxu0 %v280
  %1511 = vmatprep.subr.bf16.mxu0 0
  %1512 = vmatpush1.bf16.msra.mxu0 %v281
  %1513 = vmatprep.subr.bf16.mxu0 0
  %1514 = vmatpush1.bf16.msra.mxu0 %v282
  %1515 = vmatprep.subr.bf16.mxu0 0
  %1516 = vmatpush1.bf16.msra.mxu0 %v283
  %1517 = vmatprep.subr.bf16.mxu0 0
  %1518 = vmatpush1.bf16.msra.mxu0 %v284
  %1519 = vmatprep.subr.bf16.mxu0 0
  %1520 = vmatpush1.bf16.msra.mxu0 %v285
  %1521 = vmatprep.subr.bf16.mxu0 0
  %1522 = vmatpush1.bf16.msra.mxu0 %v286
  %1523 = vmatprep.subr.bf16.mxu0 0
  %1524 = vmatpush1.bf16.msra.mxu0 %v287
  %1525 = vmatprep.subr.bf16.mxu0 0
  %1526 = vmatpush1.bf16.msra.mxu0 0
  %1527 = vmatprep.subr.bf16.mxu0 0
  %1528 = vmatpush1.bf16.msra.mxu0 0
  %1529 = vmatprep.subr.bf16.mxu0 0
  %1530 = vmatpush1.bf16.msra.mxu0 0
  %1531 = vmatprep.subr.bf16.mxu0 0
  %1532 = vmatpush1.bf16.msra.mxu0 0
  %1533 = vmatprep.subr.bf16.mxu0 0
  %1534 = vmatpush1.bf16.msra.mxu0 0
  %1535 = vmatprep.subr.bf16.mxu0 0
  %1536 = vmatpush1.bf16.msra.mxu0 0
  %1537 = vmatprep.subr.bf16.mxu0 0
  %1538 = vmatpush1.bf16.msra.mxu0 0
  %1539 = vmatprep.subr.bf16.mxu0 0
  %1540 = vmatpush1.bf16.msra.mxu0 0
  %1541 = vmatprep.mubr.bf16.mxu0 0
  %1542 = vmatmul.mubr.bf16.gmra.mrb[0].mxu0 %v1459
  %v1543 = vpop.f32.mrb[0].mxu0
  %v1544 = vadd.f32 0.0, %v1543
  %v1545 = vpop.f32.mrb[0].mxu0
  %v1546 = vpop.f32.mrb[0].mxu0
  %v1547 = vadd.f32 0.0, %v1546
  %v1548 = vpop.f32.mrb[0].mxu0
  %1549 = vmatprep.mubr.bf16.mxu0 0
  %1550 = vmatmul.mubr.bf16.gmra.mrb[0].mxu0 %v1460
  %v1551 = vpop.f32.mrb[0].mxu0
  %v1552 = vadd.f32 0.0, %v1551
  %v1553 = vpop.f32.mrb[0].mxu0
  %v1554 = vpop.f32.mrb[0].mxu0
  %v1555 = vadd.f32 0.0, %v1554
  %v1556 = vpop.f32.mrb[0].mxu0
  %1557 = vmatprep.mubr.bf16.mxu0 0
  %1558 = vmatmul.mubr.bf16.gmra.mrb[0].mxu0 %v1461
  %v1559 = vpop.f32.mrb[0].mxu0
  %v1560 = vadd.f32 0.0, %v1559
  %v1561 = vpop.f32.mrb[0].mxu0
  %v1562 = vpop.f32.mrb[0].mxu0
  %v1563 = vadd.f32 0.0, %v1562
  %v1564 = vpop.f32.mrb[0].mxu0
  %1565 = vmatprep.mubr.bf16.mxu0 0
  %1566 = vmatmul.mubr.bf16.gmra.mrb[0].mxu0 %v1462
  %v1567 = vpop.f32.mrb[0].mxu0
  %v1568 = vadd.f32 0.0, %v1567
  %v1569 = vpop.f32.mrb[0].mxu0
  %v1570 = vpop.f32.mrb[0].mxu0
  %v1571 = vadd.f32 0.0, %v1570
  %v1572 = vpop.f32.mrb[0].mxu0
  %1573 = vmatprep.mubr.bf16.mxu0 0
  %1574 = vmatmul.mubr.bf16.gmra.mrb[0].mxu0 %v1463
  %v1575 = vpop.f32.mrb[0].mxu0
  %v1576 = vadd.f32 0.0, %v1575
  %v1577 = vpop.f32.mrb[0].mxu0
  %v1578 = vpop.f32.mrb[0].mxu0
  %v1579 = vadd.f32 0.0, %v1578
  %v1580 = vpop.f32.mrb[0].mxu0
  %1581 = vmatprep.mubr.bf16.mxu0 0
  %1582 = vmatmul.mubr.bf16.gmra.mrb[0].mxu0 %v1464
  %v1583 = vpop.f32.mrb[0].mxu0
  %v1584 = vadd.f32 0.0, %v1583
  %v1585 = vpop.f32.mrb[0].mxu0
  %v1586 = vpop.f32.mrb[0].mxu0
  %v1587 = vadd.f32 0.0, %v1586
  %v1588 = vpop.f32.mrb[0].mxu0
  %1589 = vmatprep.mubr.bf16.mxu0 0
  %1590 = vmatmul.mubr.bf16.gmra.mrb[0].mxu0 %v1465
  %v1591 = vpop.f32.mrb[0].mxu0
  %v1592 = vadd.f32 0.0, %v1591
  %v1593 = vpop.f32.mrb[0].mxu0
  %v1594 = vpop.f32.mrb[0].mxu0
  %v1595 = vadd.f32 0.0, %v1594
  %v1596 = vpop.f32.mrb[0].mxu0
  %1597 = vmatprep.mubr.bf16.mxu0 0
  %1598 = vmatmul.mubr.bf16.gmra.mrb[0].mxu0 %v1466
  %v1599 = vpop.f32.mrb[0].mxu0
  %v1600 = vadd.f32 0.0, %v1599
  %v1601 = vpop.f32.mrb[0].mxu0
  %v1602 = vpop.f32.mrb[0].mxu0
  %v1603 = vadd.f32 0.0, %v1602
  %v1604 = vpop.f32.mrb[0].mxu0
  %1605 = vmatprep.mubr.bf16.mxu0 0
  %1606 = vmatmul.mubr.bf16.gmra.mrb[0].mxu0 %v1467
  %v1607 = vpop.f32.mrb[0].mxu0
  %v1608 = vadd.f32 0.0, %v1607
  %v1609 = vpop.f32.mrb[0].mxu0
  %v1610 = vpop.f32.mrb[0].mxu0
  %v1611 = vadd.f32 0.0, %v1610
  %v1612 = vpop.f32.mrb[0].mxu0
  %1613 = vmatprep.mubr.bf16.mxu0 0
  %1614 = vmatmul.mubr.bf16.gmra.mrb[0].mxu0 %v1468
  %v1615 = vpop.f32.mrb[0].mxu0
  %v1616 = vadd.f32 0.0, %v1615
  %v1617 = vpop.f32.mrb[0].mxu0
  %v1618 = vpop.f32.mrb[0].mxu0
  %v1619 = vadd.f32 0.0, %v1618
  %v1620 = vpop.f32.mrb[0].mxu0
  %1621 = vmatprep.mubr.bf16.mxu0 0
  %1622 = vmatmul.mubr.bf16.gmra.mrb[0].mxu0 %v1469
  %v1623 = vpop.f32.mrb[0].mxu0
  %v1624 = vadd.f32 0.0, %v1623
  %v1625 = vpop.f32.mrb[0].mxu0
  %v1626 = vpop.f32.mrb[0].mxu0
  %v1627 = vadd.f32 0.0, %v1626
  %v1628 = vpop.f32.mrb[0].mxu0
  %1629 = vmatprep.mubr.bf16.mxu0 0
  %1630 = vmatmul.mubr.bf16.gmra.mrb[0].mxu0 %v1470
  %v1631 = vpop.f32.mrb[0].mxu0
  %v1632 = vadd.f32 0.0, %v1631
  %v1633 = vpop.f32.mrb[0].mxu0
  %v1634 = vpop.f32.mrb[0].mxu0
  %v1635 = vadd.f32 0.0, %v1634
  %v1636 = vpop.f32.mrb[0].mxu0
  %1637 = vmatprep.mubr.bf16.mxu0 0
  %1638 = vmatmul.mubr.bf16.gmra.mrb[0].mxu0 %v1471
  %v1639 = vpop.f32.mrb[0].mxu0
  %v1640 = vadd.f32 0.0, %v1639
  %v1641 = vpop.f32.mrb[0].mxu0
  %v1642 = vpop.f32.mrb[0].mxu0
  %v1643 = vadd.f32 0.0, %v1642
  %v1644 = vpop.f32.mrb[0].mxu0
  %1645 = vmatprep.mubr.bf16.mxu0 0
  %1646 = vmatmul.mubr.bf16.gmra.mrb[0].mxu0 %v1472
  %v1647 = vpop.f32.mrb[0].mxu0
  %v1648 = vadd.f32 0.0, %v1647
  %v1649 = vpop.f32.mrb[0].mxu0
  %v1650 = vpop.f32.mrb[0].mxu0
  %v1651 = vadd.f32 0.0, %v1650
  %v1652 = vpop.f32.mrb[0].mxu0
  %1653 = vmatprep.mubr.bf16.mxu0 0
  %1654 = vmatmul.mubr.bf16.gmra.mrb[0].mxu0 %v1473
  %v1655 = vpop.f32.mrb[0].mxu0
  %v1656 = vadd.f32 0.0, %v1655
  %v1657 = vpop.f32.mrb[0].mxu0
  %v1658 = vpop.f32.mrb[0].mxu0
  %v1659 = vadd.f32 0.0, %v1658
  %v1660 = vpop.f32.mrb[0].mxu0
  %1661 = vmatprep.mubr.bf16.mxu0 0
  %1662 = vmatmul.mubr.bf16.gmra.mrb[0].mxu0 %v1474
  %v1663 = vpop.f32.mrb[0].mxu0
  %v1664 = vadd.f32 0.0, %v1663
  %v1665 = vpop.f32.mrb[0].mxu0
  %v1666 = vpop.f32.mrb[0].mxu0
  %v1667 = vadd.f32 0.0, %v1666
  %v1668 = vpop.f32.mrb[0].mxu0
  %1669 = vmatprep.mubr.bf16.mxu0 0
  %1670 = vmatmul.mubr.bf16.gmra.mrb[0].mxu0 %v1475
  %v1671 = vpop.f32.mrb[0].mxu0
  %v1672 = vadd.f32 0.0, %v1671
  %v1673 = vpop.f32.mrb[0].mxu0
  %v1674 = vpop.f32.mrb[0].mxu0
  %v1675 = vadd.f32 0.0, %v1674
  %v1676 = vpop.f32.mrb[0].mxu0
  %1677 = vmatprep.mubr.bf16.mxu0 0
  %1678 = vmatmul.mubr.bf16.gmra.mrb[0].mxu0 %v1476
  %v1679 = vpop.f32.mrb[0].mxu0
  %v1680 = vadd.f32 0.0, %v1679
  %v1681 = vpop.f32.mrb[0].mxu0
  %v1682 = vpop.f32.mrb[0].mxu0
  %v1683 = vadd.f32 0.0, %v1682
  %v1684 = vpop.f32.mrb[0].mxu0
  %1685 = vmatprep.mubr.bf16.mxu0 0
  %1686 = vmatmul.mubr.bf16.gmra.mrb[0].mxu0 %v1477
  %v1687 = vpop.f32.mrb[0].mxu0
  %v1688 = vadd.f32 0.0, %v1687
  %v1689 = vpop.f32.mrb[0].mxu0
  %v1690 = vpop.f32.mrb[0].mxu0
  %v1691 = vadd.f32 0.0, %v1690
  %v1692 = vpop.f32.mrb[0].mxu0
  %1693 = vmatprep.mubr.bf16.mxu0 0
  %1694 = vmatmul.mubr.bf16.gmra.mrb[0].mxu0 %v1478
  %v1695 = vpop.f32.mrb[0].mxu0
  %v1696 = vadd.f32 0.0, %v1695
  %v1697 = vpop.f32.mrb[0].mxu0
  %v1698 = vpop.f32.mrb[0].mxu0
  %v1699 = vadd.f32 0.0, %v1698
  %v1700 = vpop.f32.mrb[0].mxu0
  %1701 = vmatprep.mubr.bf16.mxu0 0
  %1702 = vmatmul.mubr.bf16.gmra.mrb[0].mxu0 %v1479
  %v1703 = vpop.f32.mrb[0].mxu0
  %v1704 = vadd.f32 0.0, %v1703
  %v1705 = vpop.f32.mrb[0].mxu0
  %v1706 = vpop.f32.mrb[0].mxu0
  %v1707 = vadd.f32 0.0, %v1706
  %v1708 = vpop.f32.mrb[0].mxu0
  %1709 = vmatprep.mubr.bf16.mxu0 0
  %1710 = vmatmul.mubr.bf16.gmra.mrb[0].mxu0 %v1480
  %v1711 = vpop.f32.mrb[0].mxu0
  %v1712 = vadd.f32 0.0, %v1711
  %v1713 = vpop.f32.mrb[0].mxu0
  %v1714 = vpop.f32.mrb[0].mxu0
  %v1715 = vadd.f32 0.0, %v1714
  %v1716 = vpop.f32.mrb[0].mxu0
  %1717 = vmatprep.mubr.bf16.mxu0 0
  %1718 = vmatmul.mubr.bf16.gmra.mrb[0].mxu0 %v1481
  %v1719 = vpop.f32.mrb[0].mxu0
  %v1720 = vadd.f32 0.0, %v1719
  %v1721 = vpop.f32.mrb[0].mxu0
  %v1722 = vpop.f32.mrb[0].mxu0
  %v1723 = vadd.f32 0.0, %v1722
  %v1724 = vpop.f32.mrb[0].mxu0
  %1725 = vmatprep.mubr.bf16.mxu0 0
  %1726 = vmatmul.mubr.bf16.gmra.mrb[0].mxu0 %v1482
  %v1727 = vpop.f32.mrb[0].mxu0
  %v1728 = vadd.f32 0.0, %v1727
  %v1729 = vpop.f32.mrb[0].mxu0
  %v1730 = vpop.f32.mrb[0].mxu0
  %v1731 = vadd.f32 0.0, %v1730
  %v1732 = vpop.f32.mrb[0].mxu0
  %1733 = vmatprep.mubr.bf16.mxu0 0
  %1734 = vmatmul.mubr.bf16.gmra.mrb[0].mxu0 %v1483
  %v1735 = vpop.f32.mrb[0].mxu0
  %v1736 = vadd.f32 0.0, %v1735
  %v1737 = vpop.f32.mrb[0].mxu0
  %v1738 = vpop.f32.mrb[0].mxu0
  %v1739 = vpop.f32.mrb[0].mxu0
  %1740 = vdwg.mxu0
  %v1741 = vmul.f32 %v1544, %v531
  %v1742 = vmul.f32 %v1547, %v531
  %v1743 = vmul.f32 %v1552, %v531
  %v1744 = vmul.f32 %v1555, %v531
  %v1745 = vmul.f32 %v1560, %v531
  %v1746 = vmul.f32 %v1563, %v531
  %v1747 = vmul.f32 %v1568, %v531
  %v1748 = vmul.f32 %v1571, %v531
  %v1749 = vmul.f32 %v1576, %v531
  %v1750 = vmul.f32 %v1579, %v531
  %v1751 = vmul.f32 %v1584, %v531
  %v1752 = vmul.f32 %v1587, %v531
  %v1753 = vmul.f32 %v1592, %v531
  %v1754 = vmul.f32 %v1595, %v531
  %v1755 = vmul.f32 %v1600, %v531
  %v1756 = vmul.f32 %v1603, %v531
  %v1757 = vmul.f32 %v1608, %v531
  %v1758 = vmul.f32 %v1611, %v531
  %v1759 = vmul.f32 %v1616, %v531
  %v1760 = vmul.f32 %v1619, %v531
  %v1761 = vmul.f32 %v1624, %v531
  %v1762 = vmul.f32 %v1627, %v531
  %v1763 = vmul.f32 %v1632, %v531
  %v1764 = vmul.f32 %v1635, %v531
  %v1765 = vmul.f32 %v1640, %v531
  %v1766 = vmul.f32 %v1643, %v531
  %v1767 = vmul.f32 %v1648, %v531
  %v1768 = vmul.f32 %v1651, %v531
  %v1769 = vmul.f32 %v1656, %v531
  %v1770 = vmul.f32 %v1659, %v531
  %v1771 = vmul.f32 %v1664, %v531
  %v1772 = vmul.f32 %v1667, %v531
  %v1773 = vmul.f32 %v1672, %v531
  %v1774 = vmul.f32 %v1675, %v531
  %v1775 = vmul.f32 %v1680, %v531
  %v1776 = vmul.f32 %v1683, %v531
  %v1777 = vmul.f32 %v1688, %v531
  %v1778 = vmul.f32 %v1691, %v531
  %v1779 = vmul.f32 %v1696, %v531
  %v1780 = vmul.f32 %v1699, %v531
  %v1781 = vmul.f32 %v1704, %v531
  %v1782 = vmul.f32 %v1707, %v531
  %v1783 = vmul.f32 %v1712, %v531
  %v1784 = vmul.f32 %v1715, %v531
  %v1785 = vmul.f32 %v1720, %v531
  %v1786 = vmul.f32 %v1723, %v531
  %v1787 = vmul.f32 %v1728, %v531
  %v1788 = vmul.f32 %v1731, %v531
  %v1789 = vmul.f32 %v1736, %v531
  %v1790 = vadd.f32 %v1741, %v585
  %v1791 = vadd.f32 %v1742, %v585
  %v1792 = vadd.f32 %v1743, %v585
  %v1793 = vadd.f32 %v1744, %v585
  %v1794 = vadd.f32 %v1745, %v585
  %v1795 = vadd.f32 %v1746, %v585
  %v1796 = vadd.f32 %v1747, %v585
  %v1797 = vadd.f32 %v1748, %v585
  %v1798 = vadd.f32 %v1749, %v585
  %v1799 = vadd.f32 %v1750, %v585
  %v1800 = vadd.f32 %v1751, %v585
  %v1801 = vadd.f32 %v1752, %v585
  %v1802 = vadd.f32 %v1753, %v585
  %v1803 = vadd.f32 %v1754, %v585
  %v1804 = vadd.f32 %v1755, %v585
  %v1805 = vadd.f32 %v1756, %v585
  %v1806 = vadd.f32 %v1757, %v585
  %v1807 = vadd.f32 %v1758, %v585
  %v1808 = vadd.f32 %v1759, %v585
  %v1809 = vadd.f32 %v1760, %v585
  %v1810 = vadd.f32 %v1761, %v585
  %v1811 = vadd.f32 %v1762, %v585
  %v1812 = vadd.f32 %v1763, %v585
  %v1813 = vadd.f32 %v1764, %v585
  %v1814 = vadd.f32 %v1765, %v585
  %v1815 = vadd.f32 %v1766, %v585
  %v1816 = vadd.f32 %v1767, %v585
  %v1817 = vadd.f32 %v1768, %v585
  %v1818 = vadd.f32 %v1769, %v585
  %v1819 = vadd.f32 %v1770, %v585
  %v1820 = vadd.f32 %v1771, %v585
  %v1821 = vadd.f32 %v1772, %v585
  %v1822 = vadd.f32 %v1773, %v585
  %v1823 = vadd.f32 %v1774, %v585
  %v1824 = vadd.f32 %v1775, %v585
  %v1825 = vadd.f32 %v1776, %v585
  %v1826 = vadd.f32 %v1777, %v585
  %v1827 = vadd.f32 %v1778, %v585
  %v1828 = vadd.f32 %v1779, %v585
  %v1829 = vadd.f32 %v1780, %v585
  %v1830 = vadd.f32 %v1781, %v585
  %v1831 = vadd.f32 %v1782, %v585
  %v1832 = vadd.f32 %v1783, %v585
  %v1833 = vadd.f32 %v1784, %v585
  %v1834 = vadd.f32 %v1785, %v585
  %v1835 = vadd.f32 %v1786, %v585
  %v1836 = vadd.f32 %v1787, %v585
  %v1837 = vadd.f32 %v1788, %v585
  %v1838 = vadd.f32 %v1789, %v585
  %v1839 = vmax.f32 %v1790, 0.0
  %v1840 = vmax.f32 %v1791, 0.0
  %v1841 = vmax.f32 %v1792, 0.0
  %v1842 = vmax.f32 %v1793, 0.0
  %v1843 = vmax.f32 %v1794, 0.0
  %v1844 = vmax.f32 %v1795, 0.0
  %v1845 = vmax.f32 %v1796, 0.0
  %v1846 = vmax.f32 %v1797, 0.0
  %v1847 = vmax.f32 %v1798, 0.0
  %v1848 = vmax.f32 %v1799, 0.0
  %v1849 = vmax.f32 %v1800, 0.0
  %v1850 = vmax.f32 %v1801, 0.0
  %v1851 = vmax.f32 %v1802, 0.0
  %v1852 = vmax.f32 %v1803, 0.0
  %v1853 = vmax.f32 %v1804, 0.0
  %v1854 = vmax.f32 %v1805, 0.0
  %v1855 = vmax.f32 %v1806, 0.0
  %v1856 = vmax.f32 %v1807, 0.0
  %v1857 = vmax.f32 %v1808, 0.0
  %v1858 = vmax.f32 %v1809, 0.0
  %v1859 = vmax.f32 %v1810, 0.0
  %v1860 = vmax.f32 %v1811, 0.0
  %v1861 = vmax.f32 %v1812, 0.0
  %v1862 = vmax.f32 %v1813, 0.0
  %v1863 = vmax.f32 %v1814, 0.0
  %v1864 = vmax.f32 %v1815, 0.0
  %v1865 = vmax.f32 %v1816, 0.0
  %v1866 = vmax.f32 %v1817, 0.0
  %v1867 = vmax.f32 %v1818, 0.0
  %v1868 = vmax.f32 %v1819, 0.0
  %v1869 = vmax.f32 %v1820, 0.0
  %v1870 = vmax.f32 %v1821, 0.0
  %v1871 = vmax.f32 %v1822, 0.0
  %v1872 = vmax.f32 %v1823, 0.0
  %v1873 = vmax.f32 %v1824, 0.0
  %v1874 = vmax.f32 %v1825, 0.0
  %v1875 = vmax.f32 %v1826, 0.0
  %v1876 = vmax.f32 %v1827, 0.0
  %v1877 = vmax.f32 %v1828, 0.0
  %v1878 = vmax.f32 %v1829, 0.0
  %v1879 = vmax.f32 %v1830, 0.0
  %v1880 = vmax.f32 %v1831, 0.0
  %v1881 = vmax.f32 %v1832, 0.0
  %v1882 = vmax.f32 %v1833, 0.0
  %v1883 = vmax.f32 %v1834, 0.0
  %v1884 = vmax.f32 %v1835, 0.0
  %v1885 = vmax.f32 %v1836, 0.0
  %v1886 = vmax.f32 %v1837, 0.0
  %v1887 = vmax.f32 %v1838, 0.0
  %v1888 = vmax.f32 %v1262, %v1839
  %v1889 = vmax.f32 %v1263, %v1840
  %v1890 = vmax.f32 %v1264, %v1841
  %v1891 = vmax.f32 %v1265, %v1842
  %v1892 = vmax.f32 %v1266, %v1843
  %v1893 = vmax.f32 %v1267, %v1844
  %v1894 = vmax.f32 %v1268, %v1845
  %v1895 = vmax.f32 %v1269, %v1846
  %v1896 = vmax.f32 %v1270, %v1847
  %v1897 = vmax.f32 %v1271, %v1848
  %v1898 = vmax.f32 %v1272, %v1849
  %v1899 = vmax.f32 %v1273, %v1850
  %v1900 = vmax.f32 %v1274, %v1851
  %v1901 = vmax.f32 %v1275, %v1852
  %v1902 = vmax.f32 %v1276, %v1853
  %v1903 = vmax.f32 %v1277, %v1854
  %v1904 = vmax.f32 %v1278, %v1855
  %v1905 = vmax.f32 %v1279, %v1856
  %v1906 = vmax.f32 %v1280, %v1857
  %v1907 = vmax.f32 %v1281, %v1858
  %v1908 = vmax.f32 %v1282, %v1859
  %v1909 = vmax.f32 %v1283, %v1860
  %v1910 = vmax.f32 %v1284, %v1861
  %v1911 = vmax.f32 %v1285, %v1862
  %v1912 = vmax.f32 %v1286, %v1863
  %v1913 = vmax.f32 %v1287, %v1864
  %v1914 = vmax.f32 %v1288, %v1865
  %v1915 = vmax.f32 %v1289, %v1866
  %v1916 = vmax.f32 %v1290, %v1867
  %v1917 = vmax.f32 %v1291, %v1868
  %v1918 = vmax.f32 %v1292, %v1869
  %v1919 = vmax.f32 %v1293, %v1870
  %v1920 = vmax.f32 %v1294, %v1871
  %v1921 = vmax.f32 %v1295, %v1872
  %v1922 = vmax.f32 %v1296, %v1873
  %v1923 = vmax.f32 %v1297, %v1874
  %v1924 = vmax.f32 %v1298, %v1875
  %v1925 = vmax.f32 %v1299, %v1876
  %v1926 = vmax.f32 %v1300, %v1877
  %v1927 = vmax.f32 %v1301, %v1878
  %v1928 = vmax.f32 %v1302, %v1879
  %v1929 = vmax.f32 %v1303, %v1880
  %v1930 = vmax.f32 %v1304, %v1881
  %v1931 = vmax.f32 %v1305, %v1882
  %v1932 = vmax.f32 %v1306, %v1883
  %v1933 = vmax.f32 %v1307, %v1884
  %v1934 = vmax.f32 %v1308, %v1885
  %v1935 = vmax.f32 %v1309, %v1886
  %v1936 = vmax.f32 %v1310, %v1887
  %s1937 = scalar_lea.vmem %s3, 588
  %v1938 = vld [vmem:[%s1937] sm:$0xf]
  %v1939 = vld [vmem:[%s1937 + $0x4] sm:$0xf]
  %v1940 = vld [vmem:[%s1937 + $0x8] sm:$0xf]
  %v1941 = vld [vmem:[%s1937 + $0xc] sm:$0xf]
  %v1942 = vld [vmem:[%s1937 + $0x10] sm:$0xf]
  %v1943 = vld [vmem:[%s1937 + $0x14] sm:$0xf]
  %v1944 = vld [vmem:[%s1937 + $0x18] sm:$0xf]
  %v1945 = vld [vmem:[%s1937 + $0x1c] sm:$0xf]
  %v1946 = vld [vmem:[%s1937 + $0x20] sm:$0xf]
  %v1947 = vld [vmem:[%s1937 + $0x24] sm:$0xf]
  %v1948 = vld [vmem:[%s1937 + $0x28] sm:$0xf]
  %v1949 = vld [vmem:[%s1937 + $0x2c] sm:$0xf]
  %v1950 = vld [vmem:[%s1937 + $0x30] sm:$0xf]
  %v1951 = vld [vmem:[%s1937 + $0x34] sm:$0xf]
  %v1952 = vld [vmem:[%s1937 + $0x38] sm:$0xf]
  %v1953 = vld [vmem:[%s1937 + $0x3c] sm:$0xf]
  %v1954 = vld [vmem:[%s1937 + $0x40] sm:$0xf]
  %v1955 = vld [vmem:[%s1937 + $0x44] sm:$0xf]
  %v1956 = vld [vmem:[%s1937 + $0x48] sm:$0xf]
  %v1957 = vld [vmem:[%s1937 + $0x4c] sm:$0xf]
  %v1958 = vld [vmem:[%s1937 + $0x50] sm:$0xf]
  %v1959 = vld [vmem:[%s1937 + $0x54] sm:$0xf]
  %v1960 = vld [vmem:[%s1937 + $0x58] sm:$0xf]
  %v1961 = vld [vmem:[%s1937 + $0x5c] sm:$0xf]
  %v1962 = vld [vmem:[%s1937 + $0x60] sm:$0xf]
  %v1963 = vld [vmem:[%s1937 + $0x64] sm:$0xf]
  %v1964 = vld [vmem:[%s1937 + $0x68] sm:$0xf]
  %v1965 = vld [vmem:[%s1937 + $0x6c] sm:$0xf]
  %v1966 = vld [vmem:[%s1937 + $0x70] sm:$0xf]
  %v1967 = vld [vmem:[%s1937 + $0x74] sm:$0xf]
  %v1968 = vld [vmem:[%s1937 + $0x78] sm:$0xf]
  %v1969 = vld [vmem:[%s1937 + $0x7c] sm:$0xf]
  %v1970 = vld [vmem:[%s1937 + $0x80] sm:$0xf]
  %v1971 = vld [vmem:[%s1937 + $0x84] sm:$0xf]
  %v1972 = vld [vmem:[%s1937 + $0x88] sm:$0xf]
  %v1973 = vld [vmem:[%s1937 + $0x8c] sm:$0xf]
  %v1974 = vld [vmem:[%s1937 + $0x90] sm:$0xf]
  %v1975 = vld [vmem:[%s1937 + $0x94] sm:$0xf]
  %v1976 = vld [vmem:[%s1937 + $0x98] sm:$0xf]
  %v1977 = vld [vmem:[%s1937 + $0x9c] sm:$0xf]
  %v1978 = vld [vmem:[%s1937 + $0xa0] sm:$0xf]
  %v1979 = vld [vmem:[%s1937 + $0xa4] sm:$0xf]
  %v1980 = vld [vmem:[%s1937 + $0xa8] sm:$0xf]
  %v1981 = vld [vmem:[%s1937 + $0xac] sm:$0xf]
  %v1982 = vld [vmem:[%s1937 + $0xb0] sm:$0xf]
  %v1983 = vld [vmem:[%s1937 + $0xb4] sm:$0xf]
  %v1984 = vld [vmem:[%s1937 + $0xb8] sm:$0xf]
  %v1985 = vld [vmem:[%s1937 + $0xbc] sm:$0xf]
  %v1986 = vld [vmem:[%s1937 + $0xc0] sm:$0xf]
  %v2036 = vunpack.c.l.b16 %v1938
  %v2037 = vunpack.c.l.b16 %v1939
  %v2038 = vunpack.c.l.b16 %v1940
  %v2039 = vunpack.c.l.b16 %v1941
  %v2040 = vunpack.c.l.b16 %v1942
  %v2041 = vunpack.c.l.b16 %v1943
  %v2042 = vunpack.c.l.b16 %v1944
  %v2043 = vunpack.c.l.b16 %v1945
  %v2044 = vunpack.c.l.b16 %v1946
  %v2045 = vunpack.c.l.b16 %v1947
  %v2046 = vunpack.c.l.b16 %v1948
  %v2047 = vunpack.c.l.b16 %v1949
  %v2048 = vunpack.c.l.b16 %v1950
  %v2049 = vunpack.c.l.b16 %v1951
  %v2050 = vunpack.c.l.b16 %v1952
  %v2051 = vunpack.c.l.b16 %v1953
  %v2052 = vunpack.c.l.b16 %v1954
  %v2053 = vunpack.c.l.b16 %v1955
  %v2054 = vunpack.c.l.b16 %v1956
  %v2055 = vunpack.c.l.b16 %v1957
  %v2056 = vunpack.c.l.b16 %v1958
  %v2057 = vunpack.c.l.b16 %v1959
  %v2058 = vunpack.c.l.b16 %v1960
  %v2059 = vunpack.c.l.b16 %v1961
  %v2060 = vunpack.c.l.b16 %v1962
  %v2061 = vunpack.c.l.b16 %v1963
  %v2062 = vunpack.c.l.b16 %v1964
  %v2063 = vunpack.c.l.b16 %v1965
  %v2064 = vunpack.c.l.b16 %v1966
  %v2065 = vunpack.c.l.b16 %v1967
  %v2066 = vunpack.c.l.b16 %v1968
  %v2067 = vunpack.c.l.b16 %v1969
  %v2068 = vunpack.c.l.b16 %v1970
  %v2069 = vunpack.c.l.b16 %v1971
  %v2070 = vunpack.c.l.b16 %v1972
  %v2071 = vunpack.c.l.b16 %v1973
  %v2072 = vunpack.c.l.b16 %v1974
  %v2073 = vunpack.c.l.b16 %v1975
  %v2074 = vunpack.c.l.b16 %v1976
  %v2075 = vunpack.c.l.b16 %v1977
  %v2076 = vunpack.c.l.b16 %v1978
  %v2077 = vunpack.c.l.b16 %v1979
  %v2078 = vunpack.c.l.b16 %v1980
  %v2079 = vunpack.c.l.b16 %v1981
  %v2080 = vunpack.c.l.b16 %v1982
  %v2081 = vunpack.c.l.b16 %v1983
  %v2082 = vunpack.c.l.b16 %v1984
  %v2083 = vunpack.c.l.b16 %v1985
  %v2084 = vunpack.c.l.b16 %v1986
  %v2085 = vpack.c.b16 %v2037, %v2036
  %v2086 = vpack.c.b16 %v2039, %v2038
  %v2087 = vpack.c.b16 %v2041, %v2040
  %v2088 = vpack.c.b16 %v2043, %v2042
  %v2089 = vpack.c.b16 %v2045, %v2044
  %v2090 = vpack.c.b16 %v2047, %v2046
  %v2091 = vpack.c.b16 %v2049, %v2048
  %v2092 = vpack.c.b16 %v2051, %v2050
  %v2093 = vpack.c.b16 %v2053, %v2052
  %v2094 = vpack.c.b16 %v2055, %v2054
  %v2095 = vpack.c.b16 %v2057, %v2056
  %v2096 = vpack.c.b16 %v2059, %v2058
  %v2097 = vpack.c.b16 %v2061, %v2060
  %v2098 = vpack.c.b16 %v2063, %v2062
  %v2099 = vpack.c.b16 %v2065, %v2064
  %v2100 = vpack.c.b16 %v2067, %v2066
  %v2101 = vpack.c.b16 %v2069, %v2068
  %v2102 = vpack.c.b16 %v2071, %v2070
  %v2103 = vpack.c.b16 %v2073, %v2072
  %v2104 = vpack.c.b16 %v2075, %v2074
  %v2105 = vpack.c.b16 %v2077, %v2076
  %v2106 = vpack.c.b16 %v2079, %v2078
  %v2107 = vpack.c.b16 %v2081, %v2080
  %v2108 = vpack.c.b16 %v2083, %v2082
  %v2109 = vpack.c.b16 %v2084, %v2084
  %2135 = vmatprep.subr.bf16.mxu0 0
  %2136 = vmatpush1.bf16.msra.mxu0 %v280
  %2137 = vmatprep.subr.bf16.mxu0 0
  %2138 = vmatpush1.bf16.msra.mxu0 %v281
  %2139 = vmatprep.subr.bf16.mxu0 0
  %2140 = vmatpush1.bf16.msra.mxu0 %v282
  %2141 = vmatprep.subr.bf16.mxu0 0
  %2142 = vmatpush1.bf16.msra.mxu0 %v283
  %2143 = vmatprep.subr.bf16.mxu0 0
  %2144 = vmatpush1.bf16.msra.mxu0 %v284
  %2145 = vmatprep.subr.bf16.mxu0 0
  %2146 = vmatpush1.bf16.msra.mxu0 %v285
  %2147 = vmatprep.subr.bf16.mxu0 0
  %2148 = vmatpush1.bf16.msra.mxu0 %v286
  %2149 = vmatprep.subr.bf16.mxu0 0
  %2150 = vmatpush1.bf16.msra.mxu0 %v287
  %2151 = vmatprep.subr.bf16.mxu0 0
  %2152 = vmatpush1.bf16.msra.mxu0 0
  %2153 = vmatprep.subr.bf16.mxu0 0
  %2154 = vmatpush1.bf16.msra.mxu0 0
  %2155 = vmatprep.subr.bf16.mxu0 0
  %2156 = vmatpush1.bf16.msra.mxu0 0
  %2157 = vmatprep.subr.bf16.mxu0 0
  %2158 = vmatpush1.bf16.msra.mxu0 0
  %2159 = vmatprep.subr.bf16.mxu0 0
  %2160 = vmatpush1.bf16.msra.mxu0 0
  %2161 = vmatprep.subr.bf16.mxu0 0
  %2162 = vmatpush1.bf16.msra.mxu0 0
  %2163 = vmatprep.subr.bf16.mxu0 0
  %2164 = vmatpush1.bf16.msra.mxu0 0
  %2165 = vmatprep.subr.bf16.mxu0 0
  %2166 = vmatpush1.bf16.msra.mxu0 0
  %2167 = vmatprep.mubr.bf16.mxu0 0
  %2168 = vmatmul.mubr.bf16.gmra.mrb[0].mxu0 %v2085
  %v2169 = vpop.f32.mrb[0].mxu0
  %v2170 = vadd.f32 0.0, %v2169
  %v2171 = vpop.f32.mrb[0].mxu0
  %v2172 = vpop.f32.mrb[0].mxu0
  %v2173 = vadd.f32 0.0, %v2172
  %v2174 = vpop.f32.mrb[0].mxu0
  %2175 = vmatprep.mubr.bf16.mxu0 0
  %2176 = vmatmul.mubr.bf16.gmra.mrb[0].mxu0 %v2086
  %v2177 = vpop.f32.mrb[0].mxu0
  %v2178 = vadd.f32 0.0, %v2177
  %v2179 = vpop.f32.mrb[0].mxu0
  %v2180 = vpop.f32.mrb[0].mxu0
  %v2181 = vadd.f32 0.0, %v2180
  %v2182 = vpop.f32.mrb[0].mxu0
  %2183 = vmatprep.mubr.bf16.mxu0 0
  %2184 = vmatmul.mubr.bf16.gmra.mrb[0].mxu0 %v2087
  %v2185 = vpop.f32.mrb[0].mxu0
  %v2186 = vadd.f32 0.0, %v2185
  %v2187 = vpop.f32.mrb[0].mxu0
  %v2188 = vpop.f32.mrb[0].mxu0
  %v2189 = vadd.f32 0.0, %v2188
  %v2190 = vpop.f32.mrb[0].mxu0
  %2191 = vmatprep.mubr.bf16.mxu0 0
  %2192 = vmatmul.mubr.bf16.gmra.mrb[0].mxu0 %v2088
  %v2193 = vpop.f32.mrb[0].mxu0
  %v2194 = vadd.f32 0.0, %v2193
  %v2195 = vpop.f32.mrb[0].mxu0
  %v2196 = vpop.f32.mrb[0].mxu0
  %v2197 = vadd.f32 0.0, %v2196
  %v2198 = vpop.f32.mrb[0].mxu0
  %2199 = vmatprep.mubr.bf16.mxu0 0
  %2200 = vmatmul.mubr.bf16.gmra.mrb[0].mxu0 %v2089
  %v2201 = vpop.f32.mrb[0].mxu0
  %v2202 = vadd.f32 0.0, %v2201
  %v2203 = vpop.f32.mrb[0].mxu0
  %v2204 = vpop.f32.mrb[0].mxu0
  %v2205 = vadd.f32 0.0, %v2204
  %v2206 = vpop.f32.mrb[0].mxu0
  %2207 = vmatprep.mubr.bf16.mxu0 0
  %2208 = vmatmul.mubr.bf16.gmra.mrb[0].mxu0 %v2090
  %v2209 = vpop.f32.mrb[0].mxu0
  %v2210 = vadd.f32 0.0, %v2209
  %v2211 = vpop.f32.mrb[0].mxu0
  %v2212 = vpop.f32.mrb[0].mxu0
  %v2213 = vadd.f32 0.0, %v2212
  %v2214 = vpop.f32.mrb[0].mxu0
  %2215 = vmatprep.mubr.bf16.mxu0 0
  %2216 = vmatmul.mubr.bf16.gmra.mrb[0].mxu0 %v2091
  %v2217 = vpop.f32.mrb[0].mxu0
  %v2218 = vadd.f32 0.0, %v2217
  %v2219 = vpop.f32.mrb[0].mxu0
  %v2220 = vpop.f32.mrb[0].mxu0
  %v2221 = vadd.f32 0.0, %v2220
  %v2222 = vpop.f32.mrb[0].mxu0
  %2223 = vmatprep.mubr.bf16.mxu0 0
  %2224 = vmatmul.mubr.bf16.gmra.mrb[0].mxu0 %v2092
  %v2225 = vpop.f32.mrb[0].mxu0
  %v2226 = vadd.f32 0.0, %v2225
  %v2227 = vpop.f32.mrb[0].mxu0
  %v2228 = vpop.f32.mrb[0].mxu0
  %v2229 = vadd.f32 0.0, %v2228
  %v2230 = vpop.f32.mrb[0].mxu0
  %2231 = vmatprep.mubr.bf16.mxu0 0
  %2232 = vmatmul.mubr.bf16.gmra.mrb[0].mxu0 %v2093
  %v2233 = vpop.f32.mrb[0].mxu0
  %v2234 = vadd.f32 0.0, %v2233
  %v2235 = vpop.f32.mrb[0].mxu0
  %v2236 = vpop.f32.mrb[0].mxu0
  %v2237 = vadd.f32 0.0, %v2236
  %v2238 = vpop.f32.mrb[0].mxu0
  %2239 = vmatprep.mubr.bf16.mxu0 0
  %2240 = vmatmul.mubr.bf16.gmra.mrb[0].mxu0 %v2094
  %v2241 = vpop.f32.mrb[0].mxu0
  %v2242 = vadd.f32 0.0, %v2241
  %v2243 = vpop.f32.mrb[0].mxu0
  %v2244 = vpop.f32.mrb[0].mxu0
  %v2245 = vadd.f32 0.0, %v2244
  %v2246 = vpop.f32.mrb[0].mxu0
  %2247 = vmatprep.mubr.bf16.mxu0 0
  %2248 = vmatmul.mubr.bf16.gmra.mrb[0].mxu0 %v2095
  %v2249 = vpop.f32.mrb[0].mxu0
  %v2250 = vadd.f32 0.0, %v2249
  %v2251 = vpop.f32.mrb[0].mxu0
  %v2252 = vpop.f32.mrb[0].mxu0
  %v2253 = vadd.f32 0.0, %v2252
  %v2254 = vpop.f32.mrb[0].mxu0
  %2255 = vmatprep.mubr.bf16.mxu0 0
  %2256 = vmatmul.mubr.bf16.gmra.mrb[0].mxu0 %v2096
  %v2257 = vpop.f32.mrb[0].mxu0
  %v2258 = vadd.f32 0.0, %v2257
  %v2259 = vpop.f32.mrb[0].mxu0
  %v2260 = vpop.f32.mrb[0].mxu0
  %v2261 = vadd.f32 0.0, %v2260
  %v2262 = vpop.f32.mrb[0].mxu0
  %2263 = vmatprep.mubr.bf16.mxu0 0
  %2264 = vmatmul.mubr.bf16.gmra.mrb[0].mxu0 %v2097
  %v2265 = vpop.f32.mrb[0].mxu0
  %v2266 = vadd.f32 0.0, %v2265
  %v2267 = vpop.f32.mrb[0].mxu0
  %v2268 = vpop.f32.mrb[0].mxu0
  %v2269 = vadd.f32 0.0, %v2268
  %v2270 = vpop.f32.mrb[0].mxu0
  %2271 = vmatprep.mubr.bf16.mxu0 0
  %2272 = vmatmul.mubr.bf16.gmra.mrb[0].mxu0 %v2098
  %v2273 = vpop.f32.mrb[0].mxu0
  %v2274 = vadd.f32 0.0, %v2273
  %v2275 = vpop.f32.mrb[0].mxu0
  %v2276 = vpop.f32.mrb[0].mxu0
  %v2277 = vadd.f32 0.0, %v2276
  %v2278 = vpop.f32.mrb[0].mxu0
  %2279 = vmatprep.mubr.bf16.mxu0 0
  %2280 = vmatmul.mubr.bf16.gmra.mrb[0].mxu0 %v2099
  %v2281 = vpop.f32.mrb[0].mxu0
  %v2282 = vadd.f32 0.0, %v2281
  %v2283 = vpop.f32.mrb[0].mxu0
  %v2284 = vpop.f32.mrb[0].mxu0
  %v2285 = vadd.f32 0.0, %v2284
  %v2286 = vpop.f32.mrb[0].mxu0
  %2287 = vmatprep.mubr.bf16.mxu0 0
  %2288 = vmatmul.mubr.bf16.gmra.mrb[0].mxu0 %v2100
  %v2289 = vpop.f32.mrb[0].mxu0
  %v2290 = vadd.f32 0.0, %v2289
  %v2291 = vpop.f32.mrb[0].mxu0
  %v2292 = vpop.f32.mrb[0].mxu0
  %v2293 = vadd.f32 0.0, %v2292
  %v2294 = vpop.f32.mrb[0].mxu0
  %2295 = vmatprep.mubr.bf16.mxu0 0
  %2296 = vmatmul.mubr.bf16.gmra.mrb[0].mxu0 %v2101
  %v2297 = vpop.f32.mrb[0].mxu0
  %v2298 = vadd.f32 0.0, %v2297
  %v2299 = vpop.f32.mrb[0].mxu0
  %v2300 = vpop.f32.mrb[0].mxu0
  %v2301 = vadd.f32 0.0, %v2300
  %v2302 = vpop.f32.mrb[0].mxu0
  %2303 = vmatprep.mubr.bf16.mxu0 0
  %2304 = vmatmul.mubr.bf16.gmra.mrb[0].mxu0 %v2102
  %v2305 = vpop.f32.mrb[0].mxu0
  %v2306 = vadd.f32 0.0, %v2305
  %v2307 = vpop.f32.mrb[0].mxu0
  %v2308 = vpop.f32.mrb[0].mxu0
  %v2309 = vadd.f32 0.0, %v2308
  %v2310 = vpop.f32.mrb[0].mxu0
  %2311 = vmatprep.mubr.bf16.mxu0 0
  %2312 = vmatmul.mubr.bf16.gmra.mrb[0].mxu0 %v2103
  %v2313 = vpop.f32.mrb[0].mxu0
  %v2314 = vadd.f32 0.0, %v2313
  %v2315 = vpop.f32.mrb[0].mxu0
  %v2316 = vpop.f32.mrb[0].mxu0
  %v2317 = vadd.f32 0.0, %v2316
  %v2318 = vpop.f32.mrb[0].mxu0
  %2319 = vmatprep.mubr.bf16.mxu0 0
  %2320 = vmatmul.mubr.bf16.gmra.mrb[0].mxu0 %v2104
  %v2321 = vpop.f32.mrb[0].mxu0
  %v2322 = vadd.f32 0.0, %v2321
  %v2323 = vpop.f32.mrb[0].mxu0
  %v2324 = vpop.f32.mrb[0].mxu0
  %v2325 = vadd.f32 0.0, %v2324
  %v2326 = vpop.f32.mrb[0].mxu0
  %2327 = vmatprep.mubr.bf16.mxu0 0
  %2328 = vmatmul.mubr.bf16.gmra.mrb[0].mxu0 %v2105
  %v2329 = vpop.f32.mrb[0].mxu0
  %v2330 = vadd.f32 0.0, %v2329
  %v2331 = vpop.f32.mrb[0].mxu0
  %v2332 = vpop.f32.mrb[0].mxu0
  %v2333 = vadd.f32 0.0, %v2332
  %v2334 = vpop.f32.mrb[0].mxu0
  %2335 = vmatprep.mubr.bf16.mxu0 0
  %2336 = vmatmul.mubr.bf16.gmra.mrb[0].mxu0 %v2106
  %v2337 = vpop.f32.mrb[0].mxu0
  %v2338 = vadd.f32 0.0, %v2337
  %v2339 = vpop.f32.mrb[0].mxu0
  %v2340 = vpop.f32.mrb[0].mxu0
  %v2341 = vadd.f32 0.0, %v2340
  %v2342 = vpop.f32.mrb[0].mxu0
  %2343 = vmatprep.mubr.bf16.mxu0 0
  %2344 = vmatmul.mubr.bf16.gmra.mrb[0].mxu0 %v2107
  %v2345 = vpop.f32.mrb[0].mxu0
  %v2346 = vadd.f32 0.0, %v2345
  %v2347 = vpop.f32.mrb[0].mxu0
  %v2348 = vpop.f32.mrb[0].mxu0
  %v2349 = vadd.f32 0.0, %v2348
  %v2350 = vpop.f32.mrb[0].mxu0
  %2351 = vmatprep.mubr.bf16.mxu0 0
  %2352 = vmatmul.mubr.bf16.gmra.mrb[0].mxu0 %v2108
  %v2353 = vpop.f32.mrb[0].mxu0
  %v2354 = vadd.f32 0.0, %v2353
  %v2355 = vpop.f32.mrb[0].mxu0
  %v2356 = vpop.f32.mrb[0].mxu0
  %v2357 = vadd.f32 0.0, %v2356
  %v2358 = vpop.f32.mrb[0].mxu0
  %2359 = vmatprep.mubr.bf16.mxu0 0
  %2360 = vmatmul.mubr.bf16.gmra.mrb[0].mxu0 %v2109
  %v2361 = vpop.f32.mrb[0].mxu0
  %v2362 = vadd.f32 0.0, %v2361
  %v2363 = vpop.f32.mrb[0].mxu0
  %v2364 = vpop.f32.mrb[0].mxu0
  %v2365 = vpop.f32.mrb[0].mxu0
  %2366 = vdwg.mxu0
  %v2367 = vmul.f32 %v2170, %v531
  %v2368 = vmul.f32 %v2173, %v531
  %v2369 = vmul.f32 %v2178, %v531
  %v2370 = vmul.f32 %v2181, %v531
  %v2371 = vmul.f32 %v2186, %v531
  %v2372 = vmul.f32 %v2189, %v531
  %v2373 = vmul.f32 %v2194, %v531
  %v2374 = vmul.f32 %v2197, %v531
  %v2375 = vmul.f32 %v2202, %v531
  %v2376 = vmul.f32 %v2205, %v531
  %v2377 = vmul.f32 %v2210, %v531
  %v2378 = vmul.f32 %v2213, %v531
  %v2379 = vmul.f32 %v2218, %v531
  %v2380 = vmul.f32 %v2221, %v531
  %v2381 = vmul.f32 %v2226, %v531
  %v2382 = vmul.f32 %v2229, %v531
  %v2383 = vmul.f32 %v2234, %v531
  %v2384 = vmul.f32 %v2237, %v531
  %v2385 = vmul.f32 %v2242, %v531
  %v2386 = vmul.f32 %v2245, %v531
  %v2387 = vmul.f32 %v2250, %v531
  %v2388 = vmul.f32 %v2253, %v531
  %v2389 = vmul.f32 %v2258, %v531
  %v2390 = vmul.f32 %v2261, %v531
  %v2391 = vmul.f32 %v2266, %v531
  %v2392 = vmul.f32 %v2269, %v531
  %v2393 = vmul.f32 %v2274, %v531
  %v2394 = vmul.f32 %v2277, %v531
  %v2395 = vmul.f32 %v2282, %v531
  %v2396 = vmul.f32 %v2285, %v531
  %v2397 = vmul.f32 %v2290, %v531
  %v2398 = vmul.f32 %v2293, %v531
  %v2399 = vmul.f32 %v2298, %v531
  %v2400 = vmul.f32 %v2301, %v531
  %v2401 = vmul.f32 %v2306, %v531
  %v2402 = vmul.f32 %v2309, %v531
  %v2403 = vmul.f32 %v2314, %v531
  %v2404 = vmul.f32 %v2317, %v531
  %v2405 = vmul.f32 %v2322, %v531
  %v2406 = vmul.f32 %v2325, %v531
  %v2407 = vmul.f32 %v2330, %v531
  %v2408 = vmul.f32 %v2333, %v531
  %v2409 = vmul.f32 %v2338, %v531
  %v2410 = vmul.f32 %v2341, %v531
  %v2411 = vmul.f32 %v2346, %v531
  %v2412 = vmul.f32 %v2349, %v531
  %v2413 = vmul.f32 %v2354, %v531
  %v2414 = vmul.f32 %v2357, %v531
  %v2415 = vmul.f32 %v2362, %v531
  %v2416 = vadd.f32 %v2367, %v585
  %v2417 = vadd.f32 %v2368, %v585
  %v2418 = vadd.f32 %v2369, %v585
  %v2419 = vadd.f32 %v2370, %v585
  %v2420 = vadd.f32 %v2371, %v585
  %v2421 = vadd.f32 %v2372, %v585
  %v2422 = vadd.f32 %v2373, %v585
  %v2423 = vadd.f32 %v2374, %v585
  %v2424 = vadd.f32 %v2375, %v585
  %v2425 = vadd.f32 %v2376, %v585
  %v2426 = vadd.f32 %v2377, %v585
  %v2427 = vadd.f32 %v2378, %v585
  %v2428 = vadd.f32 %v2379, %v585
  %v2429 = vadd.f32 %v2380, %v585
  %v2430 = vadd.f32 %v2381, %v585
  %v2431 = vadd.f32 %v2382, %v585
  %v2432 = vadd.f32 %v2383, %v585
  %v2433 = vadd.f32 %v2384, %v585
  %v2434 = vadd.f32 %v2385, %v585
  %v2435 = vadd.f32 %v2386, %v585
  %v2436 = vadd.f32 %v2387, %v585
  %v2437 = vadd.f32 %v2388, %v585
  %v2438 = vadd.f32 %v2389, %v585
  %v2439 = vadd.f32 %v2390, %v585
  %v2440 = vadd.f32 %v2391, %v585
  %v2441 = vadd.f32 %v2392, %v585
  %v2442 = vadd.f32 %v2393, %v585
  %v2443 = vadd.f32 %v2394, %v585
  %v2444 = vadd.f32 %v2395, %v585
  %v2445 = vadd.f32 %v2396, %v585
  %v2446 = vadd.f32 %v2397, %v585
  %v2447 = vadd.f32 %v2398, %v585
  %v2448 = vadd.f32 %v2399, %v585
  %v2449 = vadd.f32 %v2400, %v585
  %v2450 = vadd.f32 %v2401, %v585
  %v2451 = vadd.f32 %v2402, %v585
  %v2452 = vadd.f32 %v2403, %v585
  %v2453 = vadd.f32 %v2404, %v585
  %v2454 = vadd.f32 %v2405, %v585
  %v2455 = vadd.f32 %v2406, %v585
  %v2456 = vadd.f32 %v2407, %v585
  %v2457 = vadd.f32 %v2408, %v585
  %v2458 = vadd.f32 %v2409, %v585
  %v2459 = vadd.f32 %v2410, %v585
  %v2460 = vadd.f32 %v2411, %v585
  %v2461 = vadd.f32 %v2412, %v585
  %v2462 = vadd.f32 %v2413, %v585
  %v2463 = vadd.f32 %v2414, %v585
  %v2464 = vadd.f32 %v2415, %v585
  %v2465 = vmax.f32 %v2416, 0.0
  %v2466 = vmax.f32 %v2417, 0.0
  %v2467 = vmax.f32 %v2418, 0.0
  %v2468 = vmax.f32 %v2419, 0.0
  %v2469 = vmax.f32 %v2420, 0.0
  %v2470 = vmax.f32 %v2421, 0.0
  %v2471 = vmax.f32 %v2422, 0.0
  %v2472 = vmax.f32 %v2423, 0.0
  %v2473 = vmax.f32 %v2424, 0.0
  %v2474 = vmax.f32 %v2425, 0.0
  %v2475 = vmax.f32 %v2426, 0.0
  %v2476 = vmax.f32 %v2427, 0.0
  %v2477 = vmax.f32 %v2428, 0.0
  %v2478 = vmax.f32 %v2429, 0.0
  %v2479 = vmax.f32 %v2430, 0.0
  %v2480 = vmax.f32 %v2431, 0.0
  %v2481 = vmax.f32 %v2432, 0.0
  %v2482 = vmax.f32 %v2433, 0.0
  %v2483 = vmax.f32 %v2434, 0.0
  %v2484 = vmax.f32 %v2435, 0.0
  %v2485 = vmax.f32 %v2436, 0.0
  %v2486 = vmax.f32 %v2437, 0.0
  %v2487 = vmax.f32 %v2438, 0.0
  %v2488 = vmax.f32 %v2439, 0.0
  %v2489 = vmax.f32 %v2440, 0.0
  %v2490 = vmax.f32 %v2441, 0.0
  %v2491 = vmax.f32 %v2442, 0.0
  %v2492 = vmax.f32 %v2443, 0.0
  %v2493 = vmax.f32 %v2444, 0.0
  %v2494 = vmax.f32 %v2445, 0.0
  %v2495 = vmax.f32 %v2446, 0.0
  %v2496 = vmax.f32 %v2447, 0.0
  %v2497 = vmax.f32 %v2448, 0.0
  %v2498 = vmax.f32 %v2449, 0.0
  %v2499 = vmax.f32 %v2450, 0.0
  %v2500 = vmax.f32 %v2451, 0.0
  %v2501 = vmax.f32 %v2452, 0.0
  %v2502 = vmax.f32 %v2453, 0.0
  %v2503 = vmax.f32 %v2454, 0.0
  %v2504 = vmax.f32 %v2455, 0.0
  %v2505 = vmax.f32 %v2456, 0.0
  %v2506 = vmax.f32 %v2457, 0.0
  %v2507 = vmax.f32 %v2458, 0.0
  %v2508 = vmax.f32 %v2459, 0.0
  %v2509 = vmax.f32 %v2460, 0.0
  %v2510 = vmax.f32 %v2461, 0.0
  %v2511 = vmax.f32 %v2462, 0.0
  %v2512 = vmax.f32 %v2463, 0.0
  %v2513 = vmax.f32 %v2464, 0.0
  %v2514 = vmax.f32 %v1888, %v2465
  %v2515 = vmax.f32 %v1889, %v2466
  %v2516 = vmax.f32 %v1890, %v2467
  %v2517 = vmax.f32 %v1891, %v2468
  %v2518 = vmax.f32 %v1892, %v2469
  %v2519 = vmax.f32 %v1893, %v2470
  %v2520 = vmax.f32 %v1894, %v2471
  %v2521 = vmax.f32 %v1895, %v2472
  %v2522 = vmax.f32 %v1896, %v2473
  %v2523 = vmax.f32 %v1897, %v2474
  %v2524 = vmax.f32 %v1898, %v2475
  %v2525 = vmax.f32 %v1899, %v2476
  %v2526 = vmax.f32 %v1900, %v2477
  %v2527 = vmax.f32 %v1901, %v2478
  %v2528 = vmax.f32 %v1902, %v2479
  %v2529 = vmax.f32 %v1903, %v2480
  %v2530 = vmax.f32 %v1904, %v2481
  %v2531 = vmax.f32 %v1905, %v2482
  %v2532 = vmax.f32 %v1906, %v2483
  %v2533 = vmax.f32 %v1907, %v2484
  %v2534 = vmax.f32 %v1908, %v2485
  %v2535 = vmax.f32 %v1909, %v2486
  %v2536 = vmax.f32 %v1910, %v2487
  %v2537 = vmax.f32 %v1911, %v2488
  %v2538 = vmax.f32 %v1912, %v2489
  %v2539 = vmax.f32 %v1913, %v2490
  %v2540 = vmax.f32 %v1914, %v2491
  %v2541 = vmax.f32 %v1915, %v2492
  %v2542 = vmax.f32 %v1916, %v2493
  %v2543 = vmax.f32 %v1917, %v2494
  %v2544 = vmax.f32 %v1918, %v2495
  %v2545 = vmax.f32 %v1919, %v2496
  %v2546 = vmax.f32 %v1920, %v2497
  %v2547 = vmax.f32 %v1921, %v2498
  %v2548 = vmax.f32 %v1922, %v2499
  %v2549 = vmax.f32 %v1923, %v2500
  %v2550 = vmax.f32 %v1924, %v2501
  %v2551 = vmax.f32 %v1925, %v2502
  %v2552 = vmax.f32 %v1926, %v2503
  %v2553 = vmax.f32 %v1927, %v2504
  %v2554 = vmax.f32 %v1928, %v2505
  %v2555 = vmax.f32 %v1929, %v2506
  %v2556 = vmax.f32 %v1930, %v2507
  %v2557 = vmax.f32 %v1931, %v2508
  %v2558 = vmax.f32 %v1932, %v2509
  %v2559 = vmax.f32 %v1933, %v2510
  %v2560 = vmax.f32 %v1934, %v2511
  %v2561 = vmax.f32 %v1935, %v2512
  %v2562 = vmax.f32 %v1936, %v2513
  %v2563 = vpack.c.bf16 %v2515, %v2514
  %v2564 = vpack.c.bf16 %v2517, %v2516
  %v2565 = vpack.c.bf16 %v2519, %v2518
  %v2566 = vpack.c.bf16 %v2521, %v2520
  %v2567 = vpack.c.bf16 %v2523, %v2522
  %v2568 = vpack.c.bf16 %v2525, %v2524
  %v2569 = vpack.c.bf16 %v2527, %v2526
  %v2570 = vpack.c.bf16 %v2529, %v2528
  %v2571 = vpack.c.bf16 %v2531, %v2530
  %v2572 = vpack.c.bf16 %v2533, %v2532
  %v2573 = vpack.c.bf16 %v2535, %v2534
  %v2574 = vpack.c.bf16 %v2537, %v2536
  %v2575 = vpack.c.bf16 %v2539, %v2538
  %v2576 = vpack.c.bf16 %v2541, %v2540
  %v2577 = vpack.c.bf16 %v2543, %v2542
  %v2578 = vpack.c.bf16 %v2545, %v2544
  %v2579 = vpack.c.bf16 %v2547, %v2546
  %v2580 = vpack.c.bf16 %v2549, %v2548
  %v2581 = vpack.c.bf16 %v2551, %v2550
  %v2582 = vpack.c.bf16 %v2553, %v2552
  %v2583 = vpack.c.bf16 %v2555, %v2554
  %v2584 = vpack.c.bf16 %v2557, %v2556
  %v2585 = vpack.c.bf16 %v2559, %v2558
  %v2586 = vpack.c.bf16 %v2561, %v2560
  %v2587 = vpack.c.bf16 %v2562, %v2562
  %v2613 = vunpack.c.l.b16 %v2563
  %v2614 = vunpack.c.h.b16 %v2563
  %v2615 = vunpack.c.l.b16 %v2564
  %v2616 = vunpack.c.h.b16 %v2564
  %v2617 = vunpack.c.l.b16 %v2565
  %v2618 = vunpack.c.h.b16 %v2565
  %v2619 = vunpack.c.l.b16 %v2566
  %v2620 = vunpack.c.h.b16 %v2566
  %v2621 = vunpack.c.l.b16 %v2567
  %v2622 = vunpack.c.h.b16 %v2567
  %v2623 = vunpack.c.l.b16 %v2568
  %v2624 = vunpack.c.h.b16 %v2568
  %v2625 = vunpack.c.l.b16 %v2569
  %v2626 = vunpack.c.h.b16 %v2569
  %v2627 = vunpack.c.l.b16 %v2570
  %v2628 = vunpack.c.h.b16 %v2570
  %v2629 = vunpack.c.l.b16 %v2571
  %v2630 = vunpack.c.h.b16 %v2571
  %v2631 = vunpack.c.l.b16 %v2572
  %v2632 = vunpack.c.h.b16 %v2572
  %v2633 = vunpack.c.l.b16 %v2573
  %v2634 = vunpack.c.h.b16 %v2573
  %v2635 = vunpack.c.l.b16 %v2574
  %v2636 = vunpack.c.h.b16 %v2574
  %v2637 = vunpack.c.l.b16 %v2575
  %v2638 = vunpack.c.h.b16 %v2575
  %v2639 = vunpack.c.l.b16 %v2576
  %v2640 = vunpack.c.h.b16 %v2576
  %v2641 = vunpack.c.l.b16 %v2577
  %v2642 = vunpack.c.h.b16 %v2577
  %v2643 = vunpack.c.l.b16 %v2578
  %v2644 = vunpack.c.h.b16 %v2578
  %v2645 = vunpack.c.l.b16 %v2579
  %v2646 = vunpack.c.h.b16 %v2579
  %v2647 = vunpack.c.l.b16 %v2580
  %v2648 = vunpack.c.h.b16 %v2580
  %v2649 = vunpack.c.l.b16 %v2581
  %v2650 = vunpack.c.h.b16 %v2581
  %v2651 = vunpack.c.l.b16 %v2582
  %v2652 = vunpack.c.h.b16 %v2582
  %v2653 = vunpack.c.l.b16 %v2583
  %v2654 = vunpack.c.h.b16 %v2583
  %v2655 = vunpack.c.l.b16 %v2584
  %v2656 = vunpack.c.h.b16 %v2584
  %v2657 = vunpack.c.l.b16 %v2585
  %v2658 = vunpack.c.h.b16 %v2585
  %v2659 = vunpack.c.l.b16 %v2586
  %v2660 = vunpack.c.h.b16 %v2586
  %v2661 = vunpack.c.l.b16 %v2587
  %v2662 = vpack.c.b16 %v2613, %v2613
  %v2663 = vpack.c.b16 %v2614, %v2614
  %v2664 = vpack.c.b16 %v2615, %v2615
  %v2665 = vpack.c.b16 %v2616, %v2616
  %v2666 = vpack.c.b16 %v2617, %v2617
  %v2667 = vpack.c.b16 %v2618, %v2618
  %v2668 = vpack.c.b16 %v2619, %v2619
  %v2669 = vpack.c.b16 %v2620, %v2620
  %v2670 = vpack.c.b16 %v2621, %v2621
  %v2671 = vpack.c.b16 %v2622, %v2622
  %v2672 = vpack.c.b16 %v2623, %v2623
  %v2673 = vpack.c.b16 %v2624, %v2624
  %v2674 = vpack.c.b16 %v2625, %v2625
  %v2675 = vpack.c.b16 %v2626, %v2626
  %v2676 = vpack.c.b16 %v2627, %v2627
  %v2677 = vpack.c.b16 %v2628, %v2628
  %v2678 = vpack.c.b16 %v2629, %v2629
  %v2679 = vpack.c.b16 %v2630, %v2630
  %v2680 = vpack.c.b16 %v2631, %v2631
  %v2681 = vpack.c.b16 %v2632, %v2632
  %v2682 = vpack.c.b16 %v2633, %v2633
  %v2683 = vpack.c.b16 %v2634, %v2634
  %v2684 = vpack.c.b16 %v2635, %v2635
  %v2685 = vpack.c.b16 %v2636, %v2636
  %v2686 = vpack.c.b16 %v2637, %v2637
  %v2687 = vpack.c.b16 %v2638, %v2638
  %v2688 = vpack.c.b16 %v2639, %v2639
  %v2689 = vpack.c.b16 %v2640, %v2640
  %v2690 = vpack.c.b16 %v2641, %v2641
  %v2691 = vpack.c.b16 %v2642, %v2642
  %v2692 = vpack.c.b16 %v2643, %v2643
  %v2693 = vpack.c.b16 %v2644, %v2644
  %v2694 = vpack.c.b16 %v2645, %v2645
  %v2695 = vpack.c.b16 %v2646, %v2646
  %v2696 = vpack.c.b16 %v2647, %v2647
  %v2697 = vpack.c.b16 %v2648, %v2648
  %v2698 = vpack.c.b16 %v2649, %v2649
  %v2699 = vpack.c.b16 %v2650, %v2650
  %v2700 = vpack.c.b16 %v2651, %v2651
  %v2701 = vpack.c.b16 %v2652, %v2652
  %v2702 = vpack.c.b16 %v2653, %v2653
  %v2703 = vpack.c.b16 %v2654, %v2654
  %v2704 = vpack.c.b16 %v2655, %v2655
  %v2705 = vpack.c.b16 %v2656, %v2656
  %v2706 = vpack.c.b16 %v2657, %v2657
  %v2707 = vpack.c.b16 %v2658, %v2658
  %v2708 = vpack.c.b16 %v2659, %v2659
  %v2709 = vpack.c.b16 %v2660, %v2660
  %v2710 = vpack.c.b16 %v2661, %v2661
  %2760 = vst [vmem:[%s5] sm:$0xf] %v2662
  %2761 = vst [vmem:[%s5 + $0x4] sm:$0xf] %v2663
  %2762 = vst [vmem:[%s5 + $0x8] sm:$0xf] %v2664
  %2763 = vst [vmem:[%s5 + $0xc] sm:$0xf] %v2665
  %2764 = vst [vmem:[%s5 + $0x10] sm:$0xf] %v2666
  %2765 = vst [vmem:[%s5 + $0x14] sm:$0xf] %v2667
  %2766 = vst [vmem:[%s5 + $0x18] sm:$0xf] %v2668
  %2767 = vst [vmem:[%s5 + $0x1c] sm:$0xf] %v2669
  %2768 = vst [vmem:[%s5 + $0x20] sm:$0xf] %v2670
  %2769 = vst [vmem:[%s5 + $0x24] sm:$0xf] %v2671
  %2770 = vst [vmem:[%s5 + $0x28] sm:$0xf] %v2672
  %2771 = vst [vmem:[%s5 + $0x2c] sm:$0xf] %v2673
  %2772 = vst [vmem:[%s5 + $0x30] sm:$0xf] %v2674
  %2773 = vst [vmem:[%s5 + $0x34] sm:$0xf] %v2675
  %2774 = vst [vmem:[%s5 + $0x38] sm:$0xf] %v2676
  %2775 = vst [vmem:[%s5 + $0x3c] sm:$0xf] %v2677
  %2776 = vst [vmem:[%s5 + $0x40] sm:$0xf] %v2678
  %2777 = vst [vmem:[%s5 + $0x44] sm:$0xf] %v2679
  %2778 = vst [vmem:[%s5 + $0x48] sm:$0xf] %v2680
  %2779 = vst [vmem:[%s5 + $0x4c] sm:$0xf] %v2681
  %2780 = vst [vmem:[%s5 + $0x50] sm:$0xf] %v2682
  %2781 = vst [vmem:[%s5 + $0x54] sm:$0xf] %v2683
  %2782 = vst [vmem:[%s5 + $0x58] sm:$0xf] %v2684
  %2783 = vst [vmem:[%s5 + $0x5c] sm:$0xf] %v2685
  %2784 = vst [vmem:[%s5 + $0x60] sm:$0xf] %v2686
  %2785 = vst [vmem:[%s5 + $0x64] sm:$0xf] %v2687
  %2786 = vst [vmem:[%s5 + $0x68] sm:$0xf] %v2688
  %2787 = vst [vmem:[%s5 + $0x6c] sm:$0xf] %v2689
  %2788 = vst [vmem:[%s5 + $0x70] sm:$0xf] %v2690
  %2789 = vst [vmem:[%s5 + $0x74] sm:$0xf] %v2691
  %2790 = vst [vmem:[%s5 + $0x78] sm:$0xf] %v2692
  %2791 = vst [vmem:[%s5 + $0x7c] sm:$0xf] %v2693
  %2792 = vst [vmem:[%s5 + $0x80] sm:$0xf] %v2694
  %2793 = vst [vmem:[%s5 + $0x84] sm:$0xf] %v2695
  %2794 = vst [vmem:[%s5 + $0x88] sm:$0xf] %v2696
  %2795 = vst [vmem:[%s5 + $0x8c] sm:$0xf] %v2697
  %2796 = vst [vmem:[%s5 + $0x90] sm:$0xf] %v2698
  %2797 = vst [vmem:[%s5 + $0x94] sm:$0xf] %v2699
  %2798 = vst [vmem:[%s5 + $0x98] sm:$0xf] %v2700
  %2799 = vst [vmem:[%s5 + $0x9c] sm:$0xf] %v2701
  %2800 = vst [vmem:[%s5 + $0xa0] sm:$0xf] %v2702
  %2801 = vst [vmem:[%s5 + $0xa4] sm:$0xf] %v2703
  %2802 = vst [vmem:[%s5 + $0xa8] sm:$0xf] %v2704
  %2803 = vst [vmem:[%s5 + $0xac] sm:$0xf] %v2705
  %2804 = vst [vmem:[%s5 + $0xb0] sm:$0xf] %v2706
  %2805 = vst [vmem:[%s5 + $0xb4] sm:$0xf] %v2707
  %2806 = vst [vmem:[%s5 + $0xb8] sm:$0xf] %v2708
  %2807 = vst [vmem:[%s5 + $0xbc] sm:$0xf] %v2709
  %2808 = vst [vmem:[%s5 + $0xc0] sm:$0xf] %v2710
  // Predicated region
  $region22: #{lenet5_bn_forward.6} parent=0 // pred_check
    _
  $region23: #{lenet5_bn_forward.6} parent=0 // pred_check_branch
    %2810 = sbr.rel (0) target = $region25
  $region24: #{lenet5_bn_forward.6} parent=0 // pred_region
    _
  $region25: #{lenet5_bn_forward.6} parent=0 // pred_fallthru
    _
  // Predicated region
  $region26: #{lenet5_bn_forward.6} parent=0 // pred_check
    _
  $region27: #{lenet5_bn_forward.6} parent=0 // pred_check_branch
    %2812 = sbr.rel (0) target = $region29
  $region28: #{lenet5_bn_forward.6} parent=0 // pred_region
    _
  $region29: #{lenet5_bn_forward.6} parent=0 // pred_fallthru
    _

// kernel: lenet5_bn_forward.7
$region0: #{lenet5_bn_forward.7}
  #allocation0 [shape = 'u32[]', space=smem, size = 0x4, offset = 0x4, fixed_abs, tag = 'smem constant byte address 0x4 - core index']
  #allocation1 [shape = 'u32[144,128]{1,0:T(1,128)}', space=vmem, size = 0x12000, scoped, tag = 'internal scratch']
  %s0 = inlined_call_operand.vmem [shape: bf16[4,56,256], index: 0, kind: input, shape index: {}]
  %s1 = inlined_call_operand.vmem [shape: bf16[256,128], index: 1, kind: input, shape index: {}]
  %s2 = inlined_call_operand.vmem [shape: f32[8,128], index: 2, kind: output, shape index: {}]
  %s3 = sld [smem:[#allocation0]]
  $region22: #{lenet5_bn_forward.7} parent=0
    _
  %s5 = ssub.s32 1, %s3
  %s6 = scalar_select 0, %s5, %s3
  // Predicated region
  $region2: #{lenet5_bn_forward.7} parent=0 // pred_check
    _
  $region3: #{lenet5_bn_forward.7} parent=0 // pred_check_branch
    %8 = sbr.rel (0) target = $region5
  $region4: #{lenet5_bn_forward.7} parent=0 // pred_region
    _
  $region5: #{lenet5_bn_forward.7} parent=0 // pred_fallthru
    _
  // Predicated region
  $region6: #{lenet5_bn_forward.7} parent=0 // pred_check
    _
  $region7: #{lenet5_bn_forward.7} parent=0 // pred_check_branch
    %10 = sbr.rel (0) target = $region9
  $region8: #{lenet5_bn_forward.7} parent=0 // pred_region
    _
  $region9: #{lenet5_bn_forward.7} parent=0 // pred_fallthru
    _
  %p12 = scmp.eq.s32.totalorder 0, 0
  // Predicated region
  $region10: #{lenet5_bn_forward.7} parent=0 // pred_check
    %p13 = pneg %p12
  $region11: #{lenet5_bn_forward.7} parent=0 // pred_check_branch
    %15 = sbr.rel (%p13) target = $region13
  $region12: #{lenet5_bn_forward.7} parent=0 // pred_region
    %16 = vst [vmem:[%s2] sm:$0xff] 0.0
  $region13: #{lenet5_bn_forward.7} parent=0 // pred_fallthru
    _
  %v17 = vld [vmem:[%s1] sm:$0xf]
  %v18 = vld [vmem:[%s1 + $0x4] sm:$0xf]
  %v19 = vld [vmem:[%s1 + $0x8] sm:$0xf]
  %v20 = vld [vmem:[%s1 + $0xc] sm:$0xf]
  %v21 = vld [vmem:[%s1 + $0x10] sm:$0xf]
  %v22 = vld [vmem:[%s1 + $0x14] sm:$0xf]
  %v23 = vld [vmem:[%s1 + $0x18] sm:$0xf]
  %v24 = vld [vmem:[%s1 + $0x1c] sm:$0xf]
  %v25 = vld [vmem:[%s1 + $0x20] sm:$0xf]
  %v26 = vld [vmem:[%s1 + $0x24] sm:$0xf]
  %v27 = vld [vmem:[%s1 + $0x28] sm:$0xf]
  %v28 = vld [vmem:[%s1 + $0x2c] sm:$0xf]
  %v29 = vld [vmem:[%s1 + $0x30] sm:$0xf]
  %v30 = vld [vmem:[%s1 + $0x34] sm:$0xf]
  %v31 = vld [vmem:[%s1 + $0x38] sm:$0xf]
  %v32 = vld [vmem:[%s1 + $0x3c] sm:$0xf]
  %v33 = vld [vmem:[%s1 + $0x40] sm:$0xf]
  %v34 = vld [vmem:[%s1 + $0x44] sm:$0xf]
  %v35 = vld [vmem:[%s1 + $0x48] sm:$0xf]
  %v36 = vld [vmem:[%s1 + $0x4c] sm:$0xf]
  %v37 = vld [vmem:[%s1 + $0x50] sm:$0xf]
  %v38 = vld [vmem:[%s1 + $0x54] sm:$0xf]
  %v39 = vld [vmem:[%s1 + $0x58] sm:$0xf]
  %v40 = vld [vmem:[%s1 + $0x5c] sm:$0xf]
  %v41 = vld [vmem:[%s1 + $0x60] sm:$0xf]
  %v42 = vld [vmem:[%s1 + $0x64] sm:$0xf]
  %v43 = vld [vmem:[%s1 + $0x68] sm:$0xf]
  %v44 = vld [vmem:[%s1 + $0x6c] sm:$0xf]
  %v45 = vld [vmem:[%s1 + $0x70] sm:$0xf]
  %v46 = vld [vmem:[%s1 + $0x74] sm:$0xf]
  %v47 = vld [vmem:[%s1 + $0x78] sm:$0xf]
  %v48 = vld [vmem:[%s1 + $0x7c] sm:$0xf]
  %v49 = vld [vmem:[%s0] sm:$0xff]
  %v50 = vld [vmem:[%s0 + $0x8] sm:$0xff]
  %v51 = vld [vmem:[%s0 + $0x10] sm:$0xff]
  %v52 = vld [vmem:[%s0 + $0x18] sm:$0xff]
  %v53 = vld [vmem:[%s0 + $0x20] sm:$0xff]
  %v54 = vld [vmem:[%s0 + $0x28] sm:$0xff]
  %v55 = vld [vmem:[%s0 + $0x30] sm:$0xff]
  %v63 = vunpack.c.l.b16 %v49
  %v64 = vunpack.c.h.b16 %v49
  %v65 = vunpack.c.l.b16 %v50
  %v66 = vunpack.c.h.b16 %v50
  %v67 = vunpack.c.l.b16 %v51
  %v68 = vunpack.c.h.b16 %v51
  %v69 = vunpack.c.l.b16 %v52
  %v70 = vunpack.c.h.b16 %v52
  %v71 = vunpack.c.l.b16 %v53
  %v72 = vunpack.c.h.b16 %v53
  %v73 = vunpack.c.l.b16 %v54
  %v74 = vunpack.c.h.b16 %v54
  %v75 = vunpack.c.l.b16 %v55
  %v76 = vunpack.c.h.b16 %v55
  %v77 = vpack.c.b16 %v65, %v63
  %v78 = vpack.c.b16 %v66, %v64
  %v79 = vpack.c.b16 %v69, %v67
  %v80 = vpack.c.b16 %v70, %v68
  %v81 = vpack.c.b16 %v73, %v71
  %v82 = vpack.c.b16 %v74, %v72
  %v83 = vpack.c.b16 %v75, %v75
  %v84 = vpack.c.b16 %v76, %v76
  %v125 = vunpack.c.l.b16 %v17
  %v126 = vunpack.c.l.b16 %v18
  %v127 = vunpack.c.l.b16 %v19
  %v128 = vunpack.c.l.b16 %v20
  %v129 = vunpack.c.l.b16 %v21
  %v130 = vunpack.c.l.b16 %v22
  %v131 = vunpack.c.l.b16 %v23
  %v132 = vunpack.c.l.b16 %v24
  %v133 = vunpack.c.l.b16 %v25
  %v134 = vunpack.c.l.b16 %v26
  %v135 = vunpack.c.l.b16 %v27
  %v136 = vunpack.c.l.b16 %v28
  %v137 = vunpack.c.l.b16 %v29
  %v138 = vunpack.c.l.b16 %v30
  %v139 = vunpack.c.l.b16 %v31
  %v140 = vunpack.c.l.b16 %v32
  %v141 = vunpack.c.l.b16 %v33
  %v142 = vunpack.c.l.b16 %v34
  %v143 = vunpack.c.l.b16 %v35
  %v144 = vunpack.c.l.b16 %v36
  %v145 = vunpack.c.l.b16 %v37
  %v146 = vunpack.c.l.b16 %v38
  %v147 = vunpack.c.l.b16 %v39
  %v148 = vunpack.c.l.b16 %v40
  %v149 = vunpack.c.l.b16 %v41
  %v150 = vunpack.c.l.b16 %v42
  %v151 = vunpack.c.l.b16 %v43
  %v152 = vunpack.c.l.b16 %v44
  %v153 = vunpack.c.l.b16 %v45
  %v154 = vunpack.c.l.b16 %v46
  %v155 = vunpack.c.l.b16 %v47
  %v156 = vunpack.c.l.b16 %v48
  %v157 = vpack.c.b16 %v126, %v125
  %v158 = vpack.c.b16 %v128, %v127
  %v159 = vpack.c.b16 %v130, %v129
  %v160 = vpack.c.b16 %v132, %v131
  %v161 = vpack.c.b16 %v134, %v133
  %v162 = vpack.c.b16 %v136, %v135
  %v163 = vpack.c.b16 %v138, %v137
  %v164 = vpack.c.b16 %v140, %v139
  %v165 = vpack.c.b16 %v142, %v141
  %v166 = vpack.c.b16 %v144, %v143
  %v167 = vpack.c.b16 %v146, %v145
  %v168 = vpack.c.b16 %v148, %v147
  %v169 = vpack.c.b16 %v150, %v149
  %v170 = vpack.c.b16 %v152, %v151
  %v171 = vpack.c.b16 %v154, %v153
  %v172 = vpack.c.b16 %v156, %v155
  %189 = vmatprep.subr.bf16.mxu0 0
  %190 = vmatpush1.bf16.msra.mxu0 %v157
  %191 = vmatprep.subr.bf16.mxu0 0
  %192 = vmatpush1.bf16.msra.mxu0 %v158
  %193 = vmatprep.subr.bf16.mxu0 0
  %194 = vmatpush1.bf16.msra.mxu0 %v159
  %195 = vmatprep.subr.bf16.mxu0 0
  %196 = vmatpush1.bf16.msra.mxu0 %v160
  %197 = vmatprep.subr.bf16.mxu0 0
  %198 = vmatpush1.bf16.msra.mxu0 %v161
  %199 = vmatprep.subr.bf16.mxu0 0
  %200 = vmatpush1.bf16.msra.mxu0 %v162
  %201 = vmatprep.subr.bf16.mxu0 0
  %202 = vmatpush1.bf16.msra.mxu0 %v163
  %203 = vmatprep.subr.bf16.mxu0 0
  %204 = vmatpush1.bf16.msra.mxu0 %v164
  %205 = vmatprep.subr.bf16.mxu0 0
  %206 = vmatpush1.bf16.msra.mxu0 %v165
  %207 = vmatprep.subr.bf16.mxu0 0
  %208 = vmatpush1.bf16.msra.mxu0 %v166
  %209 = vmatprep.subr.bf16.mxu0 0
  %210 = vmatpush1.bf16.msra.mxu0 %v167
  %211 = vmatprep.subr.bf16.mxu0 0
  %212 = vmatpush1.bf16.msra.mxu0 %v168
  %213 = vmatprep.subr.bf16.mxu0 0
  %214 = vmatpush1.bf16.msra.mxu0 %v169
  %215 = vmatprep.subr.bf16.mxu0 0
  %216 = vmatpush1.bf16.msra.mxu0 %v170
  %217 = vmatprep.subr.bf16.mxu0 0
  %218 = vmatpush1.bf16.msra.mxu0 %v171
  %219 = vmatprep.subr.bf16.mxu0 0
  %220 = vmatpush1.bf16.msra.mxu0 %v172
  %221 = vmatprep.mubr.bf16.mxu0 %v78
  %222 = vmatmul.mubr.bf16.gmra.mrb[0].mxu0 %v77
  %v223 = vpop.f32.mrb[0].mxu0
  %v224 = vadd.f32 0.0, %v223
  %v225 = vpop.f32.mrb[0].mxu0
  %v226 = vpop.f32.mrb[0].mxu0
  %v227 = vadd.f32 0.0, %v226
  %v228 = vpop.f32.mrb[0].mxu0
  %229 = vmatprep.mubr.bf16.mxu0 %v80
  %230 = vmatmul.mubr.bf16.gmra.mrb[0].mxu0 %v79
  %v231 = vpop.f32.mrb[0].mxu0
  %v232 = vadd.f32 0.0, %v231
  %v233 = vpop.f32.mrb[0].mxu0
  %v234 = vpop.f32.mrb[0].mxu0
  %v235 = vadd.f32 0.0, %v234
  %v236 = vpop.f32.mrb[0].mxu0
  %237 = vmatprep.mubr.bf16.mxu0 %v82
  %238 = vmatmul.mubr.bf16.gmra.mrb[0].mxu0 %v81
  %v239 = vpop.f32.mrb[0].mxu0
  %v240 = vadd.f32 0.0, %v239
  %v241 = vpop.f32.mrb[0].mxu0
  %v242 = vpop.f32.mrb[0].mxu0
  %v243 = vadd.f32 0.0, %v242
  %v244 = vpop.f32.mrb[0].mxu0
  %245 = vmatprep.mubr.bf16.mxu0 %v84
  %246 = vmatmul.mubr.bf16.gmra.mrb[0].mxu0 %v83
  %v247 = vpop.f32.mrb[0].mxu0
  %v248 = vadd.f32 0.0, %v247
  %v249 = vpop.f32.mrb[0].mxu0
  %v250 = vpop.f32.mrb[0].mxu0
  %v251 = vpop.f32.mrb[0].mxu0
  %252 = vdwg.mxu0
  %v253 = vadd.f32 %v224, %v227
  %v254 = vadd.f32 %v253, %v232
  %v255 = vadd.f32 %v254, %v235
  %v256 = vadd.f32 %v255, %v240
  %v257 = vadd.f32 %v256, %v243
  %v258 = vadd.f32 %v257, %v248
  %v259 = vrot.slane %v258, 4
  %v260 = vadd.f32 %v258, %v259
  %v261 = vrot.slane %v260, 2
  %v262 = vadd.f32 %v260, %v261
  %v263 = vrot.slane %v262, 1
  %v264 = vadd.f32 %v262, %v263
  %v265 = vadd.f32 %v264, 0.0
  %v266 = vmul.f32 %v224, %v224
  %v267 = vmul.f32 %v227, %v227
  %v268 = vmul.f32 %v232, %v232
  %v269 = vmul.f32 %v235, %v235
  %v270 = vmul.f32 %v240, %v240
  %v271 = vmul.f32 %v243, %v243
  %v272 = vmul.f32 %v248, %v248
  %v273 = vadd.f32 %v266, %v267
  %v274 = vadd.f32 %v273, %v268
  %v275 = vadd.f32 %v274, %v269
  %v276 = vadd.f32 %v275, %v270
  %v277 = vadd.f32 %v276, %v271
  %v278 = vadd.f32 %v277, %v272
  %v279 = vrot.slane %v278, 4
  %v280 = vadd.f32 %v278, %v279
  %v281 = vrot.slane %v280, 2
  %v282 = vadd.f32 %v280, %v281
  %v283 = vrot.slane %v282, 1
  %v284 = vadd.f32 %v282, %v283
  %v285 = vadd.f32 %v284, 0.0
  %s286 = scalar_lea.vmem %s0, 56
  %v287 = vld [vmem:[%s286] sm:$0xff]
  %v288 = vld [vmem:[%s286 + $0x8] sm:$0xff]
  %v289 = vld [vmem:[%s286 + $0x10] sm:$0xff]
  %v290 = vld [vmem:[%s286 + $0x18] sm:$0xff]
  %v291 = vld [vmem:[%s286 + $0x20] sm:$0xff]
  %v292 = vld [vmem:[%s286 + $0x28] sm:$0xff]
  %v293 = vld [vmem:[%s286 + $0x30] sm:$0xff]
  %v301 = vunpack.c.l.b16 %v287
  %v302 = vunpack.c.h.b16 %v287
  %v303 = vunpack.c.l.b16 %v288
  %v304 = vunpack.c.h.b16 %v288
  %v305 = vunpack.c.l.b16 %v289
  %v306 = vunpack.c.h.b16 %v289
  %v307 = vunpack.c.l.b16 %v290
  %v308 = vunpack.c.h.b16 %v290
  %v309 = vunpack.c.l.b16 %v291
  %v310 = vunpack.c.h.b16 %v291
  %v311 = vunpack.c.l.b16 %v292
  %v312 = vunpack.c.h.b16 %v292
  %v313 = vunpack.c.l.b16 %v293
  %v314 = vunpack.c.h.b16 %v293
  %v315 = vpack.c.b16 %v303, %v301
  %v316 = vpack.c.b16 %v304, %v302
  %v317 = vpack.c.b16 %v307, %v305
  %v318 = vpack.c.b16 %v308, %v306
  %v319 = vpack.c.b16 %v311, %v309
  %v320 = vpack.c.b16 %v312, %v310
  %v321 = vpack.c.b16 %v313, %v313
  %v322 = vpack.c.b16 %v314, %v314
  %331 = vmatprep.subr.bf16.mxu0 0
  %332 = vmatpush1.bf16.msra.mxu0 %v157
  %333 = vmatprep.subr.bf16.mxu0 0
  %334 = vmatpush1.bf16.msra.mxu0 %v158
  %335 = vmatprep.subr.bf16.mxu0 0
  %336 = vmatpush1.bf16.msra.mxu0 %v159
  %337 = vmatprep.subr.bf16.mxu0 0
  %338 = vmatpush1.bf16.msra.mxu0 %v160
  %339 = vmatprep.subr.bf16.mxu0 0
  %340 = vmatpush1.bf16.msra.mxu0 %v161
  %341 = vmatprep.subr.bf16.mxu0 0
  %342 = vmatpush1.bf16.msra.mxu0 %v162
  %343 = vmatprep.subr.bf16.mxu0 0
  %344 = vmatpush1.bf16.msra.mxu0 %v163
  %345 = vmatprep.subr.bf16.mxu0 0
  %346 = vmatpush1.bf16.msra.mxu0 %v164
  %347 = vmatprep.subr.bf16.mxu0 0
  %348 = vmatpush1.bf16.msra.mxu0 %v165
  %349 = vmatprep.subr.bf16.mxu0 0
  %350 = vmatpush1.bf16.msra.mxu0 %v166
  %351 = vmatprep.subr.bf16.mxu0 0
  %352 = vmatpush1.bf16.msra.mxu0 %v167
  %353 = vmatprep.subr.bf16.mxu0 0
  %354 = vmatpush1.bf16.msra.mxu0 %v168
  %355 = vmatprep.subr.bf16.mxu0 0
  %356 = vmatpush1.bf16.msra.mxu0 %v169
  %357 = vmatprep.subr.bf16.mxu0 0
  %358 = vmatpush1.bf16.msra.mxu0 %v170
  %359 = vmatprep.subr.bf16.mxu0 0
  %360 = vmatpush1.bf16.msra.mxu0 %v171
  %361 = vmatprep.subr.bf16.mxu0 0
  %362 = vmatpush1.bf16.msra.mxu0 %v172
  %363 = vmatprep.mubr.bf16.mxu0 %v316
  %364 = vmatmul.mubr.bf16.gmra.mrb[0].mxu0 %v315
  %v365 = vpop.f32.mrb[0].mxu0
  %v366 = vadd.f32 0.0, %v365
  %v367 = vpop.f32.mrb[0].mxu0
  %v368 = vpop.f32.mrb[0].mxu0
  %v369 = vadd.f32 0.0, %v368
  %v370 = vpop.f32.mrb[0].mxu0
  %371 = vmatprep.mubr.bf16.mxu0 %v318
  %372 = vmatmul.mubr.bf16.gmra.mrb[0].mxu0 %v317
  %v373 = vpop.f32.mrb[0].mxu0
  %v374 = vadd.f32 0.0, %v373
  %v375 = vpop.f32.mrb[0].mxu0
  %v376 = vpop.f32.mrb[0].mxu0
  %v377 = vadd.f32 0.0, %v376
  %v378 = vpop.f32.mrb[0].mxu0
  %379 = vmatprep.mubr.bf16.mxu0 %v320
  %380 = vmatmul.mubr.bf16.gmra.mrb[0].mxu0 %v319
  %v381 = vpop.f32.mrb[0].mxu0
  %v382 = vadd.f32 0.0, %v381
  %v383 = vpop.f32.mrb[0].mxu0
  %v384 = vpop.f32.mrb[0].mxu0
  %v385 = vadd.f32 0.0, %v384
  %v386 = vpop.f32.mrb[0].mxu0
  %387 = vmatprep.mubr.bf16.mxu0 %v322
  %388 = vmatmul.mubr.bf16.gmra.mrb[0].mxu0 %v321
  %v389 = vpop.f32.mrb[0].mxu0
  %v390 = vadd.f32 0.0, %v389
  %v391 = vpop.f32.mrb[0].mxu0
  %v392 = vpop.f32.mrb[0].mxu0
  %v393 = vpop.f32.mrb[0].mxu0
  %394 = vdwg.mxu0
  %v395 = vadd.f32 %v366, %v369
  %v396 = vadd.f32 %v395, %v374
  %v397 = vadd.f32 %v396, %v377
  %v398 = vadd.f32 %v397, %v382
  %v399 = vadd.f32 %v398, %v385
  %v400 = vadd.f32 %v399, %v390
  %v401 = vrot.slane %v400, 4
  %v402 = vadd.f32 %v400, %v401
  %v403 = vrot.slane %v402, 2
  %v404 = vadd.f32 %v402, %v403
  %v405 = vrot.slane %v404, 1
  %v406 = vadd.f32 %v404, %v405
  %v407 = vadd.f32 %v265, %v406
  %v408 = vmul.f32 %v366, %v366
  %v409 = vmul.f32 %v369, %v369
  %v410 = vmul.f32 %v374, %v374
  %v411 = vmul.f32 %v377, %v377
  %v412 = vmul.f32 %v382, %v382
  %v413 = vmul.f32 %v385, %v385
  %v414 = vmul.f32 %v390, %v390
  %v415 = vadd.f32 %v408, %v409
  %v416 = vadd.f32 %v415, %v410
  %v417 = vadd.f32 %v416, %v411
  %v418 = vadd.f32 %v417, %v412
  %v419 = vadd.f32 %v418, %v413
  %v420 = vadd.f32 %v419, %v414
  %v421 = vrot.slane %v420, 4
  %v422 = vadd.f32 %v420, %v421
  %v423 = vrot.slane %v422, 2
  %v424 = vadd.f32 %v422, %v423
  %v425 = vrot.slane %v424, 1
  %v426 = vadd.f32 %v424, %v425
  %v427 = vadd.f32 %v285, %v426
  %s428 = scalar_lea.vmem %s0, 112
  %v429 = vld [vmem:[%s428] sm:$0xff]
  %v430 = vld [vmem:[%s428 + $0x8] sm:$0xff]
  %v431 = vld [vmem:[%s428 + $0x10] sm:$0xff]
  %v432 = vld [vmem:[%s428 + $0x18] sm:$0xff]
  %v433 = vld [vmem:[%s428 + $0x20] sm:$0xff]
  %v434 = vld [vmem:[%s428 + $0x28] sm:$0xff]
  %v435 = vld [vmem:[%s428 + $0x30] sm:$0xff]
  %v443 = vunpack.c.l.b16 %v429
  %v444 = vunpack.c.h.b16 %v429
  %v445 = vunpack.c.l.b16 %v430
  %v446 = vunpack.c.h.b16 %v430
  %v447 = vunpack.c.l.b16 %v431
  %v448 = vunpack.c.h.b16 %v431
  %v449 = vunpack.c.l.b16 %v432
  %v450 = vunpack.c.h.b16 %v432
  %v451 = vunpack.c.l.b16 %v433
  %v452 = vunpack.c.h.b16 %v433
  %v453 = vunpack.c.l.b16 %v434
  %v454 = vunpack.c.h.b16 %v434
  %v455 = vunpack.c.l.b16 %v435
  %v456 = vunpack.c.h.b16 %v435
  %v457 = vpack.c.b16 %v445, %v443
  %v458 = vpack.c.b16 %v446, %v444
  %v459 = vpack.c.b16 %v449, %v447
  %v460 = vpack.c.b16 %v450, %v448
  %v461 = vpack.c.b16 %v453, %v451
  %v462 = vpack.c.b16 %v454, %v452
  %v463 = vpack.c.b16 %v455, %v455
  %v464 = vpack.c.b16 %v456, %v456
  %473 = vmatprep.subr.bf16.mxu0 0
  %474 = vmatpush1.bf16.msra.mxu0 %v157
  %475 = vmatprep.subr.bf16.mxu0 0
  %476 = vmatpush1.bf16.msra.mxu0 %v158
  %477 = vmatprep.subr.bf16.mxu0 0
  %478 = vmatpush1.bf16.msra.mxu0 %v159
  %479 = vmatprep.subr.bf16.mxu0 0
  %480 = vmatpush1.bf16.msra.mxu0 %v160
  %481 = vmatprep.subr.bf16.mxu0 0
  %482 = vmatpush1.bf16.msra.mxu0 %v161
  %483 = vmatprep.subr.bf16.mxu0 0
  %484 = vmatpush1.bf16.msra.mxu0 %v162
  %485 = vmatprep.subr.bf16.mxu0 0
  %486 = vmatpush1.bf16.msra.mxu0 %v163
  %487 = vmatprep.subr.bf16.mxu0 0
  %488 = vmatpush1.bf16.msra.mxu0 %v164
  %489 = vmatprep.subr.bf16.mxu0 0
  %490 = vmatpush1.bf16.msra.mxu0 %v165
  %491 = vmatprep.subr.bf16.mxu0 0
  %492 = vmatpush1.bf16.msra.mxu0 %v166
  %493 = vmatprep.subr.bf16.mxu0 0
  %494 = vmatpush1.bf16.msra.mxu0 %v167
  %495 = vmatprep.subr.bf16.mxu0 0
  %496 = vmatpush1.bf16.msra.mxu0 %v168
  %497 = vmatprep.subr.bf16.mxu0 0
  %498 = vmatpush1.bf16.msra.mxu0 %v169
  %499 = vmatprep.subr.bf16.mxu0 0
  %500 = vmatpush1.bf16.msra.mxu0 %v170
  %501 = vmatprep.subr.bf16.mxu0 0
  %502 = vmatpush1.bf16.msra.mxu0 %v171
  %503 = vmatprep.subr.bf16.mxu0 0
  %504 = vmatpush1.bf16.msra.mxu0 %v172
  %505 = vmatprep.mubr.bf16.mxu0 %v458
  %506 = vmatmul.mubr.bf16.gmra.mrb[0].mxu0 %v457
  %v507 = vpop.f32.mrb[0].mxu0
  %v508 = vadd.f32 0.0, %v507
  %v509 = vpop.f32.mrb[0].mxu0
  %v510 = vpop.f32.mrb[0].mxu0
  %v511 = vadd.f32 0.0, %v510
  %v512 = vpop.f32.mrb[0].mxu0
  %513 = vmatprep.mubr.bf16.mxu0 %v460
  %514 = vmatmul.mubr.bf16.gmra.mrb[0].mxu0 %v459
  %v515 = vpop.f32.mrb[0].mxu0
  %v516 = vadd.f32 0.0, %v515
  %v517 = vpop.f32.mrb[0].mxu0
  %v518 = vpop.f32.mrb[0].mxu0
  %v519 = vadd.f32 0.0, %v518
  %v520 = vpop.f32.mrb[0].mxu0
  %521 = vmatprep.mubr.bf16.mxu0 %v462
  %522 = vmatmul.mubr.bf16.gmra.mrb[0].mxu0 %v461
  %v523 = vpop.f32.mrb[0].mxu0
  %v524 = vadd.f32 0.0, %v523
  %v525 = vpop.f32.mrb[0].mxu0
  %v526 = vpop.f32.mrb[0].mxu0
  %v527 = vadd.f32 0.0, %v526
  %v528 = vpop.f32.mrb[0].mxu0
  %529 = vmatprep.mubr.bf16.mxu0 %v464
  %530 = vmatmul.mubr.bf16.gmra.mrb[0].mxu0 %v463
  %v531 = vpop.f32.mrb[0].mxu0
  %v532 = vadd.f32 0.0, %v531
  %v533 = vpop.f32.mrb[0].mxu0
  %v534 = vpop.f32.mrb[0].mxu0
  %v535 = vpop.f32.mrb[0].mxu0
  %536 = vdwg.mxu0
  %v537 = vadd.f32 %v508, %v511
  %v538 = vadd.f32 %v537, %v516
  %v539 = vadd.f32 %v538, %v519
  %v540 = vadd.f32 %v539, %v524
  %v541 = vadd.f32 %v540, %v527
  %v542 = vadd.f32 %v541, %v532
  %v543 = vrot.slane %v542, 4
  %v544 = vadd.f32 %v542, %v543
  %v545 = vrot.slane %v544, 2
  %v546 = vadd.f32 %v544, %v545
  %v547 = vrot.slane %v546, 1
  %v548 = vadd.f32 %v546, %v547
  %v549 = vadd.f32 %v407, %v548
  %v550 = vmul.f32 %v508, %v508
  %v551 = vmul.f32 %v511, %v511
  %v552 = vmul.f32 %v516, %v516
  %v553 = vmul.f32 %v519, %v519
  %v554 = vmul.f32 %v524, %v524
  %v555 = vmul.f32 %v527, %v527
  %v556 = vmul.f32 %v532, %v532
  %v557 = vadd.f32 %v550, %v551
  %v558 = vadd.f32 %v557, %v552
  %v559 = vadd.f32 %v558, %v553
  %v560 = vadd.f32 %v559, %v554
  %v561 = vadd.f32 %v560, %v555
  %v562 = vadd.f32 %v561, %v556
  %v563 = vrot.slane %v562, 4
  %v564 = vadd.f32 %v562, %v563
  %v565 = vrot.slane %v564, 2
  %v566 = vadd.f32 %v564, %v565
  %v567 = vrot.slane %v566, 1
  %v568 = vadd.f32 %v566, %v567
  %v569 = vadd.f32 %v427, %v568
  %s570 = scalar_lea.vmem %s0, 168
  %v571 = vld [vmem:[%s570] sm:$0xff]
  %v572 = vld [vmem:[%s570 + $0x8] sm:$0xff]
  %v573 = vld [vmem:[%s570 + $0x10] sm:$0xff]
  %v574 = vld [vmem:[%s570 + $0x18] sm:$0xff]
  %v575 = vld [vmem:[%s570 + $0x20] sm:$0xff]
  %v576 = vld [vmem:[%s570 + $0x28] sm:$0xff]
  %v577 = vld [vmem:[%s570 + $0x30] sm:$0xff]
  %v585 = vunpack.c.l.b16 %v571
  %v586 = vunpack.c.h.b16 %v571
  %v587 = vunpack.c.l.b16 %v572
  %v588 = vunpack.c.h.b16 %v572
  %v589 = vunpack.c.l.b16 %v573
  %v590 = vunpack.c.h.b16 %v573
  %v591 = vunpack.c.l.b16 %v574
  %v592 = vunpack.c.h.b16 %v574
  %v593 = vunpack.c.l.b16 %v575
  %v594 = vunpack.c.h.b16 %v575
  %v595 = vunpack.c.l.b16 %v576
  %v596 = vunpack.c.h.b16 %v576
  %v597 = vunpack.c.l.b16 %v577
  %v598 = vunpack.c.h.b16 %v577
  %v599 = vpack.c.b16 %v587, %v585
  %v600 = vpack.c.b16 %v588, %v586
  %v601 = vpack.c.b16 %v591, %v589
  %v602 = vpack.c.b16 %v592, %v590
  %v603 = vpack.c.b16 %v595, %v593
  %v604 = vpack.c.b16 %v596, %v594
  %v605 = vpack.c.b16 %v597, %v597
  %v606 = vpack.c.b16 %v598, %v598
  %615 = vmatprep.subr.bf16.mxu0 0
  %616 = vmatpush1.bf16.msra.mxu0 %v157
  %617 = vmatprep.subr.bf16.mxu0 0
  %618 = vmatpush1.bf16.msra.mxu0 %v158
  %619 = vmatprep.subr.bf16.mxu0 0
  %620 = vmatpush1.bf16.msra.mxu0 %v159
  %621 = vmatprep.subr.bf16.mxu0 0
  %622 = vmatpush1.bf16.msra.mxu0 %v160
  %623 = vmatprep.subr.bf16.mxu0 0
  %624 = vmatpush1.bf16.msra.mxu0 %v161
  %625 = vmatprep.subr.bf16.mxu0 0
  %626 = vmatpush1.bf16.msra.mxu0 %v162
  %627 = vmatprep.subr.bf16.mxu0 0
  %628 = vmatpush1.bf16.msra.mxu0 %v163
  %629 = vmatprep.subr.bf16.mxu0 0
  %630 = vmatpush1.bf16.msra.mxu0 %v164
  %631 = vmatprep.subr.bf16.mxu0 0
  %632 = vmatpush1.bf16.msra.mxu0 %v165
  %633 = vmatprep.subr.bf16.mxu0 0
  %634 = vmatpush1.bf16.msra.mxu0 %v166
  %635 = vmatprep.subr.bf16.mxu0 0
  %636 = vmatpush1.bf16.msra.mxu0 %v167
  %637 = vmatprep.subr.bf16.mxu0 0
  %638 = vmatpush1.bf16.msra.mxu0 %v168
  %639 = vmatprep.subr.bf16.mxu0 0
  %640 = vmatpush1.bf16.msra.mxu0 %v169
  %641 = vmatprep.subr.bf16.mxu0 0
  %642 = vmatpush1.bf16.msra.mxu0 %v170
  %643 = vmatprep.subr.bf16.mxu0 0
  %644 = vmatpush1.bf16.msra.mxu0 %v171
  %645 = vmatprep.subr.bf16.mxu0 0
  %646 = vmatpush1.bf16.msra.mxu0 %v172
  %647 = vmatprep.mubr.bf16.mxu0 %v600
  %648 = vmatmul.mubr.bf16.gmra.mrb[0].mxu0 %v599
  %v649 = vpop.f32.mrb[0].mxu0
  %v650 = vadd.f32 0.0, %v649
  %v651 = vpop.f32.mrb[0].mxu0
  %v652 = vpop.f32.mrb[0].mxu0
  %v653 = vadd.f32 0.0, %v652
  %v654 = vpop.f32.mrb[0].mxu0
  %655 = vmatprep.mubr.bf16.mxu0 %v602
  %656 = vmatmul.mubr.bf16.gmra.mrb[0].mxu0 %v601
  %v657 = vpop.f32.mrb[0].mxu0
  %v658 = vadd.f32 0.0, %v657
  %v659 = vpop.f32.mrb[0].mxu0
  %v660 = vpop.f32.mrb[0].mxu0
  %v661 = vadd.f32 0.0, %v660
  %v662 = vpop.f32.mrb[0].mxu0
  %663 = vmatprep.mubr.bf16.mxu0 %v604
  %664 = vmatmul.mubr.bf16.gmra.mrb[0].mxu0 %v603
  %v665 = vpop.f32.mrb[0].mxu0
  %v666 = vadd.f32 0.0, %v665
  %v667 = vpop.f32.mrb[0].mxu0
  %v668 = vpop.f32.mrb[0].mxu0
  %v669 = vadd.f32 0.0, %v668
  %v670 = vpop.f32.mrb[0].mxu0
  %671 = vmatprep.mubr.bf16.mxu0 %v606
  %672 = vmatmul.mubr.bf16.gmra.mrb[0].mxu0 %v605
  %v673 = vpop.f32.mrb[0].mxu0
  %v674 = vadd.f32 0.0, %v673
  %v675 = vpop.f32.mrb[0].mxu0
  %v676 = vpop.f32.mrb[0].mxu0
  %v677 = vpop.f32.mrb[0].mxu0
  %678 = vdwg.mxu0
  %v679 = vadd.f32 %v650, %v653
  %v680 = vadd.f32 %v679, %v658
  %v681 = vadd.f32 %v680, %v661
  %v682 = vadd.f32 %v681, %v666
  %v683 = vadd.f32 %v682, %v669
  %v684 = vadd.f32 %v683, %v674
  %v685 = vrot.slane %v684, 4
  %v686 = vadd.f32 %v684, %v685
  %v687 = vrot.slane %v686, 2
  %v688 = vadd.f32 %v686, %v687
  %v689 = vrot.slane %v688, 1
  %v690 = vadd.f32 %v688, %v689
  %v691 = vadd.f32 %v549, %v690
  %v692 = vmul.f32 %v650, %v650
  %v693 = vmul.f32 %v653, %v653
  %v694 = vmul.f32 %v658, %v658
  %v695 = vmul.f32 %v661, %v661
  %v696 = vmul.f32 %v666, %v666
  %v697 = vmul.f32 %v669, %v669
  %v698 = vmul.f32 %v674, %v674
  %v699 = vadd.f32 %v692, %v693
  %v700 = vadd.f32 %v699, %v694
  %v701 = vadd.f32 %v700, %v695
  %v702 = vadd.f32 %v701, %v696
  %v703 = vadd.f32 %v702, %v697
  %v704 = vadd.f32 %v703, %v698
  %v705 = vrot.slane %v704, 4
  %v706 = vadd.f32 %v704, %v705
  %v707 = vrot.slane %v706, 2
  %v708 = vadd.f32 %v706, %v707
  %v709 = vrot.slane %v708, 1
  %v710 = vadd.f32 %v708, %v709
  %v711 = vadd.f32 %v569, %v710
  %v712 = vld [vmem:[%s2] sm:$0x1]
  %v713 = vadd.f32 %v712, %v691
  %714 = vst [vmem:[%s2] sm:$0x1] %v713
  %v715 = vld [vmem:[%s2 + $0x1] sm:$0x1]
  %v716 = vadd.f32 %v715, %v711
  %717 = vst [vmem:[%s2 + $0x1] sm:$0x1] %v716
  // Predicated region
  $region14: #{lenet5_bn_forward.7} parent=0 // pred_check
    _
  $region15: #{lenet5_bn_forward.7} parent=0 // pred_check_branch
    %719 = sbr.rel (0) target = $region17
  $region16: #{lenet5_bn_forward.7} parent=0 // pred_region
    _
  $region17: #{lenet5_bn_forward.7} parent=0 // pred_fallthru
    _
  // Predicated region
  $region18: #{lenet5_bn_forward.7} parent=0 // pred_check
    _
  $region19: #{lenet5_bn_forward.7} parent=0 // pred_check_branch
    %721 = sbr.rel (0) target = $region21
  $region20: #{lenet5_bn_forward.7} parent=0 // pred_region
    _
  $region21: #{lenet5_bn_forward.7} parent=0 // pred_fallthru
    _

// kernel: lenet5_bn_forward.8
$region0: #{lenet5_bn_forward.8}
  #allocation0 [shape = 'u32[]', space=smem, size = 0x4, offset = 0x4, fixed_abs, tag = 'smem constant byte address 0x4 - core index']
  #allocation1 [shape = 'u32[144,128]{1,0:T(1,128)}', space=vmem, size = 0x12000, scoped, tag = 'internal scratch']
  %s0 = inlined_call_operand.vmem [shape: f32[8,128], index: 0, kind: input, shape index: {}]
  %s1 = inlined_call_operand.vmem [shape: f32[1,128], index: 1, kind: input, shape index: {}]
  %s2 = inlined_call_operand.vmem [shape: f32[1,128], index: 2, kind: input, shape index: {}]
  %s3 = inlined_call_operand.vmem [shape: bf16[4,56,256], index: 3, kind: input, shape index: {}]
  %s4 = inlined_call_operand.vmem [shape: bf16[256,128], index: 4, kind: input, shape index: {}]
  %s5 = inlined_call_operand.vmem [shape: bf16[56,128], index: 5, kind: output, shape index: {}]
  %s6 = sld [smem:[#allocation0]]
  $region30: #{lenet5_bn_forward.8} parent=0
    _
  %s8 = ssub.s32 1, %s6
  %s9 = scalar_select 0, %s8, %s6
  // Predicated region
  $region2: #{lenet5_bn_forward.8} parent=0 // pred_check
    _
  $region3: #{lenet5_bn_forward.8} parent=0 // pred_check_branch
    %11 = sbr.rel (0) target = $region5
  $region4: #{lenet5_bn_forward.8} parent=0 // pred_region
    _
  $region5: #{lenet5_bn_forward.8} parent=0 // pred_fallthru
    _
  // Predicated region
  $region6: #{lenet5_bn_forward.8} parent=0 // pred_check
    _
  $region7: #{lenet5_bn_forward.8} parent=0 // pred_check_branch
    %13 = sbr.rel (0) target = $region9
  $region8: #{lenet5_bn_forward.8} parent=0 // pred_region
    _
  $region9: #{lenet5_bn_forward.8} parent=0 // pred_fallthru
    _
  // Predicated region
  $region10: #{lenet5_bn_forward.8} parent=0 // pred_check
    _
  $region11: #{lenet5_bn_forward.8} parent=0 // pred_check_branch
    %15 = sbr.rel (0) target = $region13
  $region12: #{lenet5_bn_forward.8} parent=0 // pred_region
    _
  $region13: #{lenet5_bn_forward.8} parent=0 // pred_fallthru
    _
  // Predicated region
  $region14: #{lenet5_bn_forward.8} parent=0 // pred_check
    _
  $region15: #{lenet5_bn_forward.8} parent=0 // pred_check_branch
    %17 = sbr.rel (0) target = $region17
  $region16: #{lenet5_bn_forward.8} parent=0 // pred_region
    _
  $region17: #{lenet5_bn_forward.8} parent=0 // pred_fallthru
    _
  // Predicated region
  $region18: #{lenet5_bn_forward.8} parent=0 // pred_check
    _
  $region19: #{lenet5_bn_forward.8} parent=0 // pred_check_branch
    %19 = sbr.rel (0) target = $region21
  $region20: #{lenet5_bn_forward.8} parent=0 // pred_region
    _
  $region21: #{lenet5_bn_forward.8} parent=0 // pred_fallthru
    _
  %v21 = vld [vmem:[%s0] sm:$0x1]
  %v22 = vmul.f32 %v21, 0.005
  %v23 = vld [vmem:[%s0 + $0x1] sm:$0x1]
  %v24 = vmul.f32 %v23, 0.005
  %v25 = vmul.f32 %v22, %v22
  %v26 = vsub.f32 %v24, %v25
  %v27 = vmax.f32 %v26, 0.0
  %v28 = vadd.f32 %v27, 1e-05
  %v29 = vrsqrt.pop %v28
  %v30 = vld [vmem:[%s1] sm:$0x1]
  %v31 = vmul.f32 %v29, %v30
  %v32 = vld [vmem:[%s2] sm:$0x1]
  %v33 = vmul.f32 %v22, %v31
  %v34 = vsub.f32 %v32, %v33
  %v35 = vld [vmem:[%s4] sm:$0xf]
  %v36 = vld [vmem:[%s4 + $0x4] sm:$0xf]
  %v37 = vld [vmem:[%s4 + $0x8] sm:$0xf]
  %v38 = vld [vmem:[%s4 + $0xc] sm:$0xf]
  %v39 = vld [vmem:[%s4 + $0x10] sm:$0xf]
  %v40 = vld [vmem:[%s4 + $0x14] sm:$0xf]
  %v41 = vld [vmem:[%s4 + $0x18] sm:$0xf]
  %v42 = vld [vmem:[%s4 + $0x1c] sm:$0xf]
  %v43 = vld [vmem:[%s4 + $0x20] sm:$0xf]
  %v44 = vld [vmem:[%s4 + $0x24] sm:$0xf]
  %v45 = vld [vmem:[%s4 + $0x28] sm:$0xf]
  %v46 = vld [vmem:[%s4 + $0x2c] sm:$0xf]
  %v47 = vld [vmem:[%s4 + $0x30] sm:$0xf]
  %v48 = vld [vmem:[%s4 + $0x34] sm:$0xf]
  %v49 = vld [vmem:[%s4 + $0x38] sm:$0xf]
  %v50 = vld [vmem:[%s4 + $0x3c] sm:$0xf]
  %v51 = vld [vmem:[%s4 + $0x40] sm:$0xf]
  %v52 = vld [vmem:[%s4 + $0x44] sm:$0xf]
  %v53 = vld [vmem:[%s4 + $0x48] sm:$0xf]
  %v54 = vld [vmem:[%s4 + $0x4c] sm:$0xf]
  %v55 = vld [vmem:[%s4 + $0x50] sm:$0xf]
  %v56 = vld [vmem:[%s4 + $0x54] sm:$0xf]
  %v57 = vld [vmem:[%s4 + $0x58] sm:$0xf]
  %v58 = vld [vmem:[%s4 + $0x5c] sm:$0xf]
  %v59 = vld [vmem:[%s4 + $0x60] sm:$0xf]
  %v60 = vld [vmem:[%s4 + $0x64] sm:$0xf]
  %v61 = vld [vmem:[%s4 + $0x68] sm:$0xf]
  %v62 = vld [vmem:[%s4 + $0x6c] sm:$0xf]
  %v63 = vld [vmem:[%s4 + $0x70] sm:$0xf]
  %v64 = vld [vmem:[%s4 + $0x74] sm:$0xf]
  %v65 = vld [vmem:[%s4 + $0x78] sm:$0xf]
  %v66 = vld [vmem:[%s4 + $0x7c] sm:$0xf]
  %v67 = vld [vmem:[%s3] sm:$0xff]
  %v68 = vld [vmem:[%s3 + $0x8] sm:$0xff]
  %v69 = vld [vmem:[%s3 + $0x10] sm:$0xff]
  %v70 = vld [vmem:[%s3 + $0x18] sm:$0xff]
  %v71 = vld [vmem:[%s3 + $0x20] sm:$0xff]
  %v72 = vld [vmem:[%s3 + $0x28] sm:$0xff]
  %v73 = vld [vmem:[%s3 + $0x30] sm:$0xff]
  %v81 = vunpack.c.l.b16 %v67
  %v82 = vunpack.c.h.b16 %v67
  %v83 = vunpack.c.l.b16 %v68
  %v84 = vunpack.c.h.b16 %v68
  %v85 = vunpack.c.l.b16 %v69
  %v86 = vunpack.c.h.b16 %v69
  %v87 = vunpack.c.l.b16 %v70
  %v88 = vunpack.c.h.b16 %v70
  %v89 = vunpack.c.l.b16 %v71
  %v90 = vunpack.c.h.b16 %v71
  %v91 = vunpack.c.l.b16 %v72
  %v92 = vunpack.c.h.b16 %v72
  %v93 = vunpack.c.l.b16 %v73
  %v94 = vunpack.c.h.b16 %v73
  %v95 = vpack.c.b16 %v83, %v81
  %v96 = vpack.c.b16 %v84, %v82
  %v97 = vpack.c.b16 %v87, %v85
  %v98 = vpack.c.b16 %v88, %v86
  %v99 = vpack.c.b16 %v91, %v89
  %v100 = vpack.c.b16 %v92, %v90
  %v101 = vpack.c.b16 %v93, %v93
  %v102 = vpack.c.b16 %v94, %v94
  %v143 = vunpack.c.l.b16 %v35
  %v144 = vunpack.c.l.b16 %v36
  %v145 = vunpack.c.l.b16 %v37
  %v146 = vunpack.c.l.b16 %v38
  %v147 = vunpack.c.l.b16 %v39
  %v148 = vunpack.c.l.b16 %v40
  %v149 = vunpack.c.l.b16 %v41
  %v150 = vunpack.c.l.b16 %v42
  %v151 = vunpack.c.l.b16 %v43
  %v152 = vunpack.c.l.b16 %v44
  %v153 = vunpack.c.l.b16 %v45
  %v154 = vunpack.c.l.b16 %v46
  %v155 = vunpack.c.l.b16 %v47
  %v156 = vunpack.c.l.b16 %v48
  %v157 = vunpack.c.l.b16 %v49
  %v158 = vunpack.c.l.b16 %v50
  %v159 = vunpack.c.l.b16 %v51
  %v160 = vunpack.c.l.b16 %v52
  %v161 = vunpack.c.l.b16 %v53
  %v162 = vunpack.c.l.b16 %v54
  %v163 = vunpack.c.l.b16 %v55
  %v164 = vunpack.c.l.b16 %v56
  %v165 = vunpack.c.l.b16 %v57
  %v166 = vunpack.c.l.b16 %v58
  %v167 = vunpack.c.l.b16 %v59
  %v168 = vunpack.c.l.b16 %v60
  %v169 = vunpack.c.l.b16 %v61
  %v170 = vunpack.c.l.b16 %v62
  %v171 = vunpack.c.l.b16 %v63
  %v172 = vunpack.c.l.b16 %v64
  %v173 = vunpack.c.l.b16 %v65
  %v174 = vunpack.c.l.b16 %v66
  %v175 = vpack.c.b16 %v144, %v143
  %v176 = vpack.c.b16 %v146, %v145
  %v177 = vpack.c.b16 %v148, %v147
  %v178 = vpack.c.b16 %v150, %v149
  %v179 = vpack.c.b16 %v152, %v151
  %v180 = vpack.c.b16 %v154, %v153
  %v181 = vpack.c.b16 %v156, %v155
  %v182 = vpack.c.b16 %v158, %v157
  %v183 = vpack.c.b16 %v160, %v159
  %v184 = vpack.c.b16 %v162, %v161
  %v185 = vpack.c.b16 %v164, %v163
  %v186 = vpack.c.b16 %v166, %v165
  %v187 = vpack.c.b16 %v168, %v167
  %v188 = vpack.c.b16 %v170, %v169
  %v189 = vpack.c.b16 %v172, %v171
  %v190 = vpack.c.b16 %v174, %v173
  %207 = vmatprep.subr.bf16.mxu0 0
  %208 = vmatpush1.bf16.msra.mxu0 %v175
  %209 = vmatprep.subr.bf16.mxu0 0
  %210 = vmatpush1.bf16.msra.mxu0 %v176
  %211 = vmatprep.subr.bf16.mxu0 0
  %212 = vmatpush1.bf16.msra.mxu0 %v177
  %213 = vmatprep.subr.bf16.mxu0 0
  %214 = vmatpush1.bf16.msra.mxu0 %v178
  %215 = vmatprep.subr.bf16.mxu0 0
  %216 = vmatpush1.bf16.msra.mxu0 %v179
  %217 = vmatprep.subr.bf16.mxu0 0
  %218 = vmatpush1.bf16.msra.mxu0 %v180
  %219 = vmatprep.subr.bf16.mxu0 0
  %220 = vmatpush1.bf16.msra.mxu0 %v181
  %221 = vmatprep.subr.bf16.mxu0 0
  %222 = vmatpush1.bf16.msra.mxu0 %v182
  %223 = vmatprep.subr.bf16.mxu0 0
  %224 = vmatpush1.bf16.msra.mxu0 %v183
  %225 = vmatprep.subr.bf16.mxu0 0
  %226 = vmatpush1.bf16.msra.mxu0 %v184
  %227 = vmatprep.subr.bf16.mxu0 0
  %228 = vmatpush1.bf16.msra.mxu0 %v185
  %229 = vmatprep.subr.bf16.mxu0 0
  %230 = vmatpush1.bf16.msra.mxu0 %v186
  %231 = vmatprep.subr.bf16.mxu0 0
  %232 = vmatpush1.bf16.msra.mxu0 %v187
  %233 = vmatprep.subr.bf16.mxu0 0
  %234 = vmatpush1.bf16.msra.mxu0 %v188
  %235 = vmatprep.subr.bf16.mxu0 0
  %236 = vmatpush1.bf16.msra.mxu0 %v189
  %237 = vmatprep.subr.bf16.mxu0 0
  %238 = vmatpush1.bf16.msra.mxu0 %v190
  %239 = vmatprep.mubr.bf16.mxu0 %v96
  %240 = vmatmul.mubr.bf16.gmra.mrb[0].mxu0 %v95
  %v241 = vpop.f32.mrb[0].mxu0
  %v242 = vadd.f32 0.0, %v241
  %v243 = vpop.f32.mrb[0].mxu0
  %v244 = vpop.f32.mrb[0].mxu0
  %v245 = vadd.f32 0.0, %v244
  %v246 = vpop.f32.mrb[0].mxu0
  %247 = vmatprep.mubr.bf16.mxu0 %v98
  %248 = vmatmul.mubr.bf16.gmra.mrb[0].mxu0 %v97
  %v249 = vpop.f32.mrb[0].mxu0
  %v250 = vadd.f32 0.0, %v249
  %v251 = vpop.f32.mrb[0].mxu0
  %v252 = vpop.f32.mrb[0].mxu0
  %v253 = vadd.f32 0.0, %v252
  %v254 = vpop.f32.mrb[0].mxu0
  %255 = vmatprep.mubr.bf16.mxu0 %v100
  %256 = vmatmul.mubr.bf16.gmra.mrb[0].mxu0 %v99
  %v257 = vpop.f32.mrb[0].mxu0
  %v258 = vadd.f32 0.0, %v257
  %v259 = vpop.f32.mrb[0].mxu0
  %v260 = vpop.f32.mrb[0].mxu0
  %v261 = vadd.f32 0.0, %v260
  %v262 = vpop.f32.mrb[0].mxu0
  %263 = vmatprep.mubr.bf16.mxu0 %v102
  %264 = vmatmul.mubr.bf16.gmra.mrb[0].mxu0 %v101
  %v265 = vpop.f32.mrb[0].mxu0
  %v266 = vadd.f32 0.0, %v265
  %v267 = vpop.f32.mrb[0].mxu0
  %v268 = vpop.f32.mrb[0].mxu0
  %v269 = vpop.f32.mrb[0].mxu0
  %270 = vdwg.mxu0
  %v271 = vlaneseq
  %v272 = vshrl.u32 %v271, 7
  %v273 = vsub.s32 0, %v272
  %v274 = vrot.slane %v31, %v273
  %v275 = vmul.f32 %v242, %v274
  %v276 = vmul.f32 %v245, %v274
  %v277 = vmul.f32 %v250, %v274
  %v278 = vmul.f32 %v253, %v274
  %v279 = vmul.f32 %v258, %v274
  %v280 = vmul.f32 %v261, %v274
  %v281 = vmul.f32 %v266, %v274
  %v283 = vlaneseq
  %v284 = vshrl.u32 %v283, 7
  %v285 = vsub.s32 0, %v284
  %v286 = vrot.slane %v34, %v285
  %v288 = vadd.f32 %v275, %v286
  %v289 = vadd.f32 %v276, %v286
  %v290 = vadd.f32 %v277, %v286
  %v291 = vadd.f32 %v278, %v286
  %v292 = vadd.f32 %v279, %v286
  %v293 = vadd.f32 %v280, %v286
  %v294 = vadd.f32 %v281, %v286
  %v295 = vmax.f32 %v288, 0.0
  %v296 = vmax.f32 %v289, 0.0
  %v297 = vmax.f32 %v290, 0.0
  %v298 = vmax.f32 %v291, 0.0
  %v299 = vmax.f32 %v292, 0.0
  %v300 = vmax.f32 %v293, 0.0
  %v301 = vmax.f32 %v294, 0.0
  %s302 = scalar_lea.vmem %s3, 56
  %v303 = vld [vmem:[%s302] sm:$0xff]
  %v304 = vld [vmem:[%s302 + $0x8] sm:$0xff]
  %v305 = vld [vmem:[%s302 + $0x10] sm:$0xff]
  %v306 = vld [vmem:[%s302 + $0x18] sm:$0xff]
  %v307 = vld [vmem:[%s302 + $0x20] sm:$0xff]
  %v308 = vld [vmem:[%s302 + $0x28] sm:$0xff]
  %v309 = vld [vmem:[%s302 + $0x30] sm:$0xff]
  %v317 = vunpack.c.l.b16 %v303
  %v318 = vunpack.c.h.b16 %v303
  %v319 = vunpack.c.l.b16 %v304
  %v320 = vunpack.c.h.b16 %v304
  %v321 = vunpack.c.l.b16 %v305
  %v322 = vunpack.c.h.b16 %v305
  %v323 = vunpack.c.l.b16 %v306
  %v324 = vunpack.c.h.b16 %v306
  %v325 = vunpack.c.l.b16 %v307
  %v326 = vunpack.c.h.b16 %v307
  %v327 = vunpack.c.l.b16 %v308
  %v328 = vunpack.c.h.b16 %v308
  %v329 = vunpack.c.l.b16 %v309
  %v330 = vunpack.c.h.b16 %v309
  %v331 = vpack.c.b16 %v319, %v317
  %v332 = vpack.c.b16 %v320, %v318
  %v333 = vpack.c.b16 %v323, %v321
  %v334 = vpack.c.b16 %v324, %v322
  %v335 = vpack.c.b16 %v327, %v325
  %v336 = vpack.c.b16 %v328, %v326
  %v337 = vpack.c.b16 %v329, %v329
  %v338 = vpack.c.b16 %v330, %v330
  %347 = vmatprep.subr.bf16.mxu0 0
  %348 = vmatpush1.bf16.msra.mxu0 %v175
  %349 = vmatprep.subr.bf16.mxu0 0
  %350 = vmatpush1.bf16.msra.mxu0 %v176
  %351 = vmatprep.subr.bf16.mxu0 0
  %352 = vmatpush1.bf16.msra.mxu0 %v177
  %353 = vmatprep.subr.bf16.mxu0 0
  %354 = vmatpush1.bf16.msra.mxu0 %v178
  %355 = vmatprep.subr.bf16.mxu0 0
  %356 = vmatpush1.bf16.msra.mxu0 %v179
  %357 = vmatprep.subr.bf16.mxu0 0
  %358 = vmatpush1.bf16.msra.mxu0 %v180
  %359 = vmatprep.subr.bf16.mxu0 0
  %360 = vmatpush1.bf16.msra.mxu0 %v181
  %361 = vmatprep.subr.bf16.mxu0 0
  %362 = vmatpush1.bf16.msra.mxu0 %v182
  %363 = vmatprep.subr.bf16.mxu0 0
  %364 = vmatpush1.bf16.msra.mxu0 %v183
  %365 = vmatprep.subr.bf16.mxu0 0
  %366 = vmatpush1.bf16.msra.mxu0 %v184
  %367 = vmatprep.subr.bf16.mxu0 0
  %368 = vmatpush1.bf16.msra.mxu0 %v185
  %369 = vmatprep.subr.bf16.mxu0 0
  %370 = vmatpush1.bf16.msra.mxu0 %v186
  %371 = vmatprep.subr.bf16.mxu0 0
  %372 = vmatpush1.bf16.msra.mxu0 %v187
  %373 = vmatprep.subr.bf16.mxu0 0
  %374 = vmatpush1.bf16.msra.mxu0 %v188
  %375 = vmatprep.subr.bf16.mxu0 0
  %376 = vmatpush1.bf16.msra.mxu0 %v189
  %377 = vmatprep.subr.bf16.mxu0 0
  %378 = vmatpush1.bf16.msra.mxu0 %v190
  %379 = vmatprep.mubr.bf16.mxu0 %v332
  %380 = vmatmul.mubr.bf16.gmra.mrb[0].mxu0 %v331
  %v381 = vpop.f32.mrb[0].mxu0
  %v382 = vadd.f32 0.0, %v381
  %v383 = vpop.f32.mrb[0].mxu0
  %v384 = vpop.f32.mrb[0].mxu0
  %v385 = vadd.f32 0.0, %v384
  %v386 = vpop.f32.mrb[0].mxu0
  %387 = vmatprep.mubr.bf16.mxu0 %v334
  %388 = vmatmul.mubr.bf16.gmra.mrb[0].mxu0 %v333
  %v389 = vpop.f32.mrb[0].mxu0
  %v390 = vadd.f32 0.0, %v389
  %v391 = vpop.f32.mrb[0].mxu0
  %v392 = vpop.f32.mrb[0].mxu0
  %v393 = vadd.f32 0.0, %v392
  %v394 = vpop.f32.mrb[0].mxu0
  %395 = vmatprep.mubr.bf16.mxu0 %v336
  %396 = vmatmul.mubr.bf16.gmra.mrb[0].mxu0 %v335
  %v397 = vpop.f32.mrb[0].mxu0
  %v398 = vadd.f32 0.0, %v397
  %v399 = vpop.f32.mrb[0].mxu0
  %v400 = vpop.f32.mrb[0].mxu0
  %v401 = vadd.f32 0.0, %v400
  %v402 = vpop.f32.mrb[0].mxu0
  %403 = vmatprep.mubr.bf16.mxu0 %v338
  %404 = vmatmul.mubr.bf16.gmra.mrb[0].mxu0 %v337
  %v405 = vpop.f32.mrb[0].mxu0
  %v406 = vadd.f32 0.0, %v405
  %v407 = vpop.f32.mrb[0].mxu0
  %v408 = vpop.f32.mrb[0].mxu0
  %v409 = vpop.f32.mrb[0].mxu0
  %410 = vdwg.mxu0
  %v411 = vmul.f32 %v382, %v274
  %v412 = vmul.f32 %v385, %v274
  %v413 = vmul.f32 %v390, %v274
  %v414 = vmul.f32 %v393, %v274
  %v415 = vmul.f32 %v398, %v274
  %v416 = vmul.f32 %v401, %v274
  %v417 = vmul.f32 %v406, %v274
  %v418 = vadd.f32 %v411, %v286
  %v419 = vadd.f32 %v412, %v286
  %v420 = vadd.f32 %v413, %v286
  %v421 = vadd.f32 %v414, %v286
  %v422 = vadd.f32 %v415, %v286
  %v423 = vadd.f32 %v416, %v286
  %v424 = vadd.f32 %v417, %v286
  %v425 = vmax.f32 %v418, 0.0
  %v426 = vmax.f32 %v419, 0.0
  %v427 = vmax.f32 %v420, 0.0
  %v428 = vmax.f32 %v421, 0.0
  %v429 = vmax.f32 %v422, 0.0
  %v430 = vmax.f32 %v423, 0.0
  %v431 = vmax.f32 %v424, 0.0
  %v432 = vmax.f32 %v295, %v425
  %v433 = vmax.f32 %v296, %v426
  %v434 = vmax.f32 %v297, %v427
  %v435 = vmax.f32 %v298, %v428
  %v436 = vmax.f32 %v299, %v429
  %v437 = vmax.f32 %v300, %v430
  %v438 = vmax.f32 %v301, %v431
  %s439 = scalar_lea.vmem %s3, 112
  %v440 = vld [vmem:[%s439] sm:$0xff]
  %v441 = vld [vmem:[%s439 + $0x8] sm:$0xff]
  %v442 = vld [vmem:[%s439 + $0x10] sm:$0xff]
  %v443 = vld [vmem:[%s439 + $0x18] sm:$0xff]
  %v444 = vld [vmem:[%s439 + $0x20] sm:$0xff]
  %v445 = vld [vmem:[%s439 + $0x28] sm:$0xff]
  %v446 = vld [vmem:[%s439 + $0x30] sm:$0xff]
  %v454 = vunpack.c.l.b16 %v440
  %v455 = vunpack.c.h.b16 %v440
  %v456 = vunpack.c.l.b16 %v441
  %v457 = vunpack.c.h.b16 %v441
  %v458 = vunpack.c.l.b16 %v442
  %v459 = vunpack.c.h.b16 %v442
  %v460 = vunpack.c.l.b16 %v443
  %v461 = vunpack.c.h.b16 %v443
  %v462 = vunpack.c.l.b16 %v444
  %v463 = vunpack.c.h.b16 %v444
  %v464 = vunpack.c.l.b16 %v445
  %v465 = vunpack.c.h.b16 %v445
  %v466 = vunpack.c.l.b16 %v446
  %v467 = vunpack.c.h.b16 %v446
  %v468 = vpack.c.b16 %v456, %v454
  %v469 = vpack.c.b16 %v457, %v455
  %v470 = vpack.c.b16 %v460, %v458
  %v471 = vpack.c.b16 %v461, %v459
  %v472 = vpack.c.b16 %v464, %v462
  %v473 = vpack.c.b16 %v465, %v463
  %v474 = vpack.c.b16 %v466, %v466
  %v475 = vpack.c.b16 %v467, %v467
  %484 = vmatprep.subr.bf16.mxu0 0
  %485 = vmatpush1.bf16.msra.mxu0 %v175
  %486 = vmatprep.subr.bf16.mxu0 0
  %487 = vmatpush1.bf16.msra.mxu0 %v176
  %488 = vmatprep.subr.bf16.mxu0 0
  %489 = vmatpush1.bf16.msra.mxu0 %v177
  %490 = vmatprep.subr.bf16.mxu0 0
  %491 = vmatpush1.bf16.msra.mxu0 %v178
  %492 = vmatprep.subr.bf16.mxu0 0
  %493 = vmatpush1.bf16.msra.mxu0 %v179
  %494 = vmatprep.subr.bf16.mxu0 0
  %495 = vmatpush1.bf16.msra.mxu0 %v180
  %496 = vmatprep.subr.bf16.mxu0 0
  %497 = vmatpush1.bf16.msra.mxu0 %v181
  %498 = vmatprep.subr.bf16.mxu0 0
  %499 = vmatpush1.bf16.msra.mxu0 %v182
  %500 = vmatprep.subr.bf16.mxu0 0
  %501 = vmatpush1.bf16.msra.mxu0 %v183
  %502 = vmatprep.subr.bf16.mxu0 0
  %503 = vmatpush1.bf16.msra.mxu0 %v184
  %504 = vmatprep.subr.bf16.mxu0 0
  %505 = vmatpush1.bf16.msra.mxu0 %v185
  %506 = vmatprep.subr.bf16.mxu0 0
  %507 = vmatpush1.bf16.msra.mxu0 %v186
  %508 = vmatprep.subr.bf16.mxu0 0
  %509 = vmatpush1.bf16.msra.mxu0 %v187
  %510 = vmatprep.subr.bf16.mxu0 0
  %511 = vmatpush1.bf16.msra.mxu0 %v188
  %512 = vmatprep.subr.bf16.mxu0 0
  %513 = vmatpush1.bf16.msra.mxu0 %v189
  %514 = vmatprep.subr.bf16.mxu0 0
  %515 = vmatpush1.bf16.msra.mxu0 %v190
  %516 = vmatprep.mubr.bf16.mxu0 %v469
  %517 = vmatmul.mubr.bf16.gmra.mrb[0].mxu0 %v468
  %v518 = vpop.f32.mrb[0].mxu0
  %v519 = vadd.f32 0.0, %v518
  %v520 = vpop.f32.mrb[0].mxu0
  %v521 = vpop.f32.mrb[0].mxu0
  %v522 = vadd.f32 0.0, %v521
  %v523 = vpop.f32.mrb[0].mxu0
  %524 = vmatprep.mubr.bf16.mxu0 %v471
  %525 = vmatmul.mubr.bf16.gmra.mrb[0].mxu0 %v470
  %v526 = vpop.f32.mrb[0].mxu0
  %v527 = vadd.f32 0.0, %v526
  %v528 = vpop.f32.mrb[0].mxu0
  %v529 = vpop.f32.mrb[0].mxu0
  %v530 = vadd.f32 0.0, %v529
  %v531 = vpop.f32.mrb[0].mxu0
  %532 = vmatprep.mubr.bf16.mxu0 %v473
  %533 = vmatmul.mubr.bf16.gmra.mrb[0].mxu0 %v472
  %v534 = vpop.f32.mrb[0].mxu0
  %v535 = vadd.f32 0.0, %v534
  %v536 = vpop.f32.mrb[0].mxu0
  %v537 = vpop.f32.mrb[0].mxu0
  %v538 = vadd.f32 0.0, %v537
  %v539 = vpop.f32.mrb[0].mxu0
  %540 = vmatprep.mubr.bf16.mxu0 %v475
  %541 = vmatmul.mubr.bf16.gmra.mrb[0].mxu0 %v474
  %v542 = vpop.f32.mrb[0].mxu0
  %v543 = vadd.f32 0.0, %v542
  %v544 = vpop.f32.mrb[0].mxu0
  %v545 = vpop.f32.mrb[0].mxu0
  %v546 = vpop.f32.mrb[0].mxu0
  %547 = vdwg.mxu0
  %v548 = vmul.f32 %v519, %v274
  %v549 = vmul.f32 %v522, %v274
  %v550 = vmul.f32 %v527, %v274
  %v551 = vmul.f32 %v530, %v274
  %v552 = vmul.f32 %v535, %v274
  %v553 = vmul.f32 %v538, %v274
  %v554 = vmul.f32 %v543, %v274
  %v555 = vadd.f32 %v548, %v286
  %v556 = vadd.f32 %v549, %v286
  %v557 = vadd.f32 %v550, %v286
  %v558 = vadd.f32 %v551, %v286
  %v559 = vadd.f32 %v552, %v286
  %v560 = vadd.f32 %v553, %v286
  %v561 = vadd.f32 %v554, %v286
  %v562 = vmax.f32 %v555, 0.0
  %v563 = vmax.f32 %v556, 0.0
  %v564 = vmax.f32 %v557, 0.0
  %v565 = vmax.f32 %v558, 0.0
  %v566 = vmax.f32 %v559, 0.0
  %v567 = vmax.f32 %v560, 0.0
  %v568 = vmax.f32 %v561, 0.0
  %v569 = vmax.f32 %v432, %v562
  %v570 = vmax.f32 %v433, %v563
  %v571 = vmax.f32 %v434, %v564
  %v572 = vmax.f32 %v435, %v565
  %v573 = vmax.f32 %v436, %v566
  %v574 = vmax.f32 %v437, %v567
  %v575 = vmax.f32 %v438, %v568
  %s576 = scalar_lea.vmem %s3, 168
  %v577 = vld [vmem:[%s576] sm:$0xff]
  %v578 = vld [vmem:[%s576 + $0x8] sm:$0xff]
  %v579 = vld [vmem:[%s576 + $0x10] sm:$0xff]
  %v580 = vld [vmem:[%s576 + $0x18] sm:$0xff]
  %v581 = vld [vmem:[%s576 + $0x20] sm:$0xff]
  %v582 = vld [vmem:[%s576 + $0x28] sm:$0xff]
  %v583 = vld [vmem:[%s576 + $0x30] sm:$0xff]
  %v591 = vunpack.c.l.b16 %v577
  %v592 = vunpack.c.h.b16 %v577
  %v593 = vunpack.c.l.b16 %v578
  %v594 = vunpack.c.h.b16 %v578
  %v595 = vunpack.c.l.b16 %v579
  %v596 = vunpack.c.h.b16 %v579
  %v597 = vunpack.c.l.b16 %v580
  %v598 = vunpack.c.h.b16 %v580
  %v599 = vunpack.c.l.b16 %v581
  %v600 = vunpack.c.h.b16 %v581
  %v601 = vunpack.c.l.b16 %v582
  %v602 = vunpack.c.h.b16 %v582
  %v603 = vunpack.c.l.b16 %v583
  %v604 = vunpack.c.h.b16 %v583
  %v605 = vpack.c.b16 %v593, %v591
  %v606 = vpack.c.b16 %v594, %v592
  %v607 = vpack.c.b16 %v597, %v595
  %v608 = vpack.c.b16 %v598, %v596
  %v609 = vpack.c.b16 %v601, %v599
  %v610 = vpack.c.b16 %v602, %v600
  %v611 = vpack.c.b16 %v603, %v603
  %v612 = vpack.c.b16 %v604, %v604
  %621 = vmatprep.subr.bf16.mxu0 0
  %622 = vmatpush1.bf16.msra.mxu0 %v175
  %623 = vmatprep.subr.bf16.mxu0 0
  %624 = vmatpush1.bf16.msra.mxu0 %v176
  %625 = vmatprep.subr.bf16.mxu0 0
  %626 = vmatpush1.bf16.msra.mxu0 %v177
  %627 = vmatprep.subr.bf16.mxu0 0
  %628 = vmatpush1.bf16.msra.mxu0 %v178
  %629 = vmatprep.subr.bf16.mxu0 0
  %630 = vmatpush1.bf16.msra.mxu0 %v179
  %631 = vmatprep.subr.bf16.mxu0 0
  %632 = vmatpush1.bf16.msra.mxu0 %v180
  %633 = vmatprep.subr.bf16.mxu0 0
  %634 = vmatpush1.bf16.msra.mxu0 %v181
  %635 = vmatprep.subr.bf16.mxu0 0
  %636 = vmatpush1.bf16.msra.mxu0 %v182
  %637 = vmatprep.subr.bf16.mxu0 0
  %638 = vmatpush1.bf16.msra.mxu0 %v183
  %639 = vmatprep.subr.bf16.mxu0 0
  %640 = vmatpush1.bf16.msra.mxu0 %v184
  %641 = vmatprep.subr.bf16.mxu0 0
  %642 = vmatpush1.bf16.msra.mxu0 %v185
  %643 = vmatprep.subr.bf16.mxu0 0
  %644 = vmatpush1.bf16.msra.mxu0 %v186
  %645 = vmatprep.subr.bf16.mxu0 0
  %646 = vmatpush1.bf16.msra.mxu0 %v187
  %647 = vmatprep.subr.bf16.mxu0 0
  %648 = vmatpush1.bf16.msra.mxu0 %v188
  %649 = vmatprep.subr.bf16.mxu0 0
  %650 = vmatpush1.bf16.msra.mxu0 %v189
  %651 = vmatprep.subr.bf16.mxu0 0
  %652 = vmatpush1.bf16.msra.mxu0 %v190
  %653 = vmatprep.mubr.bf16.mxu0 %v606
  %654 = vmatmul.mubr.bf16.gmra.mrb[0].mxu0 %v605
  %v655 = vpop.f32.mrb[0].mxu0
  %v656 = vadd.f32 0.0, %v655
  %v657 = vpop.f32.mrb[0].mxu0
  %v658 = vpop.f32.mrb[0].mxu0
  %v659 = vadd.f32 0.0, %v658
  %v660 = vpop.f32.mrb[0].mxu0
  %661 = vmatprep.mubr.bf16.mxu0 %v608
  %662 = vmatmul.mubr.bf16.gmra.mrb[0].mxu0 %v607
  %v663 = vpop.f32.mrb[0].mxu0
  %v664 = vadd.f32 0.0, %v663
  %v665 = vpop.f32.mrb[0].mxu0
  %v666 = vpop.f32.mrb[0].mxu0
  %v667 = vadd.f32 0.0, %v666
  %v668 = vpop.f32.mrb[0].mxu0
  %669 = vmatprep.mubr.bf16.mxu0 %v610
  %670 = vmatmul.mubr.bf16.gmra.mrb[0].mxu0 %v609
  %v671 = vpop.f32.mrb[0].mxu0
  %v672 = vadd.f32 0.0, %v671
  %v673 = vpop.f32.mrb[0].mxu0
  %v674 = vpop.f32.mrb[0].mxu0
  %v675 = vadd.f32 0.0, %v674
  %v676 = vpop.f32.mrb[0].mxu0
  %677 = vmatprep.mubr.bf16.mxu0 %v612
  %678 = vmatmul.mubr.bf16.gmra.mrb[0].mxu0 %v611
  %v679 = vpop.f32.mrb[0].mxu0
  %v680 = vadd.f32 0.0, %v679
  %v681 = vpop.f32.mrb[0].mxu0
  %v682 = vpop.f32.mrb[0].mxu0
  %v683 = vpop.f32.mrb[0].mxu0
  %684 = vdwg.mxu0
  %v685 = vmul.f32 %v656, %v274
  %v686 = vmul.f32 %v659, %v274
  %v687 = vmul.f32 %v664, %v274
  %v688 = vmul.f32 %v667, %v274
  %v689 = vmul.f32 %v672, %v274
  %v690 = vmul.f32 %v675, %v274
  %v691 = vmul.f32 %v680, %v274
  %v692 = vadd.f32 %v685, %v286
  %v693 = vadd.f32 %v686, %v286
  %v694 = vadd.f32 %v687, %v286
  %v695 = vadd.f32 %v688, %v286
  %v696 = vadd.f32 %v689, %v286
  %v697 = vadd.f32 %v690, %v286
  %v698 = vadd.f32 %v691, %v286
  %v699 = vmax.f32 %v692, 0.0
  %v700 = vmax.f32 %v693, 0.0
  %v701 = vmax.f32 %v694, 0.0
  %v702 = vmax.f32 %v695, 0.0
  %v703 = vmax.f32 %v696, 0.0
  %v704 = vmax.f32 %v697, 0.0
  %v705 = vmax.f32 %v698, 0.0
  %v706 = vmax.f32 %v569, %v699
  %v707 = vmax.f32 %v570, %v700
  %v708 = vmax.f32 %v571, %v701
  %v709 = vmax.f32 %v572, %v702
  %v710 = vmax.f32 %v573, %v703
  %v711 = vmax.f32 %v574, %v704
  %v712 = vmax.f32 %v575, %v705
  %v713 = vpack.c.bf16 %v707, %v706
  %v714 = vpack.c.bf16 %v709, %v708
  %v715 = vpack.c.bf16 %v711, %v710
  %v716 = vpack.c.bf16 %v712, %v712
  %v721 = vunpack.c.l.b16 %v713
  %v722 = vunpack.c.h.b16 %v713
  %v723 = vunpack.c.l.b16 %v714
  %v724 = vunpack.c.h.b16 %v714
  %v725 = vunpack.c.l.b16 %v715
  %v726 = vunpack.c.h.b16 %v715
  %v727 = vunpack.c.l.b16 %v716
  %v728 = vpack.c.b16 %v721, %v721
  %v729 = vpack.c.b16 %v722, %v722
  %v730 = vpack.c.b16 %v723, %v723
  %v731 = vpack.c.b16 %v724, %v724
  %v732 = vpack.c.b16 %v725, %v725
  %v733 = vpack.c.b16 %v726, %v726
  %v734 = vpack.c.b16 %v727, %v727
  %742 = vst [vmem:[%s5] sm:$0xf] %v728
  %743 = vst [vmem:[%s5 + $0x4] sm:$0xf] %v729
  %744 = vst [vmem:[%s5 + $0x8] sm:$0xf] %v730
  %745 = vst [vmem:[%s5 + $0xc] sm:$0xf] %v731
  %746 = vst [vmem:[%s5 + $0x10] sm:$0xf] %v732
  %747 = vst [vmem:[%s5 + $0x14] sm:$0xf] %v733
  %748 = vst [vmem:[%s5 + $0x18] sm:$0xf] %v734
  // Predicated region
  $region22: #{lenet5_bn_forward.8} parent=0 // pred_check
    _
  $region23: #{lenet5_bn_forward.8} parent=0 // pred_check_branch
    %750 = sbr.rel (0) target = $region25
  $region24: #{lenet5_bn_forward.8} parent=0 // pred_region
    _
  $region25: #{lenet5_bn_forward.8} parent=0 // pred_fallthru
    _
  // Predicated region
  $region26: #{lenet5_bn_forward.8} parent=0 // pred_check
    _
  $region27: #{lenet5_bn_forward.8} parent=0 // pred_check_branch
    %752 = sbr.rel (0) target = $region29
  $region28: #{lenet5_bn_forward.8} parent=0 // pred_region
    _
  $region29: #{lenet5_bn_forward.8} parent=0 // pred_fallthru
    _

// kernel: lenet5_bn_forward.9
$region0: #{lenet5_bn_forward.9}
  #allocation0 [shape = 'u32[]', space=smem, size = 0x4, offset = 0x4, fixed_abs, tag = 'smem constant byte address 0x4 - core index']
  #allocation1 [shape = 'u32[144,128]{1,0:T(1,128)}', space=vmem, size = 0x12000, scoped, tag = 'internal scratch']
  %s0 = inlined_call_operand.vmem [shape: bf16[2,3200], index: 0, kind: input, shape index: {}]
  %s1 = inlined_call_operand.vmem [shape: bf16[3200,128], index: 1, kind: input, shape index: {}]
  %s2 = inlined_call_operand.vmem [shape: f32[1,128], index: 2, kind: input, shape index: {}]
  %s3 = inlined_call_operand.vmem [shape: f32[1,128], index: 3, kind: input, shape index: {}]
  %s4 = inlined_call_operand.vmem [shape: bf16[128,128], index: 4, kind: input, shape index: {}]
  %s5 = inlined_call_operand.vmem [shape: f32[1,128], index: 5, kind: input, shape index: {}]
  %s6 = inlined_call_operand.vmem [shape: f32[1,128], index: 6, kind: input, shape index: {}]
  %s7 = inlined_call_operand.vmem [shape: bf16[128,128], index: 7, kind: input, shape index: {}]
  %s8 = inlined_call_operand.vmem [shape: f32[1,128], index: 8, kind: input, shape index: {}]
  %s9 = inlined_call_operand.hbm [shape: f32[2,128], index: 9, kind: output, shape index: {}]
  %s10 = sld [smem:[#allocation0]]
  $region46: #{lenet5_bn_forward.9} parent=0
    _
  %s12 = ssub.s32 1, %s10
  %s13 = scalar_select 0, %s12, %s10
  $region1: #{lenet5_bn_forward.9} parent=0
    #allocation2 [shape = 'u8[1024]{0}', space=vmem, size = 0x400, scoped, tag = 'output window, operand 0, single buffered']
    #allocation3 [shape = 's32[1]{0}', space=sflag, size = 0x4, scoped, tag = 'scoped memory for lenet5_bn_forward.9']
    %14 = vsyncpa [#allocation3], 0
    // Predicated region
    $region2: #{lenet5_bn_forward.9} parent=1 // pred_check
      _
    $region3: #{lenet5_bn_forward.9} parent=1 // pred_check_branch
      %16 = sbr.rel (0) target = $region5
    $region4: #{lenet5_bn_forward.9} parent=1 // pred_region
      _
    $region5: #{lenet5_bn_forward.9} parent=1 // pred_fallthru
      _
    // Predicated region
    $region6: #{lenet5_bn_forward.9} parent=1 // pred_check
      _
    $region7: #{lenet5_bn_forward.9} parent=1 // pred_check_branch
      %18 = sbr.rel (0) target = $region9
    $region8: #{lenet5_bn_forward.9} parent=1 // pred_region
      _
    $region9: #{lenet5_bn_forward.9} parent=1 // pred_fallthru
      _
    // Predicated region
    $region10: #{lenet5_bn_forward.9} parent=1 // pred_check
      _
    $region11: #{lenet5_bn_forward.9} parent=1 // pred_check_branch
      %20 = sbr.rel (0) target = $region13
    $region12: #{lenet5_bn_forward.9} parent=1 // pred_region
      _
    $region13: #{lenet5_bn_forward.9} parent=1 // pred_fallthru
      _
    // Predicated region
    $region14: #{lenet5_bn_forward.9} parent=1 // pred_check
      _
    $region15: #{lenet5_bn_forward.9} parent=1 // pred_check_branch
      %22 = sbr.rel (0) target = $region17
    $region16: #{lenet5_bn_forward.9} parent=1 // pred_region
      _
    $region17: #{lenet5_bn_forward.9} parent=1 // pred_fallthru
      _
    // Predicated region
    $region18: #{lenet5_bn_forward.9} parent=1 // pred_check
      _
    $region19: #{lenet5_bn_forward.9} parent=1 // pred_check_branch
      %24 = sbr.rel (0) target = $region21
    $region20: #{lenet5_bn_forward.9} parent=1 // pred_region
      _
    $region21: #{lenet5_bn_forward.9} parent=1 // pred_fallthru
      _
    // Predicated region
    $region22: #{lenet5_bn_forward.9} parent=1 // pred_check
      _
    $region23: #{lenet5_bn_forward.9} parent=1 // pred_check_branch
      %26 = sbr.rel (0) target = $region25
    $region24: #{lenet5_bn_forward.9} parent=1 // pred_region
      _
    $region25: #{lenet5_bn_forward.9} parent=1 // pred_fallthru
      _
    // Predicated region
    $region26: #{lenet5_bn_forward.9} parent=1 // pred_check
      _
    $region27: #{lenet5_bn_forward.9} parent=1 // pred_check_branch
      %28 = sbr.rel (0) target = $region29
    $region28: #{lenet5_bn_forward.9} parent=1 // pred_region
      _
    $region29: #{lenet5_bn_forward.9} parent=1 // pred_fallthru
      _
    // Predicated region
    $region30: #{lenet5_bn_forward.9} parent=1 // pred_check
      _
    $region31: #{lenet5_bn_forward.9} parent=1 // pred_check_branch
      %30 = sbr.rel (0) target = $region33
    $region32: #{lenet5_bn_forward.9} parent=1 // pred_region
      _
    $region33: #{lenet5_bn_forward.9} parent=1 // pred_fallthru
      _
    // Predicated region
    $region34: #{lenet5_bn_forward.9} parent=1 // pred_check
      _
    $region35: #{lenet5_bn_forward.9} parent=1 // pred_check_branch
      %32 = sbr.rel (0) target = $region37
    $region36: #{lenet5_bn_forward.9} parent=1 // pred_region
      _
    $region37: #{lenet5_bn_forward.9} parent=1 // pred_fallthru
      _
    %v34 = vld [vmem:[%s0] sm:$0xff]
    %v35 = vld [vmem:[%s0 + $0x8] sm:$0xff]
    %v36 = vld [vmem:[%s0 + $0x10] sm:$0xff]
    %v37 = vld [vmem:[%s0 + $0x18] sm:$0x1]
    %v38 = vld [vmem:[%s1] sm:$0xf]
    %v39 = vld [vmem:[%s1 + $0x4] sm:$0xf]
    %v40 = vld [vmem:[%s1 + $0x8] sm:$0xf]
    %v41 = vld [vmem:[%s1 + $0xc] sm:$0xf]
    %v42 = vld [vmem:[%s1 + $0x10] sm:$0xf]
    %v43 = vld [vmem:[%s1 + $0x14] sm:$0xf]
    %v44 = vld [vmem:[%s1 + $0x18] sm:$0xf]
    %v45 = vld [vmem:[%s1 + $0x1c] sm:$0xf]
    %v46 = vld [vmem:[%s1 + $0x20] sm:$0xf]
    %v47 = vld [vmem:[%s1 + $0x24] sm:$0xf]
    %v48 = vld [vmem:[%s1 + $0x28] sm:$0xf]
    %v49 = vld [vmem:[%s1 + $0x2c] sm:$0xf]
    %v50 = vld [vmem:[%s1 + $0x30] sm:$0xf]
    %v51 = vld [vmem:[%s1 + $0x34] sm:$0xf]
    %v52 = vld [vmem:[%s1 + $0x38] sm:$0xf]
    %v53 = vld [vmem:[%s1 + $0x3c] sm:$0xf]
    %v54 = vld [vmem:[%s1 + $0x40] sm:$0xf]
    %v55 = vld [vmem:[%s1 + $0x44] sm:$0xf]
    %v56 = vld [vmem:[%s1 + $0x48] sm:$0xf]
    %v57 = vld [vmem:[%s1 + $0x4c] sm:$0xf]
    %v58 = vld [vmem:[%s1 + $0x50] sm:$0xf]
    %v59 = vld [vmem:[%s1 + $0x54] sm:$0xf]
    %v60 = vld [vmem:[%s1 + $0x58] sm:$0xf]
    %v61 = vld [vmem:[%s1 + $0x5c] sm:$0xf]
    %v62 = vld [vmem:[%s1 + $0x60] sm:$0xf]
    %v63 = vld [vmem:[%s1 + $0x64] sm:$0xf]
    %v64 = vld [vmem:[%s1 + $0x68] sm:$0xf]
    %v65 = vld [vmem:[%s1 + $0x6c] sm:$0xf]
    %v66 = vld [vmem:[%s1 + $0x70] sm:$0xf]
    %v67 = vld [vmem:[%s1 + $0x74] sm:$0xf]
    %v68 = vld [vmem:[%s1 + $0x78] sm:$0xf]
    %v69 = vld [vmem:[%s1 + $0x7c] sm:$0xf]
    %v70 = vld [vmem:[%s1 + $0x80] sm:$0xf]
    %v71 = vld [vmem:[%s1 + $0x84] sm:$0xf]
    %v72 = vld [vmem:[%s1 + $0x88] sm:$0xf]
    %v73 = vld [vmem:[%s1 + $0x8c] sm:$0xf]
    %v74 = vld [vmem:[%s1 + $0x90] sm:$0xf]
    %v75 = vld [vmem:[%s1 + $0x94] sm:$0xf]
    %v76 = vld [vmem:[%s1 + $0x98] sm:$0xf]
    %v77 = vld [vmem:[%s1 + $0x9c] sm:$0xf]
    %v78 = vld [vmem:[%s1 + $0xa0] sm:$0xf]
    %v79 = vld [vmem:[%s1 + $0xa4] sm:$0xf]
    %v80 = vld [vmem:[%s1 + $0xa8] sm:$0xf]
    %v81 = vld [vmem:[%s1 + $0xac] sm:$0xf]
    %v82 = vld [vmem:[%s1 + $0xb0] sm:$0xf]
    %v83 = vld [vmem:[%s1 + $0xb4] sm:$0xf]
    %v84 = vld [vmem:[%s1 + $0xb8] sm:$0xf]
    %v85 = vld [vmem:[%s1 + $0xbc] sm:$0xf]
    %v86 = vld [vmem:[%s1 + $0xc0] sm:$0xf]
    %v87 = vld [vmem:[%s1 + $0xc4] sm:$0xf]
    %v88 = vld [vmem:[%s1 + $0xc8] sm:$0xf]
    %v89 = vld [vmem:[%s1 + $0xcc] sm:$0xf]
    %v90 = vld [vmem:[%s1 + $0xd0] sm:$0xf]
    %v91 = vld [vmem:[%s1 + $0xd4] sm:$0xf]
    %v92 = vld [vmem:[%s1 + $0xd8] sm:$0xf]
    %v93 = vld [vmem:[%s1 + $0xdc] sm:$0xf]
    %v94 = vld [vmem:[%s1 + $0xe0] sm:$0xf]
    %v95 = vld [vmem:[%s1 + $0xe4] sm:$0xf]
    %v96 = vld [vmem:[%s1 + $0xe8] sm:$0xf]
    %v97 = vld [vmem:[%s1 + $0xec] sm:$0xf]
    %v98 = vld [vmem:[%s1 + $0xf0] sm:$0xf]
    %v99 = vld [vmem:[%s1 + $0xf4] sm:$0xf]
    %v100 = vld [vmem:[%s1 + $0xf8] sm:$0xf]
    %v101 = vld [vmem:[%s1 + $0xfc] sm:$0xf]
    %v102 = vld [vmem:[%s1 + $0x100] sm:$0xf]
    %v103 = vld [vmem:[%s1 + $0x104] sm:$0xf]
    %v104 = vld [vmem:[%s1 + $0x108] sm:$0xf]
    %v105 = vld [vmem:[%s1 + $0x10c] sm:$0xf]
    %v106 = vld [vmem:[%s1 + $0x110] sm:$0xf]
    %v107 = vld [vmem:[%s1 + $0x114] sm:$0xf]
    %v108 = vld [vmem:[%s1 + $0x118] sm:$0xf]
    %v109 = vld [vmem:[%s1 + $0x11c] sm:$0xf]
    %v110 = vld [vmem:[%s1 + $0x120] sm:$0xf]
    %v111 = vld [vmem:[%s1 + $0x124] sm:$0xf]
    %v112 = vld [vmem:[%s1 + $0x128] sm:$0xf]
    %v113 = vld [vmem:[%s1 + $0x12c] sm:$0xf]
    %v114 = vld [vmem:[%s1 + $0x130] sm:$0xf]
    %v115 = vld [vmem:[%s1 + $0x134] sm:$0xf]
    %v116 = vld [vmem:[%s1 + $0x138] sm:$0xf]
    %v117 = vld [vmem:[%s1 + $0x13c] sm:$0xf]
    %v118 = vld [vmem:[%s1 + $0x140] sm:$0xf]
    %v119 = vld [vmem:[%s1 + $0x144] sm:$0xf]
    %v120 = vld [vmem:[%s1 + $0x148] sm:$0xf]
    %v121 = vld [vmem:[%s1 + $0x14c] sm:$0xf]
    %v122 = vld [vmem:[%s1 + $0x150] sm:$0xf]
    %v123 = vld [vmem:[%s1 + $0x154] sm:$0xf]
    %v124 = vld [vmem:[%s1 + $0x158] sm:$0xf]
    %v125 = vld [vmem:[%s1 + $0x15c] sm:$0xf]
    %v126 = vld [vmem:[%s1 + $0x160] sm:$0xf]
    %v127 = vld [vmem:[%s1 + $0x164] sm:$0xf]
    %v128 = vld [vmem:[%s1 + $0x168] sm:$0xf]
    %v129 = vld [vmem:[%s1 + $0x16c] sm:$0xf]
    %v130 = vld [vmem:[%s1 + $0x170] sm:$0xf]
    %v131 = vld [vmem:[%s1 + $0x174] sm:$0xf]
    %v132 = vld [vmem:[%s1 + $0x178] sm:$0xf]
    %v133 = vld [vmem:[%s1 + $0x17c] sm:$0xf]
    %v134 = vld [vmem:[%s1 + $0x180] sm:$0xf]
    %v135 = vld [vmem:[%s1 + $0x184] sm:$0xf]
    %v136 = vld [vmem:[%s1 + $0x188] sm:$0xf]
    %v137 = vld [vmem:[%s1 + $0x18c] sm:$0xf]
    %v138 = vld [vmem:[%s1 + $0x190] sm:$0xf]
    %v139 = vld [vmem:[%s1 + $0x194] sm:$0xf]
    %v140 = vld [vmem:[%s1 + $0x198] sm:$0xf]
    %v141 = vld [vmem:[%s1 + $0x19c] sm:$0xf]
    %v142 = vld [vmem:[%s1 + $0x1a0] sm:$0xf]
    %v143 = vld [vmem:[%s1 + $0x1a4] sm:$0xf]
    %v144 = vld [vmem:[%s1 + $0x1a8] sm:$0xf]
    %v145 = vld [vmem:[%s1 + $0x1ac] sm:$0xf]
    %v146 = vld [vmem:[%s1 + $0x1b0] sm:$0xf]
    %v147 = vld [vmem:[%s1 + $0x1b4] sm:$0xf]
    %v148 = vld [vmem:[%s1 + $0x1b8] sm:$0xf]
    %v149 = vld [vmem:[%s1 + $0x1bc] sm:$0xf]
    %v150 = vld [vmem:[%s1 + $0x1c0] sm:$0xf]
    %v151 = vld [vmem:[%s1 + $0x1c4] sm:$0xf]
    %v152 = vld [vmem:[%s1 + $0x1c8] sm:$0xf]
    %v153 = vld [vmem:[%s1 + $0x1cc] sm:$0xf]
    %v154 = vld [vmem:[%s1 + $0x1d0] sm:$0xf]
    %v155 = vld [vmem:[%s1 + $0x1d4] sm:$0xf]
    %v156 = vld [vmem:[%s1 + $0x1d8] sm:$0xf]
    %v157 = vld [vmem:[%s1 + $0x1dc] sm:$0xf]
    %v158 = vld [vmem:[%s1 + $0x1e0] sm:$0xf]
    %v159 = vld [vmem:[%s1 + $0x1e4] sm:$0xf]
    %v160 = vld [vmem:[%s1 + $0x1e8] sm:$0xf]
    %v161 = vld [vmem:[%s1 + $0x1ec] sm:$0xf]
    %v162 = vld [vmem:[%s1 + $0x1f0] sm:$0xf]
    %v163 = vld [vmem:[%s1 + $0x1f4] sm:$0xf]
    %v164 = vld [vmem:[%s1 + $0x1f8] sm:$0xf]
    %v165 = vld [vmem:[%s1 + $0x1fc] sm:$0xf]
    %v166 = vld [vmem:[%s1 + $0x200] sm:$0xf]
    %v167 = vld [vmem:[%s1 + $0x204] sm:$0xf]
    %v168 = vld [vmem:[%s1 + $0x208] sm:$0xf]
    %v169 = vld [vmem:[%s1 + $0x20c] sm:$0xf]
    %v170 = vld [vmem:[%s1 + $0x210] sm:$0xf]
    %v171 = vld [vmem:[%s1 + $0x214] sm:$0xf]
    %v172 = vld [vmem:[%s1 + $0x218] sm:$0xf]
    %v173 = vld [vmem:[%s1 + $0x21c] sm:$0xf]
    %v174 = vld [vmem:[%s1 + $0x220] sm:$0xf]
    %v175 = vld [vmem:[%s1 + $0x224] sm:$0xf]
    %v176 = vld [vmem:[%s1 + $0x228] sm:$0xf]
    %v177 = vld [vmem:[%s1 + $0x22c] sm:$0xf]
    %v178 = vld [vmem:[%s1 + $0x230] sm:$0xf]
    %v179 = vld [vmem:[%s1 + $0x234] sm:$0xf]
    %v180 = vld [vmem:[%s1 + $0x238] sm:$0xf]
    %v181 = vld [vmem:[%s1 + $0x23c] sm:$0xf]
    %v182 = vld [vmem:[%s1 + $0x240] sm:$0xf]
    %v183 = vld [vmem:[%s1 + $0x244] sm:$0xf]
    %v184 = vld [vmem:[%s1 + $0x248] sm:$0xf]
    %v185 = vld [vmem:[%s1 + $0x24c] sm:$0xf]
    %v186 = vld [vmem:[%s1 + $0x250] sm:$0xf]
    %v187 = vld [vmem:[%s1 + $0x254] sm:$0xf]
    %v188 = vld [vmem:[%s1 + $0x258] sm:$0xf]
    %v189 = vld [vmem:[%s1 + $0x25c] sm:$0xf]
    %v190 = vld [vmem:[%s1 + $0x260] sm:$0xf]
    %v191 = vld [vmem:[%s1 + $0x264] sm:$0xf]
    %v192 = vld [vmem:[%s1 + $0x268] sm:$0xf]
    %v193 = vld [vmem:[%s1 + $0x26c] sm:$0xf]
    %v194 = vld [vmem:[%s1 + $0x270] sm:$0xf]
    %v195 = vld [vmem:[%s1 + $0x274] sm:$0xf]
    %v196 = vld [vmem:[%s1 + $0x278] sm:$0xf]
    %v197 = vld [vmem:[%s1 + $0x27c] sm:$0xf]
    %v198 = vld [vmem:[%s1 + $0x280] sm:$0xf]
    %v199 = vld [vmem:[%s1 + $0x284] sm:$0xf]
    %v200 = vld [vmem:[%s1 + $0x288] sm:$0xf]
    %v201 = vld [vmem:[%s1 + $0x28c] sm:$0xf]
    %v202 = vld [vmem:[%s1 + $0x290] sm:$0xf]
    %v203 = vld [vmem:[%s1 + $0x294] sm:$0xf]
    %v204 = vld [vmem:[%s1 + $0x298] sm:$0xf]
    %v205 = vld [vmem:[%s1 + $0x29c] sm:$0xf]
    %v206 = vld [vmem:[%s1 + $0x2a0] sm:$0xf]
    %v207 = vld [vmem:[%s1 + $0x2a4] sm:$0xf]
    %v208 = vld [vmem:[%s1 + $0x2a8] sm:$0xf]
    %v209 = vld [vmem:[%s1 + $0x2ac] sm:$0xf]
    %v210 = vld [vmem:[%s1 + $0x2b0] sm:$0xf]
    %v211 = vld [vmem:[%s1 + $0x2b4] sm:$0xf]
    %v212 = vld [vmem:[%s1 + $0x2b8] sm:$0xf]
    %v213 = vld [vmem:[%s1 + $0x2bc] sm:$0xf]
    %v214 = vld [vmem:[%s1 + $0x2c0] sm:$0xf]
    %v215 = vld [vmem:[%s1 + $0x2c4] sm:$0xf]
    %v216 = vld [vmem:[%s1 + $0x2c8] sm:$0xf]
    %v217 = vld [vmem:[%s1 + $0x2cc] sm:$0xf]
    %v218 = vld [vmem:[%s1 + $0x2d0] sm:$0xf]
    %v219 = vld [vmem:[%s1 + $0x2d4] sm:$0xf]
    %v220 = vld [vmem:[%s1 + $0x2d8] sm:$0xf]
    %v221 = vld [vmem:[%s1 + $0x2dc] sm:$0xf]
    %v222 = vld [vmem:[%s1 + $0x2e0] sm:$0xf]
    %v223 = vld [vmem:[%s1 + $0x2e4] sm:$0xf]
    %v224 = vld [vmem:[%s1 + $0x2e8] sm:$0xf]
    %v225 = vld [vmem:[%s1 + $0x2ec] sm:$0xf]
    %v226 = vld [vmem:[%s1 + $0x2f0] sm:$0xf]
    %v227 = vld [vmem:[%s1 + $0x2f4] sm:$0xf]
    %v228 = vld [vmem:[%s1 + $0x2f8] sm:$0xf]
    %v229 = vld [vmem:[%s1 + $0x2fc] sm:$0xf]
    %v230 = vld [vmem:[%s1 + $0x300] sm:$0xf]
    %v231 = vld [vmem:[%s1 + $0x304] sm:$0xf]
    %v232 = vld [vmem:[%s1 + $0x308] sm:$0xf]
    %v233 = vld [vmem:[%s1 + $0x30c] sm:$0xf]
    %v234 = vld [vmem:[%s1 + $0x310] sm:$0xf]
    %v235 = vld [vmem:[%s1 + $0x314] sm:$0xf]
    %v236 = vld [vmem:[%s1 + $0x318] sm:$0xf]
    %v237 = vld [vmem:[%s1 + $0x31c] sm:$0xf]
    %v238 = vld [vmem:[%s1 + $0x320] sm:$0xf]
    %v239 = vld [vmem:[%s1 + $0x324] sm:$0xf]
    %v240 = vld [vmem:[%s1 + $0x328] sm:$0xf]
    %v241 = vld [vmem:[%s1 + $0x32c] sm:$0xf]
    %v242 = vld [vmem:[%s1 + $0x330] sm:$0xf]
    %v243 = vld [vmem:[%s1 + $0x334] sm:$0xf]
    %v244 = vld [vmem:[%s1 + $0x338] sm:$0xf]
    %v245 = vld [vmem:[%s1 + $0x33c] sm:$0xf]
    %v246 = vld [vmem:[%s1 + $0x340] sm:$0xf]
    %v247 = vld [vmem:[%s1 + $0x344] sm:$0xf]
    %v248 = vld [vmem:[%s1 + $0x348] sm:$0xf]
    %v249 = vld [vmem:[%s1 + $0x34c] sm:$0xf]
    %v250 = vld [vmem:[%s1 + $0x350] sm:$0xf]
    %v251 = vld [vmem:[%s1 + $0x354] sm:$0xf]
    %v252 = vld [vmem:[%s1 + $0x358] sm:$0xf]
    %v253 = vld [vmem:[%s1 + $0x35c] sm:$0xf]
    %v254 = vld [vmem:[%s1 + $0x360] sm:$0xf]
    %v255 = vld [vmem:[%s1 + $0x364] sm:$0xf]
    %v256 = vld [vmem:[%s1 + $0x368] sm:$0xf]
    %v257 = vld [vmem:[%s1 + $0x36c] sm:$0xf]
    %v258 = vld [vmem:[%s1 + $0x370] sm:$0xf]
    %v259 = vld [vmem:[%s1 + $0x374] sm:$0xf]
    %v260 = vld [vmem:[%s1 + $0x378] sm:$0xf]
    %v261 = vld [vmem:[%s1 + $0x37c] sm:$0xf]
    %v262 = vld [vmem:[%s1 + $0x380] sm:$0xf]
    %v263 = vld [vmem:[%s1 + $0x384] sm:$0xf]
    %v264 = vld [vmem:[%s1 + $0x388] sm:$0xf]
    %v265 = vld [vmem:[%s1 + $0x38c] sm:$0xf]
    %v266 = vld [vmem:[%s1 + $0x390] sm:$0xf]
    %v267 = vld [vmem:[%s1 + $0x394] sm:$0xf]
    %v268 = vld [vmem:[%s1 + $0x398] sm:$0xf]
    %v269 = vld [vmem:[%s1 + $0x39c] sm:$0xf]
    %v270 = vld [vmem:[%s1 + $0x3a0] sm:$0xf]
    %v271 = vld [vmem:[%s1 + $0x3a4] sm:$0xf]
    %v272 = vld [vmem:[%s1 + $0x3a8] sm:$0xf]
    %v273 = vld [vmem:[%s1 + $0x3ac] sm:$0xf]
    %v274 = vld [vmem:[%s1 + $0x3b0] sm:$0xf]
    %v275 = vld [vmem:[%s1 + $0x3b4] sm:$0xf]
    %v276 = vld [vmem:[%s1 + $0x3b8] sm:$0xf]
    %v277 = vld [vmem:[%s1 + $0x3bc] sm:$0xf]
    %v278 = vld [vmem:[%s1 + $0x3c0] sm:$0xf]
    %v279 = vld [vmem:[%s1 + $0x3c4] sm:$0xf]
    %v280 = vld [vmem:[%s1 + $0x3c8] sm:$0xf]
    %v281 = vld [vmem:[%s1 + $0x3cc] sm:$0xf]
    %v282 = vld [vmem:[%s1 + $0x3d0] sm:$0xf]
    %v283 = vld [vmem:[%s1 + $0x3d4] sm:$0xf]
    %v284 = vld [vmem:[%s1 + $0x3d8] sm:$0xf]
    %v285 = vld [vmem:[%s1 + $0x3dc] sm:$0xf]
    %v286 = vld [vmem:[%s1 + $0x3e0] sm:$0xf]
    %v287 = vld [vmem:[%s1 + $0x3e4] sm:$0xf]
    %v288 = vld [vmem:[%s1 + $0x3e8] sm:$0xf]
    %v289 = vld [vmem:[%s1 + $0x3ec] sm:$0xf]
    %v290 = vld [vmem:[%s1 + $0x3f0] sm:$0xf]
    %v291 = vld [vmem:[%s1 + $0x3f4] sm:$0xf]
    %v292 = vld [vmem:[%s1 + $0x3f8] sm:$0xf]
    %v293 = vld [vmem:[%s1 + $0x3fc] sm:$0xf]
    %v294 = vld [vmem:[%s1 + $0x400] sm:$0xf]
    %v295 = vld [vmem:[%s1 + $0x404] sm:$0xf]
    %v296 = vld [vmem:[%s1 + $0x408] sm:$0xf]
    %v297 = vld [vmem:[%s1 + $0x40c] sm:$0xf]
    %v298 = vld [vmem:[%s1 + $0x410] sm:$0xf]
    %v299 = vld [vmem:[%s1 + $0x414] sm:$0xf]
    %v300 = vld [vmem:[%s1 + $0x418] sm:$0xf]
    %v301 = vld [vmem:[%s1 + $0x41c] sm:$0xf]
    %v302 = vld [vmem:[%s1 + $0x420] sm:$0xf]
    %v303 = vld [vmem:[%s1 + $0x424] sm:$0xf]
    %v304 = vld [vmem:[%s1 + $0x428] sm:$0xf]
    %v305 = vld [vmem:[%s1 + $0x42c] sm:$0xf]
    %v306 = vld [vmem:[%s1 + $0x430] sm:$0xf]
    %v307 = vld [vmem:[%s1 + $0x434] sm:$0xf]
    %v308 = vld [vmem:[%s1 + $0x438] sm:$0xf]
    %v309 = vld [vmem:[%s1 + $0x43c] sm:$0xf]
    %v310 = vld [vmem:[%s1 + $0x440] sm:$0xf]
    %v311 = vld [vmem:[%s1 + $0x444] sm:$0xf]
    %v312 = vld [vmem:[%s1 + $0x448] sm:$0xf]
    %v313 = vld [vmem:[%s1 + $0x44c] sm:$0xf]
    %v314 = vld [vmem:[%s1 + $0x450] sm:$0xf]
    %v315 = vld [vmem:[%s1 + $0x454] sm:$0xf]
    %v316 = vld [vmem:[%s1 + $0x458] sm:$0xf]
    %v317 = vld [vmem:[%s1 + $0x45c] sm:$0xf]
    %v318 = vld [vmem:[%s1 + $0x460] sm:$0xf]
    %v319 = vld [vmem:[%s1 + $0x464] sm:$0xf]
    %v320 = vld [vmem:[%s1 + $0x468] sm:$0xf]
    %v321 = vld [vmem:[%s1 + $0x46c] sm:$0xf]
    %v322 = vld [vmem:[%s1 + $0x470] sm:$0xf]
    %v323 = vld [vmem:[%s1 + $0x474] sm:$0xf]
    %v324 = vld [vmem:[%s1 + $0x478] sm:$0xf]
    %v325 = vld [vmem:[%s1 + $0x47c] sm:$0xf]
    %v326 = vld [vmem:[%s1 + $0x480] sm:$0xf]
    %v327 = vld [vmem:[%s1 + $0x484] sm:$0xf]
    %v328 = vld [vmem:[%s1 + $0x488] sm:$0xf]
    %v329 = vld [vmem:[%s1 + $0x48c] sm:$0xf]
    %v330 = vld [vmem:[%s1 + $0x490] sm:$0xf]
    %v331 = vld [vmem:[%s1 + $0x494] sm:$0xf]
    %v332 = vld [vmem:[%s1 + $0x498] sm:$0xf]
    %v333 = vld [vmem:[%s1 + $0x49c] sm:$0xf]
    %v334 = vld [vmem:[%s1 + $0x4a0] sm:$0xf]
    %v335 = vld [vmem:[%s1 + $0x4a4] sm:$0xf]
    %v336 = vld [vmem:[%s1 + $0x4a8] sm:$0xf]
    %v337 = vld [vmem:[%s1 + $0x4ac] sm:$0xf]
    %v338 = vld [vmem:[%s1 + $0x4b0] sm:$0xf]
    %v339 = vld [vmem:[%s1 + $0x4b4] sm:$0xf]
    %v340 = vld [vmem:[%s1 + $0x4b8] sm:$0xf]
    %v341 = vld [vmem:[%s1 + $0x4bc] sm:$0xf]
    %v342 = vld [vmem:[%s1 + $0x4c0] sm:$0xf]
    %v343 = vld [vmem:[%s1 + $0x4c4] sm:$0xf]
    %v344 = vld [vmem:[%s1 + $0x4c8] sm:$0xf]
    %v345 = vld [vmem:[%s1 + $0x4cc] sm:$0xf]
    %v346 = vld [vmem:[%s1 + $0x4d0] sm:$0xf]
    %v347 = vld [vmem:[%s1 + $0x4d4] sm:$0xf]
    %v348 = vld [vmem:[%s1 + $0x4d8] sm:$0xf]
    %v349 = vld [vmem:[%s1 + $0x4dc] sm:$0xf]
    %v350 = vld [vmem:[%s1 + $0x4e0] sm:$0xf]
    %v351 = vld [vmem:[%s1 + $0x4e4] sm:$0xf]
    %v352 = vld [vmem:[%s1 + $0x4e8] sm:$0xf]
    %v353 = vld [vmem:[%s1 + $0x4ec] sm:$0xf]
    %v354 = vld [vmem:[%s1 + $0x4f0] sm:$0xf]
    %v355 = vld [vmem:[%s1 + $0x4f4] sm:$0xf]
    %v356 = vld [vmem:[%s1 + $0x4f8] sm:$0xf]
    %v357 = vld [vmem:[%s1 + $0x4fc] sm:$0xf]
    %v358 = vld [vmem:[%s1 + $0x500] sm:$0xf]
    %v359 = vld [vmem:[%s1 + $0x504] sm:$0xf]
    %v360 = vld [vmem:[%s1 + $0x508] sm:$0xf]
    %v361 = vld [vmem:[%s1 + $0x50c] sm:$0xf]
    %v362 = vld [vmem:[%s1 + $0x510] sm:$0xf]
    %v363 = vld [vmem:[%s1 + $0x514] sm:$0xf]
    %v364 = vld [vmem:[%s1 + $0x518] sm:$0xf]
    %v365 = vld [vmem:[%s1 + $0x51c] sm:$0xf]
    %v366 = vld [vmem:[%s1 + $0x520] sm:$0xf]
    %v367 = vld [vmem:[%s1 + $0x524] sm:$0xf]
    %v368 = vld [vmem:[%s1 + $0x528] sm:$0xf]
    %v369 = vld [vmem:[%s1 + $0x52c] sm:$0xf]
    %v370 = vld [vmem:[%s1 + $0x530] sm:$0xf]
    %v371 = vld [vmem:[%s1 + $0x534] sm:$0xf]
    %v372 = vld [vmem:[%s1 + $0x538] sm:$0xf]
    %v373 = vld [vmem:[%s1 + $0x53c] sm:$0xf]
    %v374 = vld [vmem:[%s1 + $0x540] sm:$0xf]
    %v375 = vld [vmem:[%s1 + $0x544] sm:$0xf]
    %v376 = vld [vmem:[%s1 + $0x548] sm:$0xf]
    %v377 = vld [vmem:[%s1 + $0x54c] sm:$0xf]
    %v378 = vld [vmem:[%s1 + $0x550] sm:$0xf]
    %v379 = vld [vmem:[%s1 + $0x554] sm:$0xf]
    %v380 = vld [vmem:[%s1 + $0x558] sm:$0xf]
    %v381 = vld [vmem:[%s1 + $0x55c] sm:$0xf]
    %v382 = vld [vmem:[%s1 + $0x560] sm:$0xf]
    %v383 = vld [vmem:[%s1 + $0x564] sm:$0xf]
    %v384 = vld [vmem:[%s1 + $0x568] sm:$0xf]
    %v385 = vld [vmem:[%s1 + $0x56c] sm:$0xf]
    %v386 = vld [vmem:[%s1 + $0x570] sm:$0xf]
    %v387 = vld [vmem:[%s1 + $0x574] sm:$0xf]
    %v388 = vld [vmem:[%s1 + $0x578] sm:$0xf]
    %v389 = vld [vmem:[%s1 + $0x57c] sm:$0xf]
    %v390 = vld [vmem:[%s1 + $0x580] sm:$0xf]
    %v391 = vld [vmem:[%s1 + $0x584] sm:$0xf]
    %v392 = vld [vmem:[%s1 + $0x588] sm:$0xf]
    %v393 = vld [vmem:[%s1 + $0x58c] sm:$0xf]
    %v394 = vld [vmem:[%s1 + $0x590] sm:$0xf]
    %v395 = vld [vmem:[%s1 + $0x594] sm:$0xf]
    %v396 = vld [vmem:[%s1 + $0x598] sm:$0xf]
    %v397 = vld [vmem:[%s1 + $0x59c] sm:$0xf]
    %v398 = vld [vmem:[%s1 + $0x5a0] sm:$0xf]
    %v399 = vld [vmem:[%s1 + $0x5a4] sm:$0xf]
    %v400 = vld [vmem:[%s1 + $0x5a8] sm:$0xf]
    %v401 = vld [vmem:[%s1 + $0x5ac] sm:$0xf]
    %v402 = vld [vmem:[%s1 + $0x5b0] sm:$0xf]
    %v403 = vld [vmem:[%s1 + $0x5b4] sm:$0xf]
    %v404 = vld [vmem:[%s1 + $0x5b8] sm:$0xf]
    %v405 = vld [vmem:[%s1 + $0x5bc] sm:$0xf]
    %v406 = vld [vmem:[%s1 + $0x5c0] sm:$0xf]
    %v407 = vld [vmem:[%s1 + $0x5c4] sm:$0xf]
    %v408 = vld [vmem:[%s1 + $0x5c8] sm:$0xf]
    %v409 = vld [vmem:[%s1 + $0x5cc] sm:$0xf]
    %v410 = vld [vmem:[%s1 + $0x5d0] sm:$0xf]
    %v411 = vld [vmem:[%s1 + $0x5d4] sm:$0xf]
    %v412 = vld [vmem:[%s1 + $0x5d8] sm:$0xf]
    %v413 = vld [vmem:[%s1 + $0x5dc] sm:$0xf]
    %v414 = vld [vmem:[%s1 + $0x5e0] sm:$0xf]
    %v415 = vld [vmem:[%s1 + $0x5e4] sm:$0xf]
    %v416 = vld [vmem:[%s1 + $0x5e8] sm:$0xf]
    %v417 = vld [vmem:[%s1 + $0x5ec] sm:$0xf]
    %v418 = vld [vmem:[%s1 + $0x5f0] sm:$0xf]
    %v419 = vld [vmem:[%s1 + $0x5f4] sm:$0xf]
    %v420 = vld [vmem:[%s1 + $0x5f8] sm:$0xf]
    %v421 = vld [vmem:[%s1 + $0x5fc] sm:$0xf]
    %v422 = vld [vmem:[%s1 + $0x600] sm:$0xf]
    %v423 = vld [vmem:[%s1 + $0x604] sm:$0xf]
    %v424 = vld [vmem:[%s1 + $0x608] sm:$0xf]
    %v425 = vld [vmem:[%s1 + $0x60c] sm:$0xf]
    %v426 = vld [vmem:[%s1 + $0x610] sm:$0xf]
    %v427 = vld [vmem:[%s1 + $0x614] sm:$0xf]
    %v428 = vld [vmem:[%s1 + $0x618] sm:$0xf]
    %v429 = vld [vmem:[%s1 + $0x61c] sm:$0xf]
    %v430 = vld [vmem:[%s1 + $0x620] sm:$0xf]
    %v431 = vld [vmem:[%s1 + $0x624] sm:$0xf]
    %v432 = vld [vmem:[%s1 + $0x628] sm:$0xf]
    %v433 = vld [vmem:[%s1 + $0x62c] sm:$0xf]
    %v434 = vld [vmem:[%s1 + $0x630] sm:$0xf]
    %v435 = vld [vmem:[%s1 + $0x634] sm:$0xf]
    %v436 = vld [vmem:[%s1 + $0x638] sm:$0xf]
    %v437 = vld [vmem:[%s1 + $0x63c] sm:$0xf]
    %v442 = vcombine.high %v34, %v34
    %v444 = vunpack.c.l.s4 1966171168
    %v445 = vunpack.c.0.s8 %v444
    %v446 = vlaneseq
    %v447 = vshrl.u32 %v446, 7
    %v448 = vsub.s32 %v445, %v447
    %v449 = vrot.slane %v34, %v448
    %v451 = vunpack.c.l.s4 1966171168
    %v452 = vunpack.c.0.s8 %v451
    %v453 = vlaneseq
    %v454 = vshrl.u32 %v453, 7
    %v455 = vsub.s32 %v452, %v454
    %v456 = vrot.slane %v442, %v455
    %v457 = vcombine.high %v449, %v449
    %v458 = vcombine.high %v456, %v456
    %v460 = vunpack.c.l.s4 1966171168
    %v461 = vunpack.c.0.s8 %v460
    %v462 = vlaneseq
    %v463 = vshrl.u32 %v462, 7
    %v464 = vsub.s32 %v461, %v463
    %v465 = vrot.slane %v449, %v464
    %v467 = vunpack.c.l.s4 1966171168
    %v468 = vunpack.c.0.s8 %v467
    %v469 = vlaneseq
    %v470 = vshrl.u32 %v469, 7
    %v471 = vsub.s32 %v468, %v470
    %v472 = vrot.slane %v456, %v471
    %v474 = vunpack.c.l.s4 1966171168
    %v475 = vunpack.c.0.s8 %v474
    %v476 = vlaneseq
    %v477 = vshrl.u32 %v476, 7
    %v478 = vsub.s32 %v475, %v477
    %v479 = vrot.slane %v457, %v478
    %v481 = vunpack.c.l.s4 1966171168
    %v482 = vunpack.c.0.s8 %v481
    %v483 = vlaneseq
    %v484 = vshrl.u32 %v483, 7
    %v485 = vsub.s32 %v482, %v484
    %v486 = vrot.slane %v458, %v485
    %v487 = vcombine.high %v465, %v465
    %v488 = vcombine.high %v472, %v472
    %v489 = vcombine.high %v479, %v479
    %v490 = vcombine.high %v486, %v486
    %v491 = vcombine.high %v35, %v35
    %v493 = vunpack.c.l.s4 1966171168
    %v494 = vunpack.c.0.s8 %v493
    %v495 = vlaneseq
    %v496 = vshrl.u32 %v495, 7
    %v497 = vsub.s32 %v494, %v496
    %v498 = vrot.slane %v35, %v497
    %v500 = vunpack.c.l.s4 1966171168
    %v501 = vunpack.c.0.s8 %v500
    %v502 = vlaneseq
    %v503 = vshrl.u32 %v502, 7
    %v504 = vsub.s32 %v501, %v503
    %v505 = vrot.slane %v491, %v504
    %v506 = vcombine.high %v498, %v498
    %v507 = vcombine.high %v505, %v505
    %v509 = vunpack.c.l.s4 1966171168
    %v510 = vunpack.c.0.s8 %v509
    %v511 = vlaneseq
    %v512 = vshrl.u32 %v511, 7
    %v513 = vsub.s32 %v510, %v512
    %v514 = vrot.slane %v498, %v513
    %v516 = vunpack.c.l.s4 1966171168
    %v517 = vunpack.c.0.s8 %v516
    %v518 = vlaneseq
    %v519 = vshrl.u32 %v518, 7
    %v520 = vsub.s32 %v517, %v519
    %v521 = vrot.slane %v505, %v520
    %v523 = vunpack.c.l.s4 1966171168
    %v524 = vunpack.c.0.s8 %v523
    %v525 = vlaneseq
    %v526 = vshrl.u32 %v525, 7
    %v527 = vsub.s32 %v524, %v526
    %v528 = vrot.slane %v506, %v527
    %v530 = vunpack.c.l.s4 1966171168
    %v531 = vunpack.c.0.s8 %v530
    %v532 = vlaneseq
    %v533 = vshrl.u32 %v532, 7
    %v534 = vsub.s32 %v531, %v533
    %v535 = vrot.slane %v507, %v534
    %v536 = vcombine.high %v514, %v514
    %v537 = vcombine.high %v521, %v521
    %v538 = vcombine.high %v528, %v528
    %v539 = vcombine.high %v535, %v535
    %v540 = vcombine.high %v36, %v36
    %v542 = vunpack.c.l.s4 1966171168
    %v543 = vunpack.c.0.s8 %v542
    %v544 = vlaneseq
    %v545 = vshrl.u32 %v544, 7
    %v546 = vsub.s32 %v543, %v545
    %v547 = vrot.slane %v36, %v546
    %v549 = vunpack.c.l.s4 1966171168
    %v550 = vunpack.c.0.s8 %v549
    %v551 = vlaneseq
    %v552 = vshrl.u32 %v551, 7
    %v553 = vsub.s32 %v550, %v552
    %v554 = vrot.slane %v540, %v553
    %v555 = vcombine.high %v547, %v547
    %v556 = vcombine.high %v554, %v554
    %v558 = vunpack.c.l.s4 1966171168
    %v559 = vunpack.c.0.s8 %v558
    %v560 = vlaneseq
    %v561 = vshrl.u32 %v560, 7
    %v562 = vsub.s32 %v559, %v561
    %v563 = vrot.slane %v547, %v562
    %v565 = vunpack.c.l.s4 1966171168
    %v566 = vunpack.c.0.s8 %v565
    %v567 = vlaneseq
    %v568 = vshrl.u32 %v567, 7
    %v569 = vsub.s32 %v566, %v568
    %v570 = vrot.slane %v554, %v569
    %v572 = vunpack.c.l.s4 1966171168
    %v573 = vunpack.c.0.s8 %v572
    %v574 = vlaneseq
    %v575 = vshrl.u32 %v574, 7
    %v576 = vsub.s32 %v573, %v575
    %v577 = vrot.slane %v555, %v576
    %v579 = vunpack.c.l.s4 1966171168
    %v580 = vunpack.c.0.s8 %v579
    %v581 = vlaneseq
    %v582 = vshrl.u32 %v581, 7
    %v583 = vsub.s32 %v580, %v582
    %v584 = vrot.slane %v556, %v583
    %v585 = vcombine.high %v563, %v563
    %v586 = vcombine.high %v570, %v570
    %v587 = vcombine.high %v577, %v577
    %v588 = vcombine.high %v584, %v584
    %v590 = vunpack.c.l.s4 1966171168
    %v591 = vunpack.c.0.s8 %v590
    %v592 = vlaneseq
    %v593 = vshrl.u32 %v592, 7
    %v594 = vsub.s32 %v591, %v593
    %v595 = vrot.slane %v37, %v594
    %v597 = vunpack.c.l.s4 1966171168
    %v598 = vunpack.c.0.s8 %v597
    %v599 = vlaneseq
    %v600 = vshrl.u32 %v599, 7
    %v601 = vsub.s32 %v598, %v600
    %v602 = vrot.slane %v595, %v601
    %v1028 = vunpack.c.l.b16 %v38
    %v1029 = vunpack.c.l.b16 %v39
    %v1030 = vunpack.c.l.b16 %v40
    %v1031 = vunpack.c.l.b16 %v41
    %v1032 = vunpack.c.l.b16 %v42
    %v1033 = vunpack.c.l.b16 %v43
    %v1034 = vunpack.c.l.b16 %v44
    %v1035 = vunpack.c.l.b16 %v45
    %v1036 = vunpack.c.l.b16 %v46
    %v1037 = vunpack.c.l.b16 %v47
    %v1038 = vunpack.c.l.b16 %v48
    %v1039 = vunpack.c.l.b16 %v49
    %v1040 = vunpack.c.l.b16 %v50
    %v1041 = vunpack.c.l.b16 %v51
    %v1042 = vunpack.c.l.b16 %v52
    %v1043 = vunpack.c.l.b16 %v53
    %v1044 = vunpack.c.l.b16 %v54
    %v1045 = vunpack.c.l.b16 %v55
    %v1046 = vunpack.c.l.b16 %v56
    %v1047 = vunpack.c.l.b16 %v57
    %v1048 = vunpack.c.l.b16 %v58
    %v1049 = vunpack.c.l.b16 %v59
    %v1050 = vunpack.c.l.b16 %v60
    %v1051 = vunpack.c.l.b16 %v61
    %v1052 = vunpack.c.l.b16 %v62
    %v1053 = vunpack.c.l.b16 %v63
    %v1054 = vunpack.c.l.b16 %v64
    %v1055 = vunpack.c.l.b16 %v65
    %v1056 = vunpack.c.l.b16 %v66
    %v1057 = vunpack.c.l.b16 %v67
    %v1058 = vunpack.c.l.b16 %v68
    %v1059 = vunpack.c.l.b16 %v69
    %v1060 = vunpack.c.l.b16 %v70
    %v1061 = vunpack.c.l.b16 %v71
    %v1062 = vunpack.c.l.b16 %v72
    %v1063 = vunpack.c.l.b16 %v73
    %v1064 = vunpack.c.l.b16 %v74
    %v1065 = vunpack.c.l.b16 %v75
    %v1066 = vunpack.c.l.b16 %v76
    %v1067 = vunpack.c.l.b16 %v77
    %v1068 = vunpack.c.l.b16 %v78
    %v1069 = vunpack.c.l.b16 %v79
    %v1070 = vunpack.c.l.b16 %v80
    %v1071 = vunpack.c.l.b16 %v81
    %v1072 = vunpack.c.l.b16 %v82
    %v1073 = vunpack.c.l.b16 %v83
    %v1074 = vunpack.c.l.b16 %v84
    %v1075 = vunpack.c.l.b16 %v85
    %v1076 = vunpack.c.l.b16 %v86
    %v1077 = vunpack.c.l.b16 %v87
    %v1078 = vunpack.c.l.b16 %v88
    %v1079 = vunpack.c.l.b16 %v89
    %v1080 = vunpack.c.l.b16 %v90
    %v1081 = vunpack.c.l.b16 %v91
    %v1082 = vunpack.c.l.b16 %v92
    %v1083 = vunpack.c.l.b16 %v93
    %v1084 = vunpack.c.l.b16 %v94
    %v1085 = vunpack.c.l.b16 %v95
    %v1086 = vunpack.c.l.b16 %v96
    %v1087 = vunpack.c.l.b16 %v97
    %v1088 = vunpack.c.l.b16 %v98
    %v1089 = vunpack.c.l.b16 %v99
    %v1090 = vunpack.c.l.b16 %v100
    %v1091 = vunpack.c.l.b16 %v101
    %v1092 = vunpack.c.l.b16 %v102
    %v1093 = vunpack.c.l.b16 %v103
    %v1094 = vunpack.c.l.b16 %v104
    %v1095 = vunpack.c.l.b16 %v105
    %v1096 = vunpack.c.l.b16 %v106
    %v1097 = vunpack.c.l.b16 %v107
    %v1098 = vunpack.c.l.b16 %v108
    %v1099 = vunpack.c.l.b16 %v109
    %v1100 = vunpack.c.l.b16 %v110
    %v1101 = vunpack.c.l.b16 %v111
    %v1102 = vunpack.c.l.b16 %v112
    %v1103 = vunpack.c.l.b16 %v113
    %v1104 = vunpack.c.l.b16 %v114
    %v1105 = vunpack.c.l.b16 %v115
    %v1106 = vunpack.c.l.b16 %v116
    %v1107 = vunpack.c.l.b16 %v117
    %v1108 = vunpack.c.l.b16 %v118
    %v1109 = vunpack.c.l.b16 %v119
    %v1110 = vunpack.c.l.b16 %v120
    %v1111 = vunpack.c.l.b16 %v121
    %v1112 = vunpack.c.l.b16 %v122
    %v1113 = vunpack.c.l.b16 %v123
    %v1114 = vunpack.c.l.b16 %v124
    %v1115 = vunpack.c.l.b16 %v125
    %v1116 = vunpack.c.l.b16 %v126
    %v1117 = vunpack.c.l.b16 %v127
    %v1118 = vunpack.c.l.b16 %v128
    %v1119 = vunpack.c.l.b16 %v129
    %v1120 = vunpack.c.l.b16 %v130
    %v1121 = vunpack.c.l.b16 %v131
    %v1122 = vunpack.c.l.b16 %v132
    %v1123 = vunpack.c.l.b16 %v133
    %v1124 = vunpack.c.l.b16 %v134
    %v1125 = vunpack.c.l.b16 %v135
    %v1126 = vunpack.c.l.b16 %v136
    %v1127 = vunpack.c.l.b16 %v137
    %v1128 = vunpack.c.l.b16 %v138
    %v1129 = vunpack.c.l.b16 %v139
    %v1130 = vunpack.c.l.b16 %v140
    %v1131 = vunpack.c.l.b16 %v141
    %v1132 = vunpack.c.l.b16 %v142
    %v1133 = vunpack.c.l.b16 %v143
    %v1134 = vunpack.c.l.b16 %v144
    %v1135 = vunpack.c.l.b16 %v145
    %v1136 = vunpack.c.l.b16 %v146
    %v1137 = vunpack.c.l.b16 %v147
    %v1138 = vunpack.c.l.b16 %v148
    %v1139 = vunpack.c.l.b16 %v149
    %v1140 = vunpack.c.l.b16 %v150
    %v1141 = vunpack.c.l.b16 %v151
    %v1142 = vunpack.c.l.b16 %v152
    %v1143 = vunpack.c.l.b16 %v153
    %v1144 = vunpack.c.l.b16 %v154
    %v1145 = vunpack.c.l.b16 %v155
    %v1146 = vunpack.c.l.b16 %v156
    %v1147 = vunpack.c.l.b16 %v157
    %v1148 = vunpack.c.l.b16 %v158
    %v1149 = vunpack.c.l.b16 %v159
    %v1150 = vunpack.c.l.b16 %v160
    %v1151 = vunpack.c.l.b16 %v161
    %v1152 = vunpack.c.l.b16 %v162
    %v1153 = vunpack.c.l.b16 %v163
    %v1154 = vunpack.c.l.b16 %v164
    %v1155 = vunpack.c.l.b16 %v165
    %v1156 = vunpack.c.l.b16 %v166
    %v1157 = vunpack.c.l.b16 %v167
    %v1158 = vunpack.c.l.b16 %v168
    %v1159 = vunpack.c.l.b16 %v169
    %v1160 = vunpack.c.l.b16 %v170
    %v1161 = vunpack.c.l.b16 %v171
    %v1162 = vunpack.c.l.b16 %v172
    %v1163 = vunpack.c.l.b16 %v173
    %v1164 = vunpack.c.l.b16 %v174
    %v1165 = vunpack.c.l.b16 %v175
    %v1166 = vunpack.c.l.b16 %v176
    %v1167 = vunpack.c.l.b16 %v177
    %v1168 = vunpack.c.l.b16 %v178
    %v1169 = vunpack.c.l.b16 %v179
    %v1170 = vunpack.c.l.b16 %v180
    %v1171 = vunpack.c.l.b16 %v181
    %v1172 = vunpack.c.l.b16 %v182
    %v1173 = vunpack.c.l.b16 %v183
    %v1174 = vunpack.c.l.b16 %v184
    %v1175 = vunpack.c.l.b16 %v185
    %v1176 = vunpack.c.l.b16 %v186
    %v1177 = vunpack.c.l.b16 %v187
    %v1178 = vunpack.c.l.b16 %v188
    %v1179 = vunpack.c.l.b16 %v189
    %v1180 = vunpack.c.l.b16 %v190
    %v1181 = vunpack.c.l.b16 %v191
    %v1182 = vunpack.c.l.b16 %v192
    %v1183 = vunpack.c.l.b16 %v193
    %v1184 = vunpack.c.l.b16 %v194
    %v1185 = vunpack.c.l.b16 %v195
    %v1186 = vunpack.c.l.b16 %v196
    %v1187 = vunpack.c.l.b16 %v197
    %v1188 = vunpack.c.l.b16 %v198
    %v1189 = vunpack.c.l.b16 %v199
    %v1190 = vunpack.c.l.b16 %v200
    %v1191 = vunpack.c.l.b16 %v201
    %v1192 = vunpack.c.l.b16 %v202
    %v1193 = vunpack.c.l.b16 %v203
    %v1194 = vunpack.c.l.b16 %v204
    %v1195 = vunpack.c.l.b16 %v205
    %v1196 = vunpack.c.l.b16 %v206
    %v1197 = vunpack.c.l.b16 %v207
    %v1198 = vunpack.c.l.b16 %v208
    %v1199 = vunpack.c.l.b16 %v209
    %v1200 = vunpack.c.l.b16 %v210
    %v1201 = vunpack.c.l.b16 %v211
    %v1202 = vunpack.c.l.b16 %v212
    %v1203 = vunpack.c.l.b16 %v213
    %v1204 = vunpack.c.l.b16 %v214
    %v1205 = vunpack.c.l.b16 %v215
    %v1206 = vunpack.c.l.b16 %v216
    %v1207 = vunpack.c.l.b16 %v217
    %v1208 = vunpack.c.l.b16 %v218
    %v1209 = vunpack.c.l.b16 %v219
    %v1210 = vunpack.c.l.b16 %v220
    %v1211 = vunpack.c.l.b16 %v221
    %v1212 = vunpack.c.l.b16 %v222
    %v1213 = vunpack.c.l.b16 %v223
    %v1214 = vunpack.c.l.b16 %v224
    %v1215 = vunpack.c.l.b16 %v225
    %v1216 = vunpack.c.l.b16 %v226
    %v1217 = vunpack.c.l.b16 %v227
    %v1218 = vunpack.c.l.b16 %v228
    %v1219 = vunpack.c.l.b16 %v229
    %v1220 = vunpack.c.l.b16 %v230
    %v1221 = vunpack.c.l.b16 %v231
    %v1222 = vunpack.c.l.b16 %v232
    %v1223 = vunpack.c.l.b16 %v233
    %v1224 = vunpack.c.l.b16 %v234
    %v1225 = vunpack.c.l.b16 %v235
    %v1226 = vunpack.c.l.b16 %v236
    %v1227 = vunpack.c.l.b16 %v237
    %v1228 = vunpack.c.l.b16 %v238
    %v1229 = vunpack.c.l.b16 %v239
    %v1230 = vunpack.c.l.b16 %v240
    %v1231 = vunpack.c.l.b16 %v241
    %v1232 = vunpack.c.l.b16 %v242
    %v1233 = vunpack.c.l.b16 %v243
    %v1234 = vunpack.c.l.b16 %v244
    %v1235 = vunpack.c.l.b16 %v245
    %v1236 = vunpack.c.l.b16 %v246
    %v1237 = vunpack.c.l.b16 %v247
    %v1238 = vunpack.c.l.b16 %v248
    %v1239 = vunpack.c.l.b16 %v249
    %v1240 = vunpack.c.l.b16 %v250
    %v1241 = vunpack.c.l.b16 %v251
    %v1242 = vunpack.c.l.b16 %v252
    %v1243 = vunpack.c.l.b16 %v253
    %v1244 = vunpack.c.l.b16 %v254
    %v1245 = vunpack.c.l.b16 %v255
    %v1246 = vunpack.c.l.b16 %v256
    %v1247 = vunpack.c.l.b16 %v257
    %v1248 = vunpack.c.l.b16 %v258
    %v1249 = vunpack.c.l.b16 %v259
    %v1250 = vunpack.c.l.b16 %v260
    %v1251 = vunpack.c.l.b16 %v261
    %v1252 = vunpack.c.l.b16 %v262
    %v1253 = vunpack.c.l.b16 %v263
    %v1254 = vunpack.c.l.b16 %v264
    %v1255 = vunpack.c.l.b16 %v265
    %v1256 = vunpack.c.l.b16 %v266
    %v1257 = vunpack.c.l.b16 %v267
    %v1258 = vunpack.c.l.b16 %v268
    %v1259 = vunpack.c.l.b16 %v269
    %v1260 = vunpack.c.l.b16 %v270
    %v1261 = vunpack.c.l.b16 %v271
    %v1262 = vunpack.c.l.b16 %v272
    %v1263 = vunpack.c.l.b16 %v273
    %v1264 = vunpack.c.l.b16 %v274
    %v1265 = vunpack.c.l.b16 %v275
    %v1266 = vunpack.c.l.b16 %v276
    %v1267 = vunpack.c.l.b16 %v277
    %v1268 = vunpack.c.l.b16 %v278
    %v1269 = vunpack.c.l.b16 %v279
    %v1270 = vunpack.c.l.b16 %v280
    %v1271 = vunpack.c.l.b16 %v281
    %v1272 = vunpack.c.l.b16 %v282
    %v1273 = vunpack.c.l.b16 %v283
    %v1274 = vunpack.c.l.b16 %v284
    %v1275 = vunpack.c.l.b16 %v285
    %v1276 = vunpack.c.l.b16 %v286
    %v1277 = vunpack.c.l.b16 %v287
    %v1278 = vunpack.c.l.b16 %v288
    %v1279 = vunpack.c.l.b16 %v289
    %v1280 = vunpack.c.l.b16 %v290
    %v1281 = vunpack.c.l.b16 %v291
    %v1282 = vunpack.c.l.b16 %v292
    %v1283 = vunpack.c.l.b16 %v293
    %v1284 = vunpack.c.l.b16 %v294
    %v1285 = vunpack.c.l.b16 %v295
    %v1286 = vunpack.c.l.b16 %v296
    %v1287 = vunpack.c.l.b16 %v297
    %v1288 = vunpack.c.l.b16 %v298
    %v1289 = vunpack.c.l.b16 %v299
    %v1290 = vunpack.c.l.b16 %v300
    %v1291 = vunpack.c.l.b16 %v301
    %v1292 = vunpack.c.l.b16 %v302
    %v1293 = vunpack.c.l.b16 %v303
    %v1294 = vunpack.c.l.b16 %v304
    %v1295 = vunpack.c.l.b16 %v305
    %v1296 = vunpack.c.l.b16 %v306
    %v1297 = vunpack.c.l.b16 %v307
    %v1298 = vunpack.c.l.b16 %v308
    %v1299 = vunpack.c.l.b16 %v309
    %v1300 = vunpack.c.l.b16 %v310
    %v1301 = vunpack.c.l.b16 %v311
    %v1302 = vunpack.c.l.b16 %v312
    %v1303 = vunpack.c.l.b16 %v313
    %v1304 = vunpack.c.l.b16 %v314
    %v1305 = vunpack.c.l.b16 %v315
    %v1306 = vunpack.c.l.b16 %v316
    %v1307 = vunpack.c.l.b16 %v317
    %v1308 = vunpack.c.l.b16 %v318
    %v1309 = vunpack.c.l.b16 %v319
    %v1310 = vunpack.c.l.b16 %v320
    %v1311 = vunpack.c.l.b16 %v321
    %v1312 = vunpack.c.l.b16 %v322
    %v1313 = vunpack.c.l.b16 %v323
    %v1314 = vunpack.c.l.b16 %v324
    %v1315 = vunpack.c.l.b16 %v325
    %v1316 = vunpack.c.l.b16 %v326
    %v1317 = vunpack.c.l.b16 %v327
    %v1318 = vunpack.c.l.b16 %v328
    %v1319 = vunpack.c.l.b16 %v329
    %v1320 = vunpack.c.l.b16 %v330
    %v1321 = vunpack.c.l.b16 %v331
    %v1322 = vunpack.c.l.b16 %v332
    %v1323 = vunpack.c.l.b16 %v333
    %v1324 = vunpack.c.l.b16 %v334
    %v1325 = vunpack.c.l.b16 %v335
    %v1326 = vunpack.c.l.b16 %v336
    %v1327 = vunpack.c.l.b16 %v337
    %v1328 = vunpack.c.l.b16 %v338
    %v1329 = vunpack.c.l.b16 %v339
    %v1330 = vunpack.c.l.b16 %v340
    %v1331 = vunpack.c.l.b16 %v341
    %v1332 = vunpack.c.l.b16 %v342
    %v1333 = vunpack.c.l.b16 %v343
    %v1334 = vunpack.c.l.b16 %v344
    %v1335 = vunpack.c.l.b16 %v345
    %v1336 = vunpack.c.l.b16 %v346
    %v1337 = vunpack.c.l.b16 %v347
    %v1338 = vunpack.c.l.b16 %v348
    %v1339 = vunpack.c.l.b16 %v349
    %v1340 = vunpack.c.l.b16 %v350
    %v1341 = vunpack.c.l.b16 %v351
    %v1342 = vunpack.c.l.b16 %v352
    %v1343 = vunpack.c.l.b16 %v353
    %v1344 = vunpack.c.l.b16 %v354
    %v1345 = vunpack.c.l.b16 %v355
    %v1346 = vunpack.c.l.b16 %v356
    %v1347 = vunpack.c.l.b16 %v357
    %v1348 = vunpack.c.l.b16 %v358
    %v1349 = vunpack.c.l.b16 %v359
    %v1350 = vunpack.c.l.b16 %v360
    %v1351 = vunpack.c.l.b16 %v361
    %v1352 = vunpack.c.l.b16 %v362
    %v1353 = vunpack.c.l.b16 %v363
    %v1354 = vunpack.c.l.b16 %v364
    %v1355 = vunpack.c.l.b16 %v365
    %v1356 = vunpack.c.l.b16 %v366
    %v1357 = vunpack.c.l.b16 %v367
    %v1358 = vunpack.c.l.b16 %v368
    %v1359 = vunpack.c.l.b16 %v369
    %v1360 = vunpack.c.l.b16 %v370
    %v1361 = vunpack.c.l.b16 %v371
    %v1362 = vunpack.c.l.b16 %v372
    %v1363 = vunpack.c.l.b16 %v373
    %v1364 = vunpack.c.l.b16 %v374
    %v1365 = vunpack.c.l.b16 %v375
    %v1366 = vunpack.c.l.b16 %v376
    %v1367 = vunpack.c.l.b16 %v377
    %v1368 = vunpack.c.l.b16 %v378
    %v1369 = vunpack.c.l.b16 %v379
    %v1370 = vunpack.c.l.b16 %v380
    %v1371 = vunpack.c.l.b16 %v381
    %v1372 = vunpack.c.l.b16 %v382
    %v1373 = vunpack.c.l.b16 %v383
    %v1374 = vunpack.c.l.b16 %v384
    %v1375 = vunpack.c.l.b16 %v385
    %v1376 = vunpack.c.l.b16 %v386
    %v1377 = vunpack.c.l.b16 %v387
    %v1378 = vunpack.c.l.b16 %v388
    %v1379 = vunpack.c.l.b16 %v389
    %v1380 = vunpack.c.l.b16 %v390
    %v1381 = vunpack.c.l.b16 %v391
    %v1382 = vunpack.c.l.b16 %v392
    %v1383 = vunpack.c.l.b16 %v393
    %v1384 = vunpack.c.l.b16 %v394
    %v1385 = vunpack.c.l.b16 %v395
    %v1386 = vunpack.c.l.b16 %v396
    %v1387 = vunpack.c.l.b16 %v397
    %v1388 = vunpack.c.l.b16 %v398
    %v1389 = vunpack.c.l.b16 %v399
    %v1390 = vunpack.c.l.b16 %v400
    %v1391 = vunpack.c.l.b16 %v401
    %v1392 = vunpack.c.l.b16 %v402
    %v1393 = vunpack.c.l.b16 %v403
    %v1394 = vunpack.c.l.b16 %v404
    %v1395 = vunpack.c.l.b16 %v405
    %v1396 = vunpack.c.l.b16 %v406
    %v1397 = vunpack.c.l.b16 %v407
    %v1398 = vunpack.c.l.b16 %v408
    %v1399 = vunpack.c.l.b16 %v409
    %v1400 = vunpack.c.l.b16 %v410
    %v1401 = vunpack.c.l.b16 %v411
    %v1402 = vunpack.c.l.b16 %v412
    %v1403 = vunpack.c.l.b16 %v413
    %v1404 = vunpack.c.l.b16 %v414
    %v1405 = vunpack.c.l.b16 %v415
    %v1406 = vunpack.c.l.b16 %v416
    %v1407 = vunpack.c.l.b16 %v417
    %v1408 = vunpack.c.l.b16 %v418
    %v1409 = vunpack.c.l.b16 %v419
    %v1410 = vunpack.c.l.b16 %v420
    %v1411 = vunpack.c.l.b16 %v421
    %v1412 = vunpack.c.l.b16 %v422
    %v1413 = vunpack.c.l.b16 %v423
    %v1414 = vunpack.c.l.b16 %v424
    %v1415 = vunpack.c.l.b16 %v425
    %v1416 = vunpack.c.l.b16 %v426
    %v1417 = vunpack.c.l.b16 %v427
    %v1418 = vunpack.c.l.b16 %v428
    %v1419 = vunpack.c.l.b16 %v429
    %v1420 = vunpack.c.l.b16 %v430
    %v1421 = vunpack.c.l.b16 %v431
    %v1422 = vunpack.c.l.b16 %v432
    %v1423 = vunpack.c.l.b16 %v433
    %v1424 = vunpack.c.l.b16 %v434
    %v1425 = vunpack.c.l.b16 %v435
    %v1426 = vunpack.c.l.b16 %v436
    %v1427 = vunpack.c.l.b16 %v437
    %v1428 = vpack.c.b16 %v1029, %v1028
    %v1429 = vpack.c.b16 %v1031, %v1030
    %v1430 = vpack.c.b16 %v1033, %v1032
    %v1431 = vpack.c.b16 %v1035, %v1034
    %v1432 = vpack.c.b16 %v1037, %v1036
    %v1433 = vpack.c.b16 %v1039, %v1038
    %v1434 = vpack.c.b16 %v1041, %v1040
    %v1435 = vpack.c.b16 %v1043, %v1042
    %v1436 = vpack.c.b16 %v1045, %v1044
    %v1437 = vpack.c.b16 %v1047, %v1046
    %v1438 = vpack.c.b16 %v1049, %v1048
    %v1439 = vpack.c.b16 %v1051, %v1050
    %v1440 = vpack.c.b16 %v1053, %v1052
    %v1441 = vpack.c.b16 %v1055, %v1054
    %v1442 = vpack.c.b16 %v1057, %v1056
    %v1443 = vpack.c.b16 %v1059, %v1058
    %v1444 = vpack.c.b16 %v1061, %v1060
    %v1445 = vpack.c.b16 %v1063, %v1062
    %v1446 = vpack.c.b16 %v1065, %v1064
    %v1447 = vpack.c.b16 %v1067, %v1066
    %v1448 = vpack.c.b16 %v1069, %v1068
    %v1449 = vpack.c.b16 %v1071, %v1070
    %v1450 = vpack.c.b16 %v1073, %v1072
    %v1451 = vpack.c.b16 %v1075, %v1074
    %v1452 = vpack.c.b16 %v1077, %v1076
    %v1453 = vpack.c.b16 %v1079, %v1078
    %v1454 = vpack.c.b16 %v1081, %v1080
    %v1455 = vpack.c.b16 %v1083, %v1082
    %v1456 = vpack.c.b16 %v1085, %v1084
    %v1457 = vpack.c.b16 %v1087, %v1086
    %v1458 = vpack.c.b16 %v1089, %v1088
    %v1459 = vpack.c.b16 %v1091, %v1090
    %v1460 = vpack.c.b16 %v1093, %v1092
    %v1461 = vpack.c.b16 %v1095, %v1094
    %v1462 = vpack.c.b16 %v1097, %v1096
    %v1463 = vpack.c.b16 %v1099, %v1098
    %v1464 = vpack.c.b16 %v1101, %v1100
    %v1465 = vpack.c.b16 %v1103, %v1102
    %v1466 = vpack.c.b16 %v1105, %v1104
    %v1467 = vpack.c.b16 %v1107, %v1106
    %v1468 = vpack.c.b16 %v1109, %v1108
    %v1469 = vpack.c.b16 %v1111, %v1110
    %v1470 = vpack.c.b16 %v1113, %v1112
    %v1471 = vpack.c.b16 %v1115, %v1114
    %v1472 = vpack.c.b16 %v1117, %v1116
    %v1473 = vpack.c.b16 %v1119, %v1118
    %v1474 = vpack.c.b16 %v1121, %v1120
    %v1475 = vpack.c.b16 %v1123, %v1122
    %v1476 = vpack.c.b16 %v1125, %v1124
    %v1477 = vpack.c.b16 %v1127, %v1126
    %v1478 = vpack.c.b16 %v1129, %v1128
    %v1479 = vpack.c.b16 %v1131, %v1130
    %v1480 = vpack.c.b16 %v1133, %v1132
    %v1481 = vpack.c.b16 %v1135, %v1134
    %v1482 = vpack.c.b16 %v1137, %v1136
    %v1483 = vpack.c.b16 %v1139, %v1138
    %v1484 = vpack.c.b16 %v1141, %v1140
    %v1485 = vpack.c.b16 %v1143, %v1142
    %v1486 = vpack.c.b16 %v1145, %v1144
    %v1487 = vpack.c.b16 %v1147, %v1146
    %v1488 = vpack.c.b16 %v1149, %v1148
    %v1489 = vpack.c.b16 %v1151, %v1150
    %v1490 = vpack.c.b16 %v1153, %v1152
    %v1491 = vpack.c.b16 %v1155, %v1154
    %v1492 = vpack.c.b16 %v1157, %v1156
    %v1493 = vpack.c.b16 %v1159, %v1158
    %v1494 = vpack.c.b16 %v1161, %v1160
    %v1495 = vpack.c.b16 %v1163, %v1162
    %v1496 = vpack.c.b16 %v1165, %v1164
    %v1497 = vpack.c.b16 %v1167, %v1166
    %v1498 = vpack.c.b16 %v1169, %v1168
    %v1499 = vpack.c.b16 %v1171, %v1170
    %v1500 = vpack.c.b16 %v1173, %v1172
    %v1501 = vpack.c.b16 %v1175, %v1174
    %v1502 = vpack.c.b16 %v1177, %v1176
    %v1503 = vpack.c.b16 %v1179, %v1178
    %v1504 = vpack.c.b16 %v1181, %v1180
    %v1505 = vpack.c.b16 %v1183, %v1182
    %v1506 = vpack.c.b16 %v1185, %v1184
    %v1507 = vpack.c.b16 %v1187, %v1186
    %v1508 = vpack.c.b16 %v1189, %v1188
    %v1509 = vpack.c.b16 %v1191, %v1190
    %v1510 = vpack.c.b16 %v1193, %v1192
    %v1511 = vpack.c.b16 %v1195, %v1194
    %v1512 = vpack.c.b16 %v1197, %v1196
    %v1513 = vpack.c.b16 %v1199, %v1198
    %v1514 = vpack.c.b16 %v1201, %v1200
    %v1515 = vpack.c.b16 %v1203, %v1202
    %v1516 = vpack.c.b16 %v1205, %v1204
    %v1517 = vpack.c.b16 %v1207, %v1206
    %v1518 = vpack.c.b16 %v1209, %v1208
    %v1519 = vpack.c.b16 %v1211, %v1210
    %v1520 = vpack.c.b16 %v1213, %v1212
    %v1521 = vpack.c.b16 %v1215, %v1214
    %v1522 = vpack.c.b16 %v1217, %v1216
    %v1523 = vpack.c.b16 %v1219, %v1218
    %v1524 = vpack.c.b16 %v1221, %v1220
    %v1525 = vpack.c.b16 %v1223, %v1222
    %v1526 = vpack.c.b16 %v1225, %v1224
    %v1527 = vpack.c.b16 %v1227, %v1226
    %v1528 = vpack.c.b16 %v1229, %v1228
    %v1529 = vpack.c.b16 %v1231, %v1230
    %v1530 = vpack.c.b16 %v1233, %v1232
    %v1531 = vpack.c.b16 %v1235, %v1234
    %v1532 = vpack.c.b16 %v1237, %v1236
    %v1533 = vpack.c.b16 %v1239, %v1238
    %v1534 = vpack.c.b16 %v1241, %v1240
    %v1535 = vpack.c.b16 %v1243, %v1242
    %v1536 = vpack.c.b16 %v1245, %v1244
    %v1537 = vpack.c.b16 %v1247, %v1246
    %v1538 = vpack.c.b16 %v1249, %v1248
    %v1539 = vpack.c.b16 %v1251, %v1250
    %v1540 = vpack.c.b16 %v1253, %v1252
    %v1541 = vpack.c.b16 %v1255, %v1254
    %v1542 = vpack.c.b16 %v1257, %v1256
    %v1543 = vpack.c.b16 %v1259, %v1258
    %v1544 = vpack.c.b16 %v1261, %v1260
    %v1545 = vpack.c.b16 %v1263, %v1262
    %v1546 = vpack.c.b16 %v1265, %v1264
    %v1547 = vpack.c.b16 %v1267, %v1266
    %v1548 = vpack.c.b16 %v1269, %v1268
    %v1549 = vpack.c.b16 %v1271, %v1270
    %v1550 = vpack.c.b16 %v1273, %v1272
    %v1551 = vpack.c.b16 %v1275, %v1274
    %v1552 = vpack.c.b16 %v1277, %v1276
    %v1553 = vpack.c.b16 %v1279, %v1278
    %v1554 = vpack.c.b16 %v1281, %v1280
    %v1555 = vpack.c.b16 %v1283, %v1282
    %v1556 = vpack.c.b16 %v1285, %v1284
    %v1557 = vpack.c.b16 %v1287, %v1286
    %v1558 = vpack.c.b16 %v1289, %v1288
    %v1559 = vpack.c.b16 %v1291, %v1290
    %v1560 = vpack.c.b16 %v1293, %v1292
    %v1561 = vpack.c.b16 %v1295, %v1294
    %v1562 = vpack.c.b16 %v1297, %v1296
    %v1563 = vpack.c.b16 %v1299, %v1298
    %v1564 = vpack.c.b16 %v1301, %v1300
    %v1565 = vpack.c.b16 %v1303, %v1302
    %v1566 = vpack.c.b16 %v1305, %v1304
    %v1567 = vpack.c.b16 %v1307, %v1306
    %v1568 = vpack.c.b16 %v1309, %v1308
    %v1569 = vpack.c.b16 %v1311, %v1310
    %v1570 = vpack.c.b16 %v1313, %v1312
    %v1571 = vpack.c.b16 %v1315, %v1314
    %v1572 = vpack.c.b16 %v1317, %v1316
    %v1573 = vpack.c.b16 %v1319, %v1318
    %v1574 = vpack.c.b16 %v1321, %v1320
    %v1575 = vpack.c.b16 %v1323, %v1322
    %v1576 = vpack.c.b16 %v1325, %v1324
    %v1577 = vpack.c.b16 %v1327, %v1326
    %v1578 = vpack.c.b16 %v1329, %v1328
    %v1579 = vpack.c.b16 %v1331, %v1330
    %v1580 = vpack.c.b16 %v1333, %v1332
    %v1581 = vpack.c.b16 %v1335, %v1334
    %v1582 = vpack.c.b16 %v1337, %v1336
    %v1583 = vpack.c.b16 %v1339, %v1338
    %v1584 = vpack.c.b16 %v1341, %v1340
    %v1585 = vpack.c.b16 %v1343, %v1342
    %v1586 = vpack.c.b16 %v1345, %v1344
    %v1587 = vpack.c.b16 %v1347, %v1346
    %v1588 = vpack.c.b16 %v1349, %v1348
    %v1589 = vpack.c.b16 %v1351, %v1350
    %v1590 = vpack.c.b16 %v1353, %v1352
    %v1591 = vpack.c.b16 %v1355, %v1354
    %v1592 = vpack.c.b16 %v1357, %v1356
    %v1593 = vpack.c.b16 %v1359, %v1358
    %v1594 = vpack.c.b16 %v1361, %v1360
    %v1595 = vpack.c.b16 %v1363, %v1362
    %v1596 = vpack.c.b16 %v1365, %v1364
    %v1597 = vpack.c.b16 %v1367, %v1366
    %v1598 = vpack.c.b16 %v1369, %v1368
    %v1599 = vpack.c.b16 %v1371, %v1370
    %v1600 = vpack.c.b16 %v1373, %v1372
    %v1601 = vpack.c.b16 %v1375, %v1374
    %v1602 = vpack.c.b16 %v1377, %v1376
    %v1603 = vpack.c.b16 %v1379, %v1378
    %v1604 = vpack.c.b16 %v1381, %v1380
    %v1605 = vpack.c.b16 %v1383, %v1382
    %v1606 = vpack.c.b16 %v1385, %v1384
    %v1607 = vpack.c.b16 %v1387, %v1386
    %v1608 = vpack.c.b16 %v1389, %v1388
    %v1609 = vpack.c.b16 %v1391, %v1390
    %v1610 = vpack.c.b16 %v1393, %v1392
    %v1611 = vpack.c.b16 %v1395, %v1394
    %v1612 = vpack.c.b16 %v1397, %v1396
    %v1613 = vpack.c.b16 %v1399, %v1398
    %v1614 = vpack.c.b16 %v1401, %v1400
    %v1615 = vpack.c.b16 %v1403, %v1402
    %v1616 = vpack.c.b16 %v1405, %v1404
    %v1617 = vpack.c.b16 %v1407, %v1406
    %v1618 = vpack.c.b16 %v1409, %v1408
    %v1619 = vpack.c.b16 %v1411, %v1410
    %v1620 = vpack.c.b16 %v1413, %v1412
    %v1621 = vpack.c.b16 %v1415, %v1414
    %v1622 = vpack.c.b16 %v1417, %v1416
    %v1623 = vpack.c.b16 %v1419, %v1418
    %v1624 = vpack.c.b16 %v1421, %v1420
    %v1625 = vpack.c.b16 %v1423, %v1422
    %v1626 = vpack.c.b16 %v1425, %v1424
    %v1627 = vpack.c.b16 %v1427, %v1426
    %1828 = vmatprep.subr.bf16.mxu0 0
    %1829 = vmatpush1.bf16.msra.mxu0 %v1428
    %1830 = vmatprep.subr.bf16.mxu0 0
    %1831 = vmatpush1.bf16.msra.mxu0 %v1429
    %1832 = vmatprep.subr.bf16.mxu0 0
    %1833 = vmatpush1.bf16.msra.mxu0 %v1430
    %1834 = vmatprep.subr.bf16.mxu0 0
    %1835 = vmatpush1.bf16.msra.mxu0 %v1431
    %1836 = vmatprep.subr.bf16.mxu0 0
    %1837 = vmatpush1.bf16.msra.mxu0 %v1432
    %1838 = vmatprep.subr.bf16.mxu0 0
    %1839 = vmatpush1.bf16.msra.mxu0 %v1433
    %1840 = vmatprep.subr.bf16.mxu0 0
    %1841 = vmatpush1.bf16.msra.mxu0 %v1434
    %1842 = vmatprep.subr.bf16.mxu0 0
    %1843 = vmatpush1.bf16.msra.mxu0 %v1435
    %1844 = vmatprep.subr.bf16.mxu0 0
    %1845 = vmatpush1.bf16.msra.mxu0 %v1436
    %1846 = vmatprep.subr.bf16.mxu0 0
    %1847 = vmatpush1.bf16.msra.mxu0 %v1437
    %1848 = vmatprep.subr.bf16.mxu0 0
    %1849 = vmatpush1.bf16.msra.mxu0 %v1438
    %1850 = vmatprep.subr.bf16.mxu0 0
    %1851 = vmatpush1.bf16.msra.mxu0 %v1439
    %1852 = vmatprep.subr.bf16.mxu0 0
    %1853 = vmatpush1.bf16.msra.mxu0 %v1440
    %1854 = vmatprep.subr.bf16.mxu0 0
    %1855 = vmatpush1.bf16.msra.mxu0 %v1441
    %1856 = vmatprep.subr.bf16.mxu0 0
    %1857 = vmatpush1.bf16.msra.mxu0 %v1442
    %1858 = vmatprep.subr.bf16.mxu0 0
    %1859 = vmatpush1.bf16.msra.mxu0 %v1443
    %1860 = vmatprep.mubr.bf16.mxu0 %v479
    %1861 = vmatmul.mubr.bf16.gmra.mrb[0].mxu0 %v465
    %v1862 = vpop.f32.mrb[0].mxu0
    %v1863 = vadd.f32 0.0, %v1862
    %v1864 = vpop.f32.mrb[0].mxu0
    %v1865 = vpop.f32.mrb[0].mxu0
    %v1866 = vpop.f32.mrb[0].mxu0
    %1867 = vdwg.mxu0
    %1868 = vmatprep.subr.bf16.mxu0 0
    %1869 = vmatpush1.bf16.msra.mxu0 %v1444
    %1870 = vmatprep.subr.bf16.mxu0 0
    %1871 = vmatpush1.bf16.msra.mxu0 %v1445
    %1872 = vmatprep.subr.bf16.mxu0 0
    %1873 = vmatpush1.bf16.msra.mxu0 %v1446
    %1874 = vmatprep.subr.bf16.mxu0 0
    %1875 = vmatpush1.bf16.msra.mxu0 %v1447
    %1876 = vmatprep.subr.bf16.mxu0 0
    %1877 = vmatpush1.bf16.msra.mxu0 %v1448
    %1878 = vmatprep.subr.bf16.mxu0 0
    %1879 = vmatpush1.bf16.msra.mxu0 %v1449
    %1880 = vmatprep.subr.bf16.mxu0 0
    %1881 = vmatpush1.bf16.msra.mxu0 %v1450
    %1882 = vmatprep.subr.bf16.mxu0 0
    %1883 = vmatpush1.bf16.msra.mxu0 %v1451
    %1884 = vmatprep.subr.bf16.mxu0 0
    %1885 = vmatpush1.bf16.msra.mxu0 %v1452
    %1886 = vmatprep.subr.bf16.mxu0 0
    %1887 = vmatpush1.bf16.msra.mxu0 %v1453
    %1888 = vmatprep.subr.bf16.mxu0 0
    %1889 = vmatpush1.bf16.msra.mxu0 %v1454
    %1890 = vmatprep.subr.bf16.mxu0 0
    %1891 = vmatpush1.bf16.msra.mxu0 %v1455
    %1892 = vmatprep.subr.bf16.mxu0 0
    %1893 = vmatpush1.bf16.msra.mxu0 %v1456
    %1894 = vmatprep.subr.bf16.mxu0 0
    %1895 = vmatpush1.bf16.msra.mxu0 %v1457
    %1896 = vmatprep.subr.bf16.mxu0 0
    %1897 = vmatpush1.bf16.msra.mxu0 %v1458
    %1898 = vmatprep.subr.bf16.mxu0 0
    %1899 = vmatpush1.bf16.msra.mxu0 %v1459
    %1900 = vmatprep.mubr.bf16.mxu0 %v489
    %1901 = vmatmul.mubr.bf16.gmra.mrb[0].mxu0 %v487
    %v1902 = vpop.f32.mrb[0].mxu0
    %v1903 = vadd.f32 %v1863, %v1902
    %v1904 = vpop.f32.mrb[0].mxu0
    %v1905 = vpop.f32.mrb[0].mxu0
    %v1906 = vpop.f32.mrb[0].mxu0
    %1907 = vdwg.mxu0
    %1908 = vmatprep.subr.bf16.mxu0 0
    %1909 = vmatpush1.bf16.msra.mxu0 %v1460
    %1910 = vmatprep.subr.bf16.mxu0 0
    %1911 = vmatpush1.bf16.msra.mxu0 %v1461
    %1912 = vmatprep.subr.bf16.mxu0 0
    %1913 = vmatpush1.bf16.msra.mxu0 %v1462
    %1914 = vmatprep.subr.bf16.mxu0 0
    %1915 = vmatpush1.bf16.msra.mxu0 %v1463
    %1916 = vmatprep.subr.bf16.mxu0 0
    %1917 = vmatpush1.bf16.msra.mxu0 %v1464
    %1918 = vmatprep.subr.bf16.mxu0 0
    %1919 = vmatpush1.bf16.msra.mxu0 %v1465
    %1920 = vmatprep.subr.bf16.mxu0 0
    %1921 = vmatpush1.bf16.msra.mxu0 %v1466
    %1922 = vmatprep.subr.bf16.mxu0 0
    %1923 = vmatpush1.bf16.msra.mxu0 %v1467
    %1924 = vmatprep.subr.bf16.mxu0 0
    %1925 = vmatpush1.bf16.msra.mxu0 %v1468
    %1926 = vmatprep.subr.bf16.mxu0 0
    %1927 = vmatpush1.bf16.msra.mxu0 %v1469
    %1928 = vmatprep.subr.bf16.mxu0 0
    %1929 = vmatpush1.bf16.msra.mxu0 %v1470
    %1930 = vmatprep.subr.bf16.mxu0 0
    %1931 = vmatpush1.bf16.msra.mxu0 %v1471
    %1932 = vmatprep.subr.bf16.mxu0 0
    %1933 = vmatpush1.bf16.msra.mxu0 %v1472
    %1934 = vmatprep.subr.bf16.mxu0 0
    %1935 = vmatpush1.bf16.msra.mxu0 %v1473
    %1936 = vmatprep.subr.bf16.mxu0 0
    %1937 = vmatpush1.bf16.msra.mxu0 %v1474
    %1938 = vmatprep.subr.bf16.mxu0 0
    %1939 = vmatpush1.bf16.msra.mxu0 %v1475
    %1940 = vmatprep.mubr.bf16.mxu0 %v486
    %1941 = vmatmul.mubr.bf16.gmra.mrb[0].mxu0 %v472
    %v1942 = vpop.f32.mrb[0].mxu0
    %v1943 = vadd.f32 %v1903, %v1942
    %v1944 = vpop.f32.mrb[0].mxu0
    %v1945 = vpop.f32.mrb[0].mxu0
    %v1946 = vpop.f32.mrb[0].mxu0
    %1947 = vdwg.mxu0
    %1948 = vmatprep.subr.bf16.mxu0 0
    %1949 = vmatpush1.bf16.msra.mxu0 %v1476
    %1950 = vmatprep.subr.bf16.mxu0 0
    %1951 = vmatpush1.bf16.msra.mxu0 %v1477
    %1952 = vmatprep.subr.bf16.mxu0 0
    %1953 = vmatpush1.bf16.msra.mxu0 %v1478
    %1954 = vmatprep.subr.bf16.mxu0 0
    %1955 = vmatpush1.bf16.msra.mxu0 %v1479
    %1956 = vmatprep.subr.bf16.mxu0 0
    %1957 = vmatpush1.bf16.msra.mxu0 %v1480
    %1958 = vmatprep.subr.bf16.mxu0 0
    %1959 = vmatpush1.bf16.msra.mxu0 %v1481
    %1960 = vmatprep.subr.bf16.mxu0 0
    %1961 = vmatpush1.bf16.msra.mxu0 %v1482
    %1962 = vmatprep.subr.bf16.mxu0 0
    %1963 = vmatpush1.bf16.msra.mxu0 %v1483
    %1964 = vmatprep.subr.bf16.mxu0 0
    %1965 = vmatpush1.bf16.msra.mxu0 %v1484
    %1966 = vmatprep.subr.bf16.mxu0 0
    %1967 = vmatpush1.bf16.msra.mxu0 %v1485
    %1968 = vmatprep.subr.bf16.mxu0 0
    %1969 = vmatpush1.bf16.msra.mxu0 %v1486
    %1970 = vmatprep.subr.bf16.mxu0 0
    %1971 = vmatpush1.bf16.msra.mxu0 %v1487
    %1972 = vmatprep.subr.bf16.mxu0 0
    %1973 = vmatpush1.bf16.msra.mxu0 %v1488
    %1974 = vmatprep.subr.bf16.mxu0 0
    %1975 = vmatpush1.bf16.msra.mxu0 %v1489
    %1976 = vmatprep.subr.bf16.mxu0 0
    %1977 = vmatpush1.bf16.msra.mxu0 %v1490
    %1978 = vmatprep.subr.bf16.mxu0 0
    %1979 = vmatpush1.bf16.msra.mxu0 %v1491
    %1980 = vmatprep.mubr.bf16.mxu0 %v490
    %1981 = vmatmul.mubr.bf16.gmra.mrb[0].mxu0 %v488
    %v1982 = vpop.f32.mrb[0].mxu0
    %v1983 = vadd.f32 %v1943, %v1982
    %v1984 = vpop.f32.mrb[0].mxu0
    %v1985 = vpop.f32.mrb[0].mxu0
    %v1986 = vpop.f32.mrb[0].mxu0
    %1987 = vdwg.mxu0
    %1988 = vmatprep.subr.bf16.mxu0 0
    %1989 = vmatpush1.bf16.msra.mxu0 %v1492
    %1990 = vmatprep.subr.bf16.mxu0 0
    %1991 = vmatpush1.bf16.msra.mxu0 %v1493
    %1992 = vmatprep.subr.bf16.mxu0 0
    %1993 = vmatpush1.bf16.msra.mxu0 %v1494
    %1994 = vmatprep.subr.bf16.mxu0 0
    %1995 = vmatpush1.bf16.msra.mxu0 %v1495
    %1996 = vmatprep.subr.bf16.mxu0 0
    %1997 = vmatpush1.bf16.msra.mxu0 %v1496
    %1998 = vmatprep.subr.bf16.mxu0 0
    %1999 = vmatpush1.bf16.msra.mxu0 %v1497
    %2000 = vmatprep.subr.bf16.mxu0 0
    %2001 = vmatpush1.bf16.msra.mxu0 %v1498
    %2002 = vmatprep.subr.bf16.mxu0 0
    %2003 = vmatpush1.bf16.msra.mxu0 %v1499
    %2004 = vmatprep.subr.bf16.mxu0 0
    %2005 = vmatpush1.bf16.msra.mxu0 %v1500
    %2006 = vmatprep.subr.bf16.mxu0 0
    %2007 = vmatpush1.bf16.msra.mxu0 %v1501
    %2008 = vmatprep.subr.bf16.mxu0 0
    %2009 = vmatpush1.bf16.msra.mxu0 %v1502
    %2010 = vmatprep.subr.bf16.mxu0 0
    %2011 = vmatpush1.bf16.msra.mxu0 %v1503
    %2012 = vmatprep.subr.bf16.mxu0 0
    %2013 = vmatpush1.bf16.msra.mxu0 %v1504
    %2014 = vmatprep.subr.bf16.mxu0 0
    %2015 = vmatpush1.bf16.msra.mxu0 %v1505
    %2016 = vmatprep.subr.bf16.mxu0 0
    %2017 = vmatpush1.bf16.msra.mxu0 %v1506
    %2018 = vmatprep.subr.bf16.mxu0 0
    %2019 = vmatpush1.bf16.msra.mxu0 %v1507
    %2020 = vmatprep.mubr.bf16.mxu0 %v528
    %2021 = vmatmul.mubr.bf16.gmra.mrb[0].mxu0 %v514
    %v2022 = vpop.f32.mrb[0].mxu0
    %v2023 = vadd.f32 %v1983, %v2022
    %v2024 = vpop.f32.mrb[0].mxu0
    %v2025 = vpop.f32.mrb[0].mxu0
    %v2026 = vpop.f32.mrb[0].mxu0
    %2027 = vdwg.mxu0
    %2028 = vmatprep.subr.bf16.mxu0 0
    %2029 = vmatpush1.bf16.msra.mxu0 %v1508
    %2030 = vmatprep.subr.bf16.mxu0 0
    %2031 = vmatpush1.bf16.msra.mxu0 %v1509
    %2032 = vmatprep.subr.bf16.mxu0 0
    %2033 = vmatpush1.bf16.msra.mxu0 %v1510
    %2034 = vmatprep.subr.bf16.mxu0 0
    %2035 = vmatpush1.bf16.msra.mxu0 %v1511
    %2036 = vmatprep.subr.bf16.mxu0 0
    %2037 = vmatpush1.bf16.msra.mxu0 %v1512
    %2038 = vmatprep.subr.bf16.mxu0 0
    %2039 = vmatpush1.bf16.msra.mxu0 %v1513
    %2040 = vmatprep.subr.bf16.mxu0 0
    %2041 = vmatpush1.bf16.msra.mxu0 %v1514
    %2042 = vmatprep.subr.bf16.mxu0 0
    %2043 = vmatpush1.bf16.msra.mxu0 %v1515
    %2044 = vmatprep.subr.bf16.mxu0 0
    %2045 = vmatpush1.bf16.msra.mxu0 %v1516
    %2046 = vmatprep.subr.bf16.mxu0 0
    %2047 = vmatpush1.bf16.msra.mxu0 %v1517
    %2048 = vmatprep.subr.bf16.mxu0 0
    %2049 = vmatpush1.bf16.msra.mxu0 %v1518
    %2050 = vmatprep.subr.bf16.mxu0 0
    %2051 = vmatpush1.bf16.msra.mxu0 %v1519
    %2052 = vmatprep.subr.bf16.mxu0 0
    %2053 = vmatpush1.bf16.msra.mxu0 %v1520
    %2054 = vmatprep.subr.bf16.mxu0 0
    %2055 = vmatpush1.bf16.msra.mxu0 %v1521
    %2056 = vmatprep.subr.bf16.mxu0 0
    %2057 = vmatpush1.bf16.msra.mxu0 %v1522
    %2058 = vmatprep.subr.bf16.mxu0 0
    %2059 = vmatpush1.bf16.msra.mxu0 %v1523
    %2060 = vmatprep.mubr.bf16.mxu0 %v538
    %2061 = vmatmul.mubr.bf16.gmra.mrb[0].mxu0 %v536
    %v2062 = vpop.f32.mrb[0].mxu0
    %v2063 = vadd.f32 %v2023, %v2062
    %v2064 = vpop.f32.mrb[0].mxu0
    %v2065 = vpop.f32.mrb[0].mxu0
    %v2066 = vpop.f32.mrb[0].mxu0
    %2067 = vdwg.mxu0
    %2068 = vmatprep.subr.bf16.mxu0 0
    %2069 = vmatpush1.bf16.msra.mxu0 %v1524
    %2070 = vmatprep.subr.bf16.mxu0 0
    %2071 = vmatpush1.bf16.msra.mxu0 %v1525
    %2072 = vmatprep.subr.bf16.mxu0 0
    %2073 = vmatpush1.bf16.msra.mxu0 %v1526
    %2074 = vmatprep.subr.bf16.mxu0 0
    %2075 = vmatpush1.bf16.msra.mxu0 %v1527
    %2076 = vmatprep.subr.bf16.mxu0 0
    %2077 = vmatpush1.bf16.msra.mxu0 %v1528
    %2078 = vmatprep.subr.bf16.mxu0 0
    %2079 = vmatpush1.bf16.msra.mxu0 %v1529
    %2080 = vmatprep.subr.bf16.mxu0 0
    %2081 = vmatpush1.bf16.msra.mxu0 %v1530
    %2082 = vmatprep.subr.bf16.mxu0 0
    %2083 = vmatpush1.bf16.msra.mxu0 %v1531
    %2084 = vmatprep.subr.bf16.mxu0 0
    %2085 = vmatpush1.bf16.msra.mxu0 %v1532
    %2086 = vmatprep.subr.bf16.mxu0 0
    %2087 = vmatpush1.bf16.msra.mxu0 %v1533
    %2088 = vmatprep.subr.bf16.mxu0 0
    %2089 = vmatpush1.bf16.msra.mxu0 %v1534
    %2090 = vmatprep.subr.bf16.mxu0 0
    %2091 = vmatpush1.bf16.msra.mxu0 %v1535
    %2092 = vmatprep.subr.bf16.mxu0 0
    %2093 = vmatpush1.bf16.msra.mxu0 %v1536
    %2094 = vmatprep.subr.bf16.mxu0 0
    %2095 = vmatpush1.bf16.msra.mxu0 %v1537
    %2096 = vmatprep.subr.bf16.mxu0 0
    %2097 = vmatpush1.bf16.msra.mxu0 %v1538
    %2098 = vmatprep.subr.bf16.mxu0 0
    %2099 = vmatpush1.bf16.msra.mxu0 %v1539
    %2100 = vmatprep.mubr.bf16.mxu0 %v535
    %2101 = vmatmul.mubr.bf16.gmra.mrb[0].mxu0 %v521
    %v2102 = vpop.f32.mrb[0].mxu0
    %v2103 = vadd.f32 %v2063, %v2102
    %v2104 = vpop.f32.mrb[0].mxu0
    %v2105 = vpop.f32.mrb[0].mxu0
    %v2106 = vpop.f32.mrb[0].mxu0
    %2107 = vdwg.mxu0
    %2108 = vmatprep.subr.bf16.mxu0 0
    %2109 = vmatpush1.bf16.msra.mxu0 %v1540
    %2110 = vmatprep.subr.bf16.mxu0 0
    %2111 = vmatpush1.bf16.msra.mxu0 %v1541
    %2112 = vmatprep.subr.bf16.mxu0 0
    %2113 = vmatpush1.bf16.msra.mxu0 %v1542
    %2114 = vmatprep.subr.bf16.mxu0 0
    %2115 = vmatpush1.bf16.msra.mxu0 %v1543
    %2116 = vmatprep.subr.bf16.mxu0 0
    %2117 = vmatpush1.bf16.msra.mxu0 %v1544
    %2118 = vmatprep.subr.bf16.mxu0 0
    %2119 = vmatpush1.bf16.msra.mxu0 %v1545
    %2120 = vmatprep.subr.bf16.mxu0 0
    %2121 = vmatpush1.bf16.msra.mxu0 %v1546
    %2122 = vmatprep.subr.bf16.mxu0 0
    %2123 = vmatpush1.bf16.msra.mxu0 %v1547
    %2124 = vmatprep.subr.bf16.mxu0 0
    %2125 = vmatpush1.bf16.msra.mxu0 %v1548
    %2126 = vmatprep.subr.bf16.mxu0 0
    %2127 = vmatpush1.bf16.msra.mxu0 %v1549
    %2128 = vmatprep.subr.bf16.mxu0 0
    %2129 = vmatpush1.bf16.msra.mxu0 %v1550
    %2130 = vmatprep.subr.bf16.mxu0 0
    %2131 = vmatpush1.bf16.msra.mxu0 %v1551
    %2132 = vmatprep.subr.bf16.mxu0 0
    %2133 = vmatpush1.bf16.msra.mxu0 %v1552
    %2134 = vmatprep.subr.bf16.mxu0 0
    %2135 = vmatpush1.bf16.msra.mxu0 %v1553
    %2136 = vmatprep.subr.bf16.mxu0 0
    %2137 = vmatpush1.bf16.msra.mxu0 %v1554
    %2138 = vmatprep.subr.bf16.mxu0 0
    %2139 = vmatpush1.bf16.msra.mxu0 %v1555
    %2140 = vmatprep.mubr.bf16.mxu0 %v539
    %2141 = vmatmul.mubr.bf16.gmra.mrb[0].mxu0 %v537
    %v2142 = vpop.f32.mrb[0].mxu0
    %v2143 = vadd.f32 %v2103, %v2142
    %v2144 = vpop.f32.mrb[0].mxu0
    %v2145 = vpop.f32.mrb[0].mxu0
    %v2146 = vpop.f32.mrb[0].mxu0
    %2147 = vdwg.mxu0
    %2148 = vmatprep.subr.bf16.mxu0 0
    %2149 = vmatpush1.bf16.msra.mxu0 %v1556
    %2150 = vmatprep.subr.bf16.mxu0 0
    %2151 = vmatpush1.bf16.msra.mxu0 %v1557
    %2152 = vmatprep.subr.bf16.mxu0 0
    %2153 = vmatpush1.bf16.msra.mxu0 %v1558
    %2154 = vmatprep.subr.bf16.mxu0 0
    %2155 = vmatpush1.bf16.msra.mxu0 %v1559
    %2156 = vmatprep.subr.bf16.mxu0 0
    %2157 = vmatpush1.bf16.msra.mxu0 %v1560
    %2158 = vmatprep.subr.bf16.mxu0 0
    %2159 = vmatpush1.bf16.msra.mxu0 %v1561
    %2160 = vmatprep.subr.bf16.mxu0 0
    %2161 = vmatpush1.bf16.msra.mxu0 %v1562
    %2162 = vmatprep.subr.bf16.mxu0 0
    %2163 = vmatpush1.bf16.msra.mxu0 %v1563
    %2164 = vmatprep.subr.bf16.mxu0 0
    %2165 = vmatpush1.bf16.msra.mxu0 %v1564
    %2166 = vmatprep.subr.bf16.mxu0 0
    %2167 = vmatpush1.bf16.msra.mxu0 %v1565
    %2168 = vmatprep.subr.bf16.mxu0 0
    %2169 = vmatpush1.bf16.msra.mxu0 %v1566
    %2170 = vmatprep.subr.bf16.mxu0 0
    %2171 = vmatpush1.bf16.msra.mxu0 %v1567
    %2172 = vmatprep.subr.bf16.mxu0 0
    %2173 = vmatpush1.bf16.msra.mxu0 %v1568
    %2174 = vmatprep.subr.bf16.mxu0 0
    %2175 = vmatpush1.bf16.msra.mxu0 %v1569
    %2176 = vmatprep.subr.bf16.mxu0 0
    %2177 = vmatpush1.bf16.msra.mxu0 %v1570
    %2178 = vmatprep.subr.bf16.mxu0 0
    %2179 = vmatpush1.bf16.msra.mxu0 %v1571
    %2180 = vmatprep.mubr.bf16.mxu0 %v577
    %2181 = vmatmul.mubr.bf16.gmra.mrb[0].mxu0 %v563
    %v2182 = vpop.f32.mrb[0].mxu0
    %v2183 = vadd.f32 %v2143, %v2182
    %v2184 = vpop.f32.mrb[0].mxu0
    %v2185 = vpop.f32.mrb[0].mxu0
    %v2186 = vpop.f32.mrb[0].mxu0
    %2187 = vdwg.mxu0
    %2188 = vmatprep.subr.bf16.mxu0 0
    %2189 = vmatpush1.bf16.msra.mxu0 %v1572
    %2190 = vmatprep.subr.bf16.mxu0 0
    %2191 = vmatpush1.bf16.msra.mxu0 %v1573
    %2192 = vmatprep.subr.bf16.mxu0 0
    %2193 = vmatpush1.bf16.msra.mxu0 %v1574
    %2194 = vmatprep.subr.bf16.mxu0 0
    %2195 = vmatpush1.bf16.msra.mxu0 %v1575
    %2196 = vmatprep.subr.bf16.mxu0 0
    %2197 = vmatpush1.bf16.msra.mxu0 %v1576
    %2198 = vmatprep.subr.bf16.mxu0 0
    %2199 = vmatpush1.bf16.msra.mxu0 %v1577
    %2200 = vmatprep.subr.bf16.mxu0 0
    %2201 = vmatpush1.bf16.msra.mxu0 %v1578
    %2202 = vmatprep.subr.bf16.mxu0 0
    %2203 = vmatpush1.bf16.msra.mxu0 %v1579
    %2204 = vmatprep.subr.bf16.mxu0 0
    %2205 = vmatpush1.bf16.msra.mxu0 %v1580
    %2206 = vmatprep.subr.bf16.mxu0 0
    %2207 = vmatpush1.bf16.msra.mxu0 %v1581
    %2208 = vmatprep.subr.bf16.mxu0 0
    %2209 = vmatpush1.bf16.msra.mxu0 %v1582
    %2210 = vmatprep.subr.bf16.mxu0 0
    %2211 = vmatpush1.bf16.msra.mxu0 %v1583
    %2212 = vmatprep.subr.bf16.mxu0 0
    %2213 = vmatpush1.bf16.msra.mxu0 %v1584
    %2214 = vmatprep.subr.bf16.mxu0 0
    %2215 = vmatpush1.bf16.msra.mxu0 %v1585
    %2216 = vmatprep.subr.bf16.mxu0 0
    %2217 = vmatpush1.bf16.msra.mxu0 %v1586
    %2218 = vmatprep.subr.bf16.mxu0 0
    %2219 = vmatpush1.bf16.msra.mxu0 %v1587
    %2220 = vmatprep.mubr.bf16.mxu0 %v587
    %2221 = vmatmul.mubr.bf16.gmra.mrb[0].mxu0 %v585
    %v2222 = vpop.f32.mrb[0].mxu0
    %v2223 = vadd.f32 %v2183, %v2222
    %v2224 = vpop.f32.mrb[0].mxu0
    %v2225 = vpop.f32.mrb[0].mxu0
    %v2226 = vpop.f32.mrb[0].mxu0
    %2227 = vdwg.mxu0
    %2228 = vmatprep.subr.bf16.mxu0 0
    %2229 = vmatpush1.bf16.msra.mxu0 %v1588
    %2230 = vmatprep.subr.bf16.mxu0 0
    %2231 = vmatpush1.bf16.msra.mxu0 %v1589
    %2232 = vmatprep.subr.bf16.mxu0 0
    %2233 = vmatpush1.bf16.msra.mxu0 %v1590
    %2234 = vmatprep.subr.bf16.mxu0 0
    %2235 = vmatpush1.bf16.msra.mxu0 %v1591
    %2236 = vmatprep.subr.bf16.mxu0 0
    %2237 = vmatpush1.bf16.msra.mxu0 %v1592
    %2238 = vmatprep.subr.bf16.mxu0 0
    %2239 = vmatpush1.bf16.msra.mxu0 %v1593
    %2240 = vmatprep.subr.bf16.mxu0 0
    %2241 = vmatpush1.bf16.msra.mxu0 %v1594
    %2242 = vmatprep.subr.bf16.mxu0 0
    %2243 = vmatpush1.bf16.msra.mxu0 %v1595
    %2244 = vmatprep.subr.bf16.mxu0 0
    %2245 = vmatpush1.bf16.msra.mxu0 %v1596
    %2246 = vmatprep.subr.bf16.mxu0 0
    %2247 = vmatpush1.bf16.msra.mxu0 %v1597
    %2248 = vmatprep.subr.bf16.mxu0 0
    %2249 = vmatpush1.bf16.msra.mxu0 %v1598
    %2250 = vmatprep.subr.bf16.mxu0 0
    %2251 = vmatpush1.bf16.msra.mxu0 %v1599
    %2252 = vmatprep.subr.bf16.mxu0 0
    %2253 = vmatpush1.bf16.msra.mxu0 %v1600
    %2254 = vmatprep.subr.bf16.mxu0 0
    %2255 = vmatpush1.bf16.msra.mxu0 %v1601
    %2256 = vmatprep.subr.bf16.mxu0 0
    %2257 = vmatpush1.bf16.msra.mxu0 %v1602
    %2258 = vmatprep.subr.bf16.mxu0 0
    %2259 = vmatpush1.bf16.msra.mxu0 %v1603
    %2260 = vmatprep.mubr.bf16.mxu0 %v584
    %2261 = vmatmul.mubr.bf16.gmra.mrb[0].mxu0 %v570
    %v2262 = vpop.f32.mrb[0].mxu0
    %v2263 = vadd.f32 %v2223, %v2262
    %v2264 = vpop.f32.mrb[0].mxu0
    %v2265 = vpop.f32.mrb[0].mxu0
    %v2266 = vpop.f32.mrb[0].mxu0
    %2267 = vdwg.mxu0
    %2268 = vmatprep.subr.bf16.mxu0 0
    %2269 = vmatpush1.bf16.msra.mxu0 %v1604
    %2270 = vmatprep.subr.bf16.mxu0 0
    %2271 = vmatpush1.bf16.msra.mxu0 %v1605
    %2272 = vmatprep.subr.bf16.mxu0 0
    %2273 = vmatpush1.bf16.msra.mxu0 %v1606
    %2274 = vmatprep.subr.bf16.mxu0 0
    %2275 = vmatpush1.bf16.msra.mxu0 %v1607
    %2276 = vmatprep.subr.bf16.mxu0 0
    %2277 = vmatpush1.bf16.msra.mxu0 %v1608
    %2278 = vmatprep.subr.bf16.mxu0 0
    %2279 = vmatpush1.bf16.msra.mxu0 %v1609
    %2280 = vmatprep.subr.bf16.mxu0 0
    %2281 = vmatpush1.bf16.msra.mxu0 %v1610
    %2282 = vmatprep.subr.bf16.mxu0 0
    %2283 = vmatpush1.bf16.msra.mxu0 %v1611
    %2284 = vmatprep.subr.bf16.mxu0 0
    %2285 = vmatpush1.bf16.msra.mxu0 %v1612
    %2286 = vmatprep.subr.bf16.mxu0 0
    %2287 = vmatpush1.bf16.msra.mxu0 %v1613
    %2288 = vmatprep.subr.bf16.mxu0 0
    %2289 = vmatpush1.bf16.msra.mxu0 %v1614
    %2290 = vmatprep.subr.bf16.mxu0 0
    %2291 = vmatpush1.bf16.msra.mxu0 %v1615
    %2292 = vmatprep.subr.bf16.mxu0 0
    %2293 = vmatpush1.bf16.msra.mxu0 %v1616
    %2294 = vmatprep.subr.bf16.mxu0 0
    %2295 = vmatpush1.bf16.msra.mxu0 %v1617
    %2296 = vmatprep.subr.bf16.mxu0 0
    %2297 = vmatpush1.bf16.msra.mxu0 %v1618
    %2298 = vmatprep.subr.bf16.mxu0 0
    %2299 = vmatpush1.bf16.msra.mxu0 %v1619
    %2300 = vmatprep.mubr.bf16.mxu0 %v588
    %2301 = vmatmul.mubr.bf16.gmra.mrb[0].mxu0 %v586
    %v2302 = vpop.f32.mrb[0].mxu0
    %v2303 = vadd.f32 %v2263, %v2302
    %v2304 = vpop.f32.mrb[0].mxu0
    %v2305 = vpop.f32.mrb[0].mxu0
    %v2306 = vpop.f32.mrb[0].mxu0
    %2307 = vdwg.mxu0
    %2308 = vmatprep.subr.bf16.mxu0 0
    %2309 = vmatpush1.bf16.msra.mxu0 %v1620
    %2310 = vmatprep.subr.bf16.mxu0 0
    %2311 = vmatpush1.bf16.msra.mxu0 %v1621
    %2312 = vmatprep.subr.bf16.mxu0 0
    %2313 = vmatpush1.bf16.msra.mxu0 %v1622
    %2314 = vmatprep.subr.bf16.mxu0 0
    %2315 = vmatpush1.bf16.msra.mxu0 %v1623
    %2316 = vmatprep.subr.bf16.mxu0 0
    %2317 = vmatpush1.bf16.msra.mxu0 %v1624
    %2318 = vmatprep.subr.bf16.mxu0 0
    %2319 = vmatpush1.bf16.msra.mxu0 %v1625
    %2320 = vmatprep.subr.bf16.mxu0 0
    %2321 = vmatpush1.bf16.msra.mxu0 %v1626
    %2322 = vmatprep.subr.bf16.mxu0 0
    %2323 = vmatpush1.bf16.msra.mxu0 %v1627
    %2324 = vmatprep.subr.bf16.mxu0 0
    %2325 = vmatpush1.bf16.msra.mxu0 0
    %2326 = vmatprep.subr.bf16.mxu0 0
    %2327 = vmatpush1.bf16.msra.mxu0 0
    %2328 = vmatprep.subr.bf16.mxu0 0
    %2329 = vmatpush1.bf16.msra.mxu0 0
    %2330 = vmatprep.subr.bf16.mxu0 0
    %2331 = vmatpush1.bf16.msra.mxu0 0
    %2332 = vmatprep.subr.bf16.mxu0 0
    %2333 = vmatpush1.bf16.msra.mxu0 0
    %2334 = vmatprep.subr.bf16.mxu0 0
    %2335 = vmatpush1.bf16.msra.mxu0 0
    %2336 = vmatprep.subr.bf16.mxu0 0
    %2337 = vmatpush1.bf16.msra.mxu0 0
    %2338 = vmatprep.subr.bf16.mxu0 0
    %2339 = vmatpush1.bf16.msra.mxu0 0
    %2340 = vmatprep.mubr.bf16.mxu0 0
    %2341 = vmatmul.mubr.bf16.gmra.mrb[0].mxu0 %v602
    %v2342 = vpop.f32.mrb[0].mxu0
    %v2343 = vadd.f32 %v2303, %v2342
    %v2344 = vpop.f32.mrb[0].mxu0
    %v2345 = vpop.f32.mrb[0].mxu0
    %v2346 = vpop.f32.mrb[0].mxu0
    %2347 = vdwg.mxu0
    %v2348 = vld [vmem:[%s2] sm:$0x1]
    %v2349 = vld [vmem:[%s3] sm:$0x1]
    %vm2350 = vcmask 1041408
    %v2351 = vsel %vm2350, %v2343, 0.0
    %v2352 = vrot.slane %v2351, 4
    %v2353 = vadd.f32 %v2351, %v2352
    %v2354 = vrot.slane %v2353, 2
    %v2355 = vadd.f32 %v2353, %v2354
    %v2356 = vrot.slane %v2355, 1
    %v2357 = vadd.f32 %v2355, %v2356
    %v2358 = vrcp.pop 2.0
    %v2359 = vmul.f32 %v2357, %v2358
    %v2360 = vsub.f32 %v2343, %v2359
    %v2361 = vmul.f32 %v2360, %v2360
    %v2362 = vsel %vm2350, %v2361, 0.0
    %v2363 = vrot.slane %v2362, 4
    %v2364 = vadd.f32 %v2362, %v2363
    %v2365 = vrot.slane %v2364, 2
    %v2366 = vadd.f32 %v2364, %v2365
    %v2367 = vrot.slane %v2366, 1
    %v2368 = vadd.f32 %v2366, %v2367
    %v2369 = vmul.f32 %v2368, %v2358
    %v2370 = vadd.f32 %v2369, 1e-05
    %v2371 = vrsqrt.pop %v2370
    %v2372 = vmul.f32 %v2360, %v2371
    %v2374 = vlaneseq
    %v2375 = vshrl.u32 %v2374, 7
    %v2376 = vsub.s32 0, %v2375
    %v2377 = vrot.slane %v2348, %v2376
    %v2379 = vmul.f32 %v2372, %v2377
    %v2381 = vlaneseq
    %v2382 = vshrl.u32 %v2381, 7
    %v2383 = vsub.s32 0, %v2382
    %v2384 = vrot.slane %v2349, %v2383
    %v2386 = vadd.f32 %v2379, %v2384
    %v2387 = vmax.f32 %v2386, 0.0
    %v2388 = vpack.c.bf16 %v2387, %v2387
    %v2389 = vld [vmem:[%s4] sm:$0xf]
    %v2390 = vld [vmem:[%s4 + $0x4] sm:$0xf]
    %v2391 = vld [vmem:[%s4 + $0x8] sm:$0xf]
    %v2392 = vld [vmem:[%s4 + $0xc] sm:$0xf]
    %v2393 = vld [vmem:[%s4 + $0x10] sm:$0xf]
    %v2394 = vld [vmem:[%s4 + $0x14] sm:$0xf]
    %v2395 = vld [vmem:[%s4 + $0x18] sm:$0xf]
    %v2396 = vld [vmem:[%s4 + $0x1c] sm:$0xf]
    %v2397 = vld [vmem:[%s4 + $0x20] sm:$0xf]
    %v2398 = vld [vmem:[%s4 + $0x24] sm:$0xf]
    %v2399 = vld [vmem:[%s4 + $0x28] sm:$0xf]
    %v2400 = vld [vmem:[%s4 + $0x2c] sm:$0xf]
    %v2401 = vld [vmem:[%s4 + $0x30] sm:$0xf]
    %v2402 = vld [vmem:[%s4 + $0x34] sm:$0xf]
    %v2403 = vld [vmem:[%s4 + $0x38] sm:$0xf]
    %v2404 = vld [vmem:[%s4 + $0x3c] sm:$0xf]
    %v2421 = vunpack.c.l.b16 %v2389
    %v2422 = vunpack.c.l.b16 %v2390
    %v2423 = vunpack.c.l.b16 %v2391
    %v2424 = vunpack.c.l.b16 %v2392
    %v2425 = vunpack.c.l.b16 %v2393
    %v2426 = vunpack.c.l.b16 %v2394
    %v2427 = vunpack.c.l.b16 %v2395
    %v2428 = vunpack.c.l.b16 %v2396
    %v2429 = vunpack.c.l.b16 %v2397
    %v2430 = vunpack.c.l.b16 %v2398
    %v2431 = vunpack.c.l.b16 %v2399
    %v2432 = vunpack.c.l.b16 %v2400
    %v2433 = vunpack.c.l.b16 %v2401
    %v2434 = vunpack.c.l.b16 %v2402
    %v2435 = vunpack.c.l.b16 %v2403
    %v2436 = vunpack.c.l.b16 %v2404
    %v2437 = vpack.c.b16 %v2422, %v2421
    %v2438 = vpack.c.b16 %v2424, %v2423
    %v2439 = vpack.c.b16 %v2426, %v2425
    %v2440 = vpack.c.b16 %v2428, %v2427
    %v2441 = vpack.c.b16 %v2430, %v2429
    %v2442 = vpack.c.b16 %v2432, %v2431
    %v2443 = vpack.c.b16 %v2434, %v2433
    %v2444 = vpack.c.b16 %v2436, %v2435
    %2453 = vmatprep.subr.bf16.mxu0 0
    %2454 = vmatpush1.bf16.msra.mxu0 %v2437
    %2455 = vmatprep.subr.bf16.mxu0 0
    %2456 = vmatpush1.bf16.msra.mxu0 %v2438
    %2457 = vmatprep.subr.bf16.mxu0 0
    %2458 = vmatpush1.bf16.msra.mxu0 %v2439
    %2459 = vmatprep.subr.bf16.mxu0 0
    %2460 = vmatpush1.bf16.msra.mxu0 %v2440
    %2461 = vmatprep.subr.bf16.mxu0 0
    %2462 = vmatpush1.bf16.msra.mxu0 %v2441
    %2463 = vmatprep.subr.bf16.mxu0 0
    %2464 = vmatpush1.bf16.msra.mxu0 %v2442
    %2465 = vmatprep.subr.bf16.mxu0 0
    %2466 = vmatpush1.bf16.msra.mxu0 %v2443
    %2467 = vmatprep.subr.bf16.mxu0 0
    %2468 = vmatpush1.bf16.msra.mxu0 %v2444
    %2469 = vmatprep.subr.bf16.mxu0 0
    %2470 = vmatpush1.bf16.msra.mxu0 0
    %2471 = vmatprep.subr.bf16.mxu0 0
    %2472 = vmatpush1.bf16.msra.mxu0 0
    %2473 = vmatprep.subr.bf16.mxu0 0
    %2474 = vmatpush1.bf16.msra.mxu0 0
    %2475 = vmatprep.subr.bf16.mxu0 0
    %2476 = vmatpush1.bf16.msra.mxu0 0
    %2477 = vmatprep.subr.bf16.mxu0 0
    %2478 = vmatpush1.bf16.msra.mxu0 0
    %2479 = vmatprep.subr.bf16.mxu0 0
    %2480 = vmatpush1.bf16.msra.mxu0 0
    %2481 = vmatprep.subr.bf16.mxu0 0
    %2482 = vmatpush1.bf16.msra.mxu0 0
    %2483 = vmatprep.subr.bf16.mxu0 0
    %2484 = vmatpush1.bf16.msra.mxu0 0
    %2485 = vmatprep.mubr.bf16.mxu0 0
    %2486 = vmatmul.mubr.bf16.gmra.mrb[0].mxu0 %v2388
    %v2487 = vpop.f32.mrb[0].mxu0
    %v2488 = vadd.f32 0.0, %v2487
    %v2489 = vpop.f32.mrb[0].mxu0
    %v2490 = vpop.f32.mrb[0].mxu0
    %v2491 = vpop.f32.mrb[0].mxu0
    %2492 = vdwg.mxu0
    %v2493 = vld [vmem:[%s5] sm:$0x1]
    %v2494 = vld [vmem:[%s6] sm:$0x1]
    %v2495 = vsel %vm2350, %v2488, 0.0
    %v2496 = vrot.slane %v2495, 4
    %v2497 = vadd.f32 %v2495, %v2496
    %v2498 = vrot.slane %v2497, 2
    %v2499 = vadd.f32 %v2497, %v2498
    %v2500 = vrot.slane %v2499, 1
    %v2501 = vadd.f32 %v2499, %v2500
    %v2502 = vmul.f32 %v2501, %v2358
    %v2503 = vsub.f32 %v2488, %v2502
    %v2504 = vmul.f32 %v2503, %v2503
    %v2505 = vsel %vm2350, %v2504, 0.0
    %v2506 = vrot.slane %v2505, 4
    %v2507 = vadd.f32 %v2505, %v2506
    %v2508 = vrot.slane %v2507, 2
    %v2509 = vadd.f32 %v2507, %v2508
    %v2510 = vrot.slane %v2509, 1
    %v2511 = vadd.f32 %v2509, %v2510
    %v2512 = vmul.f32 %v2511, %v2358
    %v2513 = vadd.f32 %v2512, 1e-05
    %v2514 = vrsqrt.pop %v2513
    %v2515 = vmul.f32 %v2503, %v2514
    %v2517 = vlaneseq
    %v2518 = vshrl.u32 %v2517, 7
    %v2519 = vsub.s32 0, %v2518
    %v2520 = vrot.slane %v2493, %v2519
    %v2522 = vmul.f32 %v2515, %v2520
    %v2524 = vlaneseq
    %v2525 = vshrl.u32 %v2524, 7
    %v2526 = vsub.s32 0, %v2525
    %v2527 = vrot.slane %v2494, %v2526
    %v2529 = vadd.f32 %v2522, %v2527
    %v2530 = vmax.f32 %v2529, 0.0
    %v2531 = vpack.c.bf16 %v2530, %v2530
    %v2532 = vld [vmem:[%s7] sm:$0xf]
    %v2533 = vld [vmem:[%s7 + $0x4] sm:$0xf]
    %v2534 = vld [vmem:[%s7 + $0x8] sm:$0xf]
    %v2535 = vld [vmem:[%s7 + $0xc] sm:$0xf]
    %v2536 = vld [vmem:[%s7 + $0x10] sm:$0xf]
    %v2537 = vld [vmem:[%s7 + $0x14] sm:$0xf]
    %v2538 = vld [vmem:[%s7 + $0x18] sm:$0xf]
    %v2539 = vld [vmem:[%s7 + $0x1c] sm:$0xf]
    %v2540 = vld [vmem:[%s7 + $0x20] sm:$0xf]
    %v2541 = vld [vmem:[%s7 + $0x24] sm:$0xf]
    %v2542 = vld [vmem:[%s7 + $0x28] sm:$0xf]
    %v2543 = vld [vmem:[%s7 + $0x2c] sm:$0xf]
    %v2544 = vld [vmem:[%s7 + $0x30] sm:$0xf]
    %v2545 = vld [vmem:[%s7 + $0x34] sm:$0xf]
    %v2546 = vld [vmem:[%s7 + $0x38] sm:$0xf]
    %v2547 = vld [vmem:[%s7 + $0x3c] sm:$0xf]
    %v2548 = vld [vmem:[%s8] sm:$0x1]
    %v2550 = vlaneseq
    %v2551 = vshrl.u32 %v2550, 7
    %v2552 = vsub.s32 0, %v2551
    %v2553 = vrot.slane %v2548, %v2552
    %v2571 = vunpack.c.l.b16 %v2532
    %v2572 = vunpack.c.l.b16 %v2533
    %v2573 = vunpack.c.l.b16 %v2534
    %v2574 = vunpack.c.l.b16 %v2535
    %v2575 = vunpack.c.l.b16 %v2536
    %v2576 = vunpack.c.l.b16 %v2537
    %v2577 = vunpack.c.l.b16 %v2538
    %v2578 = vunpack.c.l.b16 %v2539
    %v2579 = vunpack.c.l.b16 %v2540
    %v2580 = vunpack.c.l.b16 %v2541
    %v2581 = vunpack.c.l.b16 %v2542
    %v2582 = vunpack.c.l.b16 %v2543
    %v2583 = vunpack.c.l.b16 %v2544
    %v2584 = vunpack.c.l.b16 %v2545
    %v2585 = vunpack.c.l.b16 %v2546
    %v2586 = vunpack.c.l.b16 %v2547
    %v2587 = vpack.c.b16 %v2572, %v2571
    %v2588 = vpack.c.b16 %v2574, %v2573
    %v2589 = vpack.c.b16 %v2576, %v2575
    %v2590 = vpack.c.b16 %v2578, %v2577
    %v2591 = vpack.c.b16 %v2580, %v2579
    %v2592 = vpack.c.b16 %v2582, %v2581
    %v2593 = vpack.c.b16 %v2584, %v2583
    %v2594 = vpack.c.b16 %v2586, %v2585
    %2603 = vmatprep.subr.bf16.mxu0 0
    %2604 = vmatpush1.bf16.msra.mxu0 %v2587
    %2605 = vmatprep.subr.bf16.mxu0 0
    %2606 = vmatpush1.bf16.msra.mxu0 %v2588
    %2607 = vmatprep.subr.bf16.mxu0 0
    %2608 = vmatpush1.bf16.msra.mxu0 %v2589
    %2609 = vmatprep.subr.bf16.mxu0 0
    %2610 = vmatpush1.bf16.msra.mxu0 %v2590
    %2611 = vmatprep.subr.bf16.mxu0 0
    %2612 = vmatpush1.bf16.msra.mxu0 %v2591
    %2613 = vmatprep.subr.bf16.mxu0 0
    %2614 = vmatpush1.bf16.msra.mxu0 %v2592
    %2615 = vmatprep.subr.bf16.mxu0 0
    %2616 = vmatpush1.bf16.msra.mxu0 %v2593
    %2617 = vmatprep.subr.bf16.mxu0 0
    %2618 = vmatpush1.bf16.msra.mxu0 %v2594
    %2619 = vmatprep.subr.bf16.mxu0 0
    %2620 = vmatpush1.bf16.msra.mxu0 0
    %2621 = vmatprep.subr.bf16.mxu0 0
    %2622 = vmatpush1.bf16.msra.mxu0 0
    %2623 = vmatprep.subr.bf16.mxu0 0
    %2624 = vmatpush1.bf16.msra.mxu0 0
    %2625 = vmatprep.subr.bf16.mxu0 0
    %2626 = vmatpush1.bf16.msra.mxu0 0
    %2627 = vmatprep.subr.bf16.mxu0 0
    %2628 = vmatpush1.bf16.msra.mxu0 0
    %2629 = vmatprep.subr.bf16.mxu0 0
    %2630 = vmatpush1.bf16.msra.mxu0 0
    %2631 = vmatprep.subr.bf16.mxu0 0
    %2632 = vmatpush1.bf16.msra.mxu0 0
    %2633 = vmatprep.subr.bf16.mxu0 0
    %2634 = vmatpush1.bf16.msra.mxu0 0
    %2635 = vmatprep.mubr.bf16.mxu0 0
    %2636 = vmatmul.mubr.bf16.gmra.mrb[0].mxu0 %v2531
    %v2637 = vpop.f32.mrb[0].mxu0
    %v2638 = vadd.f32 %v2553, %v2637
    %v2639 = vpop.f32.mrb[0].mxu0
    %v2640 = vpop.f32.mrb[0].mxu0
    %v2641 = vpop.f32.mrb[0].mxu0
    %2642 = vdwg.mxu0
    %v2643 = vsel %vm2350, %v2638, -inf
    %2644 = vmax.xlane.f32.xlu0 %v2643
    %v2645 = vpop.xlane.xlu0 %2644
    %v2646 = vsub.f32 %v2638, %v2645
    %v2647 = vmul.f32 %v2646, 1.442695
    %v2648 = vpow.pop %v2647
    %v2649 = vsel %vm2350, %v2648, 0.0
    %2650 = vadd.xlane.f32.xlu0 %v2649
    %v2651 = vpop.xlane.xlu0 %2650
    %v2652 = vlog2.pop %v2651
    %v2653 = vmul.f32 %v2652, 0.6931472
    %v2654 = vsub.f32 %v2646, %v2653
    %2655 = vst [vmem:[#allocation2] sm:$0x3] %v2654
    // Predicated region
    $region38: #{lenet5_bn_forward.9} parent=1 // pred_check
      _
    $region39: #{lenet5_bn_forward.9} parent=1 // pred_check_branch
      %2657 = sbr.rel (0) target = $region41
    $region40: #{lenet5_bn_forward.9} parent=1 // pred_region
      %s2659 = ssub.s32 32, 32
      %2660 = vsyncadd [#allocation3], %s2659
      %s2662 = sshll.u32 [#allocation2], 4
      %s2663 = int_to_ptr.vmem [resolvable:$true] %s2662
      %2665 = dma.vmem_to_hbm [thread:$0]  %s2663, 32, %s9, [#allocation3]
    $region41: #{lenet5_bn_forward.9} parent=1 // pred_fallthru
      _
    // Predicated region
    $region42: #{lenet5_bn_forward.9} parent=1 // pred_check
      _
    $region43: #{lenet5_bn_forward.9} parent=1 // pred_check_branch
      %2667 = sbr.rel (0) target = $region45
    $region44: #{lenet5_bn_forward.9} parent=1 // pred_region
      %2668 = dma.done [#allocation3], 32
    $region45: #{lenet5_bn_forward.9} parent=1 // pred_fallthru
      _
    %2669 = vsyncpa [#allocation3], 1

</llo_original>
